<compile_context>
chip_gen: v6e
topology: v6e:2x2x1
jax: 0.10.0
libtpu: 0.0.40
codegen_flags: <defaults>
</compile_context>

<pallas_src>
import math

import jax
import jax.numpy as jnp
from jax.experimental import pallas as pl
from jax.experimental.pallas import tpu as pltpu

# ----------------------------- model hyperparameters -----------------------------
OUTPUT_DIM = 16      # vocab size
EMBED_DIM  = 32
NUM_HEADS  = 4
HIDDEN_DIM = 64      # dim_feedforward
NUM_LAYERS = 2
MAX_LEN    = 8
BATCH      = 2

HEAD_DIM  = EMBED_DIM // NUM_HEADS
SOS_TOKEN = 0
EOS_TOKEN = 1
LN_EPS    = 1e-5
VPAD      = 128      # fc_out columns padded to a full lane tile (lane-dense stores)


# --------------------------- packed bias-slab layout ------------------------------
def _offsets(sizes):
    off, table = 0, {}
    for name, width in sizes:
        table[name] = (off, off + width)
        off += width
    return table, off

_B_OFF, B_SLAB = _offsets([('bqkv', 3 * EMBED_DIM), ('bo', EMBED_DIM), ('bca', EMBED_DIM),
                           ('b1', HIDDEN_DIM), ('b2', EMBED_DIM),
                           ('ln1g', EMBED_DIM), ('ln1b', EMBED_DIM),
                           ('ln2g', EMBED_DIM), ('ln2b', EMBED_DIM),
                           ('ln3g', EMBED_DIM), ('ln3b', EMBED_DIM)])


# ------------------------------- the Pallas kernel --------------------------------
def _decode_kernel(emb_ref, pe_ref, mem_ref, wq_ref, wk_ref, wv_ref, wo_ref,
                   w1_ref, w2_ref, wca_ref, b_ref, wf_ref, bf_ref, out_ref):
    """Full greedy decode (all MAX_LEN steps) for the whole batch, in one program.

    emb_ref : [V, E]           embedding table
    pe_ref  : [B, 1, E]        pe[:batch] rows (reference's batch-index quirk)
    mem_ref : [B, 1, E]        encoder latent
    wq/wk/wv_ref : [L, H, E, D]   head-split self-attn projections (scale folded in Wq)
    wo_ref  : [L, H, D, E]     head-split output projection
    w1_ref  : [L, E, HID]      FFN W1,   w2_ref : [L, HID, E]  FFN W2
    wca_ref : [L, E, E]        folded single-key cross-attention map (f32)
    b_ref   : [L, 1, B_SLAB]   packed biases + LayerNorm params
    wf_ref  : [E, VPAD]        fc_out weight, zero-padded to 128 lanes
    bf_ref  : [1, VPAD]        fc_out bias,   zero-padded
    out_ref : [B, MAX_LEN, VPAD]  per-step logits at the last real position
    """
    f32 = jnp.float32
    B = mem_ref.shape[0]
    S, E, H, D = MAX_LEN, EMBED_DIM, NUM_HEADS, HEAD_DIM

    emb = emb_ref[...]                      # [V, E]
    pe  = pe_ref[...]                       # [B, 1, E]
    mem = mem_ref[...]                      # [B, 1, E]
    wf  = wf_ref[...]                       # [E, VPAD]
    bf  = bf_ref[...]                       # [1, VPAD]

    # ------------- per-layer constants (prologue, outside the step loop) -------------
    layers = []
    for l in range(NUM_LAYERS):
        bl = b_ref[l]                                            # [1, B_SLAB]

        def bvec(name, _bl=bl):
            lo, hi = _B_OFF[name]
            return _bl[:, lo:hi]                                 # [1, width]; no broadcast_to

        bqkv = bvec('bqkv')                                      # [1, 3E]; q-part pre-scaled
        # Single-key cross-attention folds exactly: memory expanded to step+1 identical
        # keys/values -> uniform attention weights -> output = mem@(WvWo) + (bvWo + bo).
        ca = jnp.einsum('boe,ef->bof', mem, wca_ref[l],
                        preferred_element_type=f32) + bvec('bca')            # [B, 1, E]
        layers.append(dict(
            bq=[bqkv[:, h * D:(h + 1) * D] for h in range(H)],
            bk=[bqkv[:, E + h * D:E + (h + 1) * D] for h in range(H)],
            bv=[bqkv[:, 2 * E + h * D:2 * E + (h + 1) * D] for h in range(H)],
            bo=bvec('bo'), b1=bvec('b1'), b2=bvec('b2'),
            ln1g=bvec('ln1g'), ln1b=bvec('ln1b'),
            ln2g=bvec('ln2g'), ln2b=bvec('ln2b'),
            ln3g=bvec('ln3g'), ln3b=bvec('ln3b'),
            ca=ca,
        ))

    def layernorm(v, g, beta):
        mu = jnp.mean(v, axis=-1, keepdims=True)
        var = jnp.mean((v - mu) ** 2, axis=-1, keepdims=True)
        return (v - mu) * jax.lax.rsqrt(var + LN_EPS) * g + beta

    def self_attn(xq, xkv, l, ly, mask_bias):
        """Multi-head self-attention.  Heads are host-split weights, so there is no
        in-kernel lane slicing / concatenation of activations.  xq:[B,Q,E] xkv:[B,S,E]."""
        out = None
        for h in range(H):
            q = jnp.einsum('bqe,ed->bqd', xq, wq_ref[l, h],
                           preferred_element_type=f32) + ly['bq'][h]     # scale folded
            k = jnp.einsum('bke,ed->bkd', xkv, wk_ref[l, h],
                           preferred_element_type=f32) + ly['bk'][h]
            v = jnp.einsum('bke,ed->bkd', xkv, wv_ref[l, h],
                           preferred_element_type=f32) + ly['bv'][h]
            s = jnp.einsum('bqd,bkd->bqk', q, k,
                           preferred_element_type=f32) + mask_bias        # [B,Q,S]
            s = s - jnp.max(s, axis=-1, keepdims=True)
            p = jnp.exp(s)
            p = p * pl.reciprocal(jnp.sum(p, axis=-1, keepdims=True))     # exact recip
            ctx = jnp.einsum('bqk,bkd->bqd', p, v, preferred_element_type=f32)
            o = jnp.einsum('bqd,de->bqe', ctx, wo_ref[l, h],
                           preferred_element_type=f32)
            out = o if out is None else out + o
        return out + ly['bo']

    def decoder_layer(xq, xkv, l, ly, mask_bias):
        x1 = layernorm(xq + self_attn(xq, xkv, l, ly, mask_bias),
                       ly['ln1g'], ly['ln1b'])
        x2 = layernorm(x1 + ly['ca'], ly['ln2g'], ly['ln2b'])
        h1 = jnp.maximum(jnp.einsum('bqe,eh->bqh', x2, w1_ref[l],
                                    preferred_element_type=f32) + ly['b1'], 0.0)
        ff = jnp.einsum('bqh,he->bqe', h1, w2_ref[l],
                        preferred_element_type=f32) + ly['b2']
        return layernorm(x2 + ff, ly['ln3g'], ly['ln3b'])

    kpos = jax.lax.broadcasted_iota(jnp.int32, (1, 1, S), 2)        # key positions
    qpos = jax.lax.broadcasted_iota(jnp.int32, (1, S, 1), 1)        # query positions
    vcol = jax.lax.broadcasted_iota(jnp.int32, (B, 1, VPAD), 2)     # vocab lanes

    sos_row = emb[SOS_TOKEN:SOS_TOKEN + 1, :] + pe                  # [B, 1, E]
    x0 = jnp.where(qpos == 0, sos_row, 0.0).astype(f32)             # [B, S, E]
    logits0 = jnp.zeros((B, S, VPAD), f32)

    def step_body(step, carry):
        x_seq, logit_seq = carry
        # additive key-padding bias: only positions 0..step exist at this step
        mask_bias = jnp.where(kpos <= step, 0.0, -1e9).astype(f32)           # [1,1,S]

        x = x_seq
        for l in range(NUM_LAYERS - 1):        # full-sequence layers (feed next K/V)
            x = decoder_layer(x, x, l, layers[l], mask_bias)

        # final layer: only the row at position `step` feeds fc_out -> single query row
        row = (qpos == step).astype(f32)                                      # [1,S,1]
        x_q = jnp.sum(x * row, axis=1, keepdims=True)                         # [B,1,E]
        lst = NUM_LAYERS - 1
        y = decoder_layer(x_q, x, lst, layers[lst], mask_bias)                # [B,1,E]

        logits = jnp.einsum('bqe,ev->bqv', y, wf,
                            preferred_element_type=f32) + bf                  # [B,1,VPAD]
        logit_seq = jnp.where(qpos == step, logits, logit_seq)                # [B,S,VPAD]

        # greedy argmax over the real vocab (first-occurrence tie-break), then embed the
        # chosen token via a one-hot matmul and append it as row step+1.
        lm = jnp.where(vcol < OUTPUT_DIM, logits, -1e30)
        mx = jnp.max(lm, axis=-1, keepdims=True)
        tok = jnp.min(jnp.where(lm >= mx, vcol, VPAD), axis=-1, keepdims=True)  # [B,1,1]
        onehot = (jax.lax.broadcasted_iota(jnp.int32, (B, 1, OUTPUT_DIM), 2)
                  == tok).astype(f32)                                           # [B,1,V]
        new_emb = jnp.einsum('bqv,ve->bqe', onehot, emb,
                             preferred_element_type=f32) + pe                   # [B,1,E]
        # `qpos == step+1` selects nothing on the last step, so no bounds guard is needed
        x_seq = jnp.where(qpos == step + 1, new_emb, x_seq)
        return x_seq, logit_seq

    _, logit_seq = jax.lax.fori_loop(0, S, step_body, (x0, logits0))
    out_ref[...] = logit_seq


# ------------------------------ pallas_call wrapper --------------------------------
def _full_spec(shape):
    nd = len(shape)
    return pl.BlockSpec(tuple(shape), lambda i, _n=nd: (0,) * _n)


def build_decode_fn():
    L, E, H, D, HD = NUM_LAYERS, EMBED_DIM, NUM_HEADS, HEAD_DIM, HIDDEN_DIM
    in_specs = [
        _full_spec((OUTPUT_DIM, E)),       # embedding table
        _full_spec((BATCH, 1, E)),         # pe[:batch]  (reference's batch-index quirk)
        _full_spec((BATCH, 1, E)),         # memory
        _full_spec((L, H, E, D)),          # Wq (head-split, 1/sqrt(D) folded in)
        _full_spec((L, H, E, D)),          # Wk
        _full_spec((L, H, E, D)),          # Wv
        _full_spec((L, H, D, E)),          # Wo
        _full_spec((L, E, HD)),            # FFN W1
        _full_spec((L, HD, E)),            # FFN W2
        _full_spec((L, E, E)),             # folded cross-attention map (f32)
        _full_spec((L, 1, B_SLAB)),        # packed biases + LayerNorm params
        _full_spec((E, VPAD)),             # fc_out weight (zero-padded to 128 lanes)
        _full_spec((1, VPAD)),             # fc_out bias
    ]
    return pl.pallas_call(
        _decode_kernel,
        out_shape=jax.ShapeDtypeStruct((BATCH, MAX_LEN, VPAD), jnp.float32),
        grid=(1,),                         # whole batch in one program (single-TC chips)
        in_specs=in_specs,
        out_specs=pl.BlockSpec((BATCH, MAX_LEN, VPAD), lambda i: (0, 0, 0)),
        compiler_params=pltpu.CompilerParams(dimension_semantics=("arbitrary",)),
    )


# ------------------------------ parameter construction -----------------------------
def init_params(key):
    keys = iter(jax.random.split(key, 64))

    def w(shape, fan_in):
        return (jax.random.normal(next(keys), shape, dtype=jnp.float32)
                / math.sqrt(fan_in))

    L, E, H, V = NUM_LAYERS, EMBED_DIM, HIDDEN_DIM, OUTPUT_DIM
    p = {}
    p['embedding'] = w((V, E), 1.0)                 # nn.Embedding(output_dim, embed_dim)
    for pfx in ('sa', 'ca'):
        for nm in ('Wq', 'Wk', 'Wv', 'Wo'):
            p[f'{pfx}{nm}'] = w((L, E, E), E)
        for nm in ('bq', 'bk', 'bv', 'bo'):
            p[f'{pfx}{nm}'] = jnp.zeros((L, E), jnp.float32)
    for nm in ('ln1', 'ln2', 'ln3'):
        p[f'{nm}g'] = jnp.ones((L, E), jnp.float32)
        p[f'{nm}b'] = jnp.zeros((L, E), jnp.float32)
    p['W1'] = w((L, E, H), E)
    p['b1'] = jnp.zeros((L, H), jnp.float32)
    p['W2'] = w((L, H, E), H)
    p['b2'] = jnp.zeros((L, E), jnp.float32)
    p['Wf'] = w((E, V), E)                          # fc_out
    p['bf'] = jnp.zeros((V,), jnp.float32)
    return p


def pack_params(p):
    """Split self-attention heads on the host, fold the softmax scale and the single-key
    cross-attention, and pack all small biases / LayerNorm params into one slab."""
    L, E, H, D, V = NUM_LAYERS, EMBED_DIM, NUM_HEADS, HEAD_DIM, OUTPUT_DIM
    scale = 1.0 / math.sqrt(D)

    def split_cols(wmat):                            # [L,E,E] -> [L,H,E,D]
        return jnp.transpose(wmat.reshape(L, E, H, D), (0, 2, 1, 3))

    wq = split_cols(p['saWq'] * scale)               # fold 1/sqrt(D) into Wq
    wk = split_cols(p['saWk'])
    wv = split_cols(p['saWv'])
    wo = p['saWo'].reshape(L, H, D, E)               # rows split per head

    # single-key cross-attention folds to one linear map of memory (uniform weights
    # over identical keys): out = mem @ (Wv Wo) + (bv Wo + bo).  Kept in f32.
    wca = jnp.einsum('lef,lfg->leg', p['caWv'], p['caWo'])               # [L,E,E]
    bca = jnp.einsum('lf,lfg->lg', p['cabv'], p['caWo']) + p['cabo']     # [L,E]

    bqkv = jnp.concatenate([p['sabq'] * scale, p['sabk'], p['sabv']], axis=-1)  # [L,3E]
    bslab = jnp.concatenate([bqkv, p['sabo'], bca, p['b1'], p['b2'],
                             p['ln1g'], p['ln1b'], p['ln2g'], p['ln2b'],
                             p['ln3g'], p['ln3b']], axis=-1)[:, None, :]  # [L,1,B_SLAB]

    wf = jnp.zeros((E, VPAD), jnp.float32).at[:, :V].set(p['Wf'])
    bf = jnp.zeros((1, VPAD), jnp.float32).at[0, :V].set(p['bf'])
    return dict(emb=p['embedding'], wq=wq, wk=wk, wv=wv, wo=wo,
                w1=p['W1'], w2=p['W2'], wca=wca, bslab=bslab, wf=wf, bf=bf)


def make_positional_encoding(embed_dim, max_len):
    position = jnp.arange(max_len, dtype=jnp.float32)[:, None]
    div_term = jnp.exp(jnp.arange(0, embed_dim, 2, dtype=jnp.float32)
                       * (-math.log(10000.0) / embed_dim))
    pe = jnp.zeros((max_len, embed_dim), jnp.float32)
    pe = pe.at[:, 0::2].set(jnp.sin(position * div_term))
    pe = pe.at[:, 1::2].set(jnp.cos(position * div_term))
    return pe[:, None, :]                            # [max_len, 1, E]


# ------------------------------- greedy forward pass --------------------------------
_decode_call = build_decode_fn()


@jax.jit
def _greedy_decode(memory, emb, wq, wk, wv, wo, w1, w2, wca, bslab, wf, bf):
    pe = make_positional_encoding(EMBED_DIM, MAX_LEN)[:memory.shape[0]]   # [B,1,E]
    mem3 = memory[:, None, :].astype(jnp.float32)                         # [B,1,E]
    logits_pad = _decode_call(emb, pe, mem3, wq, wk, wv, wo,
                              w1, w2, wca, bslab, wf, bf)
    logits = logits_pad[:, :, :OUTPUT_DIM]                                # [B,S,V]
    tokens = jnp.argmax(logits, axis=-1).astype(jnp.int32)                # [B,S]
    return tokens, logits


def pooled_transformer_decoder_forward(packed, memory, target_seq=None,
                                       max_len=None, teacher_forcing_ratio=0.5):
    """memory: [B, E] encoder latent.  Returns (generated_tokens, per-step logits)."""
    del teacher_forcing_ratio
    if target_seq is not None:
        # TODO(synk): teacher forcing (host randomness + target feed) is not folded into
        #             the fused on-device greedy decode.
        raise NotImplementedError("teacher forcing not supported in the fused kernel")
    if memory.shape != (BATCH, EMBED_DIM):
        raise ValueError(f"expected memory shape {(BATCH, EMBED_DIM)}, got {memory.shape}")
    req_len = int(min(max_len or MAX_LEN, MAX_LEN))

    tokens, logits = _greedy_decode(memory, packed['emb'], packed['wq'], packed['wk'],
                                    packed['wv'], packed['wo'], packed['w1'],
                                    packed['w2'], packed['wca'], packed['bslab'],
                                    packed['wf'], packed['bf'])
    # reference early-stop: the loop breaks after the first step where every sequence
    # emits EOS; earlier steps never depend on later ones, so truncation is exact.
    tok_host = jax.device_get(tokens[:, :req_len])
    all_eos = (tok_host == EOS_TOKEN).all(axis=0)
    n_steps = int(all_eos.argmax()) + 1 if bool(all_eos.any()) else req_len
    return tokens[:, :n_steps], logits[:, :n_steps, :]


# -------------------------------------- main ----------------------------------------
if __name__ == "__main__":
    key = jax.random.PRNGKey(0)
    k_params, k_mem = jax.random.split(key)
    params = init_params(k_params)
    packed = pack_params(params)

    memory = jax.random.normal(k_mem, (BATCH, EMBED_DIM), dtype=jnp.float32)

    tokens, logits = pooled_transformer_decoder_forward(packed, memory)
    tokens = jax.block_until_ready(tokens)
    logits = jax.block_until_ready(logits)

    assert tokens.shape[0] == BATCH and 1 <= tokens.shape[1] <= MAX_LEN
    assert logits.shape == (BATCH, tokens.shape[1], OUTPUT_DIM)
    assert bool(jnp.all(jnp.isfinite(logits)))
    print("KERNEL_OK")
</pallas_src>

<mosaic_0001>
module attributes {stable_mosaic.version = 11 : i64} {
  func.func @_decode_kernel(%arg0: i32, %arg1: memref<16x32xf32, #tpu.memory_space<vmem>>, %arg2: memref<2x1x32xf32, #tpu.memory_space<vmem>>, %arg3: memref<2x1x32xf32, #tpu.memory_space<vmem>>, %arg4: memref<2x4x32x8xf32, #tpu.memory_space<vmem>>, %arg5: memref<2x4x32x8xf32, #tpu.memory_space<vmem>>, %arg6: memref<2x4x32x8xf32, #tpu.memory_space<vmem>>, %arg7: memref<2x4x8x32xf32, #tpu.memory_space<vmem>>, %arg8: memref<2x32x64xf32, #tpu.memory_space<vmem>>, %arg9: memref<2x64x32xf32, #tpu.memory_space<vmem>>, %arg10: memref<2x32x32xf32, #tpu.memory_space<vmem>>, %arg11: memref<2x1x448xf32, #tpu.memory_space<vmem>>, %arg12: memref<32x128xf32, #tpu.memory_space<vmem>>, %arg13: memref<1x128xf32, #tpu.memory_space<vmem>>, %arg14: memref<2x8x128xf32, #tpu.memory_space<vmem>>) attributes {dimension_semantics = [#tpu.dimension_semantics<arbitrary>], iteration_bounds = array<i64: 1>, scalar_prefetch = 0 : i64, scratch_operands = 0 : i64, tpu.core_type = #tpu.core_type<tc>, window_params = [{pipeline_mode = #tpu.pipeline_mode<synchronous>, transform_indices = @transform_0, window_bounds = array<i64: 16, 32>}, {pipeline_mode = #tpu.pipeline_mode<synchronous>, transform_indices = @transform_1, window_bounds = array<i64: 2, 1, 32>}, {pipeline_mode = #tpu.pipeline_mode<synchronous>, transform_indices = @transform_2, window_bounds = array<i64: 2, 1, 32>}, {pipeline_mode = #tpu.pipeline_mode<synchronous>, transform_indices = @transform_3, window_bounds = array<i64: 2, 4, 32, 8>}, {pipeline_mode = #tpu.pipeline_mode<synchronous>, transform_indices = @transform_4, window_bounds = array<i64: 2, 4, 32, 8>}, {pipeline_mode = #tpu.pipeline_mode<synchronous>, transform_indices = @transform_5, window_bounds = array<i64: 2, 4, 32, 8>}, {pipeline_mode = #tpu.pipeline_mode<synchronous>, transform_indices = @transform_6, window_bounds = array<i64: 2, 4, 8, 32>}, {pipeline_mode = #tpu.pipeline_mode<synchronous>, transform_indices = @transform_7, window_bounds = array<i64: 2, 32, 64>}, {pipeline_mode = #tpu.pipeline_mode<synchronous>, transform_indices = @transform_8, window_bounds = array<i64: 2, 64, 32>}, {pipeline_mode = #tpu.pipeline_mode<synchronous>, transform_indices = @transform_9, window_bounds = array<i64: 2, 32, 32>}, {pipeline_mode = #tpu.pipeline_mode<synchronous>, transform_indices = @transform_10, window_bounds = array<i64: 2, 1, 448>}, {pipeline_mode = #tpu.pipeline_mode<synchronous>, transform_indices = @transform_11, window_bounds = array<i64: 32, 128>}, {pipeline_mode = #tpu.pipeline_mode<synchronous>, transform_indices = @transform_12, window_bounds = array<i64: 1, 128>}, {pipeline_mode = #tpu.pipeline_mode<synchronous>, transform_indices = @transform_13, window_bounds = array<i64: 2, 8, 128>}]} {
    %c0 = arith.constant 0 : index
    %c0_0 = arith.constant 0 : index
    %0 = vector.load %arg1[%c0, %c0_0] : memref<16x32xf32, #tpu.memory_space<vmem>>, vector<16x32xf32>
    %c0_1 = arith.constant 0 : index
    %c0_2 = arith.constant 0 : index
    %c0_3 = arith.constant 0 : index
    %1 = vector.load %arg2[%c0_1, %c0_2, %c0_3] : memref<2x1x32xf32, #tpu.memory_space<vmem>>, vector<2x1x32xf32>
    %c0_4 = arith.constant 0 : index
    %c0_5 = arith.constant 0 : index
    %c0_6 = arith.constant 0 : index
    %2 = vector.load %arg3[%c0_4, %c0_5, %c0_6] : memref<2x1x32xf32, #tpu.memory_space<vmem>>, vector<2x1x32xf32>
    %c0_7 = arith.constant 0 : index
    %c0_8 = arith.constant 0 : index
    %3 = vector.load %arg12[%c0_7, %c0_8] : memref<32x128xf32, #tpu.memory_space<vmem>>, vector<32x128xf32>
    %c0_9 = arith.constant 0 : index
    %c0_10 = arith.constant 0 : index
    %4 = vector.load %arg13[%c0_9, %c0_10] : memref<1x128xf32, #tpu.memory_space<vmem>>, vector<1x128xf32>
    %c0_11 = arith.constant 0 : index
    %c0_12 = arith.constant 0 : index
    %c0_13 = arith.constant 0 : index
    %5 = vector.load %arg11[%c0_11, %c0_12, %c0_13] : memref<2x1x448xf32, #tpu.memory_space<vmem>>, vector<1x1x448xf32>
    %6 = vector.shape_cast %5 : vector<1x1x448xf32> to vector<1x448xf32>
    %7 = vector.extract_strided_slice %6 {offsets = [0, 0], sizes = [1, 96], strides = [1, 1]} : vector<1x448xf32> to vector<1x96xf32>
    %c0_14 = arith.constant 0 : index
    %c0_15 = arith.constant 0 : index
    %c0_16 = arith.constant 0 : index
    %8 = vector.load %arg10[%c0_14, %c0_15, %c0_16] : memref<2x32x32xf32, #tpu.memory_space<vmem>>, vector<1x32x32xf32>
    %9 = vector.shape_cast %8 : vector<1x32x32xf32> to vector<32x32xf32>
    "tpu.trace_start"() <{level = 10 : i32, message = "boe,ef->bof"}> : () -> ()
    %cst = arith.constant dense<0.000000e+00> : vector<2x1x32xf32>
    %10 = tpu.matmul %2, %9, %cst {dimension_numbers = #tpu.dot_dimension_numbers<[2], [0], [0, 1], [1], [0, 0, 0, 1, 1, 1], [], []>} : vector<2x1x32xf32>, vector<32x32xf32>, vector<2x1x32xf32> -> vector<2x1x32xf32>
    "tpu.trace_stop"() : () -> ()
    %11 = vector.extract_strided_slice %6 {offsets = [0, 128], sizes = [1, 32], strides = [1, 1]} : vector<1x448xf32> to vector<1x32xf32>
    %12 = vector.shape_cast %11 : vector<1x32xf32> to vector<1x1x32xf32>
    %13 = vector.broadcast %12 : vector<1x1x32xf32> to vector<2x1x32xf32>
    %14 = arith.addf %10, %13 : vector<2x1x32xf32>
    %15 = vector.extract_strided_slice %7 {offsets = [0, 0], sizes = [1, 8], strides = [1, 1]} : vector<1x96xf32> to vector<1x8xf32>
    %16 = vector.extract_strided_slice %7 {offsets = [0, 8], sizes = [1, 8], strides = [1, 1]} : vector<1x96xf32> to vector<1x8xf32>
    %17 = vector.extract_strided_slice %7 {offsets = [0, 16], sizes = [1, 8], strides = [1, 1]} : vector<1x96xf32> to vector<1x8xf32>
    %18 = vector.extract_strided_slice %7 {offsets = [0, 24], sizes = [1, 8], strides = [1, 1]} : vector<1x96xf32> to vector<1x8xf32>
    %19 = vector.extract_strided_slice %7 {offsets = [0, 32], sizes = [1, 8], strides = [1, 1]} : vector<1x96xf32> to vector<1x8xf32>
    %20 = vector.extract_strided_slice %7 {offsets = [0, 40], sizes = [1, 8], strides = [1, 1]} : vector<1x96xf32> to vector<1x8xf32>
    %21 = vector.extract_strided_slice %7 {offsets = [0, 48], sizes = [1, 8], strides = [1, 1]} : vector<1x96xf32> to vector<1x8xf32>
    %22 = vector.extract_strided_slice %7 {offsets = [0, 56], sizes = [1, 8], strides = [1, 1]} : vector<1x96xf32> to vector<1x8xf32>
    %23 = vector.extract_strided_slice %7 {offsets = [0, 64], sizes = [1, 8], strides = [1, 1]} : vector<1x96xf32> to vector<1x8xf32>
    %24 = vector.extract_strided_slice %7 {offsets = [0, 72], sizes = [1, 8], strides = [1, 1]} : vector<1x96xf32> to vector<1x8xf32>
    %25 = vector.extract_strided_slice %7 {offsets = [0, 80], sizes = [1, 8], strides = [1, 1]} : vector<1x96xf32> to vector<1x8xf32>
    %26 = vector.extract_strided_slice %7 {offsets = [0, 88], sizes = [1, 8], strides = [1, 1]} : vector<1x96xf32> to vector<1x8xf32>
    %27 = vector.extract_strided_slice %6 {offsets = [0, 96], sizes = [1, 32], strides = [1, 1]} : vector<1x448xf32> to vector<1x32xf32>
    %28 = vector.extract_strided_slice %6 {offsets = [0, 160], sizes = [1, 64], strides = [1, 1]} : vector<1x448xf32> to vector<1x64xf32>
    %29 = vector.extract_strided_slice %6 {offsets = [0, 224], sizes = [1, 32], strides = [1, 1]} : vector<1x448xf32> to vector<1x32xf32>
    %30 = vector.extract_strided_slice %6 {offsets = [0, 256], sizes = [1, 32], strides = [1, 1]} : vector<1x448xf32> to vector<1x32xf32>
    %31 = vector.extract_strided_slice %6 {offsets = [0, 288], sizes = [1, 32], strides = [1, 1]} : vector<1x448xf32> to vector<1x32xf32>
    %32 = vector.extract_strided_slice %6 {offsets = [0, 320], sizes = [1, 32], strides = [1, 1]} : vector<1x448xf32> to vector<1x32xf32>
    %33 = vector.extract_strided_slice %6 {offsets = [0, 352], sizes = [1, 32], strides = [1, 1]} : vector<1x448xf32> to vector<1x32xf32>
    %34 = vector.extract_strided_slice %6 {offsets = [0, 384], sizes = [1, 32], strides = [1, 1]} : vector<1x448xf32> to vector<1x32xf32>
    %35 = vector.extract_strided_slice %6 {offsets = [0, 416], sizes = [1, 32], strides = [1, 1]} : vector<1x448xf32> to vector<1x32xf32>
    %c1 = arith.constant 1 : index
    %c0_17 = arith.constant 0 : index
    %c0_18 = arith.constant 0 : index
    %36 = vector.load %arg11[%c1, %c0_17, %c0_18] : memref<2x1x448xf32, #tpu.memory_space<vmem>>, vector<1x1x448xf32>
    %37 = vector.shape_cast %36 : vector<1x1x448xf32> to vector<1x448xf32>
    %38 = vector.extract_strided_slice %37 {offsets = [0, 0], sizes = [1, 96], strides = [1, 1]} : vector<1x448xf32> to vector<1x96xf32>
    %c1_19 = arith.constant 1 : index
    %c0_20 = arith.constant 0 : index
    %c0_21 = arith.constant 0 : index
    %39 = vector.load %arg10[%c1_19, %c0_20, %c0_21] : memref<2x32x32xf32, #tpu.memory_space<vmem>>, vector<1x32x32xf32>
    %40 = vector.shape_cast %39 : vector<1x32x32xf32> to vector<32x32xf32>
    "tpu.trace_start"() <{level = 10 : i32, message = "boe,ef->bof"}> : () -> ()
    %cst_22 = arith.constant dense<0.000000e+00> : vector<2x1x32xf32>
    %41 = tpu.matmul %2, %40, %cst_22 {dimension_numbers = #tpu.dot_dimension_numbers<[2], [0], [0, 1], [1], [0, 0, 0, 1, 1, 1], [], []>} : vector<2x1x32xf32>, vector<32x32xf32>, vector<2x1x32xf32> -> vector<2x1x32xf32>
    "tpu.trace_stop"() : () -> ()
    %42 = vector.extract_strided_slice %37 {offsets = [0, 128], sizes = [1, 32], strides = [1, 1]} : vector<1x448xf32> to vector<1x32xf32>
    %43 = vector.shape_cast %42 : vector<1x32xf32> to vector<1x1x32xf32>
    %44 = vector.broadcast %43 : vector<1x1x32xf32> to vector<2x1x32xf32>
    %45 = arith.addf %41, %44 : vector<2x1x32xf32>
    %46 = vector.extract_strided_slice %38 {offsets = [0, 0], sizes = [1, 8], strides = [1, 1]} : vector<1x96xf32> to vector<1x8xf32>
    %47 = vector.extract_strided_slice %38 {offsets = [0, 8], sizes = [1, 8], strides = [1, 1]} : vector<1x96xf32> to vector<1x8xf32>
    %48 = vector.extract_strided_slice %38 {offsets = [0, 16], sizes = [1, 8], strides = [1, 1]} : vector<1x96xf32> to vector<1x8xf32>
    %49 = vector.extract_strided_slice %38 {offsets = [0, 24], sizes = [1, 8], strides = [1, 1]} : vector<1x96xf32> to vector<1x8xf32>
    %50 = vector.extract_strided_slice %38 {offsets = [0, 32], sizes = [1, 8], strides = [1, 1]} : vector<1x96xf32> to vector<1x8xf32>
    %51 = vector.extract_strided_slice %38 {offsets = [0, 40], sizes = [1, 8], strides = [1, 1]} : vector<1x96xf32> to vector<1x8xf32>
    %52 = vector.extract_strided_slice %38 {offsets = [0, 48], sizes = [1, 8], strides = [1, 1]} : vector<1x96xf32> to vector<1x8xf32>
    %53 = vector.extract_strided_slice %38 {offsets = [0, 56], sizes = [1, 8], strides = [1, 1]} : vector<1x96xf32> to vector<1x8xf32>
    %54 = vector.extract_strided_slice %38 {offsets = [0, 64], sizes = [1, 8], strides = [1, 1]} : vector<1x96xf32> to vector<1x8xf32>
    %55 = vector.extract_strided_slice %38 {offsets = [0, 72], sizes = [1, 8], strides = [1, 1]} : vector<1x96xf32> to vector<1x8xf32>
    %56 = vector.extract_strided_slice %38 {offsets = [0, 80], sizes = [1, 8], strides = [1, 1]} : vector<1x96xf32> to vector<1x8xf32>
    %57 = vector.extract_strided_slice %38 {offsets = [0, 88], sizes = [1, 8], strides = [1, 1]} : vector<1x96xf32> to vector<1x8xf32>
    %58 = vector.extract_strided_slice %37 {offsets = [0, 96], sizes = [1, 32], strides = [1, 1]} : vector<1x448xf32> to vector<1x32xf32>
    %59 = vector.extract_strided_slice %37 {offsets = [0, 160], sizes = [1, 64], strides = [1, 1]} : vector<1x448xf32> to vector<1x64xf32>
    %60 = vector.extract_strided_slice %37 {offsets = [0, 224], sizes = [1, 32], strides = [1, 1]} : vector<1x448xf32> to vector<1x32xf32>
    %61 = vector.extract_strided_slice %37 {offsets = [0, 256], sizes = [1, 32], strides = [1, 1]} : vector<1x448xf32> to vector<1x32xf32>
    %62 = vector.extract_strided_slice %37 {offsets = [0, 288], sizes = [1, 32], strides = [1, 1]} : vector<1x448xf32> to vector<1x32xf32>
    %63 = vector.extract_strided_slice %37 {offsets = [0, 320], sizes = [1, 32], strides = [1, 1]} : vector<1x448xf32> to vector<1x32xf32>
    %64 = vector.extract_strided_slice %37 {offsets = [0, 352], sizes = [1, 32], strides = [1, 1]} : vector<1x448xf32> to vector<1x32xf32>
    %65 = vector.extract_strided_slice %37 {offsets = [0, 384], sizes = [1, 32], strides = [1, 1]} : vector<1x448xf32> to vector<1x32xf32>
    %66 = vector.extract_strided_slice %37 {offsets = [0, 416], sizes = [1, 32], strides = [1, 1]} : vector<1x448xf32> to vector<1x32xf32>
    %67 = tpu.iota {dimensions = array<i32: 2>} : vector<1x1x8xi32>
    %68 = tpu.iota {dimensions = array<i32: 1>} : vector<1x8x1xi32>
    %69 = tpu.iota {dimensions = array<i32: 2>} : vector<2x1x128xi32>
    %70 = vector.extract_strided_slice %0 {offsets = [0, 0], sizes = [1, 32], strides = [1, 1]} : vector<16x32xf32> to vector<1x32xf32>
    %71 = vector.shape_cast %70 : vector<1x32xf32> to vector<1x1x32xf32>
    %72 = vector.broadcast %71 : vector<1x1x32xf32> to vector<2x1x32xf32>
    %73 = arith.addf %72, %1 : vector<2x1x32xf32>
    %c0_i32 = arith.constant 0 : i32
    %74 = vector.broadcast %c0_i32 : i32 to vector<1x8x1xi32>
    %75 = arith.cmpi eq, %68, %74 : vector<1x8x1xi32>
    %cst_23 = arith.constant 0.000000e+00 : f32
    %76 = vector.shape_cast %75 : vector<1x8x1xi1> to vector<1x8x1xi1>
    %77 = vector.broadcast %76 : vector<1x8x1xi1> to vector<2x8x32xi1>
    %78 = vector.shape_cast %73 : vector<2x1x32xf32> to vector<2x1x32xf32>
    %79 = vector.broadcast %78 : vector<2x1x32xf32> to vector<2x8x32xf32>
    %80 = vector.broadcast %cst_23 : f32 to vector<2x8x32xf32>
    %81 = arith.select %77, %79, %80 : vector<2x8x32xi1>, vector<2x8x32xf32>
    %cst_24 = arith.constant 0.000000e+00 : f32
    %82 = vector.broadcast %cst_24 : f32 to vector<2x8x128xf32>
    %c0_i32_25 = arith.constant 0 : i32
    %c8_i32 = arith.constant 8 : i32
    %83 = arith.addi %c0_i32_25, %c8_i32 : i32
    %c1_i32 = arith.constant 1 : i32
    %84:2 = scf.for %arg15 = %c0_i32_25 to %83 step %c1_i32 iter_args(%arg16 = %81, %arg17 = %82) -> (vector<2x8x32xf32>, vector<2x8x128xf32>)  : i32 {
      %86 = vector.broadcast %arg15 : i32 to vector<1x1x8xi32>
      %87 = arith.cmpi sle, %67, %86 : vector<1x1x8xi32>
      %cst_30 = arith.constant 0.000000e+00 : f32
      %cst_31 = arith.constant -1.000000e+09 : f32
      %88 = vector.broadcast %cst_30 : f32 to vector<1x1x8xf32>
      %89 = vector.broadcast %cst_31 : f32 to vector<1x1x8xf32>
      %90 = arith.select %87, %88, %89 : vector<1x1x8xi1>, vector<1x1x8xf32>
      %c0_32 = arith.constant 0 : index
      %c0_33 = arith.constant 0 : index
      %c0_34 = arith.constant 0 : index
      %c0_35 = arith.constant 0 : index
      %91 = vector.load %arg4[%c0_32, %c0_33, %c0_34, %c0_35] : memref<2x4x32x8xf32, #tpu.memory_space<vmem>>, vector<1x1x32x8xf32>
      %92 = vector.shape_cast %91 : vector<1x1x32x8xf32> to vector<32x8xf32>
      "tpu.trace_start"() <{level = 10 : i32, message = "bqe,ed->bqd"}> : () -> ()
      %cst_36 = arith.constant dense<0.000000e+00> : vector<2x8x8xf32>
      %93 = tpu.matmul %arg16, %92, %cst_36 {dimension_numbers = #tpu.dot_dimension_numbers<[2], [0], [0, 1], [1], [0, 0, 0, 1, 1, 1], [], []>} : vector<2x8x32xf32>, vector<32x8xf32>, vector<2x8x8xf32> -> vector<2x8x8xf32>
      "tpu.trace_stop"() : () -> ()
      %94 = vector.shape_cast %15 : vector<1x8xf32> to vector<1x1x8xf32>
      %95 = vector.broadcast %94 : vector<1x1x8xf32> to vector<2x8x8xf32>
      %96 = arith.addf %93, %95 : vector<2x8x8xf32>
      %c0_37 = arith.constant 0 : index
      %c0_38 = arith.constant 0 : index
      %c0_39 = arith.constant 0 : index
      %c0_40 = arith.constant 0 : index
      %97 = vector.load %arg5[%c0_37, %c0_38, %c0_39, %c0_40] : memref<2x4x32x8xf32, #tpu.memory_space<vmem>>, vector<1x1x32x8xf32>
      %98 = vector.shape_cast %97 : vector<1x1x32x8xf32> to vector<32x8xf32>
      "tpu.trace_start"() <{level = 10 : i32, message = "bke,ed->bkd"}> : () -> ()
      %cst_41 = arith.constant dense<0.000000e+00> : vector<2x8x8xf32>
      %99 = tpu.matmul %arg16, %98, %cst_41 {dimension_numbers = #tpu.dot_dimension_numbers<[2], [0], [0, 1], [1], [0, 0, 0, 1, 1, 1], [], []>} : vector<2x8x32xf32>, vector<32x8xf32>, vector<2x8x8xf32> -> vector<2x8x8xf32>
      "tpu.trace_stop"() : () -> ()
      %100 = vector.shape_cast %19 : vector<1x8xf32> to vector<1x1x8xf32>
      %101 = vector.broadcast %100 : vector<1x1x8xf32> to vector<2x8x8xf32>
      %102 = arith.addf %99, %101 : vector<2x8x8xf32>
      %c0_42 = arith.constant 0 : index
      %c0_43 = arith.constant 0 : index
      %c0_44 = arith.constant 0 : index
      %c0_45 = arith.constant 0 : index
      %103 = vector.load %arg6[%c0_42, %c0_43, %c0_44, %c0_45] : memref<2x4x32x8xf32, #tpu.memory_space<vmem>>, vector<1x1x32x8xf32>
      %104 = vector.shape_cast %103 : vector<1x1x32x8xf32> to vector<32x8xf32>
      "tpu.trace_start"() <{level = 10 : i32, message = "bke,ed->bkd"}> : () -> ()
      %cst_46 = arith.constant dense<0.000000e+00> : vector<2x8x8xf32>
      %105 = tpu.matmul %arg16, %104, %cst_46 {dimension_numbers = #tpu.dot_dimension_numbers<[2], [0], [0, 1], [1], [0, 0, 0, 1, 1, 1], [], []>} : vector<2x8x32xf32>, vector<32x8xf32>, vector<2x8x8xf32> -> vector<2x8x8xf32>
      "tpu.trace_stop"() : () -> ()
      %106 = vector.shape_cast %23 : vector<1x8xf32> to vector<1x1x8xf32>
      %107 = vector.broadcast %106 : vector<1x1x8xf32> to vector<2x8x8xf32>
      %108 = arith.addf %105, %107 : vector<2x8x8xf32>
      "tpu.trace_start"() <{level = 10 : i32, message = "bqd,bkd->bqk"}> : () -> ()
      %cst_47 = arith.constant dense<0.000000e+00> : vector<2x8x8xf32>
      %109 = tpu.matmul %96, %102, %cst_47 {dimension_numbers = #tpu.dot_dimension_numbers<[2], [2], [1], [1], [0, 0, 0, 1, 1, 1], [0], [0]>} : vector<2x8x8xf32>, vector<2x8x8xf32>, vector<2x8x8xf32> -> vector<2x8x8xf32>
      "tpu.trace_stop"() : () -> ()
      %110 = vector.broadcast %90 : vector<1x1x8xf32> to vector<2x8x8xf32>
      %111 = arith.addf %109, %110 : vector<2x8x8xf32>
      %cst_48 = arith.constant dense<0xFF800000> : vector<2x8xf32>
      %112 = vector.multi_reduction <maximumf>, %111, %cst_48 [2] : vector<2x8x8xf32> to vector<2x8xf32>
      %113 = vector.shape_cast %112 : vector<2x8xf32> to vector<2x8x1xf32>
      %114 = vector.broadcast %113 : vector<2x8x1xf32> to vector<2x8x8xf32>
      %115 = arith.subf %111, %114 : vector<2x8x8xf32>
      %116 = math.exp %115 : vector<2x8x8xf32>
      %cst_49 = arith.constant dense<0.000000e+00> : vector<2x8xf32>
      %117 = vector.multi_reduction <add>, %116, %cst_49 [2] : vector<2x8x8xf32> to vector<2x8xf32>
      %118 = vector.shape_cast %117 : vector<2x8xf32> to vector<2x8x1xf32>
      %119 = tpu.reciprocal %118 : vector<2x8x1xf32> -> vector<2x8x1xf32>
      %120 = vector.broadcast %119 : vector<2x8x1xf32> to vector<2x8x8xf32>
      %121 = arith.mulf %116, %120 : vector<2x8x8xf32>
      "tpu.trace_start"() <{level = 10 : i32, message = "bqk,bkd->bqd"}> : () -> ()
      %cst_50 = arith.constant dense<0.000000e+00> : vector<2x8x8xf32>
      %122 = tpu.matmul %121, %108, %cst_50 {dimension_numbers = #tpu.dot_dimension_numbers<[2], [1], [1], [2], [0, 0, 0, 1, 1, 2], [0], [0]>} : vector<2x8x8xf32>, vector<2x8x8xf32>, vector<2x8x8xf32> -> vector<2x8x8xf32>
      "tpu.trace_stop"() : () -> ()
      %c0_51 = arith.constant 0 : index
      %c0_52 = arith.constant 0 : index
      %c0_53 = arith.constant 0 : index
      %c0_54 = arith.constant 0 : index
      %123 = vector.load %arg7[%c0_51, %c0_52, %c0_53, %c0_54] : memref<2x4x8x32xf32, #tpu.memory_space<vmem>>, vector<1x1x8x32xf32>
      %124 = vector.shape_cast %123 : vector<1x1x8x32xf32> to vector<8x32xf32>
      "tpu.trace_start"() <{level = 10 : i32, message = "bqd,de->bqe"}> : () -> ()
      %cst_55 = arith.constant dense<0.000000e+00> : vector<2x8x32xf32>
      %125 = tpu.matmul %122, %124, %cst_55 {dimension_numbers = #tpu.dot_dimension_numbers<[2], [0], [0, 1], [1], [0, 0, 0, 1, 1, 1], [], []>} : vector<2x8x8xf32>, vector<8x32xf32>, vector<2x8x32xf32> -> vector<2x8x32xf32>
      "tpu.trace_stop"() : () -> ()
      %c0_56 = arith.constant 0 : index
      %c1_57 = arith.constant 1 : index
      %c0_58 = arith.constant 0 : index
      %c0_59 = arith.constant 0 : index
      %126 = vector.load %arg4[%c0_56, %c1_57, %c0_58, %c0_59] : memref<2x4x32x8xf32, #tpu.memory_space<vmem>>, vector<1x1x32x8xf32>
      %127 = vector.shape_cast %126 : vector<1x1x32x8xf32> to vector<32x8xf32>
      "tpu.trace_start"() <{level = 10 : i32, message = "bqe,ed->bqd"}> : () -> ()
      %cst_60 = arith.constant dense<0.000000e+00> : vector<2x8x8xf32>
      %128 = tpu.matmul %arg16, %127, %cst_60 {dimension_numbers = #tpu.dot_dimension_numbers<[2], [0], [0, 1], [1], [0, 0, 0, 1, 1, 1], [], []>} : vector<2x8x32xf32>, vector<32x8xf32>, vector<2x8x8xf32> -> vector<2x8x8xf32>
      "tpu.trace_stop"() : () -> ()
      %129 = vector.shape_cast %16 : vector<1x8xf32> to vector<1x1x8xf32>
      %130 = vector.broadcast %129 : vector<1x1x8xf32> to vector<2x8x8xf32>
      %131 = arith.addf %128, %130 : vector<2x8x8xf32>
      %c0_61 = arith.constant 0 : index
      %c1_62 = arith.constant 1 : index
      %c0_63 = arith.constant 0 : index
      %c0_64 = arith.constant 0 : index
      %132 = vector.load %arg5[%c0_61, %c1_62, %c0_63, %c0_64] : memref<2x4x32x8xf32, #tpu.memory_space<vmem>>, vector<1x1x32x8xf32>
      %133 = vector.shape_cast %132 : vector<1x1x32x8xf32> to vector<32x8xf32>
      "tpu.trace_start"() <{level = 10 : i32, message = "bke,ed->bkd"}> : () -> ()
      %cst_65 = arith.constant dense<0.000000e+00> : vector<2x8x8xf32>
      %134 = tpu.matmul %arg16, %133, %cst_65 {dimension_numbers = #tpu.dot_dimension_numbers<[2], [0], [0, 1], [1], [0, 0, 0, 1, 1, 1], [], []>} : vector<2x8x32xf32>, vector<32x8xf32>, vector<2x8x8xf32> -> vector<2x8x8xf32>
      "tpu.trace_stop"() : () -> ()
      %135 = vector.shape_cast %20 : vector<1x8xf32> to vector<1x1x8xf32>
      %136 = vector.broadcast %135 : vector<1x1x8xf32> to vector<2x8x8xf32>
      %137 = arith.addf %134, %136 : vector<2x8x8xf32>
      %c0_66 = arith.constant 0 : index
      %c1_67 = arith.constant 1 : index
      %c0_68 = arith.constant 0 : index
      %c0_69 = arith.constant 0 : index
      %138 = vector.load %arg6[%c0_66, %c1_67, %c0_68, %c0_69] : memref<2x4x32x8xf32, #tpu.memory_space<vmem>>, vector<1x1x32x8xf32>
      %139 = vector.shape_cast %138 : vector<1x1x32x8xf32> to vector<32x8xf32>
      "tpu.trace_start"() <{level = 10 : i32, message = "bke,ed->bkd"}> : () -> ()
      %cst_70 = arith.constant dense<0.000000e+00> : vector<2x8x8xf32>
      %140 = tpu.matmul %arg16, %139, %cst_70 {dimension_numbers = #tpu.dot_dimension_numbers<[2], [0], [0, 1], [1], [0, 0, 0, 1, 1, 1], [], []>} : vector<2x8x32xf32>, vector<32x8xf32>, vector<2x8x8xf32> -> vector<2x8x8xf32>
      "tpu.trace_stop"() : () -> ()
      %141 = vector.shape_cast %24 : vector<1x8xf32> to vector<1x1x8xf32>
      %142 = vector.broadcast %141 : vector<1x1x8xf32> to vector<2x8x8xf32>
      %143 = arith.addf %140, %142 : vector<2x8x8xf32>
      "tpu.trace_start"() <{level = 10 : i32, message = "bqd,bkd->bqk"}> : () -> ()
      %cst_71 = arith.constant dense<0.000000e+00> : vector<2x8x8xf32>
      %144 = tpu.matmul %131, %137, %cst_71 {dimension_numbers = #tpu.dot_dimension_numbers<[2], [2], [1], [1], [0, 0, 0, 1, 1, 1], [0], [0]>} : vector<2x8x8xf32>, vector<2x8x8xf32>, vector<2x8x8xf32> -> vector<2x8x8xf32>
      "tpu.trace_stop"() : () -> ()
      %145 = vector.broadcast %90 : vector<1x1x8xf32> to vector<2x8x8xf32>
      %146 = arith.addf %144, %145 : vector<2x8x8xf32>
      %cst_72 = arith.constant dense<0xFF800000> : vector<2x8xf32>
      %147 = vector.multi_reduction <maximumf>, %146, %cst_72 [2] : vector<2x8x8xf32> to vector<2x8xf32>
      %148 = vector.shape_cast %147 : vector<2x8xf32> to vector<2x8x1xf32>
      %149 = vector.broadcast %148 : vector<2x8x1xf32> to vector<2x8x8xf32>
      %150 = arith.subf %146, %149 : vector<2x8x8xf32>
      %151 = math.exp %150 : vector<2x8x8xf32>
      %cst_73 = arith.constant dense<0.000000e+00> : vector<2x8xf32>
      %152 = vector.multi_reduction <add>, %151, %cst_73 [2] : vector<2x8x8xf32> to vector<2x8xf32>
      %153 = vector.shape_cast %152 : vector<2x8xf32> to vector<2x8x1xf32>
      %154 = tpu.reciprocal %153 : vector<2x8x1xf32> -> vector<2x8x1xf32>
      %155 = vector.broadcast %154 : vector<2x8x1xf32> to vector<2x8x8xf32>
      %156 = arith.mulf %151, %155 : vector<2x8x8xf32>
      "tpu.trace_start"() <{level = 10 : i32, message = "bqk,bkd->bqd"}> : () -> ()
      %cst_74 = arith.constant dense<0.000000e+00> : vector<2x8x8xf32>
      %157 = tpu.matmul %156, %143, %cst_74 {dimension_numbers = #tpu.dot_dimension_numbers<[2], [1], [1], [2], [0, 0, 0, 1, 1, 2], [0], [0]>} : vector<2x8x8xf32>, vector<2x8x8xf32>, vector<2x8x8xf32> -> vector<2x8x8xf32>
      "tpu.trace_stop"() : () -> ()
      %c0_75 = arith.constant 0 : index
      %c1_76 = arith.constant 1 : index
      %c0_77 = arith.constant 0 : index
      %c0_78 = arith.constant 0 : index
      %158 = vector.load %arg7[%c0_75, %c1_76, %c0_77, %c0_78] : memref<2x4x8x32xf32, #tpu.memory_space<vmem>>, vector<1x1x8x32xf32>
      %159 = vector.shape_cast %158 : vector<1x1x8x32xf32> to vector<8x32xf32>
      "tpu.trace_start"() <{level = 10 : i32, message = "bqd,de->bqe"}> : () -> ()
      %cst_79 = arith.constant dense<0.000000e+00> : vector<2x8x32xf32>
      %160 = tpu.matmul %157, %159, %cst_79 {dimension_numbers = #tpu.dot_dimension_numbers<[2], [0], [0, 1], [1], [0, 0, 0, 1, 1, 1], [], []>} : vector<2x8x8xf32>, vector<8x32xf32>, vector<2x8x32xf32> -> vector<2x8x32xf32>
      "tpu.trace_stop"() : () -> ()
      %161 = arith.addf %125, %160 : vector<2x8x32xf32>
      %c0_80 = arith.constant 0 : index
      %c2 = arith.constant 2 : index
      %c0_81 = arith.constant 0 : index
      %c0_82 = arith.constant 0 : index
      %162 = vector.load %arg4[%c0_80, %c2, %c0_81, %c0_82] : memref<2x4x32x8xf32, #tpu.memory_space<vmem>>, vector<1x1x32x8xf32>
      %163 = vector.shape_cast %162 : vector<1x1x32x8xf32> to vector<32x8xf32>
      "tpu.trace_start"() <{level = 10 : i32, message = "bqe,ed->bqd"}> : () -> ()
      %cst_83 = arith.constant dense<0.000000e+00> : vector<2x8x8xf32>
      %164 = tpu.matmul %arg16, %163, %cst_83 {dimension_numbers = #tpu.dot_dimension_numbers<[2], [0], [0, 1], [1], [0, 0, 0, 1, 1, 1], [], []>} : vector<2x8x32xf32>, vector<32x8xf32>, vector<2x8x8xf32> -> vector<2x8x8xf32>
      "tpu.trace_stop"() : () -> ()
      %165 = vector.shape_cast %17 : vector<1x8xf32> to vector<1x1x8xf32>
      %166 = vector.broadcast %165 : vector<1x1x8xf32> to vector<2x8x8xf32>
      %167 = arith.addf %164, %166 : vector<2x8x8xf32>
      %c0_84 = arith.constant 0 : index
      %c2_85 = arith.constant 2 : index
      %c0_86 = arith.constant 0 : index
      %c0_87 = arith.constant 0 : index
      %168 = vector.load %arg5[%c0_84, %c2_85, %c0_86, %c0_87] : memref<2x4x32x8xf32, #tpu.memory_space<vmem>>, vector<1x1x32x8xf32>
      %169 = vector.shape_cast %168 : vector<1x1x32x8xf32> to vector<32x8xf32>
      "tpu.trace_start"() <{level = 10 : i32, message = "bke,ed->bkd"}> : () -> ()
      %cst_88 = arith.constant dense<0.000000e+00> : vector<2x8x8xf32>
      %170 = tpu.matmul %arg16, %169, %cst_88 {dimension_numbers = #tpu.dot_dimension_numbers<[2], [0], [0, 1], [1], [0, 0, 0, 1, 1, 1], [], []>} : vector<2x8x32xf32>, vector<32x8xf32>, vector<2x8x8xf32> -> vector<2x8x8xf32>
      "tpu.trace_stop"() : () -> ()
      %171 = vector.shape_cast %21 : vector<1x8xf32> to vector<1x1x8xf32>
      %172 = vector.broadcast %171 : vector<1x1x8xf32> to vector<2x8x8xf32>
      %173 = arith.addf %170, %172 : vector<2x8x8xf32>
      %c0_89 = arith.constant 0 : index
      %c2_90 = arith.constant 2 : index
      %c0_91 = arith.constant 0 : index
      %c0_92 = arith.constant 0 : index
      %174 = vector.load %arg6[%c0_89, %c2_90, %c0_91, %c0_92] : memref<2x4x32x8xf32, #tpu.memory_space<vmem>>, vector<1x1x32x8xf32>
      %175 = vector.shape_cast %174 : vector<1x1x32x8xf32> to vector<32x8xf32>
      "tpu.trace_start"() <{level = 10 : i32, message = "bke,ed->bkd"}> : () -> ()
      %cst_93 = arith.constant dense<0.000000e+00> : vector<2x8x8xf32>
      %176 = tpu.matmul %arg16, %175, %cst_93 {dimension_numbers = #tpu.dot_dimension_numbers<[2], [0], [0, 1], [1], [0, 0, 0, 1, 1, 1], [], []>} : vector<2x8x32xf32>, vector<32x8xf32>, vector<2x8x8xf32> -> vector<2x8x8xf32>
      "tpu.trace_stop"() : () -> ()
      %177 = vector.shape_cast %25 : vector<1x8xf32> to vector<1x1x8xf32>
      %178 = vector.broadcast %177 : vector<1x1x8xf32> to vector<2x8x8xf32>
      %179 = arith.addf %176, %178 : vector<2x8x8xf32>
      "tpu.trace_start"() <{level = 10 : i32, message = "bqd,bkd->bqk"}> : () -> ()
      %cst_94 = arith.constant dense<0.000000e+00> : vector<2x8x8xf32>
      %180 = tpu.matmul %167, %173, %cst_94 {dimension_numbers = #tpu.dot_dimension_numbers<[2], [2], [1], [1], [0, 0, 0, 1, 1, 1], [0], [0]>} : vector<2x8x8xf32>, vector<2x8x8xf32>, vector<2x8x8xf32> -> vector<2x8x8xf32>
      "tpu.trace_stop"() : () -> ()
      %181 = vector.broadcast %90 : vector<1x1x8xf32> to vector<2x8x8xf32>
      %182 = arith.addf %180, %181 : vector<2x8x8xf32>
      %cst_95 = arith.constant dense<0xFF800000> : vector<2x8xf32>
      %183 = vector.multi_reduction <maximumf>, %182, %cst_95 [2] : vector<2x8x8xf32> to vector<2x8xf32>
      %184 = vector.shape_cast %183 : vector<2x8xf32> to vector<2x8x1xf32>
      %185 = vector.broadcast %184 : vector<2x8x1xf32> to vector<2x8x8xf32>
      %186 = arith.subf %182, %185 : vector<2x8x8xf32>
      %187 = math.exp %186 : vector<2x8x8xf32>
      %cst_96 = arith.constant dense<0.000000e+00> : vector<2x8xf32>
      %188 = vector.multi_reduction <add>, %187, %cst_96 [2] : vector<2x8x8xf32> to vector<2x8xf32>
      %189 = vector.shape_cast %188 : vector<2x8xf32> to vector<2x8x1xf32>
      %190 = tpu.reciprocal %189 : vector<2x8x1xf32> -> vector<2x8x1xf32>
      %191 = vector.broadcast %190 : vector<2x8x1xf32> to vector<2x8x8xf32>
      %192 = arith.mulf %187, %191 : vector<2x8x8xf32>
      "tpu.trace_start"() <{level = 10 : i32, message = "bqk,bkd->bqd"}> : () -> ()
      %cst_97 = arith.constant dense<0.000000e+00> : vector<2x8x8xf32>
      %193 = tpu.matmul %192, %179, %cst_97 {dimension_numbers = #tpu.dot_dimension_numbers<[2], [1], [1], [2], [0, 0, 0, 1, 1, 2], [0], [0]>} : vector<2x8x8xf32>, vector<2x8x8xf32>, vector<2x8x8xf32> -> vector<2x8x8xf32>
      "tpu.trace_stop"() : () -> ()
      %c0_98 = arith.constant 0 : index
      %c2_99 = arith.constant 2 : index
      %c0_100 = arith.constant 0 : index
      %c0_101 = arith.constant 0 : index
      %194 = vector.load %arg7[%c0_98, %c2_99, %c0_100, %c0_101] : memref<2x4x8x32xf32, #tpu.memory_space<vmem>>, vector<1x1x8x32xf32>
      %195 = vector.shape_cast %194 : vector<1x1x8x32xf32> to vector<8x32xf32>
      "tpu.trace_start"() <{level = 10 : i32, message = "bqd,de->bqe"}> : () -> ()
      %cst_102 = arith.constant dense<0.000000e+00> : vector<2x8x32xf32>
      %196 = tpu.matmul %193, %195, %cst_102 {dimension_numbers = #tpu.dot_dimension_numbers<[2], [0], [0, 1], [1], [0, 0, 0, 1, 1, 1], [], []>} : vector<2x8x8xf32>, vector<8x32xf32>, vector<2x8x32xf32> -> vector<2x8x32xf32>
      "tpu.trace_stop"() : () -> ()
      %197 = arith.addf %161, %196 : vector<2x8x32xf32>
      %c0_103 = arith.constant 0 : index
      %c3 = arith.constant 3 : index
      %c0_104 = arith.constant 0 : index
      %c0_105 = arith.constant 0 : index
      %198 = vector.load %arg4[%c0_103, %c3, %c0_104, %c0_105] : memref<2x4x32x8xf32, #tpu.memory_space<vmem>>, vector<1x1x32x8xf32>
      %199 = vector.shape_cast %198 : vector<1x1x32x8xf32> to vector<32x8xf32>
      "tpu.trace_start"() <{level = 10 : i32, message = "bqe,ed->bqd"}> : () -> ()
      %cst_106 = arith.constant dense<0.000000e+00> : vector<2x8x8xf32>
      %200 = tpu.matmul %arg16, %199, %cst_106 {dimension_numbers = #tpu.dot_dimension_numbers<[2], [0], [0, 1], [1], [0, 0, 0, 1, 1, 1], [], []>} : vector<2x8x32xf32>, vector<32x8xf32>, vector<2x8x8xf32> -> vector<2x8x8xf32>
      "tpu.trace_stop"() : () -> ()
      %201 = vector.shape_cast %18 : vector<1x8xf32> to vector<1x1x8xf32>
      %202 = vector.broadcast %201 : vector<1x1x8xf32> to vector<2x8x8xf32>
      %203 = arith.addf %200, %202 : vector<2x8x8xf32>
      %c0_107 = arith.constant 0 : index
      %c3_108 = arith.constant 3 : index
      %c0_109 = arith.constant 0 : index
      %c0_110 = arith.constant 0 : index
      %204 = vector.load %arg5[%c0_107, %c3_108, %c0_109, %c0_110] : memref<2x4x32x8xf32, #tpu.memory_space<vmem>>, vector<1x1x32x8xf32>
      %205 = vector.shape_cast %204 : vector<1x1x32x8xf32> to vector<32x8xf32>
      "tpu.trace_start"() <{level = 10 : i32, message = "bke,ed->bkd"}> : () -> ()
      %cst_111 = arith.constant dense<0.000000e+00> : vector<2x8x8xf32>
      %206 = tpu.matmul %arg16, %205, %cst_111 {dimension_numbers = #tpu.dot_dimension_numbers<[2], [0], [0, 1], [1], [0, 0, 0, 1, 1, 1], [], []>} : vector<2x8x32xf32>, vector<32x8xf32>, vector<2x8x8xf32> -> vector<2x8x8xf32>
      "tpu.trace_stop"() : () -> ()
      %207 = vector.shape_cast %22 : vector<1x8xf32> to vector<1x1x8xf32>
      %208 = vector.broadcast %207 : vector<1x1x8xf32> to vector<2x8x8xf32>
      %209 = arith.addf %206, %208 : vector<2x8x8xf32>
      %c0_112 = arith.constant 0 : index
      %c3_113 = arith.constant 3 : index
      %c0_114 = arith.constant 0 : index
      %c0_115 = arith.constant 0 : index
      %210 = vector.load %arg6[%c0_112, %c3_113, %c0_114, %c0_115] : memref<2x4x32x8xf32, #tpu.memory_space<vmem>>, vector<1x1x32x8xf32>
      %211 = vector.shape_cast %210 : vector<1x1x32x8xf32> to vector<32x8xf32>
      "tpu.trace_start"() <{level = 10 : i32, message = "bke,ed->bkd"}> : () -> ()
      %cst_116 = arith.constant dense<0.000000e+00> : vector<2x8x8xf32>
      %212 = tpu.matmul %arg16, %211, %cst_116 {dimension_numbers = #tpu.dot_dimension_numbers<[2], [0], [0, 1], [1], [0, 0, 0, 1, 1, 1], [], []>} : vector<2x8x32xf32>, vector<32x8xf32>, vector<2x8x8xf32> -> vector<2x8x8xf32>
      "tpu.trace_stop"() : () -> ()
      %213 = vector.shape_cast %26 : vector<1x8xf32> to vector<1x1x8xf32>
      %214 = vector.broadcast %213 : vector<1x1x8xf32> to vector<2x8x8xf32>
      %215 = arith.addf %212, %214 : vector<2x8x8xf32>
      "tpu.trace_start"() <{level = 10 : i32, message = "bqd,bkd->bqk"}> : () -> ()
      %cst_117 = arith.constant dense<0.000000e+00> : vector<2x8x8xf32>
      %216 = tpu.matmul %203, %209, %cst_117 {dimension_numbers = #tpu.dot_dimension_numbers<[2], [2], [1], [1], [0, 0, 0, 1, 1, 1], [0], [0]>} : vector<2x8x8xf32>, vector<2x8x8xf32>, vector<2x8x8xf32> -> vector<2x8x8xf32>
      "tpu.trace_stop"() : () -> ()
      %217 = vector.broadcast %90 : vector<1x1x8xf32> to vector<2x8x8xf32>
      %218 = arith.addf %216, %217 : vector<2x8x8xf32>
      %cst_118 = arith.constant dense<0xFF800000> : vector<2x8xf32>
      %219 = vector.multi_reduction <maximumf>, %218, %cst_118 [2] : vector<2x8x8xf32> to vector<2x8xf32>
      %220 = vector.shape_cast %219 : vector<2x8xf32> to vector<2x8x1xf32>
      %221 = vector.broadcast %220 : vector<2x8x1xf32> to vector<2x8x8xf32>
      %222 = arith.subf %218, %221 : vector<2x8x8xf32>
      %223 = math.exp %222 : vector<2x8x8xf32>
      %cst_119 = arith.constant dense<0.000000e+00> : vector<2x8xf32>
      %224 = vector.multi_reduction <add>, %223, %cst_119 [2] : vector<2x8x8xf32> to vector<2x8xf32>
      %225 = vector.shape_cast %224 : vector<2x8xf32> to vector<2x8x1xf32>
      %226 = tpu.reciprocal %225 : vector<2x8x1xf32> -> vector<2x8x1xf32>
      %227 = vector.broadcast %226 : vector<2x8x1xf32> to vector<2x8x8xf32>
      %228 = arith.mulf %223, %227 : vector<2x8x8xf32>
      "tpu.trace_start"() <{level = 10 : i32, message = "bqk,bkd->bqd"}> : () -> ()
      %cst_120 = arith.constant dense<0.000000e+00> : vector<2x8x8xf32>
      %229 = tpu.matmul %228, %215, %cst_120 {dimension_numbers = #tpu.dot_dimension_numbers<[2], [1], [1], [2], [0, 0, 0, 1, 1, 2], [0], [0]>} : vector<2x8x8xf32>, vector<2x8x8xf32>, vector<2x8x8xf32> -> vector<2x8x8xf32>
      "tpu.trace_stop"() : () -> ()
      %c0_121 = arith.constant 0 : index
      %c3_122 = arith.constant 3 : index
      %c0_123 = arith.constant 0 : index
      %c0_124 = arith.constant 0 : index
      %230 = vector.load %arg7[%c0_121, %c3_122, %c0_123, %c0_124] : memref<2x4x8x32xf32, #tpu.memory_space<vmem>>, vector<1x1x8x32xf32>
      %231 = vector.shape_cast %230 : vector<1x1x8x32xf32> to vector<8x32xf32>
      "tpu.trace_start"() <{level = 10 : i32, message = "bqd,de->bqe"}> : () -> ()
      %cst_125 = arith.constant dense<0.000000e+00> : vector<2x8x32xf32>
      %232 = tpu.matmul %229, %231, %cst_125 {dimension_numbers = #tpu.dot_dimension_numbers<[2], [0], [0, 1], [1], [0, 0, 0, 1, 1, 1], [], []>} : vector<2x8x8xf32>, vector<8x32xf32>, vector<2x8x32xf32> -> vector<2x8x32xf32>
      "tpu.trace_stop"() : () -> ()
      %233 = arith.addf %197, %232 : vector<2x8x32xf32>
      %234 = vector.shape_cast %27 : vector<1x32xf32> to vector<1x1x32xf32>
      %235 = vector.broadcast %234 : vector<1x1x32xf32> to vector<2x8x32xf32>
      %236 = arith.addf %233, %235 : vector<2x8x32xf32>
      %237 = arith.addf %arg16, %236 : vector<2x8x32xf32>
      %cst_126 = arith.constant dense<0.000000e+00> : vector<2x8xf32>
      %238 = vector.multi_reduction <add>, %237, %cst_126 [2] : vector<2x8x32xf32> to vector<2x8xf32>
      %239 = vector.shape_cast %238 : vector<2x8xf32> to vector<2x8x1xf32>
      %cst_127 = arith.constant 3.200000e+01 : f32
      %240 = vector.broadcast %cst_127 : f32 to vector<2x8x1xf32>
      %241 = arith.divf %239, %240 : vector<2x8x1xf32>
      %242 = vector.broadcast %241 : vector<2x8x1xf32> to vector<2x8x32xf32>
      %243 = arith.subf %237, %242 : vector<2x8x32xf32>
      %244 = arith.mulf %243, %243 : vector<2x8x32xf32>
      %cst_128 = arith.constant dense<0.000000e+00> : vector<2x8xf32>
      %245 = vector.multi_reduction <add>, %244, %cst_128 [2] : vector<2x8x32xf32> to vector<2x8xf32>
      %246 = vector.shape_cast %245 : vector<2x8xf32> to vector<2x8x1xf32>
      %cst_129 = arith.constant 3.200000e+01 : f32
      %247 = vector.broadcast %cst_129 : f32 to vector<2x8x1xf32>
      %248 = arith.divf %246, %247 : vector<2x8x1xf32>
      %249 = vector.broadcast %241 : vector<2x8x1xf32> to vector<2x8x32xf32>
      %250 = arith.subf %237, %249 : vector<2x8x32xf32>
      %cst_130 = arith.constant 9.99999974E-6 : f32
      %251 = vector.broadcast %cst_130 : f32 to vector<2x8x1xf32>
      %252 = arith.addf %248, %251 : vector<2x8x1xf32>
      %253 = math.rsqrt %252 : vector<2x8x1xf32>
      %254 = vector.broadcast %253 : vector<2x8x1xf32> to vector<2x8x32xf32>
      %255 = arith.mulf %250, %254 : vector<2x8x32xf32>
      %256 = vector.shape_cast %30 : vector<1x32xf32> to vector<1x1x32xf32>
      %257 = vector.broadcast %256 : vector<1x1x32xf32> to vector<2x8x32xf32>
      %258 = arith.mulf %255, %257 : vector<2x8x32xf32>
      %259 = vector.shape_cast %31 : vector<1x32xf32> to vector<1x1x32xf32>
      %260 = vector.broadcast %259 : vector<1x1x32xf32> to vector<2x8x32xf32>
      %261 = arith.addf %258, %260 : vector<2x8x32xf32>
      %262 = vector.broadcast %14 : vector<2x1x32xf32> to vector<2x8x32xf32>
      %263 = arith.addf %261, %262 : vector<2x8x32xf32>
      %cst_131 = arith.constant dense<0.000000e+00> : vector<2x8xf32>
      %264 = vector.multi_reduction <add>, %263, %cst_131 [2] : vector<2x8x32xf32> to vector<2x8xf32>
      %265 = vector.shape_cast %264 : vector<2x8xf32> to vector<2x8x1xf32>
      %cst_132 = arith.constant 3.200000e+01 : f32
      %266 = vector.broadcast %cst_132 : f32 to vector<2x8x1xf32>
      %267 = arith.divf %265, %266 : vector<2x8x1xf32>
      %268 = vector.broadcast %267 : vector<2x8x1xf32> to vector<2x8x32xf32>
      %269 = arith.subf %263, %268 : vector<2x8x32xf32>
      %270 = arith.mulf %269, %269 : vector<2x8x32xf32>
      %cst_133 = arith.constant dense<0.000000e+00> : vector<2x8xf32>
      %271 = vector.multi_reduction <add>, %270, %cst_133 [2] : vector<2x8x32xf32> to vector<2x8xf32>
      %272 = vector.shape_cast %271 : vector<2x8xf32> to vector<2x8x1xf32>
      %cst_134 = arith.constant 3.200000e+01 : f32
      %273 = vector.broadcast %cst_134 : f32 to vector<2x8x1xf32>
      %274 = arith.divf %272, %273 : vector<2x8x1xf32>
      %275 = vector.broadcast %267 : vector<2x8x1xf32> to vector<2x8x32xf32>
      %276 = arith.subf %263, %275 : vector<2x8x32xf32>
      %cst_135 = arith.constant 9.99999974E-6 : f32
      %277 = vector.broadcast %cst_135 : f32 to vector<2x8x1xf32>
      %278 = arith.addf %274, %277 : vector<2x8x1xf32>
      %279 = math.rsqrt %278 : vector<2x8x1xf32>
      %280 = vector.broadcast %279 : vector<2x8x1xf32> to vector<2x8x32xf32>
      %281 = arith.mulf %276, %280 : vector<2x8x32xf32>
      %282 = vector.shape_cast %32 : vector<1x32xf32> to vector<1x1x32xf32>
      %283 = vector.broadcast %282 : vector<1x1x32xf32> to vector<2x8x32xf32>
      %284 = arith.mulf %281, %283 : vector<2x8x32xf32>
      %285 = vector.shape_cast %33 : vector<1x32xf32> to vector<1x1x32xf32>
      %286 = vector.broadcast %285 : vector<1x1x32xf32> to vector<2x8x32xf32>
      %287 = arith.addf %284, %286 : vector<2x8x32xf32>
      %c0_136 = arith.constant 0 : index
      %c0_137 = arith.constant 0 : index
      %c0_138 = arith.constant 0 : index
      %288 = vector.load %arg8[%c0_136, %c0_137, %c0_138] : memref<2x32x64xf32, #tpu.memory_space<vmem>>, vector<1x32x64xf32>
      %289 = vector.shape_cast %288 : vector<1x32x64xf32> to vector<32x64xf32>
      "tpu.trace_start"() <{level = 10 : i32, message = "bqe,eh->bqh"}> : () -> ()
      %cst_139 = arith.constant dense<0.000000e+00> : vector<2x8x64xf32>
      %290 = tpu.matmul %287, %289, %cst_139 {dimension_numbers = #tpu.dot_dimension_numbers<[2], [0], [0, 1], [1], [0, 0, 0, 1, 1, 1], [], []>} : vector<2x8x32xf32>, vector<32x64xf32>, vector<2x8x64xf32> -> vector<2x8x64xf32>
      "tpu.trace_stop"() : () -> ()
      %291 = vector.shape_cast %28 : vector<1x64xf32> to vector<1x1x64xf32>
      %292 = vector.broadcast %291 : vector<1x1x64xf32> to vector<2x8x64xf32>
      %293 = arith.addf %290, %292 : vector<2x8x64xf32>
      %cst_140 = arith.constant 0.000000e+00 : f32
      %294 = vector.broadcast %cst_140 : f32 to vector<2x8x64xf32>
      %295 = arith.maximumf %293, %294 : vector<2x8x64xf32>
      %c0_141 = arith.constant 0 : index
      %c0_142 = arith.constant 0 : index
      %c0_143 = arith.constant 0 : index
      %296 = vector.load %arg9[%c0_141, %c0_142, %c0_143] : memref<2x64x32xf32, #tpu.memory_space<vmem>>, vector<1x64x32xf32>
      %297 = vector.shape_cast %296 : vector<1x64x32xf32> to vector<64x32xf32>
      "tpu.trace_start"() <{level = 10 : i32, message = "bqh,he->bqe"}> : () -> ()
      %cst_144 = arith.constant dense<0.000000e+00> : vector<2x8x32xf32>
      %298 = tpu.matmul %295, %297, %cst_144 {dimension_numbers = #tpu.dot_dimension_numbers<[2], [0], [0, 1], [1], [0, 0, 0, 1, 1, 1], [], []>} : vector<2x8x64xf32>, vector<64x32xf32>, vector<2x8x32xf32> -> vector<2x8x32xf32>
      "tpu.trace_stop"() : () -> ()
      %299 = vector.shape_cast %29 : vector<1x32xf32> to vector<1x1x32xf32>
      %300 = vector.broadcast %299 : vector<1x1x32xf32> to vector<2x8x32xf32>
      %301 = arith.addf %298, %300 : vector<2x8x32xf32>
      %302 = arith.addf %287, %301 : vector<2x8x32xf32>
      %cst_145 = arith.constant dense<0.000000e+00> : vector<2x8xf32>
      %303 = vector.multi_reduction <add>, %302, %cst_145 [2] : vector<2x8x32xf32> to vector<2x8xf32>
      %304 = vector.shape_cast %303 : vector<2x8xf32> to vector<2x8x1xf32>
      %cst_146 = arith.constant 3.200000e+01 : f32
      %305 = vector.broadcast %cst_146 : f32 to vector<2x8x1xf32>
      %306 = arith.divf %304, %305 : vector<2x8x1xf32>
      %307 = vector.broadcast %306 : vector<2x8x1xf32> to vector<2x8x32xf32>
      %308 = arith.subf %302, %307 : vector<2x8x32xf32>
      %309 = arith.mulf %308, %308 : vector<2x8x32xf32>
      %cst_147 = arith.constant dense<0.000000e+00> : vector<2x8xf32>
      %310 = vector.multi_reduction <add>, %309, %cst_147 [2] : vector<2x8x32xf32> to vector<2x8xf32>
      %311 = vector.shape_cast %310 : vector<2x8xf32> to vector<2x8x1xf32>
      %cst_148 = arith.constant 3.200000e+01 : f32
      %312 = vector.broadcast %cst_148 : f32 to vector<2x8x1xf32>
      %313 = arith.divf %311, %312 : vector<2x8x1xf32>
      %314 = vector.broadcast %306 : vector<2x8x1xf32> to vector<2x8x32xf32>
      %315 = arith.subf %302, %314 : vector<2x8x32xf32>
      %cst_149 = arith.constant 9.99999974E-6 : f32
      %316 = vector.broadcast %cst_149 : f32 to vector<2x8x1xf32>
      %317 = arith.addf %313, %316 : vector<2x8x1xf32>
      %318 = math.rsqrt %317 : vector<2x8x1xf32>
      %319 = vector.broadcast %318 : vector<2x8x1xf32> to vector<2x8x32xf32>
      %320 = arith.mulf %315, %319 : vector<2x8x32xf32>
      %321 = vector.shape_cast %34 : vector<1x32xf32> to vector<1x1x32xf32>
      %322 = vector.broadcast %321 : vector<1x1x32xf32> to vector<2x8x32xf32>
      %323 = arith.mulf %320, %322 : vector<2x8x32xf32>
      %324 = vector.shape_cast %35 : vector<1x32xf32> to vector<1x1x32xf32>
      %325 = vector.broadcast %324 : vector<1x1x32xf32> to vector<2x8x32xf32>
      %326 = arith.addf %323, %325 : vector<2x8x32xf32>
      %327 = vector.broadcast %arg15 : i32 to vector<1x8x1xi32>
      %328 = arith.cmpi eq, %68, %327 : vector<1x8x1xi32>
      %329 = arith.extui %328 : vector<1x8x1xi1> to vector<1x8x1xi32>
      %330 = arith.sitofp %329 : vector<1x8x1xi32> to vector<1x8x1xf32>
      %331 = vector.broadcast %330 : vector<1x8x1xf32> to vector<2x8x32xf32>
      %332 = arith.mulf %326, %331 : vector<2x8x32xf32>
      %cst_150 = arith.constant dense<0.000000e+00> : vector<2x32xf32>
      %333 = vector.multi_reduction <add>, %332, %cst_150 [1] : vector<2x8x32xf32> to vector<2x32xf32>
      %334 = vector.shape_cast %333 : vector<2x32xf32> to vector<2x1x32xf32>
      %c1_151 = arith.constant 1 : index
      %c0_152 = arith.constant 0 : index
      %c0_153 = arith.constant 0 : index
      %c0_154 = arith.constant 0 : index
      %335 = vector.load %arg4[%c1_151, %c0_152, %c0_153, %c0_154] : memref<2x4x32x8xf32, #tpu.memory_space<vmem>>, vector<1x1x32x8xf32>
      %336 = vector.shape_cast %335 : vector<1x1x32x8xf32> to vector<32x8xf32>
      "tpu.trace_start"() <{level = 10 : i32, message = "bqe,ed->bqd"}> : () -> ()
      %cst_155 = arith.constant dense<0.000000e+00> : vector<2x1x8xf32>
      %337 = tpu.matmul %334, %336, %cst_155 {dimension_numbers = #tpu.dot_dimension_numbers<[2], [0], [0, 1], [1], [0, 0, 0, 1, 1, 1], [], []>} : vector<2x1x32xf32>, vector<32x8xf32>, vector<2x1x8xf32> -> vector<2x1x8xf32>
      "tpu.trace_stop"() : () -> ()
      %338 = vector.shape_cast %46 : vector<1x8xf32> to vector<1x1x8xf32>
      %339 = vector.broadcast %338 : vector<1x1x8xf32> to vector<2x1x8xf32>
      %340 = arith.addf %337, %339 : vector<2x1x8xf32>
      %c1_156 = arith.constant 1 : index
      %c0_157 = arith.constant 0 : index
      %c0_158 = arith.constant 0 : index
      %c0_159 = arith.constant 0 : index
      %341 = vector.load %arg5[%c1_156, %c0_157, %c0_158, %c0_159] : memref<2x4x32x8xf32, #tpu.memory_space<vmem>>, vector<1x1x32x8xf32>
      %342 = vector.shape_cast %341 : vector<1x1x32x8xf32> to vector<32x8xf32>
      "tpu.trace_start"() <{level = 10 : i32, message = "bke,ed->bkd"}> : () -> ()
      %cst_160 = arith.constant dense<0.000000e+00> : vector<2x8x8xf32>
      %343 = tpu.matmul %326, %342, %cst_160 {dimension_numbers = #tpu.dot_dimension_numbers<[2], [0], [0, 1], [1], [0, 0, 0, 1, 1, 1], [], []>} : vector<2x8x32xf32>, vector<32x8xf32>, vector<2x8x8xf32> -> vector<2x8x8xf32>
      "tpu.trace_stop"() : () -> ()
      %344 = vector.shape_cast %50 : vector<1x8xf32> to vector<1x1x8xf32>
      %345 = vector.broadcast %344 : vector<1x1x8xf32> to vector<2x8x8xf32>
      %346 = arith.addf %343, %345 : vector<2x8x8xf32>
      %c1_161 = arith.constant 1 : index
      %c0_162 = arith.constant 0 : index
      %c0_163 = arith.constant 0 : index
      %c0_164 = arith.constant 0 : index
      %347 = vector.load %arg6[%c1_161, %c0_162, %c0_163, %c0_164] : memref<2x4x32x8xf32, #tpu.memory_space<vmem>>, vector<1x1x32x8xf32>
      %348 = vector.shape_cast %347 : vector<1x1x32x8xf32> to vector<32x8xf32>
      "tpu.trace_start"() <{level = 10 : i32, message = "bke,ed->bkd"}> : () -> ()
      %cst_165 = arith.constant dense<0.000000e+00> : vector<2x8x8xf32>
      %349 = tpu.matmul %326, %348, %cst_165 {dimension_numbers = #tpu.dot_dimension_numbers<[2], [0], [0, 1], [1], [0, 0, 0, 1, 1, 1], [], []>} : vector<2x8x32xf32>, vector<32x8xf32>, vector<2x8x8xf32> -> vector<2x8x8xf32>
      "tpu.trace_stop"() : () -> ()
      %350 = vector.shape_cast %54 : vector<1x8xf32> to vector<1x1x8xf32>
      %351 = vector.broadcast %350 : vector<1x1x8xf32> to vector<2x8x8xf32>
      %352 = arith.addf %349, %351 : vector<2x8x8xf32>
      "tpu.trace_start"() <{level = 10 : i32, message = "bqd,bkd->bqk"}> : () -> ()
      %cst_166 = arith.constant dense<0.000000e+00> : vector<2x1x8xf32>
      %353 = tpu.matmul %340, %346, %cst_166 {dimension_numbers = #tpu.dot_dimension_numbers<[2], [2], [1], [1], [0, 0, 0, 1, 1, 1], [0], [0]>} : vector<2x1x8xf32>, vector<2x8x8xf32>, vector<2x1x8xf32> -> vector<2x1x8xf32>
      "tpu.trace_stop"() : () -> ()
      %354 = vector.broadcast %90 : vector<1x1x8xf32> to vector<2x1x8xf32>
      %355 = arith.addf %353, %354 : vector<2x1x8xf32>
      %cst_167 = arith.constant dense<0xFF800000> : vector<2x1xf32>
      %356 = vector.multi_reduction <maximumf>, %355, %cst_167 [2] : vector<2x1x8xf32> to vector<2x1xf32>
      %357 = vector.shape_cast %356 : vector<2x1xf32> to vector<2x1x1xf32>
      %358 = vector.broadcast %357 : vector<2x1x1xf32> to vector<2x1x8xf32>
      %359 = arith.subf %355, %358 : vector<2x1x8xf32>
      %360 = math.exp %359 : vector<2x1x8xf32>
      %cst_168 = arith.constant dense<0.000000e+00> : vector<2x1xf32>
      %361 = vector.multi_reduction <add>, %360, %cst_168 [2] : vector<2x1x8xf32> to vector<2x1xf32>
      %362 = vector.shape_cast %361 : vector<2x1xf32> to vector<2x1x1xf32>
      %363 = tpu.reciprocal %362 : vector<2x1x1xf32> -> vector<2x1x1xf32>
      %364 = vector.broadcast %363 : vector<2x1x1xf32> to vector<2x1x8xf32>
      %365 = arith.mulf %360, %364 : vector<2x1x8xf32>
      "tpu.trace_start"() <{level = 10 : i32, message = "bqk,bkd->bqd"}> : () -> ()
      %cst_169 = arith.constant dense<0.000000e+00> : vector<2x1x8xf32>
      %366 = tpu.matmul %365, %352, %cst_169 {dimension_numbers = #tpu.dot_dimension_numbers<[2], [1], [1], [2], [0, 0, 0, 1, 1, 2], [0], [0]>} : vector<2x1x8xf32>, vector<2x8x8xf32>, vector<2x1x8xf32> -> vector<2x1x8xf32>
      "tpu.trace_stop"() : () -> ()
      %c1_170 = arith.constant 1 : index
      %c0_171 = arith.constant 0 : index
      %c0_172 = arith.constant 0 : index
      %c0_173 = arith.constant 0 : index
      %367 = vector.load %arg7[%c1_170, %c0_171, %c0_172, %c0_173] : memref<2x4x8x32xf32, #tpu.memory_space<vmem>>, vector<1x1x8x32xf32>
      %368 = vector.shape_cast %367 : vector<1x1x8x32xf32> to vector<8x32xf32>
      "tpu.trace_start"() <{level = 10 : i32, message = "bqd,de->bqe"}> : () -> ()
      %cst_174 = arith.constant dense<0.000000e+00> : vector<2x1x32xf32>
      %369 = tpu.matmul %366, %368, %cst_174 {dimension_numbers = #tpu.dot_dimension_numbers<[2], [0], [0, 1], [1], [0, 0, 0, 1, 1, 1], [], []>} : vector<2x1x8xf32>, vector<8x32xf32>, vector<2x1x32xf32> -> vector<2x1x32xf32>
      "tpu.trace_stop"() : () -> ()
      %c1_175 = arith.constant 1 : index
      %c1_176 = arith.constant 1 : index
      %c0_177 = arith.constant 0 : index
      %c0_178 = arith.constant 0 : index
      %370 = vector.load %arg4[%c1_175, %c1_176, %c0_177, %c0_178] : memref<2x4x32x8xf32, #tpu.memory_space<vmem>>, vector<1x1x32x8xf32>
      %371 = vector.shape_cast %370 : vector<1x1x32x8xf32> to vector<32x8xf32>
      "tpu.trace_start"() <{level = 10 : i32, message = "bqe,ed->bqd"}> : () -> ()
      %cst_179 = arith.constant dense<0.000000e+00> : vector<2x1x8xf32>
      %372 = tpu.matmul %334, %371, %cst_179 {dimension_numbers = #tpu.dot_dimension_numbers<[2], [0], [0, 1], [1], [0, 0, 0, 1, 1, 1], [], []>} : vector<2x1x32xf32>, vector<32x8xf32>, vector<2x1x8xf32> -> vector<2x1x8xf32>
      "tpu.trace_stop"() : () -> ()
      %373 = vector.shape_cast %47 : vector<1x8xf32> to vector<1x1x8xf32>
      %374 = vector.broadcast %373 : vector<1x1x8xf32> to vector<2x1x8xf32>
      %375 = arith.addf %372, %374 : vector<2x1x8xf32>
      %c1_180 = arith.constant 1 : index
      %c1_181 = arith.constant 1 : index
      %c0_182 = arith.constant 0 : index
      %c0_183 = arith.constant 0 : index
      %376 = vector.load %arg5[%c1_180, %c1_181, %c0_182, %c0_183] : memref<2x4x32x8xf32, #tpu.memory_space<vmem>>, vector<1x1x32x8xf32>
      %377 = vector.shape_cast %376 : vector<1x1x32x8xf32> to vector<32x8xf32>
      "tpu.trace_start"() <{level = 10 : i32, message = "bke,ed->bkd"}> : () -> ()
      %cst_184 = arith.constant dense<0.000000e+00> : vector<2x8x8xf32>
      %378 = tpu.matmul %326, %377, %cst_184 {dimension_numbers = #tpu.dot_dimension_numbers<[2], [0], [0, 1], [1], [0, 0, 0, 1, 1, 1], [], []>} : vector<2x8x32xf32>, vector<32x8xf32>, vector<2x8x8xf32> -> vector<2x8x8xf32>
      "tpu.trace_stop"() : () -> ()
      %379 = vector.shape_cast %51 : vector<1x8xf32> to vector<1x1x8xf32>
      %380 = vector.broadcast %379 : vector<1x1x8xf32> to vector<2x8x8xf32>
      %381 = arith.addf %378, %380 : vector<2x8x8xf32>
      %c1_185 = arith.constant 1 : index
      %c1_186 = arith.constant 1 : index
      %c0_187 = arith.constant 0 : index
      %c0_188 = arith.constant 0 : index
      %382 = vector.load %arg6[%c1_185, %c1_186, %c0_187, %c0_188] : memref<2x4x32x8xf32, #tpu.memory_space<vmem>>, vector<1x1x32x8xf32>
      %383 = vector.shape_cast %382 : vector<1x1x32x8xf32> to vector<32x8xf32>
      "tpu.trace_start"() <{level = 10 : i32, message = "bke,ed->bkd"}> : () -> ()
      %cst_189 = arith.constant dense<0.000000e+00> : vector<2x8x8xf32>
      %384 = tpu.matmul %326, %383, %cst_189 {dimension_numbers = #tpu.dot_dimension_numbers<[2], [0], [0, 1], [1], [0, 0, 0, 1, 1, 1], [], []>} : vector<2x8x32xf32>, vector<32x8xf32>, vector<2x8x8xf32> -> vector<2x8x8xf32>
      "tpu.trace_stop"() : () -> ()
      %385 = vector.shape_cast %55 : vector<1x8xf32> to vector<1x1x8xf32>
      %386 = vector.broadcast %385 : vector<1x1x8xf32> to vector<2x8x8xf32>
      %387 = arith.addf %384, %386 : vector<2x8x8xf32>
      "tpu.trace_start"() <{level = 10 : i32, message = "bqd,bkd->bqk"}> : () -> ()
      %cst_190 = arith.constant dense<0.000000e+00> : vector<2x1x8xf32>
      %388 = tpu.matmul %375, %381, %cst_190 {dimension_numbers = #tpu.dot_dimension_numbers<[2], [2], [1], [1], [0, 0, 0, 1, 1, 1], [0], [0]>} : vector<2x1x8xf32>, vector<2x8x8xf32>, vector<2x1x8xf32> -> vector<2x1x8xf32>
      "tpu.trace_stop"() : () -> ()
      %389 = vector.broadcast %90 : vector<1x1x8xf32> to vector<2x1x8xf32>
      %390 = arith.addf %388, %389 : vector<2x1x8xf32>
      %cst_191 = arith.constant dense<0xFF800000> : vector<2x1xf32>
      %391 = vector.multi_reduction <maximumf>, %390, %cst_191 [2] : vector<2x1x8xf32> to vector<2x1xf32>
      %392 = vector.shape_cast %391 : vector<2x1xf32> to vector<2x1x1xf32>
      %393 = vector.broadcast %392 : vector<2x1x1xf32> to vector<2x1x8xf32>
      %394 = arith.subf %390, %393 : vector<2x1x8xf32>
      %395 = math.exp %394 : vector<2x1x8xf32>
      %cst_192 = arith.constant dense<0.000000e+00> : vector<2x1xf32>
      %396 = vector.multi_reduction <add>, %395, %cst_192 [2] : vector<2x1x8xf32> to vector<2x1xf32>
      %397 = vector.shape_cast %396 : vector<2x1xf32> to vector<2x1x1xf32>
      %398 = tpu.reciprocal %397 : vector<2x1x1xf32> -> vector<2x1x1xf32>
      %399 = vector.broadcast %398 : vector<2x1x1xf32> to vector<2x1x8xf32>
      %400 = arith.mulf %395, %399 : vector<2x1x8xf32>
      "tpu.trace_start"() <{level = 10 : i32, message = "bqk,bkd->bqd"}> : () -> ()
      %cst_193 = arith.constant dense<0.000000e+00> : vector<2x1x8xf32>
      %401 = tpu.matmul %400, %387, %cst_193 {dimension_numbers = #tpu.dot_dimension_numbers<[2], [1], [1], [2], [0, 0, 0, 1, 1, 2], [0], [0]>} : vector<2x1x8xf32>, vector<2x8x8xf32>, vector<2x1x8xf32> -> vector<2x1x8xf32>
      "tpu.trace_stop"() : () -> ()
      %c1_194 = arith.constant 1 : index
      %c1_195 = arith.constant 1 : index
      %c0_196 = arith.constant 0 : index
      %c0_197 = arith.constant 0 : index
      %402 = vector.load %arg7[%c1_194, %c1_195, %c0_196, %c0_197] : memref<2x4x8x32xf32, #tpu.memory_space<vmem>>, vector<1x1x8x32xf32>
      %403 = vector.shape_cast %402 : vector<1x1x8x32xf32> to vector<8x32xf32>
      "tpu.trace_start"() <{level = 10 : i32, message = "bqd,de->bqe"}> : () -> ()
      %cst_198 = arith.constant dense<0.000000e+00> : vector<2x1x32xf32>
      %404 = tpu.matmul %401, %403, %cst_198 {dimension_numbers = #tpu.dot_dimension_numbers<[2], [0], [0, 1], [1], [0, 0, 0, 1, 1, 1], [], []>} : vector<2x1x8xf32>, vector<8x32xf32>, vector<2x1x32xf32> -> vector<2x1x32xf32>
      "tpu.trace_stop"() : () -> ()
      %405 = arith.addf %369, %404 : vector<2x1x32xf32>
      %c1_199 = arith.constant 1 : index
      %c2_200 = arith.constant 2 : index
      %c0_201 = arith.constant 0 : index
      %c0_202 = arith.constant 0 : index
      %406 = vector.load %arg4[%c1_199, %c2_200, %c0_201, %c0_202] : memref<2x4x32x8xf32, #tpu.memory_space<vmem>>, vector<1x1x32x8xf32>
      %407 = vector.shape_cast %406 : vector<1x1x32x8xf32> to vector<32x8xf32>
      "tpu.trace_start"() <{level = 10 : i32, message = "bqe,ed->bqd"}> : () -> ()
      %cst_203 = arith.constant dense<0.000000e+00> : vector<2x1x8xf32>
      %408 = tpu.matmul %334, %407, %cst_203 {dimension_numbers = #tpu.dot_dimension_numbers<[2], [0], [0, 1], [1], [0, 0, 0, 1, 1, 1], [], []>} : vector<2x1x32xf32>, vector<32x8xf32>, vector<2x1x8xf32> -> vector<2x1x8xf32>
      "tpu.trace_stop"() : () -> ()
      %409 = vector.shape_cast %48 : vector<1x8xf32> to vector<1x1x8xf32>
      %410 = vector.broadcast %409 : vector<1x1x8xf32> to vector<2x1x8xf32>
      %411 = arith.addf %408, %410 : vector<2x1x8xf32>
      %c1_204 = arith.constant 1 : index
      %c2_205 = arith.constant 2 : index
      %c0_206 = arith.constant 0 : index
      %c0_207 = arith.constant 0 : index
      %412 = vector.load %arg5[%c1_204, %c2_205, %c0_206, %c0_207] : memref<2x4x32x8xf32, #tpu.memory_space<vmem>>, vector<1x1x32x8xf32>
      %413 = vector.shape_cast %412 : vector<1x1x32x8xf32> to vector<32x8xf32>
      "tpu.trace_start"() <{level = 10 : i32, message = "bke,ed->bkd"}> : () -> ()
      %cst_208 = arith.constant dense<0.000000e+00> : vector<2x8x8xf32>
      %414 = tpu.matmul %326, %413, %cst_208 {dimension_numbers = #tpu.dot_dimension_numbers<[2], [0], [0, 1], [1], [0, 0, 0, 1, 1, 1], [], []>} : vector<2x8x32xf32>, vector<32x8xf32>, vector<2x8x8xf32> -> vector<2x8x8xf32>
      "tpu.trace_stop"() : () -> ()
      %415 = vector.shape_cast %52 : vector<1x8xf32> to vector<1x1x8xf32>
      %416 = vector.broadcast %415 : vector<1x1x8xf32> to vector<2x8x8xf32>
      %417 = arith.addf %414, %416 : vector<2x8x8xf32>
      %c1_209 = arith.constant 1 : index
      %c2_210 = arith.constant 2 : index
      %c0_211 = arith.constant 0 : index
      %c0_212 = arith.constant 0 : index
      %418 = vector.load %arg6[%c1_209, %c2_210, %c0_211, %c0_212] : memref<2x4x32x8xf32, #tpu.memory_space<vmem>>, vector<1x1x32x8xf32>
      %419 = vector.shape_cast %418 : vector<1x1x32x8xf32> to vector<32x8xf32>
      "tpu.trace_start"() <{level = 10 : i32, message = "bke,ed->bkd"}> : () -> ()
      %cst_213 = arith.constant dense<0.000000e+00> : vector<2x8x8xf32>
      %420 = tpu.matmul %326, %419, %cst_213 {dimension_numbers = #tpu.dot_dimension_numbers<[2], [0], [0, 1], [1], [0, 0, 0, 1, 1, 1], [], []>} : vector<2x8x32xf32>, vector<32x8xf32>, vector<2x8x8xf32> -> vector<2x8x8xf32>
      "tpu.trace_stop"() : () -> ()
      %421 = vector.shape_cast %56 : vector<1x8xf32> to vector<1x1x8xf32>
      %422 = vector.broadcast %421 : vector<1x1x8xf32> to vector<2x8x8xf32>
      %423 = arith.addf %420, %422 : vector<2x8x8xf32>
      "tpu.trace_start"() <{level = 10 : i32, message = "bqd,bkd->bqk"}> : () -> ()
      %cst_214 = arith.constant dense<0.000000e+00> : vector<2x1x8xf32>
      %424 = tpu.matmul %411, %417, %cst_214 {dimension_numbers = #tpu.dot_dimension_numbers<[2], [2], [1], [1], [0, 0, 0, 1, 1, 1], [0], [0]>} : vector<2x1x8xf32>, vector<2x8x8xf32>, vector<2x1x8xf32> -> vector<2x1x8xf32>
      "tpu.trace_stop"() : () -> ()
      %425 = vector.broadcast %90 : vector<1x1x8xf32> to vector<2x1x8xf32>
      %426 = arith.addf %424, %425 : vector<2x1x8xf32>
      %cst_215 = arith.constant dense<0xFF800000> : vector<2x1xf32>
      %427 = vector.multi_reduction <maximumf>, %426, %cst_215 [2] : vector<2x1x8xf32> to vector<2x1xf32>
      %428 = vector.shape_cast %427 : vector<2x1xf32> to vector<2x1x1xf32>
      %429 = vector.broadcast %428 : vector<2x1x1xf32> to vector<2x1x8xf32>
      %430 = arith.subf %426, %429 : vector<2x1x8xf32>
      %431 = math.exp %430 : vector<2x1x8xf32>
      %cst_216 = arith.constant dense<0.000000e+00> : vector<2x1xf32>
      %432 = vector.multi_reduction <add>, %431, %cst_216 [2] : vector<2x1x8xf32> to vector<2x1xf32>
      %433 = vector.shape_cast %432 : vector<2x1xf32> to vector<2x1x1xf32>
      %434 = tpu.reciprocal %433 : vector<2x1x1xf32> -> vector<2x1x1xf32>
      %435 = vector.broadcast %434 : vector<2x1x1xf32> to vector<2x1x8xf32>
      %436 = arith.mulf %431, %435 : vector<2x1x8xf32>
      "tpu.trace_start"() <{level = 10 : i32, message = "bqk,bkd->bqd"}> : () -> ()
      %cst_217 = arith.constant dense<0.000000e+00> : vector<2x1x8xf32>
      %437 = tpu.matmul %436, %423, %cst_217 {dimension_numbers = #tpu.dot_dimension_numbers<[2], [1], [1], [2], [0, 0, 0, 1, 1, 2], [0], [0]>} : vector<2x1x8xf32>, vector<2x8x8xf32>, vector<2x1x8xf32> -> vector<2x1x8xf32>
      "tpu.trace_stop"() : () -> ()
      %c1_218 = arith.constant 1 : index
      %c2_219 = arith.constant 2 : index
      %c0_220 = arith.constant 0 : index
      %c0_221 = arith.constant 0 : index
      %438 = vector.load %arg7[%c1_218, %c2_219, %c0_220, %c0_221] : memref<2x4x8x32xf32, #tpu.memory_space<vmem>>, vector<1x1x8x32xf32>
      %439 = vector.shape_cast %438 : vector<1x1x8x32xf32> to vector<8x32xf32>
      "tpu.trace_start"() <{level = 10 : i32, message = "bqd,de->bqe"}> : () -> ()
      %cst_222 = arith.constant dense<0.000000e+00> : vector<2x1x32xf32>
      %440 = tpu.matmul %437, %439, %cst_222 {dimension_numbers = #tpu.dot_dimension_numbers<[2], [0], [0, 1], [1], [0, 0, 0, 1, 1, 1], [], []>} : vector<2x1x8xf32>, vector<8x32xf32>, vector<2x1x32xf32> -> vector<2x1x32xf32>
      "tpu.trace_stop"() : () -> ()
      %441 = arith.addf %405, %440 : vector<2x1x32xf32>
      %c1_223 = arith.constant 1 : index
      %c3_224 = arith.constant 3 : index
      %c0_225 = arith.constant 0 : index
      %c0_226 = arith.constant 0 : index
      %442 = vector.load %arg4[%c1_223, %c3_224, %c0_225, %c0_226] : memref<2x4x32x8xf32, #tpu.memory_space<vmem>>, vector<1x1x32x8xf32>
      %443 = vector.shape_cast %442 : vector<1x1x32x8xf32> to vector<32x8xf32>
      "tpu.trace_start"() <{level = 10 : i32, message = "bqe,ed->bqd"}> : () -> ()
      %cst_227 = arith.constant dense<0.000000e+00> : vector<2x1x8xf32>
      %444 = tpu.matmul %334, %443, %cst_227 {dimension_numbers = #tpu.dot_dimension_numbers<[2], [0], [0, 1], [1], [0, 0, 0, 1, 1, 1], [], []>} : vector<2x1x32xf32>, vector<32x8xf32>, vector<2x1x8xf32> -> vector<2x1x8xf32>
      "tpu.trace_stop"() : () -> ()
      %445 = vector.shape_cast %49 : vector<1x8xf32> to vector<1x1x8xf32>
      %446 = vector.broadcast %445 : vector<1x1x8xf32> to vector<2x1x8xf32>
      %447 = arith.addf %444, %446 : vector<2x1x8xf32>
      %c1_228 = arith.constant 1 : index
      %c3_229 = arith.constant 3 : index
      %c0_230 = arith.constant 0 : index
      %c0_231 = arith.constant 0 : index
      %448 = vector.load %arg5[%c1_228, %c3_229, %c0_230, %c0_231] : memref<2x4x32x8xf32, #tpu.memory_space<vmem>>, vector<1x1x32x8xf32>
      %449 = vector.shape_cast %448 : vector<1x1x32x8xf32> to vector<32x8xf32>
      "tpu.trace_start"() <{level = 10 : i32, message = "bke,ed->bkd"}> : () -> ()
      %cst_232 = arith.constant dense<0.000000e+00> : vector<2x8x8xf32>
      %450 = tpu.matmul %326, %449, %cst_232 {dimension_numbers = #tpu.dot_dimension_numbers<[2], [0], [0, 1], [1], [0, 0, 0, 1, 1, 1], [], []>} : vector<2x8x32xf32>, vector<32x8xf32>, vector<2x8x8xf32> -> vector<2x8x8xf32>
      "tpu.trace_stop"() : () -> ()
      %451 = vector.shape_cast %53 : vector<1x8xf32> to vector<1x1x8xf32>
      %452 = vector.broadcast %451 : vector<1x1x8xf32> to vector<2x8x8xf32>
      %453 = arith.addf %450, %452 : vector<2x8x8xf32>
      %c1_233 = arith.constant 1 : index
      %c3_234 = arith.constant 3 : index
      %c0_235 = arith.constant 0 : index
      %c0_236 = arith.constant 0 : index
      %454 = vector.load %arg6[%c1_233, %c3_234, %c0_235, %c0_236] : memref<2x4x32x8xf32, #tpu.memory_space<vmem>>, vector<1x1x32x8xf32>
      %455 = vector.shape_cast %454 : vector<1x1x32x8xf32> to vector<32x8xf32>
      "tpu.trace_start"() <{level = 10 : i32, message = "bke,ed->bkd"}> : () -> ()
      %cst_237 = arith.constant dense<0.000000e+00> : vector<2x8x8xf32>
      %456 = tpu.matmul %326, %455, %cst_237 {dimension_numbers = #tpu.dot_dimension_numbers<[2], [0], [0, 1], [1], [0, 0, 0, 1, 1, 1], [], []>} : vector<2x8x32xf32>, vector<32x8xf32>, vector<2x8x8xf32> -> vector<2x8x8xf32>
      "tpu.trace_stop"() : () -> ()
      %457 = vector.shape_cast %57 : vector<1x8xf32> to vector<1x1x8xf32>
      %458 = vector.broadcast %457 : vector<1x1x8xf32> to vector<2x8x8xf32>
      %459 = arith.addf %456, %458 : vector<2x8x8xf32>
      "tpu.trace_start"() <{level = 10 : i32, message = "bqd,bkd->bqk"}> : () -> ()
      %cst_238 = arith.constant dense<0.000000e+00> : vector<2x1x8xf32>
      %460 = tpu.matmul %447, %453, %cst_238 {dimension_numbers = #tpu.dot_dimension_numbers<[2], [2], [1], [1], [0, 0, 0, 1, 1, 1], [0], [0]>} : vector<2x1x8xf32>, vector<2x8x8xf32>, vector<2x1x8xf32> -> vector<2x1x8xf32>
      "tpu.trace_stop"() : () -> ()
      %461 = vector.broadcast %90 : vector<1x1x8xf32> to vector<2x1x8xf32>
      %462 = arith.addf %460, %461 : vector<2x1x8xf32>
      %cst_239 = arith.constant dense<0xFF800000> : vector<2x1xf32>
      %463 = vector.multi_reduction <maximumf>, %462, %cst_239 [2] : vector<2x1x8xf32> to vector<2x1xf32>
      %464 = vector.shape_cast %463 : vector<2x1xf32> to vector<2x1x1xf32>
      %465 = vector.broadcast %464 : vector<2x1x1xf32> to vector<2x1x8xf32>
      %466 = arith.subf %462, %465 : vector<2x1x8xf32>
      %467 = math.exp %466 : vector<2x1x8xf32>
      %cst_240 = arith.constant dense<0.000000e+00> : vector<2x1xf32>
      %468 = vector.multi_reduction <add>, %467, %cst_240 [2] : vector<2x1x8xf32> to vector<2x1xf32>
      %469 = vector.shape_cast %468 : vector<2x1xf32> to vector<2x1x1xf32>
      %470 = tpu.reciprocal %469 : vector<2x1x1xf32> -> vector<2x1x1xf32>
      %471 = vector.broadcast %470 : vector<2x1x1xf32> to vector<2x1x8xf32>
      %472 = arith.mulf %467, %471 : vector<2x1x8xf32>
      "tpu.trace_start"() <{level = 10 : i32, message = "bqk,bkd->bqd"}> : () -> ()
      %cst_241 = arith.constant dense<0.000000e+00> : vector<2x1x8xf32>
      %473 = tpu.matmul %472, %459, %cst_241 {dimension_numbers = #tpu.dot_dimension_numbers<[2], [1], [1], [2], [0, 0, 0, 1, 1, 2], [0], [0]>} : vector<2x1x8xf32>, vector<2x8x8xf32>, vector<2x1x8xf32> -> vector<2x1x8xf32>
      "tpu.trace_stop"() : () -> ()
      %c1_242 = arith.constant 1 : index
      %c3_243 = arith.constant 3 : index
      %c0_244 = arith.constant 0 : index
      %c0_245 = arith.constant 0 : index
      %474 = vector.load %arg7[%c1_242, %c3_243, %c0_244, %c0_245] : memref<2x4x8x32xf32, #tpu.memory_space<vmem>>, vector<1x1x8x32xf32>
      %475 = vector.shape_cast %474 : vector<1x1x8x32xf32> to vector<8x32xf32>
      "tpu.trace_start"() <{level = 10 : i32, message = "bqd,de->bqe"}> : () -> ()
      %cst_246 = arith.constant dense<0.000000e+00> : vector<2x1x32xf32>
      %476 = tpu.matmul %473, %475, %cst_246 {dimension_numbers = #tpu.dot_dimension_numbers<[2], [0], [0, 1], [1], [0, 0, 0, 1, 1, 1], [], []>} : vector<2x1x8xf32>, vector<8x32xf32>, vector<2x1x32xf32> -> vector<2x1x32xf32>
      "tpu.trace_stop"() : () -> ()
      %477 = arith.addf %441, %476 : vector<2x1x32xf32>
      %478 = vector.shape_cast %58 : vector<1x32xf32> to vector<1x1x32xf32>
      %479 = vector.broadcast %478 : vector<1x1x32xf32> to vector<2x1x32xf32>
      %480 = arith.addf %477, %479 : vector<2x1x32xf32>
      %481 = arith.addf %334, %480 : vector<2x1x32xf32>
      %cst_247 = arith.constant dense<0.000000e+00> : vector<2x1xf32>
      %482 = vector.multi_reduction <add>, %481, %cst_247 [2] : vector<2x1x32xf32> to vector<2x1xf32>
      %483 = vector.shape_cast %482 : vector<2x1xf32> to vector<2x1x1xf32>
      %cst_248 = arith.constant 3.200000e+01 : f32
      %484 = vector.broadcast %cst_248 : f32 to vector<2x1x1xf32>
      %485 = arith.divf %483, %484 : vector<2x1x1xf32>
      %486 = vector.broadcast %485 : vector<2x1x1xf32> to vector<2x1x32xf32>
      %487 = arith.subf %481, %486 : vector<2x1x32xf32>
      %488 = arith.mulf %487, %487 : vector<2x1x32xf32>
      %cst_249 = arith.constant dense<0.000000e+00> : vector<2x1xf32>
      %489 = vector.multi_reduction <add>, %488, %cst_249 [2] : vector<2x1x32xf32> to vector<2x1xf32>
      %490 = vector.shape_cast %489 : vector<2x1xf32> to vector<2x1x1xf32>
      %cst_250 = arith.constant 3.200000e+01 : f32
      %491 = vector.broadcast %cst_250 : f32 to vector<2x1x1xf32>
      %492 = arith.divf %490, %491 : vector<2x1x1xf32>
      %493 = vector.broadcast %485 : vector<2x1x1xf32> to vector<2x1x32xf32>
      %494 = arith.subf %481, %493 : vector<2x1x32xf32>
      %cst_251 = arith.constant 9.99999974E-6 : f32
      %495 = vector.broadcast %cst_251 : f32 to vector<2x1x1xf32>
      %496 = arith.addf %492, %495 : vector<2x1x1xf32>
      %497 = math.rsqrt %496 : vector<2x1x1xf32>
      %498 = vector.broadcast %497 : vector<2x1x1xf32> to vector<2x1x32xf32>
      %499 = arith.mulf %494, %498 : vector<2x1x32xf32>
      %500 = vector.shape_cast %61 : vector<1x32xf32> to vector<1x1x32xf32>
      %501 = vector.broadcast %500 : vector<1x1x32xf32> to vector<2x1x32xf32>
      %502 = arith.mulf %499, %501 : vector<2x1x32xf32>
      %503 = vector.shape_cast %62 : vector<1x32xf32> to vector<1x1x32xf32>
      %504 = vector.broadcast %503 : vector<1x1x32xf32> to vector<2x1x32xf32>
      %505 = arith.addf %502, %504 : vector<2x1x32xf32>
      %506 = arith.addf %505, %45 : vector<2x1x32xf32>
      %cst_252 = arith.constant dense<0.000000e+00> : vector<2x1xf32>
      %507 = vector.multi_reduction <add>, %506, %cst_252 [2] : vector<2x1x32xf32> to vector<2x1xf32>
      %508 = vector.shape_cast %507 : vector<2x1xf32> to vector<2x1x1xf32>
      %cst_253 = arith.constant 3.200000e+01 : f32
      %509 = vector.broadcast %cst_253 : f32 to vector<2x1x1xf32>
      %510 = arith.divf %508, %509 : vector<2x1x1xf32>
      %511 = vector.broadcast %510 : vector<2x1x1xf32> to vector<2x1x32xf32>
      %512 = arith.subf %506, %511 : vector<2x1x32xf32>
      %513 = arith.mulf %512, %512 : vector<2x1x32xf32>
      %cst_254 = arith.constant dense<0.000000e+00> : vector<2x1xf32>
      %514 = vector.multi_reduction <add>, %513, %cst_254 [2] : vector<2x1x32xf32> to vector<2x1xf32>
      %515 = vector.shape_cast %514 : vector<2x1xf32> to vector<2x1x1xf32>
      %cst_255 = arith.constant 3.200000e+01 : f32
      %516 = vector.broadcast %cst_255 : f32 to vector<2x1x1xf32>
      %517 = arith.divf %515, %516 : vector<2x1x1xf32>
      %518 = vector.broadcast %510 : vector<2x1x1xf32> to vector<2x1x32xf32>
      %519 = arith.subf %506, %518 : vector<2x1x32xf32>
      %cst_256 = arith.constant 9.99999974E-6 : f32
      %520 = vector.broadcast %cst_256 : f32 to vector<2x1x1xf32>
      %521 = arith.addf %517, %520 : vector<2x1x1xf32>
      %522 = math.rsqrt %521 : vector<2x1x1xf32>
      %523 = vector.broadcast %522 : vector<2x1x1xf32> to vector<2x1x32xf32>
      %524 = arith.mulf %519, %523 : vector<2x1x32xf32>
      %525 = vector.shape_cast %63 : vector<1x32xf32> to vector<1x1x32xf32>
      %526 = vector.broadcast %525 : vector<1x1x32xf32> to vector<2x1x32xf32>
      %527 = arith.mulf %524, %526 : vector<2x1x32xf32>
      %528 = vector.shape_cast %64 : vector<1x32xf32> to vector<1x1x32xf32>
      %529 = vector.broadcast %528 : vector<1x1x32xf32> to vector<2x1x32xf32>
      %530 = arith.addf %527, %529 : vector<2x1x32xf32>
      %c1_257 = arith.constant 1 : index
      %c0_258 = arith.constant 0 : index
      %c0_259 = arith.constant 0 : index
      %531 = vector.load %arg8[%c1_257, %c0_258, %c0_259] : memref<2x32x64xf32, #tpu.memory_space<vmem>>, vector<1x32x64xf32>
      %532 = vector.shape_cast %531 : vector<1x32x64xf32> to vector<32x64xf32>
      "tpu.trace_start"() <{level = 10 : i32, message = "bqe,eh->bqh"}> : () -> ()
      %cst_260 = arith.constant dense<0.000000e+00> : vector<2x1x64xf32>
      %533 = tpu.matmul %530, %532, %cst_260 {dimension_numbers = #tpu.dot_dimension_numbers<[2], [0], [0, 1], [1], [0, 0, 0, 1, 1, 1], [], []>} : vector<2x1x32xf32>, vector<32x64xf32>, vector<2x1x64xf32> -> vector<2x1x64xf32>
      "tpu.trace_stop"() : () -> ()
      %534 = vector.shape_cast %59 : vector<1x64xf32> to vector<1x1x64xf32>
      %535 = vector.broadcast %534 : vector<1x1x64xf32> to vector<2x1x64xf32>
      %536 = arith.addf %533, %535 : vector<2x1x64xf32>
      %cst_261 = arith.constant 0.000000e+00 : f32
      %537 = vector.broadcast %cst_261 : f32 to vector<2x1x64xf32>
      %538 = arith.maximumf %536, %537 : vector<2x1x64xf32>
      %c1_262 = arith.constant 1 : index
      %c0_263 = arith.constant 0 : index
      %c0_264 = arith.constant 0 : index
      %539 = vector.load %arg9[%c1_262, %c0_263, %c0_264] : memref<2x64x32xf32, #tpu.memory_space<vmem>>, vector<1x64x32xf32>
      %540 = vector.shape_cast %539 : vector<1x64x32xf32> to vector<64x32xf32>
      "tpu.trace_start"() <{level = 10 : i32, message = "bqh,he->bqe"}> : () -> ()
      %cst_265 = arith.constant dense<0.000000e+00> : vector<2x1x32xf32>
      %541 = tpu.matmul %538, %540, %cst_265 {dimension_numbers = #tpu.dot_dimension_numbers<[2], [0], [0, 1], [1], [0, 0, 0, 1, 1, 1], [], []>} : vector<2x1x64xf32>, vector<64x32xf32>, vector<2x1x32xf32> -> vector<2x1x32xf32>
      "tpu.trace_stop"() : () -> ()
      %542 = vector.shape_cast %60 : vector<1x32xf32> to vector<1x1x32xf32>
      %543 = vector.broadcast %542 : vector<1x1x32xf32> to vector<2x1x32xf32>
      %544 = arith.addf %541, %543 : vector<2x1x32xf32>
      %545 = arith.addf %530, %544 : vector<2x1x32xf32>
      %cst_266 = arith.constant dense<0.000000e+00> : vector<2x1xf32>
      %546 = vector.multi_reduction <add>, %545, %cst_266 [2] : vector<2x1x32xf32> to vector<2x1xf32>
      %547 = vector.shape_cast %546 : vector<2x1xf32> to vector<2x1x1xf32>
      %cst_267 = arith.constant 3.200000e+01 : f32
      %548 = vector.broadcast %cst_267 : f32 to vector<2x1x1xf32>
      %549 = arith.divf %547, %548 : vector<2x1x1xf32>
      %550 = vector.broadcast %549 : vector<2x1x1xf32> to vector<2x1x32xf32>
      %551 = arith.subf %545, %550 : vector<2x1x32xf32>
      %552 = arith.mulf %551, %551 : vector<2x1x32xf32>
      %cst_268 = arith.constant dense<0.000000e+00> : vector<2x1xf32>
      %553 = vector.multi_reduction <add>, %552, %cst_268 [2] : vector<2x1x32xf32> to vector<2x1xf32>
      %554 = vector.shape_cast %553 : vector<2x1xf32> to vector<2x1x1xf32>
      %cst_269 = arith.constant 3.200000e+01 : f32
      %555 = vector.broadcast %cst_269 : f32 to vector<2x1x1xf32>
      %556 = arith.divf %554, %555 : vector<2x1x1xf32>
      %557 = vector.broadcast %549 : vector<2x1x1xf32> to vector<2x1x32xf32>
      %558 = arith.subf %545, %557 : vector<2x1x32xf32>
      %cst_270 = arith.constant 9.99999974E-6 : f32
      %559 = vector.broadcast %cst_270 : f32 to vector<2x1x1xf32>
      %560 = arith.addf %556, %559 : vector<2x1x1xf32>
      %561 = math.rsqrt %560 : vector<2x1x1xf32>
      %562 = vector.broadcast %561 : vector<2x1x1xf32> to vector<2x1x32xf32>
      %563 = arith.mulf %558, %562 : vector<2x1x32xf32>
      %564 = vector.shape_cast %65 : vector<1x32xf32> to vector<1x1x32xf32>
      %565 = vector.broadcast %564 : vector<1x1x32xf32> to vector<2x1x32xf32>
      %566 = arith.mulf %563, %565 : vector<2x1x32xf32>
      %567 = vector.shape_cast %66 : vector<1x32xf32> to vector<1x1x32xf32>
      %568 = vector.broadcast %567 : vector<1x1x32xf32> to vector<2x1x32xf32>
      %569 = arith.addf %566, %568 : vector<2x1x32xf32>
      "tpu.trace_start"() <{level = 10 : i32, message = "bqe,ev->bqv"}> : () -> ()
      %cst_271 = arith.constant dense<0.000000e+00> : vector<2x1x128xf32>
      %570 = tpu.matmul %569, %3, %cst_271 {dimension_numbers = #tpu.dot_dimension_numbers<[2], [0], [0, 1], [1], [0, 0, 0, 1, 1, 1], [], []>} : vector<2x1x32xf32>, vector<32x128xf32>, vector<2x1x128xf32> -> vector<2x1x128xf32>
      "tpu.trace_stop"() : () -> ()
      %571 = vector.shape_cast %4 : vector<1x128xf32> to vector<1x1x128xf32>
      %572 = vector.broadcast %571 : vector<1x1x128xf32> to vector<2x1x128xf32>
      %573 = arith.addf %570, %572 : vector<2x1x128xf32>
      %574 = vector.broadcast %arg15 : i32 to vector<1x8x1xi32>
      %575 = arith.cmpi eq, %68, %574 : vector<1x8x1xi32>
      %576 = vector.shape_cast %575 : vector<1x8x1xi1> to vector<1x8x1xi1>
      %577 = vector.broadcast %576 : vector<1x8x1xi1> to vector<2x8x128xi1>
      %578 = vector.shape_cast %573 : vector<2x1x128xf32> to vector<2x1x128xf32>
      %579 = vector.broadcast %578 : vector<2x1x128xf32> to vector<2x8x128xf32>
      %580 = arith.select %577, %579, %arg17 : vector<2x8x128xi1>, vector<2x8x128xf32>
      %c16_i32 = arith.constant 16 : i32
      %581 = vector.broadcast %c16_i32 : i32 to vector<2x1x128xi32>
      %582 = arith.cmpi slt, %69, %581 : vector<2x1x128xi32>
      %cst_272 = arith.constant -1.000000e+30 : f32
      %583 = vector.broadcast %cst_272 : f32 to vector<2x1x128xf32>
      %584 = arith.select %582, %573, %583 : vector<2x1x128xi1>, vector<2x1x128xf32>
      %cst_273 = arith.constant dense<0xFF800000> : vector<2x1xf32>
      %585 = vector.multi_reduction <maximumf>, %584, %cst_273 [2] : vector<2x1x128xf32> to vector<2x1xf32>
      %586 = vector.shape_cast %585 : vector<2x1xf32> to vector<2x1x1xf32>
      %587 = vector.broadcast %586 : vector<2x1x1xf32> to vector<2x1x128xf32>
      %588 = arith.cmpf oge, %584, %587 : vector<2x1x128xf32>
      %c128_i32 = arith.constant 128 : i32
      %589 = vector.broadcast %c128_i32 : i32 to vector<2x1x128xi32>
      %590 = arith.select %588, %69, %589 : vector<2x1x128xi1>, vector<2x1x128xi32>
      %cst_274 = arith.constant dense<2147483647> : vector<2x1xi32>
      %591 = vector.multi_reduction <minsi>, %590, %cst_274 [2] : vector<2x1x128xi32> to vector<2x1xi32>
      %592 = vector.shape_cast %591 : vector<2x1xi32> to vector<2x1x1xi32>
      %593 = tpu.iota {dimensions = array<i32: 2>} : vector<2x1x16xi32>
      %594 = vector.broadcast %592 : vector<2x1x1xi32> to vector<2x1x16xi32>
      %595 = arith.cmpi eq, %593, %594 : vector<2x1x16xi32>
      %596 = arith.extui %595 : vector<2x1x16xi1> to vector<2x1x16xi32>
      %597 = arith.sitofp %596 : vector<2x1x16xi32> to vector<2x1x16xf32>
      "tpu.trace_start"() <{level = 10 : i32, message = "bqv,ve->bqe"}> : () -> ()
      %cst_275 = arith.constant dense<0.000000e+00> : vector<2x1x32xf32>
      %598 = tpu.matmul %597, %0, %cst_275 {dimension_numbers = #tpu.dot_dimension_numbers<[2], [0], [0, 1], [1], [0, 0, 0, 1, 1, 1], [], []>} : vector<2x1x16xf32>, vector<16x32xf32>, vector<2x1x32xf32> -> vector<2x1x32xf32>
      "tpu.trace_stop"() : () -> ()
      %599 = arith.addf %598, %1 : vector<2x1x32xf32>
      %c1_i32_276 = arith.constant 1 : i32
      %600 = arith.addi %arg15, %c1_i32_276 : i32
      %601 = vector.broadcast %600 : i32 to vector<1x8x1xi32>
      %602 = arith.cmpi eq, %68, %601 : vector<1x8x1xi32>
      %603 = vector.shape_cast %602 : vector<1x8x1xi1> to vector<1x8x1xi1>
      %604 = vector.broadcast %603 : vector<1x8x1xi1> to vector<2x8x32xi1>
      %605 = vector.shape_cast %599 : vector<2x1x32xf32> to vector<2x1x32xf32>
      %606 = vector.broadcast %605 : vector<2x1x32xf32> to vector<2x8x32xf32>
      %607 = arith.select %604, %606, %arg16 : vector<2x8x32xi1>, vector<2x8x32xf32>
      scf.yield %607, %580 : vector<2x8x32xf32>, vector<2x8x128xf32>
    }
    %c8_i32_26 = arith.constant 8 : i32
    %c0_27 = arith.constant 0 : index
    %c0_28 = arith.constant 0 : index
    %c0_29 = arith.constant 0 : index
    %85 = vector.load %arg14[%c0_27, %c0_28, %c0_29] : memref<2x8x128xf32, #tpu.memory_space<vmem>>, vector<2x8x128xf32>
    tpu.vector_store %arg14[%c0_27, %c0_28, %c0_29], %84#1 {strides = array<i32>} : memref<2x8x128xf32, #tpu.memory_space<vmem>>, vector<2x8x128xf32>,
    return
  }
  func.func @transform_0(%arg0: i32) -> (i32, i32) {
    %c0_i32 = arith.constant 0 : i32
    %c0_i32_0 = arith.constant 0 : i32
    %c0_i32_1 = arith.constant 0 : i32
    return %c0_i32, %c0_i32_0 : i32, i32
  }
  func.func @transform_1(%arg0: i32) -> (i32, i32, i32) {
    %c0_i32 = arith.constant 0 : i32
    %c0_i32_0 = arith.constant 0 : i32
    %c0_i32_1 = arith.constant 0 : i32
    %c0_i32_2 = arith.constant 0 : i32
    return %c0_i32, %c0_i32_0, %c0_i32_1 : i32, i32, i32
  }
  func.func @transform_2(%arg0: i32) -> (i32, i32, i32) {
    %c0_i32 = arith.constant 0 : i32
    %c0_i32_0 = arith.constant 0 : i32
    %c0_i32_1 = arith.constant 0 : i32
    %c0_i32_2 = arith.constant 0 : i32
    return %c0_i32, %c0_i32_0, %c0_i32_1 : i32, i32, i32
  }
  func.func @transform_3(%arg0: i32) -> (i32, i32, i32, i32) {
    %c0_i32 = arith.constant 0 : i32
    %c0_i32_0 = arith.constant 0 : i32
    %c0_i32_1 = arith.constant 0 : i32
    %c0_i32_2 = arith.constant 0 : i32
    %c0_i32_3 = arith.constant 0 : i32
    return %c0_i32, %c0_i32_0, %c0_i32_1, %c0_i32_2 : i32, i32, i32, i32
  }
  func.func @transform_4(%arg0: i32) -> (i32, i32, i32, i32) {
    %c0_i32 = arith.constant 0 : i32
    %c0_i32_0 = arith.constant 0 : i32
    %c0_i32_1 = arith.constant 0 : i32
    %c0_i32_2 = arith.constant 0 : i32
    %c0_i32_3 = arith.constant 0 : i32
    return %c0_i32, %c0_i32_0, %c0_i32_1, %c0_i32_2 : i32, i32, i32, i32
  }
  func.func @transform_5(%arg0: i32) -> (i32, i32, i32, i32) {
    %c0_i32 = arith.constant 0 : i32
    %c0_i32_0 = arith.constant 0 : i32
    %c0_i32_1 = arith.constant 0 : i32
    %c0_i32_2 = arith.constant 0 : i32
    %c0_i32_3 = arith.constant 0 : i32
    return %c0_i32, %c0_i32_0, %c0_i32_1, %c0_i32_2 : i32, i32, i32, i32
  }
  func.func @transform_6(%arg0: i32) -> (i32, i32, i32, i32) {
    %c0_i32 = arith.constant 0 : i32
    %c0_i32_0 = arith.constant 0 : i32
    %c0_i32_1 = arith.constant 0 : i32
    %c0_i32_2 = arith.constant 0 : i32
    %c0_i32_3 = arith.constant 0 : i32
    return %c0_i32, %c0_i32_0, %c0_i32_1, %c0_i32_2 : i32, i32, i32, i32
  }
  func.func @transform_7(%arg0: i32) -> (i32, i32, i32) {
    %c0_i32 = arith.constant 0 : i32
    %c0_i32_0 = arith.constant 0 : i32
    %c0_i32_1 = arith.constant 0 : i32
    %c0_i32_2 = arith.constant 0 : i32
    return %c0_i32, %c0_i32_0, %c0_i32_1 : i32, i32, i32
  }
  func.func @transform_8(%arg0: i32) -> (i32, i32, i32) {
    %c0_i32 = arith.constant 0 : i32
    %c0_i32_0 = arith.constant 0 : i32
    %c0_i32_1 = arith.constant 0 : i32
    %c0_i32_2 = arith.constant 0 : i32
    return %c0_i32, %c0_i32_0, %c0_i32_1 : i32, i32, i32
  }
  func.func @transform_9(%arg0: i32) -> (i32, i32, i32) {
    %c0_i32 = arith.constant 0 : i32
    %c0_i32_0 = arith.constant 0 : i32
    %c0_i32_1 = arith.constant 0 : i32
    %c0_i32_2 = arith.constant 0 : i32
    return %c0_i32, %c0_i32_0, %c0_i32_1 : i32, i32, i32
  }
  func.func @transform_10(%arg0: i32) -> (i32, i32, i32) {
    %c0_i32 = arith.constant 0 : i32
    %c0_i32_0 = arith.constant 0 : i32
    %c0_i32_1 = arith.constant 0 : i32
    %c0_i32_2 = arith.constant 0 : i32
    return %c0_i32, %c0_i32_0, %c0_i32_1 : i32, i32, i32
  }
  func.func @transform_11(%arg0: i32) -> (i32, i32) {
    %c0_i32 = arith.constant 0 : i32
    %c0_i32_0 = arith.constant 0 : i32
    %c0_i32_1 = arith.constant 0 : i32
    return %c0_i32, %c0_i32_0 : i32, i32
  }
  func.func @transform_12(%arg0: i32) -> (i32, i32) {
    %c0_i32 = arith.constant 0 : i32
    %c0_i32_0 = arith.constant 0 : i32
    %c0_i32_1 = arith.constant 0 : i32
    return %c0_i32, %c0_i32_0 : i32, i32
  }
  func.func @transform_13(%arg0: i32) -> (i32, i32, i32) {
    %c0_i32 = arith.constant 0 : i32
    %c0_i32_0 = arith.constant 0 : i32
    %c0_i32_1 = arith.constant 0 : i32
    %c0_i32_2 = arith.constant 0 : i32
    return %c0_i32, %c0_i32_0, %c0_i32_1 : i32, i32, i32
  }
}

</mosaic_0001>

<llo_original>
// kernel: _greedy_decode.1
$region0: #{_greedy_decode.1}
  #allocation0 [shape = 'u32[]', space=smem, size = 0x4, offset = 0x4, fixed_abs, tag = 'smem constant byte address 0x4 - core index']
  #allocation1 [shape = 'u32[144,128]{1,0:T(1,128)}', space=vmem, size = 0x12000, scoped, tag = 'internal scratch']
  %s0 = inlined_call_operand.vmem [shape: f32[16,32], index: 0, kind: input, shape index: {}]
  %s1 = inlined_call_operand.vmem [shape: f32[2,1,32], index: 1, kind: input, shape index: {}]
  %s2 = inlined_call_operand.vmem [shape: f32[2,1,32], index: 2, kind: input, shape index: {}]
  %s3 = inlined_call_operand.vmem [shape: f32[2,4,32,8], index: 3, kind: input, shape index: {}]
  %s4 = inlined_call_operand.vmem [shape: f32[2,4,32,8], index: 4, kind: input, shape index: {}]
  %s5 = inlined_call_operand.vmem [shape: f32[2,4,32,8], index: 5, kind: input, shape index: {}]
  %s6 = inlined_call_operand.vmem [shape: f32[2,4,8,32], index: 6, kind: input, shape index: {}]
  %s7 = inlined_call_operand.vmem [shape: f32[2,32,64], index: 7, kind: input, shape index: {}]
  %s8 = inlined_call_operand.vmem [shape: f32[2,64,32], index: 8, kind: input, shape index: {}]
  %s9 = inlined_call_operand.vmem [shape: f32[2,32,32], index: 9, kind: input, shape index: {}]
  %s10 = inlined_call_operand.vmem [shape: f32[2,1,448], index: 10, kind: input, shape index: {}]
  %s11 = inlined_call_operand.vmem [shape: f32[32,128], index: 11, kind: input, shape index: {}]
  %s12 = inlined_call_operand.vmem [shape: f32[1,128], index: 12, kind: input, shape index: {}]
  %s13 = inlined_call_operand.vmem [shape: f32[2,8,128], index: 13, kind: output, shape index: {}]
  %s14 = sld [smem:[#allocation0]]
  $region69: #{_greedy_decode.1} parent=0
    _
  %s16 = ssub.s32 1, %s14
  %s17 = scalar_select 0, %s16, %s14
  // Predicated region
  $region2: #{_greedy_decode.1} parent=0 // pred_check
    _
  $region3: #{_greedy_decode.1} parent=0 // pred_check_branch
    %19 = sbr.rel (0) target = $region5
  $region4: #{_greedy_decode.1} parent=0 // pred_region
    _
  $region5: #{_greedy_decode.1} parent=0 // pred_fallthru
    _
  // Predicated region
  $region6: #{_greedy_decode.1} parent=0 // pred_check
    _
  $region7: #{_greedy_decode.1} parent=0 // pred_check_branch
    %21 = sbr.rel (0) target = $region9
  $region8: #{_greedy_decode.1} parent=0 // pred_region
    _
  $region9: #{_greedy_decode.1} parent=0 // pred_fallthru
    _
  // Predicated region
  $region10: #{_greedy_decode.1} parent=0 // pred_check
    _
  $region11: #{_greedy_decode.1} parent=0 // pred_check_branch
    %23 = sbr.rel (0) target = $region13
  $region12: #{_greedy_decode.1} parent=0 // pred_region
    _
  $region13: #{_greedy_decode.1} parent=0 // pred_fallthru
    _
  // Predicated region
  $region14: #{_greedy_decode.1} parent=0 // pred_check
    _
  $region15: #{_greedy_decode.1} parent=0 // pred_check_branch
    %25 = sbr.rel (0) target = $region17
  $region16: #{_greedy_decode.1} parent=0 // pred_region
    _
  $region17: #{_greedy_decode.1} parent=0 // pred_fallthru
    _
  // Predicated region
  $region18: #{_greedy_decode.1} parent=0 // pred_check
    _
  $region19: #{_greedy_decode.1} parent=0 // pred_check_branch
    %27 = sbr.rel (0) target = $region21
  $region20: #{_greedy_decode.1} parent=0 // pred_region
    _
  $region21: #{_greedy_decode.1} parent=0 // pred_fallthru
    _
  // Predicated region
  $region22: #{_greedy_decode.1} parent=0 // pred_check
    _
  $region23: #{_greedy_decode.1} parent=0 // pred_check_branch
    %29 = sbr.rel (0) target = $region25
  $region24: #{_greedy_decode.1} parent=0 // pred_region
    _
  $region25: #{_greedy_decode.1} parent=0 // pred_fallthru
    _
  // Predicated region
  $region26: #{_greedy_decode.1} parent=0 // pred_check
    _
  $region27: #{_greedy_decode.1} parent=0 // pred_check_branch
    %31 = sbr.rel (0) target = $region29
  $region28: #{_greedy_decode.1} parent=0 // pred_region
    _
  $region29: #{_greedy_decode.1} parent=0 // pred_fallthru
    _
  // Predicated region
  $region30: #{_greedy_decode.1} parent=0 // pred_check
    _
  $region31: #{_greedy_decode.1} parent=0 // pred_check_branch
    %33 = sbr.rel (0) target = $region33
  $region32: #{_greedy_decode.1} parent=0 // pred_region
    _
  $region33: #{_greedy_decode.1} parent=0 // pred_fallthru
    _
  // Predicated region
  $region34: #{_greedy_decode.1} parent=0 // pred_check
    _
  $region35: #{_greedy_decode.1} parent=0 // pred_check_branch
    %35 = sbr.rel (0) target = $region37
  $region36: #{_greedy_decode.1} parent=0 // pred_region
    _
  $region37: #{_greedy_decode.1} parent=0 // pred_fallthru
    _
  // Predicated region
  $region38: #{_greedy_decode.1} parent=0 // pred_check
    _
  $region39: #{_greedy_decode.1} parent=0 // pred_check_branch
    %37 = sbr.rel (0) target = $region41
  $region40: #{_greedy_decode.1} parent=0 // pred_region
    _
  $region41: #{_greedy_decode.1} parent=0 // pred_fallthru
    _
  // Predicated region
  $region42: #{_greedy_decode.1} parent=0 // pred_check
    _
  $region43: #{_greedy_decode.1} parent=0 // pred_check_branch
    %39 = sbr.rel (0) target = $region45
  $region44: #{_greedy_decode.1} parent=0 // pred_region
    _
  $region45: #{_greedy_decode.1} parent=0 // pred_fallthru
    _
  // Predicated region
  $region46: #{_greedy_decode.1} parent=0 // pred_check
    _
  $region47: #{_greedy_decode.1} parent=0 // pred_check_branch
    %41 = sbr.rel (0) target = $region49
  $region48: #{_greedy_decode.1} parent=0 // pred_region
    _
  $region49: #{_greedy_decode.1} parent=0 // pred_fallthru
    _
  // Predicated region
  $region50: #{_greedy_decode.1} parent=0 // pred_check
    _
  $region51: #{_greedy_decode.1} parent=0 // pred_check_branch
    %43 = sbr.rel (0) target = $region53
  $region52: #{_greedy_decode.1} parent=0 // pred_region
    _
  $region53: #{_greedy_decode.1} parent=0 // pred_fallthru
    _
  %v44 = vld [vmem:[%s0] sm:$0xff]
  %v45 = vld [vmem:[%s0 + $0x8] sm:$0xff]
  %v46 = vld [vmem:[%s1] sm:$0x1]
  %v47 = vld [vmem:[%s1 + $0x1] sm:$0x1]
  %v48 = vld [vmem:[%s2] sm:$0x1]
  %v49 = vld [vmem:[%s2 + $0x1] sm:$0x1]
  %v50 = vld [vmem:[%s11] sm:$0xff]
  %v51 = vld [vmem:[%s11 + $0x8] sm:$0xff]
  %v52 = vld [vmem:[%s11 + $0x10] sm:$0xff]
  %v53 = vld [vmem:[%s11 + $0x18] sm:$0xff]
  %v54 = vld [vmem:[%s12] sm:$0x1]
  %v55 = vld [vmem:[%s10] sm:$0xf]
  %v56 = vld [vmem:[%s9] sm:$0xff]
  %v57 = vld [vmem:[%s9 + $0x8] sm:$0xff]
  %v58 = vld [vmem:[%s9 + $0x10] sm:$0xff]
  %v59 = vld [vmem:[%s9 + $0x18] sm:$0xff]
  %v61 = vrot.slane %v55, 1
  %v64 = vcombine.low %v48, %v49
  %v66 = vunpack.c.l.s4 1966171168
  %v67 = vunpack.c.0.s8 %v66
  %v68 = vlaneseq
  %v69 = vshrl.u32 %v68, 7
  %v70 = vsub.s32 %v67, %v69
  %v71 = vrot.slane %v64, %v70
  %v73 = vunpack.c.l.s4 1966171168
  %v74 = vunpack.c.0.s8 %v73
  %v75 = vlaneseq
  %v76 = vshrl.u32 %v75, 7
  %v77 = vsub.s32 %v74, %v76
  %v78 = vrot.slane %v71, %v77
  %v79 = vcombine.low %v61, %v61
  %v81 = vunpack.c.l.s4 1966171168
  %v82 = vunpack.c.0.s8 %v81
  %v83 = vlaneseq
  %v84 = vshrl.u32 %v83, 7
  %v85 = vsub.s32 %v82, %v84
  %v86 = vrot.slane %v79, %v85
  %v88 = vunpack.c.l.s4 1966171168
  %v89 = vunpack.c.0.s8 %v88
  %v90 = vlaneseq
  %v91 = vshrl.u32 %v90, 7
  %v92 = vsub.s32 %v89, %v91
  %v93 = vrot.slane %v86, %v92
  %vm95 = vcmask 261120
  %v96 = vsel %vm95, %v78, 0
  %98 = vmatprep.subr.mxu0 0.0
  %99 = vmatpush1.msra.mxu0 0.0
  %100 = vmatprep.subr.mxu0 0.0
  %101 = vmatpush1.msra.mxu0 0.0
  %102 = vmatprep.subr.mxu0 0.0
  %103 = vmatpush1.msra.mxu0 0.0
  %104 = vmatprep.subr.mxu0 0.0
  %105 = vmatpush1.msra.mxu0 0.0
  %106 = vmatprep.subr.mxu0 0.0
  %107 = vmatpush1.msra.mxu0 0.0
  %108 = vmatprep.subr.mxu0 0.0
  %109 = vmatpush1.msra.mxu0 0.0
  %110 = vmatprep.subr.mxu0 0.0
  %111 = vmatpush1.msra.mxu0 0.0
  %112 = vmatprep.subr.mxu0 0.0
  %113 = vmatpush1.msra.mxu0 0.0
  %114 = vmatprep.subr.mxu0 0.0
  %115 = vmatpush1.msra.mxu0 0.0
  %116 = vmatprep.subr.mxu0 0.0
  %117 = vmatpush1.msra.mxu0 0.0
  %118 = vmatprep.subr.mxu0 0.0
  %119 = vmatpush1.msra.mxu0 0.0
  %120 = vmatprep.subr.mxu0 0.0
  %121 = vmatpush1.msra.mxu0 0.0
  %122 = vmatprep.subr.mxu0 0.0
  %123 = vmatpush1.msra.mxu0 %v59
  %124 = vmatprep.subr.mxu0 0.0
  %125 = vmatpush1.msra.mxu0 %v58
  %126 = vmatprep.subr.mxu0 0.0
  %127 = vmatpush1.msra.mxu0 %v57
  %128 = vmatprep.subr.mxu0 0.0
  %129 = vmatpush1.msra.mxu0 %v56
  %130 = vmatprep.subr.mxu0 0.0
  %131 = vmatpush2.msra.mxu0 0.0
  %132 = vmatprep.subr.mxu0 0.0
  %133 = vmatpush2.msra.mxu0 0.0
  %134 = vmatprep.subr.mxu0 0.0
  %135 = vmatpush2.msra.mxu0 0.0
  %136 = vmatprep.subr.mxu0 0.0
  %137 = vmatpush2.msra.mxu0 0.0
  %138 = vmatprep.subr.mxu0 0.0
  %139 = vmatpush2.msra.mxu0 0.0
  %140 = vmatprep.subr.mxu0 0.0
  %141 = vmatpush2.msra.mxu0 0.0
  %142 = vmatprep.subr.mxu0 0.0
  %143 = vmatpush2.msra.mxu0 0.0
  %144 = vmatprep.subr.mxu0 0.0
  %145 = vmatpush2.msra.mxu0 0.0
  %146 = vmatprep.subr.mxu0 0.0
  %147 = vmatpush2.msra.mxu0 0.0
  %148 = vmatprep.subr.mxu0 0.0
  %149 = vmatpush2.msra.mxu0 0.0
  %150 = vmatprep.subr.mxu0 0.0
  %151 = vmatpush2.msra.mxu0 0.0
  %152 = vmatprep.subr.mxu0 0.0
  %153 = vmatpush2.msra.mxu0 0.0
  %154 = vmatprep.subr.mxu0 0.0
  %155 = vmatpush2.msra.mxu0 0.0
  %156 = vmatprep.subr.mxu0 0.0
  %157 = vmatpush2.msra.mxu0 0.0
  %158 = vmatprep.subr.mxu0 0.0
  %159 = vmatpush2.msra.mxu0 0.0
  %160 = vmatprep.subr.mxu0 0.0
  %161 = vmatpush2.msra.mxu0 0.0
  %162 = vmatprep.mubr.f32.mxu0 0.0
  %163 = vmatmul.mubr.f32.gmra.mxu0 %v96
  %v164 = vpop.f32.mrf.mxu0
  %v165 = vadd.f32 %v93, %v164
  %v166 = vpop.f32.mrf.mxu0
  %167 = vdwg.mxu0
  %v170 = vunpack.c.l.s4 1966171168
  %v171 = vunpack.c.0.s8 %v170
  %v172 = vlaneseq
  %v173 = vshrl.u32 %v172, 7
  %v174 = vsub.s32 %v171, %v173
  %v175 = vrot.slane %v165, %v174
  %v176 = vcombine.high %v175, %v175
  %v178 = vunpack.c.l.s4 1966171168
  %v179 = vunpack.c.0.s8 %v178
  %v180 = vlaneseq
  %v181 = vshrl.u32 %v180, 7
  %v182 = vsub.s32 %v179, %v181
  %v183 = vrot.slane %v175, %v182
  %v185 = vunpack.c.l.s4 1966171168
  %v186 = vunpack.c.0.s8 %v185
  %v187 = vlaneseq
  %v188 = vshrl.u32 %v187, 7
  %v189 = vsub.s32 %v186, %v188
  %v190 = vrot.slane %v176, %v189
  %s191 = scalar_lea.vmem %s10, 4
  %v192 = vld [vmem:[%s191] sm:$0xf]
  %s193 = scalar_lea.vmem %s9, 32
  %v194 = vld [vmem:[%s193] sm:$0xff]
  %v195 = vld [vmem:[%s193 + $0x8] sm:$0xff]
  %v196 = vld [vmem:[%s193 + $0x10] sm:$0xff]
  %v197 = vld [vmem:[%s193 + $0x18] sm:$0xff]
  %v199 = vrot.slane %v192, 1
  %v200 = vcombine.low %v199, %v199
  %v202 = vunpack.c.l.s4 1966171168
  %v203 = vunpack.c.0.s8 %v202
  %v204 = vlaneseq
  %v205 = vshrl.u32 %v204, 7
  %v206 = vsub.s32 %v203, %v205
  %v207 = vrot.slane %v200, %v206
  %v209 = vunpack.c.l.s4 1966171168
  %v210 = vunpack.c.0.s8 %v209
  %v211 = vlaneseq
  %v212 = vshrl.u32 %v211, 7
  %v213 = vsub.s32 %v210, %v212
  %v214 = vrot.slane %v207, %v213
  %216 = vmatprep.subr.mxu0 0.0
  %217 = vmatpush1.msra.mxu0 0.0
  %218 = vmatprep.subr.mxu0 0.0
  %219 = vmatpush1.msra.mxu0 0.0
  %220 = vmatprep.subr.mxu0 0.0
  %221 = vmatpush1.msra.mxu0 0.0
  %222 = vmatprep.subr.mxu0 0.0
  %223 = vmatpush1.msra.mxu0 0.0
  %224 = vmatprep.subr.mxu0 0.0
  %225 = vmatpush1.msra.mxu0 0.0
  %226 = vmatprep.subr.mxu0 0.0
  %227 = vmatpush1.msra.mxu0 0.0
  %228 = vmatprep.subr.mxu0 0.0
  %229 = vmatpush1.msra.mxu0 0.0
  %230 = vmatprep.subr.mxu0 0.0
  %231 = vmatpush1.msra.mxu0 0.0
  %232 = vmatprep.subr.mxu0 0.0
  %233 = vmatpush1.msra.mxu0 0.0
  %234 = vmatprep.subr.mxu0 0.0
  %235 = vmatpush1.msra.mxu0 0.0
  %236 = vmatprep.subr.mxu0 0.0
  %237 = vmatpush1.msra.mxu0 0.0
  %238 = vmatprep.subr.mxu0 0.0
  %239 = vmatpush1.msra.mxu0 0.0
  %240 = vmatprep.subr.mxu0 0.0
  %241 = vmatpush1.msra.mxu0 %v197
  %242 = vmatprep.subr.mxu0 0.0
  %243 = vmatpush1.msra.mxu0 %v196
  %244 = vmatprep.subr.mxu0 0.0
  %245 = vmatpush1.msra.mxu0 %v195
  %246 = vmatprep.subr.mxu0 0.0
  %247 = vmatpush1.msra.mxu0 %v194
  %248 = vmatprep.subr.mxu0 0.0
  %249 = vmatpush2.msra.mxu0 0.0
  %250 = vmatprep.subr.mxu0 0.0
  %251 = vmatpush2.msra.mxu0 0.0
  %252 = vmatprep.subr.mxu0 0.0
  %253 = vmatpush2.msra.mxu0 0.0
  %254 = vmatprep.subr.mxu0 0.0
  %255 = vmatpush2.msra.mxu0 0.0
  %256 = vmatprep.subr.mxu0 0.0
  %257 = vmatpush2.msra.mxu0 0.0
  %258 = vmatprep.subr.mxu0 0.0
  %259 = vmatpush2.msra.mxu0 0.0
  %260 = vmatprep.subr.mxu0 0.0
  %261 = vmatpush2.msra.mxu0 0.0
  %262 = vmatprep.subr.mxu0 0.0
  %263 = vmatpush2.msra.mxu0 0.0
  %264 = vmatprep.subr.mxu0 0.0
  %265 = vmatpush2.msra.mxu0 0.0
  %266 = vmatprep.subr.mxu0 0.0
  %267 = vmatpush2.msra.mxu0 0.0
  %268 = vmatprep.subr.mxu0 0.0
  %269 = vmatpush2.msra.mxu0 0.0
  %270 = vmatprep.subr.mxu0 0.0
  %271 = vmatpush2.msra.mxu0 0.0
  %272 = vmatprep.subr.mxu0 0.0
  %273 = vmatpush2.msra.mxu0 0.0
  %274 = vmatprep.subr.mxu0 0.0
  %275 = vmatpush2.msra.mxu0 0.0
  %276 = vmatprep.subr.mxu0 0.0
  %277 = vmatpush2.msra.mxu0 0.0
  %278 = vmatprep.subr.mxu0 0.0
  %279 = vmatpush2.msra.mxu0 0.0
  %280 = vmatprep.mubr.f32.mxu0 0.0
  %281 = vmatmul.mubr.f32.gmra.mxu0 %v96
  %v282 = vpop.f32.mrf.mxu0
  %v283 = vadd.f32 %v214, %v282
  %v284 = vpop.f32.mrf.mxu0
  %285 = vdwg.mxu0
  %v288 = vunpack.c.l.s4 1966171168
  %v289 = vunpack.c.0.s8 %v288
  %v290 = vlaneseq
  %v291 = vshrl.u32 %v290, 7
  %v292 = vsub.s32 %v289, %v291
  %v293 = vrot.slane %v283, %v292
  %v294 = vcombine.high %v293, %v293
  %v296 = vunpack.c.l.s4 1966171168
  %v297 = vunpack.c.0.s8 %v296
  %v298 = vlaneseq
  %v299 = vshrl.u32 %v298, 7
  %v300 = vsub.s32 %v297, %v299
  %v301 = vrot.slane %v293, %v300
  %v303 = vunpack.c.l.s4 1966171168
  %v304 = vunpack.c.0.s8 %v303
  %v305 = vlaneseq
  %v306 = vshrl.u32 %v305, 7
  %v307 = vsub.s32 %v304, %v306
  %v308 = vrot.slane %v294, %v307
  %v311 = vlaneseq
  %v312 = vand.u32 %v311, 127
  %v313 = vlaneseq
  %v314 = vshrl.u32 %v313, 7
  %v315 = vadd.f32 %v44, %v46
  %v316 = vadd.f32 %v44, %v47
  %vm317 = vcmp.eq.s32.totalorder %v314, 0
  %v318 = vsel %vm317, 1, 0
  %vm319 = vcmp.eq.s32.totalorder %v318, 1
  %v320 = vlaneseq
  %v321 = vshrl.u32 %v320, 7
  %v322 = vsub.s32 0, %v321
  %v323 = vrot.slane %v315, %v322
  %v324 = vlaneseq
  %v325 = vshrl.u32 %v324, 7
  %v326 = vsub.s32 0, %v325
  %v327 = vrot.slane %v316, %v326
  %v328 = vsel %vm319, %v323, 0.0
  %v329 = vsel %vm319, %v327, 0.0
  loop: start=0, step=1, limit=8
  $region54: #{_greedy_decode.1} parent=0 // loop_pre_header
    _
  $region55: #{_greedy_decode.1} parent=0 // loop_header
    %s331 = sphi 0, %s335
    %p332 = scmp.ge.s32.totalorder %s331, 8
    %v336 = vphi %v328, %v6780
    %v337 = vphi %v329, %v6781
    %v338 = vphi 0.0, %v6595
    %v339 = vphi 0.0, %v6596
  $region56: #{_greedy_decode.1} parent=0 // loop_header_branch
    %334 = sbr.rel (%p332) target = $region60
  $region57: #{_greedy_decode.1} parent=0 // loop_body
    %v340 = vstv %s331
    %vm341 = vcmp.le.s32.totalorder %v312, %v340
    %v342 = vsel %vm341, 0.0, -1e+09
    %v343 = vld [vmem:[%s3] sm:$0xff]
    %v344 = vld [vmem:[%s3 + $0x8] sm:$0xff]
    %v345 = vld [vmem:[%s3 + $0x10] sm:$0xff]
    %v346 = vld [vmem:[%s3 + $0x18] sm:$0xff]
    %v347 = vlaneseq
    %v348 = vshrl.u32 %v347, 7
    %v349 = vsub.s32 0, %v348
    %v350 = vrot.slane %v55, %v349
    %v353 = vsel %vm95, %v336, 0
    %v356 = vsel %vm95, %v337, 0
    %358 = vmatprep.subr.mxu0 0.0
    %359 = vmatpush1.msra.mxu0 0.0
    %360 = vmatprep.subr.mxu0 0.0
    %361 = vmatpush1.msra.mxu0 0.0
    %362 = vmatprep.subr.mxu0 0.0
    %363 = vmatpush1.msra.mxu0 0.0
    %364 = vmatprep.subr.mxu0 0.0
    %365 = vmatpush1.msra.mxu0 0.0
    %366 = vmatprep.subr.mxu0 0.0
    %367 = vmatpush1.msra.mxu0 0.0
    %368 = vmatprep.subr.mxu0 0.0
    %369 = vmatpush1.msra.mxu0 0.0
    %370 = vmatprep.subr.mxu0 0.0
    %371 = vmatpush1.msra.mxu0 0.0
    %372 = vmatprep.subr.mxu0 0.0
    %373 = vmatpush1.msra.mxu0 0.0
    %374 = vmatprep.subr.mxu0 0.0
    %375 = vmatpush1.msra.mxu0 0.0
    %376 = vmatprep.subr.mxu0 0.0
    %377 = vmatpush1.msra.mxu0 0.0
    %378 = vmatprep.subr.mxu0 0.0
    %379 = vmatpush1.msra.mxu0 0.0
    %380 = vmatprep.subr.mxu0 0.0
    %381 = vmatpush1.msra.mxu0 0.0
    %382 = vmatprep.subr.mxu0 0.0
    %383 = vmatpush1.msra.mxu0 %v346
    %384 = vmatprep.subr.mxu0 0.0
    %385 = vmatpush1.msra.mxu0 %v345
    %386 = vmatprep.subr.mxu0 0.0
    %387 = vmatpush1.msra.mxu0 %v344
    %388 = vmatprep.subr.mxu0 0.0
    %389 = vmatpush1.msra.mxu0 %v343
    %390 = vmatprep.subr.mxu0 0.0
    %391 = vmatpush2.msra.mxu0 0.0
    %392 = vmatprep.subr.mxu0 0.0
    %393 = vmatpush2.msra.mxu0 0.0
    %394 = vmatprep.subr.mxu0 0.0
    %395 = vmatpush2.msra.mxu0 0.0
    %396 = vmatprep.subr.mxu0 0.0
    %397 = vmatpush2.msra.mxu0 0.0
    %398 = vmatprep.subr.mxu0 0.0
    %399 = vmatpush2.msra.mxu0 0.0
    %400 = vmatprep.subr.mxu0 0.0
    %401 = vmatpush2.msra.mxu0 0.0
    %402 = vmatprep.subr.mxu0 0.0
    %403 = vmatpush2.msra.mxu0 0.0
    %404 = vmatprep.subr.mxu0 0.0
    %405 = vmatpush2.msra.mxu0 0.0
    %406 = vmatprep.subr.mxu0 0.0
    %407 = vmatpush2.msra.mxu0 0.0
    %408 = vmatprep.subr.mxu0 0.0
    %409 = vmatpush2.msra.mxu0 0.0
    %410 = vmatprep.subr.mxu0 0.0
    %411 = vmatpush2.msra.mxu0 0.0
    %412 = vmatprep.subr.mxu0 0.0
    %413 = vmatpush2.msra.mxu0 0.0
    %414 = vmatprep.subr.mxu0 0.0
    %415 = vmatpush2.msra.mxu0 0.0
    %416 = vmatprep.subr.mxu0 0.0
    %417 = vmatpush2.msra.mxu0 0.0
    %418 = vmatprep.subr.mxu0 0.0
    %419 = vmatpush2.msra.mxu0 0.0
    %420 = vmatprep.subr.mxu0 0.0
    %421 = vmatpush2.msra.mxu0 0.0
    %422 = vmatprep.mubr.f32.mxu0 0.0
    %423 = vmatmul.mubr.f32.gmra.mxu0 %v353
    %v424 = vpop.f32.mrf.mxu0
    %v425 = vadd.f32 %v350, %v424
    %v426 = vpop.f32.mrf.mxu0
    %427 = vmatprep.mubr.f32.mxu0 0.0
    %428 = vmatmul.mubr.f32.gmra.mxu0 %v356
    %v429 = vpop.f32.mrf.mxu0
    %v430 = vadd.f32 %v350, %v429
    %v431 = vpop.f32.mrf.mxu0
    %432 = vdwg.mxu0
    %v433 = vld [vmem:[%s4] sm:$0xff]
    %v434 = vld [vmem:[%s4 + $0x8] sm:$0xff]
    %v435 = vld [vmem:[%s4 + $0x10] sm:$0xff]
    %v436 = vld [vmem:[%s4 + $0x18] sm:$0xff]
    %437 = vrot.lane.b32.xlu0 %v350, 96
    %v438 = vpop.permute.xlu0 %437
    %440 = vmatprep.subr.mxu0 0.0
    %441 = vmatpush1.msra.mxu0 0.0
    %442 = vmatprep.subr.mxu0 0.0
    %443 = vmatpush1.msra.mxu0 0.0
    %444 = vmatprep.subr.mxu0 0.0
    %445 = vmatpush1.msra.mxu0 0.0
    %446 = vmatprep.subr.mxu0 0.0
    %447 = vmatpush1.msra.mxu0 0.0
    %448 = vmatprep.subr.mxu0 0.0
    %449 = vmatpush1.msra.mxu0 0.0
    %450 = vmatprep.subr.mxu0 0.0
    %451 = vmatpush1.msra.mxu0 0.0
    %452 = vmatprep.subr.mxu0 0.0
    %453 = vmatpush1.msra.mxu0 0.0
    %454 = vmatprep.subr.mxu0 0.0
    %455 = vmatpush1.msra.mxu0 0.0
    %456 = vmatprep.subr.mxu0 0.0
    %457 = vmatpush1.msra.mxu0 0.0
    %458 = vmatprep.subr.mxu0 0.0
    %459 = vmatpush1.msra.mxu0 0.0
    %460 = vmatprep.subr.mxu0 0.0
    %461 = vmatpush1.msra.mxu0 0.0
    %462 = vmatprep.subr.mxu0 0.0
    %463 = vmatpush1.msra.mxu0 0.0
    %464 = vmatprep.subr.mxu0 0.0
    %465 = vmatpush1.msra.mxu0 %v436
    %466 = vmatprep.subr.mxu0 0.0
    %467 = vmatpush1.msra.mxu0 %v435
    %468 = vmatprep.subr.mxu0 0.0
    %469 = vmatpush1.msra.mxu0 %v434
    %470 = vmatprep.subr.mxu0 0.0
    %471 = vmatpush1.msra.mxu0 %v433
    %472 = vmatprep.subr.mxu0 0.0
    %473 = vmatpush2.msra.mxu0 0.0
    %474 = vmatprep.subr.mxu0 0.0
    %475 = vmatpush2.msra.mxu0 0.0
    %476 = vmatprep.subr.mxu0 0.0
    %477 = vmatpush2.msra.mxu0 0.0
    %478 = vmatprep.subr.mxu0 0.0
    %479 = vmatpush2.msra.mxu0 0.0
    %480 = vmatprep.subr.mxu0 0.0
    %481 = vmatpush2.msra.mxu0 0.0
    %482 = vmatprep.subr.mxu0 0.0
    %483 = vmatpush2.msra.mxu0 0.0
    %484 = vmatprep.subr.mxu0 0.0
    %485 = vmatpush2.msra.mxu0 0.0
    %486 = vmatprep.subr.mxu0 0.0
    %487 = vmatpush2.msra.mxu0 0.0
    %488 = vmatprep.subr.mxu0 0.0
    %489 = vmatpush2.msra.mxu0 0.0
    %490 = vmatprep.subr.mxu0 0.0
    %491 = vmatpush2.msra.mxu0 0.0
    %492 = vmatprep.subr.mxu0 0.0
    %493 = vmatpush2.msra.mxu0 0.0
    %494 = vmatprep.subr.mxu0 0.0
    %495 = vmatpush2.msra.mxu0 0.0
    %496 = vmatprep.subr.mxu0 0.0
    %497 = vmatpush2.msra.mxu0 0.0
    %498 = vmatprep.subr.mxu0 0.0
    %499 = vmatpush2.msra.mxu0 0.0
    %500 = vmatprep.subr.mxu0 0.0
    %501 = vmatpush2.msra.mxu0 0.0
    %502 = vmatprep.subr.mxu0 0.0
    %503 = vmatpush2.msra.mxu0 0.0
    %504 = vmatprep.mubr.f32.mxu0 0.0
    %505 = vmatmul.mubr.f32.gmra.mxu0 %v353
    %v506 = vpop.f32.mrf.mxu0
    %v507 = vadd.f32 %v438, %v506
    %v508 = vpop.f32.mrf.mxu0
    %509 = vmatprep.mubr.f32.mxu0 0.0
    %510 = vmatmul.mubr.f32.gmra.mxu0 %v356
    %v511 = vpop.f32.mrf.mxu0
    %v512 = vadd.f32 %v438, %v511
    %v513 = vpop.f32.mrf.mxu0
    %514 = vdwg.mxu0
    %v515 = vld [vmem:[%s5] sm:$0xff]
    %v516 = vld [vmem:[%s5 + $0x8] sm:$0xff]
    %v517 = vld [vmem:[%s5 + $0x10] sm:$0xff]
    %v518 = vld [vmem:[%s5 + $0x18] sm:$0xff]
    %519 = vrot.lane.b32.xlu0 %v350, 64
    %v520 = vpop.permute.xlu0 %519
    %522 = vmatprep.subr.mxu0 0.0
    %523 = vmatpush1.msra.mxu0 0.0
    %524 = vmatprep.subr.mxu0 0.0
    %525 = vmatpush1.msra.mxu0 0.0
    %526 = vmatprep.subr.mxu0 0.0
    %527 = vmatpush1.msra.mxu0 0.0
    %528 = vmatprep.subr.mxu0 0.0
    %529 = vmatpush1.msra.mxu0 0.0
    %530 = vmatprep.subr.mxu0 0.0
    %531 = vmatpush1.msra.mxu0 0.0
    %532 = vmatprep.subr.mxu0 0.0
    %533 = vmatpush1.msra.mxu0 0.0
    %534 = vmatprep.subr.mxu0 0.0
    %535 = vmatpush1.msra.mxu0 0.0
    %536 = vmatprep.subr.mxu0 0.0
    %537 = vmatpush1.msra.mxu0 0.0
    %538 = vmatprep.subr.mxu0 0.0
    %539 = vmatpush1.msra.mxu0 0.0
    %540 = vmatprep.subr.mxu0 0.0
    %541 = vmatpush1.msra.mxu0 0.0
    %542 = vmatprep.subr.mxu0 0.0
    %543 = vmatpush1.msra.mxu0 0.0
    %544 = vmatprep.subr.mxu0 0.0
    %545 = vmatpush1.msra.mxu0 0.0
    %546 = vmatprep.subr.mxu0 0.0
    %547 = vmatpush1.msra.mxu0 %v518
    %548 = vmatprep.subr.mxu0 0.0
    %549 = vmatpush1.msra.mxu0 %v517
    %550 = vmatprep.subr.mxu0 0.0
    %551 = vmatpush1.msra.mxu0 %v516
    %552 = vmatprep.subr.mxu0 0.0
    %553 = vmatpush1.msra.mxu0 %v515
    %554 = vmatprep.subr.mxu0 0.0
    %555 = vmatpush2.msra.mxu0 0.0
    %556 = vmatprep.subr.mxu0 0.0
    %557 = vmatpush2.msra.mxu0 0.0
    %558 = vmatprep.subr.mxu0 0.0
    %559 = vmatpush2.msra.mxu0 0.0
    %560 = vmatprep.subr.mxu0 0.0
    %561 = vmatpush2.msra.mxu0 0.0
    %562 = vmatprep.subr.mxu0 0.0
    %563 = vmatpush2.msra.mxu0 0.0
    %564 = vmatprep.subr.mxu0 0.0
    %565 = vmatpush2.msra.mxu0 0.0
    %566 = vmatprep.subr.mxu0 0.0
    %567 = vmatpush2.msra.mxu0 0.0
    %568 = vmatprep.subr.mxu0 0.0
    %569 = vmatpush2.msra.mxu0 0.0
    %570 = vmatprep.subr.mxu0 0.0
    %571 = vmatpush2.msra.mxu0 0.0
    %572 = vmatprep.subr.mxu0 0.0
    %573 = vmatpush2.msra.mxu0 0.0
    %574 = vmatprep.subr.mxu0 0.0
    %575 = vmatpush2.msra.mxu0 0.0
    %576 = vmatprep.subr.mxu0 0.0
    %577 = vmatpush2.msra.mxu0 0.0
    %578 = vmatprep.subr.mxu0 0.0
    %579 = vmatpush2.msra.mxu0 0.0
    %580 = vmatprep.subr.mxu0 0.0
    %581 = vmatpush2.msra.mxu0 0.0
    %582 = vmatprep.subr.mxu0 0.0
    %583 = vmatpush2.msra.mxu0 0.0
    %584 = vmatprep.subr.mxu0 0.0
    %585 = vmatpush2.msra.mxu0 0.0
    %586 = vmatprep.mubr.f32.mxu0 0.0
    %587 = vmatmul.mubr.f32.gmra.mxu0 %v353
    %v588 = vpop.f32.mrf.mxu0
    %v589 = vadd.f32 %v520, %v588
    %v590 = vpop.f32.mrf.mxu0
    %591 = vmatprep.mubr.f32.mxu0 0.0
    %592 = vmatmul.mubr.f32.gmra.mxu0 %v356
    %v593 = vpop.f32.mrf.mxu0
    %v594 = vadd.f32 %v520, %v593
    %v595 = vpop.f32.mrf.mxu0
    %596 = vdwg.mxu0
    %vm597 = vcmask 64512
    %v599 = vsel %vm597, %v425, 0
    %v602 = vsel %vm597, %v507, 0
    %604 = vmatprep.subr.mxu0 0.0
    %605 = vmatpush1.xpose.msra.mxu0 0.0
    %606 = vmatprep.subr.mxu0 0.0
    %607 = vmatpush1.xpose.msra.mxu0 0.0
    %608 = vmatprep.subr.mxu0 0.0
    %609 = vmatpush1.xpose.msra.mxu0 0.0
    %610 = vmatprep.subr.mxu0 0.0
    %611 = vmatpush1.xpose.msra.mxu0 0.0
    %612 = vmatprep.subr.mxu0 0.0
    %613 = vmatpush1.xpose.msra.mxu0 0.0
    %614 = vmatprep.subr.mxu0 0.0
    %615 = vmatpush1.xpose.msra.mxu0 0.0
    %616 = vmatprep.subr.mxu0 0.0
    %617 = vmatpush1.xpose.msra.mxu0 0.0
    %618 = vmatprep.subr.mxu0 0.0
    %619 = vmatpush1.xpose.msra.mxu0 0.0
    %620 = vmatprep.subr.mxu0 0.0
    %621 = vmatpush1.xpose.msra.mxu0 0.0
    %622 = vmatprep.subr.mxu0 0.0
    %623 = vmatpush1.xpose.msra.mxu0 0.0
    %624 = vmatprep.subr.mxu0 0.0
    %625 = vmatpush1.xpose.msra.mxu0 0.0
    %626 = vmatprep.subr.mxu0 0.0
    %627 = vmatpush1.xpose.msra.mxu0 0.0
    %628 = vmatprep.subr.mxu0 0.0
    %629 = vmatpush1.xpose.msra.mxu0 0.0
    %630 = vmatprep.subr.mxu0 0.0
    %631 = vmatpush1.xpose.msra.mxu0 0.0
    %632 = vmatprep.subr.mxu0 0.0
    %633 = vmatpush1.xpose.msra.mxu0 0.0
    %634 = vmatprep.subr.mxu0 0.0
    %635 = vmatpush1.xpose.msra.mxu0 %v602
    %636 = vmatprep.subr.mxu0 0.0
    %637 = vmatpush2.xpose.msra.mxu0 0.0
    %638 = vmatprep.subr.mxu0 0.0
    %639 = vmatpush2.xpose.msra.mxu0 0.0
    %640 = vmatprep.subr.mxu0 0.0
    %641 = vmatpush2.xpose.msra.mxu0 0.0
    %642 = vmatprep.subr.mxu0 0.0
    %643 = vmatpush2.xpose.msra.mxu0 0.0
    %644 = vmatprep.subr.mxu0 0.0
    %645 = vmatpush2.xpose.msra.mxu0 0.0
    %646 = vmatprep.subr.mxu0 0.0
    %647 = vmatpush2.xpose.msra.mxu0 0.0
    %648 = vmatprep.subr.mxu0 0.0
    %649 = vmatpush2.xpose.msra.mxu0 0.0
    %650 = vmatprep.subr.mxu0 0.0
    %651 = vmatpush2.xpose.msra.mxu0 0.0
    %652 = vmatprep.subr.mxu0 0.0
    %653 = vmatpush2.xpose.msra.mxu0 0.0
    %654 = vmatprep.subr.mxu0 0.0
    %655 = vmatpush2.xpose.msra.mxu0 0.0
    %656 = vmatprep.subr.mxu0 0.0
    %657 = vmatpush2.xpose.msra.mxu0 0.0
    %658 = vmatprep.subr.mxu0 0.0
    %659 = vmatpush2.xpose.msra.mxu0 0.0
    %660 = vmatprep.subr.mxu0 0.0
    %661 = vmatpush2.xpose.msra.mxu0 0.0
    %662 = vmatprep.subr.mxu0 0.0
    %663 = vmatpush2.xpose.msra.mxu0 0.0
    %664 = vmatprep.subr.mxu0 0.0
    %665 = vmatpush2.xpose.msra.mxu0 0.0
    %666 = vmatprep.subr.mxu0 0.0
    %667 = vmatpush2.xpose.msra.mxu0 0.0
    %668 = vmatprep.mubr.f32.mxu0 0.0
    %669 = vmatmul.mubr.f32.gmra.mxu0 %v599
    %v670 = vpop.f32.mrf.mxu0
    %v671 = vadd.f32 %v342, %v670
    %v672 = vpop.f32.mrf.mxu0
    %673 = vdwg.mxu0
    %v675 = vsel %vm597, %v430, 0
    %v678 = vsel %vm597, %v512, 0
    %680 = vmatprep.subr.mxu0 0.0
    %681 = vmatpush1.xpose.msra.mxu0 0.0
    %682 = vmatprep.subr.mxu0 0.0
    %683 = vmatpush1.xpose.msra.mxu0 0.0
    %684 = vmatprep.subr.mxu0 0.0
    %685 = vmatpush1.xpose.msra.mxu0 0.0
    %686 = vmatprep.subr.mxu0 0.0
    %687 = vmatpush1.xpose.msra.mxu0 0.0
    %688 = vmatprep.subr.mxu0 0.0
    %689 = vmatpush1.xpose.msra.mxu0 0.0
    %690 = vmatprep.subr.mxu0 0.0
    %691 = vmatpush1.xpose.msra.mxu0 0.0
    %692 = vmatprep.subr.mxu0 0.0
    %693 = vmatpush1.xpose.msra.mxu0 0.0
    %694 = vmatprep.subr.mxu0 0.0
    %695 = vmatpush1.xpose.msra.mxu0 0.0
    %696 = vmatprep.subr.mxu0 0.0
    %697 = vmatpush1.xpose.msra.mxu0 0.0
    %698 = vmatprep.subr.mxu0 0.0
    %699 = vmatpush1.xpose.msra.mxu0 0.0
    %700 = vmatprep.subr.mxu0 0.0
    %701 = vmatpush1.xpose.msra.mxu0 0.0
    %702 = vmatprep.subr.mxu0 0.0
    %703 = vmatpush1.xpose.msra.mxu0 0.0
    %704 = vmatprep.subr.mxu0 0.0
    %705 = vmatpush1.xpose.msra.mxu0 0.0
    %706 = vmatprep.subr.mxu0 0.0
    %707 = vmatpush1.xpose.msra.mxu0 0.0
    %708 = vmatprep.subr.mxu0 0.0
    %709 = vmatpush1.xpose.msra.mxu0 0.0
    %710 = vmatprep.subr.mxu0 0.0
    %711 = vmatpush1.xpose.msra.mxu0 %v678
    %712 = vmatprep.subr.mxu0 0.0
    %713 = vmatpush2.xpose.msra.mxu0 0.0
    %714 = vmatprep.subr.mxu0 0.0
    %715 = vmatpush2.xpose.msra.mxu0 0.0
    %716 = vmatprep.subr.mxu0 0.0
    %717 = vmatpush2.xpose.msra.mxu0 0.0
    %718 = vmatprep.subr.mxu0 0.0
    %719 = vmatpush2.xpose.msra.mxu0 0.0
    %720 = vmatprep.subr.mxu0 0.0
    %721 = vmatpush2.xpose.msra.mxu0 0.0
    %722 = vmatprep.subr.mxu0 0.0
    %723 = vmatpush2.xpose.msra.mxu0 0.0
    %724 = vmatprep.subr.mxu0 0.0
    %725 = vmatpush2.xpose.msra.mxu0 0.0
    %726 = vmatprep.subr.mxu0 0.0
    %727 = vmatpush2.xpose.msra.mxu0 0.0
    %728 = vmatprep.subr.mxu0 0.0
    %729 = vmatpush2.xpose.msra.mxu0 0.0
    %730 = vmatprep.subr.mxu0 0.0
    %731 = vmatpush2.xpose.msra.mxu0 0.0
    %732 = vmatprep.subr.mxu0 0.0
    %733 = vmatpush2.xpose.msra.mxu0 0.0
    %734 = vmatprep.subr.mxu0 0.0
    %735 = vmatpush2.xpose.msra.mxu0 0.0
    %736 = vmatprep.subr.mxu0 0.0
    %737 = vmatpush2.xpose.msra.mxu0 0.0
    %738 = vmatprep.subr.mxu0 0.0
    %739 = vmatpush2.xpose.msra.mxu0 0.0
    %740 = vmatprep.subr.mxu0 0.0
    %741 = vmatpush2.xpose.msra.mxu0 0.0
    %742 = vmatprep.subr.mxu0 0.0
    %743 = vmatpush2.xpose.msra.mxu0 0.0
    %744 = vmatprep.mubr.f32.mxu0 0.0
    %745 = vmatmul.mubr.f32.gmra.mxu0 %v675
    %v746 = vpop.f32.mrf.mxu0
    %v747 = vadd.f32 %v342, %v746
    %v748 = vpop.f32.mrf.mxu0
    %749 = vdwg.mxu0
    %v750 = vsel %vm597, %v671, -inf
    %751 = vmax.xlane.f32.xlu0 %v750
    %v752 = vpop.xlane.xlu0 %751
    %v753 = vsel %vm597, %v747, -inf
    %754 = vmax.xlane.f32.xlu0 %v753
    %v755 = vpop.xlane.xlu0 %754
    %v756 = vsub.f32 %v671, %v752
    %v757 = vsub.f32 %v747, %v755
    %v758 = vmul.f32 %v756, 1.442695
    %v759 = vpow.pop %v758
    %v760 = vmul.f32 %v757, 1.442695
    %v761 = vpow.pop %v760
    %v762 = vsel %vm597, %v759, 0.0
    %763 = vadd.xlane.f32.xlu0 %v762
    %v764 = vpop.xlane.xlu0 %763
    %v765 = vsel %vm597, %v761, 0.0
    %766 = vadd.xlane.f32.xlu0 %v765
    %v767 = vpop.xlane.xlu0 %766
    %v768 = vrcp.pop %v764
    %v769 = vrcp.pop %v767
    %v770 = vmul.f32 %v759, %v768
    %v771 = vmul.f32 %v761, %v769
    %v773 = vsel %vm597, %v770, 0
    %775 = vmatprep.subr.mxu0 0.0
    %776 = vmatpush1.msra.mxu0 0.0
    %777 = vmatprep.subr.mxu0 0.0
    %778 = vmatpush1.msra.mxu0 0.0
    %779 = vmatprep.subr.mxu0 0.0
    %780 = vmatpush1.msra.mxu0 0.0
    %781 = vmatprep.subr.mxu0 0.0
    %782 = vmatpush1.msra.mxu0 0.0
    %783 = vmatprep.subr.mxu0 0.0
    %784 = vmatpush1.msra.mxu0 0.0
    %785 = vmatprep.subr.mxu0 0.0
    %786 = vmatpush1.msra.mxu0 0.0
    %787 = vmatprep.subr.mxu0 0.0
    %788 = vmatpush1.msra.mxu0 0.0
    %789 = vmatprep.subr.mxu0 0.0
    %790 = vmatpush1.msra.mxu0 0.0
    %791 = vmatprep.subr.mxu0 0.0
    %792 = vmatpush1.msra.mxu0 0.0
    %793 = vmatprep.subr.mxu0 0.0
    %794 = vmatpush1.msra.mxu0 0.0
    %795 = vmatprep.subr.mxu0 0.0
    %796 = vmatpush1.msra.mxu0 0.0
    %797 = vmatprep.subr.mxu0 0.0
    %798 = vmatpush1.msra.mxu0 0.0
    %799 = vmatprep.subr.mxu0 0.0
    %800 = vmatpush1.msra.mxu0 0.0
    %801 = vmatprep.subr.mxu0 0.0
    %802 = vmatpush1.msra.mxu0 0.0
    %803 = vmatprep.subr.mxu0 0.0
    %804 = vmatpush1.msra.mxu0 0.0
    %805 = vmatprep.subr.mxu0 0.0
    %806 = vmatpush1.msra.mxu0 %v589
    %807 = vmatprep.subr.mxu0 0.0
    %808 = vmatpush2.msra.mxu0 0.0
    %809 = vmatprep.subr.mxu0 0.0
    %810 = vmatpush2.msra.mxu0 0.0
    %811 = vmatprep.subr.mxu0 0.0
    %812 = vmatpush2.msra.mxu0 0.0
    %813 = vmatprep.subr.mxu0 0.0
    %814 = vmatpush2.msra.mxu0 0.0
    %815 = vmatprep.subr.mxu0 0.0
    %816 = vmatpush2.msra.mxu0 0.0
    %817 = vmatprep.subr.mxu0 0.0
    %818 = vmatpush2.msra.mxu0 0.0
    %819 = vmatprep.subr.mxu0 0.0
    %820 = vmatpush2.msra.mxu0 0.0
    %821 = vmatprep.subr.mxu0 0.0
    %822 = vmatpush2.msra.mxu0 0.0
    %823 = vmatprep.subr.mxu0 0.0
    %824 = vmatpush2.msra.mxu0 0.0
    %825 = vmatprep.subr.mxu0 0.0
    %826 = vmatpush2.msra.mxu0 0.0
    %827 = vmatprep.subr.mxu0 0.0
    %828 = vmatpush2.msra.mxu0 0.0
    %829 = vmatprep.subr.mxu0 0.0
    %830 = vmatpush2.msra.mxu0 0.0
    %831 = vmatprep.subr.mxu0 0.0
    %832 = vmatpush2.msra.mxu0 0.0
    %833 = vmatprep.subr.mxu0 0.0
    %834 = vmatpush2.msra.mxu0 0.0
    %835 = vmatprep.subr.mxu0 0.0
    %836 = vmatpush2.msra.mxu0 0.0
    %837 = vmatprep.subr.mxu0 0.0
    %838 = vmatpush2.msra.mxu0 0.0
    %839 = vmatprep.mubr.f32.mxu0 0.0
    %840 = vmatmul.mubr.f32.gmra.mxu0 %v773
    %v841 = vpop.f32.mrf.mxu0
    %v842 = vadd.f32 0.0, %v841
    %v843 = vpop.f32.mrf.mxu0
    %844 = vdwg.mxu0
    %v846 = vsel %vm597, %v771, 0
    %848 = vmatprep.subr.mxu0 0.0
    %849 = vmatpush1.msra.mxu0 0.0
    %850 = vmatprep.subr.mxu0 0.0
    %851 = vmatpush1.msra.mxu0 0.0
    %852 = vmatprep.subr.mxu0 0.0
    %853 = vmatpush1.msra.mxu0 0.0
    %854 = vmatprep.subr.mxu0 0.0
    %855 = vmatpush1.msra.mxu0 0.0
    %856 = vmatprep.subr.mxu0 0.0
    %857 = vmatpush1.msra.mxu0 0.0
    %858 = vmatprep.subr.mxu0 0.0
    %859 = vmatpush1.msra.mxu0 0.0
    %860 = vmatprep.subr.mxu0 0.0
    %861 = vmatpush1.msra.mxu0 0.0
    %862 = vmatprep.subr.mxu0 0.0
    %863 = vmatpush1.msra.mxu0 0.0
    %864 = vmatprep.subr.mxu0 0.0
    %865 = vmatpush1.msra.mxu0 0.0
    %866 = vmatprep.subr.mxu0 0.0
    %867 = vmatpush1.msra.mxu0 0.0
    %868 = vmatprep.subr.mxu0 0.0
    %869 = vmatpush1.msra.mxu0 0.0
    %870 = vmatprep.subr.mxu0 0.0
    %871 = vmatpush1.msra.mxu0 0.0
    %872 = vmatprep.subr.mxu0 0.0
    %873 = vmatpush1.msra.mxu0 0.0
    %874 = vmatprep.subr.mxu0 0.0
    %875 = vmatpush1.msra.mxu0 0.0
    %876 = vmatprep.subr.mxu0 0.0
    %877 = vmatpush1.msra.mxu0 0.0
    %878 = vmatprep.subr.mxu0 0.0
    %879 = vmatpush1.msra.mxu0 %v594
    %880 = vmatprep.subr.mxu0 0.0
    %881 = vmatpush2.msra.mxu0 0.0
    %882 = vmatprep.subr.mxu0 0.0
    %883 = vmatpush2.msra.mxu0 0.0
    %884 = vmatprep.subr.mxu0 0.0
    %885 = vmatpush2.msra.mxu0 0.0
    %886 = vmatprep.subr.mxu0 0.0
    %887 = vmatpush2.msra.mxu0 0.0
    %888 = vmatprep.subr.mxu0 0.0
    %889 = vmatpush2.msra.mxu0 0.0
    %890 = vmatprep.subr.mxu0 0.0
    %891 = vmatpush2.msra.mxu0 0.0
    %892 = vmatprep.subr.mxu0 0.0
    %893 = vmatpush2.msra.mxu0 0.0
    %894 = vmatprep.subr.mxu0 0.0
    %895 = vmatpush2.msra.mxu0 0.0
    %896 = vmatprep.subr.mxu0 0.0
    %897 = vmatpush2.msra.mxu0 0.0
    %898 = vmatprep.subr.mxu0 0.0
    %899 = vmatpush2.msra.mxu0 0.0
    %900 = vmatprep.subr.mxu0 0.0
    %901 = vmatpush2.msra.mxu0 0.0
    %902 = vmatprep.subr.mxu0 0.0
    %903 = vmatpush2.msra.mxu0 0.0
    %904 = vmatprep.subr.mxu0 0.0
    %905 = vmatpush2.msra.mxu0 0.0
    %906 = vmatprep.subr.mxu0 0.0
    %907 = vmatpush2.msra.mxu0 0.0
    %908 = vmatprep.subr.mxu0 0.0
    %909 = vmatpush2.msra.mxu0 0.0
    %910 = vmatprep.subr.mxu0 0.0
    %911 = vmatpush2.msra.mxu0 0.0
    %912 = vmatprep.mubr.f32.mxu0 0.0
    %913 = vmatmul.mubr.f32.gmra.mxu0 %v846
    %v914 = vpop.f32.mrf.mxu0
    %v915 = vadd.f32 0.0, %v914
    %v916 = vpop.f32.mrf.mxu0
    %917 = vdwg.mxu0
    %v918 = vld [vmem:[%s6] sm:$0xff]
    %s919 = scalar_lea.vmem %s3, 32
    %v920 = vld [vmem:[%s919] sm:$0xff]
    %v921 = vld [vmem:[%s919 + $0x8] sm:$0xff]
    %v922 = vld [vmem:[%s919 + $0x10] sm:$0xff]
    %v923 = vld [vmem:[%s919 + $0x18] sm:$0xff]
    %924 = vrot.lane.b32.xlu0 %v350, 120
    %v925 = vpop.permute.xlu0 %924
    %927 = vmatprep.subr.mxu0 0.0
    %928 = vmatpush1.msra.mxu0 0.0
    %929 = vmatprep.subr.mxu0 0.0
    %930 = vmatpush1.msra.mxu0 0.0
    %931 = vmatprep.subr.mxu0 0.0
    %932 = vmatpush1.msra.mxu0 0.0
    %933 = vmatprep.subr.mxu0 0.0
    %934 = vmatpush1.msra.mxu0 0.0
    %935 = vmatprep.subr.mxu0 0.0
    %936 = vmatpush1.msra.mxu0 0.0
    %937 = vmatprep.subr.mxu0 0.0
    %938 = vmatpush1.msra.mxu0 0.0
    %939 = vmatprep.subr.mxu0 0.0
    %940 = vmatpush1.msra.mxu0 0.0
    %941 = vmatprep.subr.mxu0 0.0
    %942 = vmatpush1.msra.mxu0 0.0
    %943 = vmatprep.subr.mxu0 0.0
    %944 = vmatpush1.msra.mxu0 0.0
    %945 = vmatprep.subr.mxu0 0.0
    %946 = vmatpush1.msra.mxu0 0.0
    %947 = vmatprep.subr.mxu0 0.0
    %948 = vmatpush1.msra.mxu0 0.0
    %949 = vmatprep.subr.mxu0 0.0
    %950 = vmatpush1.msra.mxu0 0.0
    %951 = vmatprep.subr.mxu0 0.0
    %952 = vmatpush1.msra.mxu0 %v923
    %953 = vmatprep.subr.mxu0 0.0
    %954 = vmatpush1.msra.mxu0 %v922
    %955 = vmatprep.subr.mxu0 0.0
    %956 = vmatpush1.msra.mxu0 %v921
    %957 = vmatprep.subr.mxu0 0.0
    %958 = vmatpush1.msra.mxu0 %v920
    %959 = vmatprep.subr.mxu0 0.0
    %960 = vmatpush2.msra.mxu0 0.0
    %961 = vmatprep.subr.mxu0 0.0
    %962 = vmatpush2.msra.mxu0 0.0
    %963 = vmatprep.subr.mxu0 0.0
    %964 = vmatpush2.msra.mxu0 0.0
    %965 = vmatprep.subr.mxu0 0.0
    %966 = vmatpush2.msra.mxu0 0.0
    %967 = vmatprep.subr.mxu0 0.0
    %968 = vmatpush2.msra.mxu0 0.0
    %969 = vmatprep.subr.mxu0 0.0
    %970 = vmatpush2.msra.mxu0 0.0
    %971 = vmatprep.subr.mxu0 0.0
    %972 = vmatpush2.msra.mxu0 0.0
    %973 = vmatprep.subr.mxu0 0.0
    %974 = vmatpush2.msra.mxu0 0.0
    %975 = vmatprep.subr.mxu0 0.0
    %976 = vmatpush2.msra.mxu0 0.0
    %977 = vmatprep.subr.mxu0 0.0
    %978 = vmatpush2.msra.mxu0 0.0
    %979 = vmatprep.subr.mxu0 0.0
    %980 = vmatpush2.msra.mxu0 0.0
    %981 = vmatprep.subr.mxu0 0.0
    %982 = vmatpush2.msra.mxu0 0.0
    %983 = vmatprep.subr.mxu0 0.0
    %984 = vmatpush2.msra.mxu0 0.0
    %985 = vmatprep.subr.mxu0 0.0
    %986 = vmatpush2.msra.mxu0 0.0
    %987 = vmatprep.subr.mxu0 0.0
    %988 = vmatpush2.msra.mxu0 0.0
    %989 = vmatprep.subr.mxu0 0.0
    %990 = vmatpush2.msra.mxu0 0.0
    %991 = vmatprep.mubr.f32.mxu0 0.0
    %992 = vmatmul.mubr.f32.gmra.mxu0 %v353
    %v993 = vpop.f32.mrf.mxu0
    %v994 = vadd.f32 %v925, %v993
    %v995 = vpop.f32.mrf.mxu0
    %996 = vmatprep.mubr.f32.mxu0 0.0
    %997 = vmatmul.mubr.f32.gmra.mxu0 %v356
    %v998 = vpop.f32.mrf.mxu0
    %v999 = vadd.f32 %v925, %v998
    %v1000 = vpop.f32.mrf.mxu0
    %1001 = vdwg.mxu0
    %s1002 = scalar_lea.vmem %s4, 32
    %v1003 = vld [vmem:[%s1002] sm:$0xff]
    %v1004 = vld [vmem:[%s1002 + $0x8] sm:$0xff]
    %v1005 = vld [vmem:[%s1002 + $0x10] sm:$0xff]
    %v1006 = vld [vmem:[%s1002 + $0x18] sm:$0xff]
    %1007 = vrot.lane.b32.xlu0 %v350, 88
    %v1008 = vpop.permute.xlu0 %1007
    %1010 = vmatprep.subr.mxu0 0.0
    %1011 = vmatpush1.msra.mxu0 0.0
    %1012 = vmatprep.subr.mxu0 0.0
    %1013 = vmatpush1.msra.mxu0 0.0
    %1014 = vmatprep.subr.mxu0 0.0
    %1015 = vmatpush1.msra.mxu0 0.0
    %1016 = vmatprep.subr.mxu0 0.0
    %1017 = vmatpush1.msra.mxu0 0.0
    %1018 = vmatprep.subr.mxu0 0.0
    %1019 = vmatpush1.msra.mxu0 0.0
    %1020 = vmatprep.subr.mxu0 0.0
    %1021 = vmatpush1.msra.mxu0 0.0
    %1022 = vmatprep.subr.mxu0 0.0
    %1023 = vmatpush1.msra.mxu0 0.0
    %1024 = vmatprep.subr.mxu0 0.0
    %1025 = vmatpush1.msra.mxu0 0.0
    %1026 = vmatprep.subr.mxu0 0.0
    %1027 = vmatpush1.msra.mxu0 0.0
    %1028 = vmatprep.subr.mxu0 0.0
    %1029 = vmatpush1.msra.mxu0 0.0
    %1030 = vmatprep.subr.mxu0 0.0
    %1031 = vmatpush1.msra.mxu0 0.0
    %1032 = vmatprep.subr.mxu0 0.0
    %1033 = vmatpush1.msra.mxu0 0.0
    %1034 = vmatprep.subr.mxu0 0.0
    %1035 = vmatpush1.msra.mxu0 %v1006
    %1036 = vmatprep.subr.mxu0 0.0
    %1037 = vmatpush1.msra.mxu0 %v1005
    %1038 = vmatprep.subr.mxu0 0.0
    %1039 = vmatpush1.msra.mxu0 %v1004
    %1040 = vmatprep.subr.mxu0 0.0
    %1041 = vmatpush1.msra.mxu0 %v1003
    %1042 = vmatprep.subr.mxu0 0.0
    %1043 = vmatpush2.msra.mxu0 0.0
    %1044 = vmatprep.subr.mxu0 0.0
    %1045 = vmatpush2.msra.mxu0 0.0
    %1046 = vmatprep.subr.mxu0 0.0
    %1047 = vmatpush2.msra.mxu0 0.0
    %1048 = vmatprep.subr.mxu0 0.0
    %1049 = vmatpush2.msra.mxu0 0.0
    %1050 = vmatprep.subr.mxu0 0.0
    %1051 = vmatpush2.msra.mxu0 0.0
    %1052 = vmatprep.subr.mxu0 0.0
    %1053 = vmatpush2.msra.mxu0 0.0
    %1054 = vmatprep.subr.mxu0 0.0
    %1055 = vmatpush2.msra.mxu0 0.0
    %1056 = vmatprep.subr.mxu0 0.0
    %1057 = vmatpush2.msra.mxu0 0.0
    %1058 = vmatprep.subr.mxu0 0.0
    %1059 = vmatpush2.msra.mxu0 0.0
    %1060 = vmatprep.subr.mxu0 0.0
    %1061 = vmatpush2.msra.mxu0 0.0
    %1062 = vmatprep.subr.mxu0 0.0
    %1063 = vmatpush2.msra.mxu0 0.0
    %1064 = vmatprep.subr.mxu0 0.0
    %1065 = vmatpush2.msra.mxu0 0.0
    %1066 = vmatprep.subr.mxu0 0.0
    %1067 = vmatpush2.msra.mxu0 0.0
    %1068 = vmatprep.subr.mxu0 0.0
    %1069 = vmatpush2.msra.mxu0 0.0
    %1070 = vmatprep.subr.mxu0 0.0
    %1071 = vmatpush2.msra.mxu0 0.0
    %1072 = vmatprep.subr.mxu0 0.0
    %1073 = vmatpush2.msra.mxu0 0.0
    %1074 = vmatprep.mubr.f32.mxu0 0.0
    %1075 = vmatmul.mubr.f32.gmra.mxu0 %v353
    %v1076 = vpop.f32.mrf.mxu0
    %v1077 = vadd.f32 %v1008, %v1076
    %v1078 = vpop.f32.mrf.mxu0
    %1079 = vmatprep.mubr.f32.mxu0 0.0
    %1080 = vmatmul.mubr.f32.gmra.mxu0 %v356
    %v1081 = vpop.f32.mrf.mxu0
    %v1082 = vadd.f32 %v1008, %v1081
    %v1083 = vpop.f32.mrf.mxu0
    %1084 = vdwg.mxu0
    %s1085 = scalar_lea.vmem %s5, 32
    %v1086 = vld [vmem:[%s1085] sm:$0xff]
    %v1087 = vld [vmem:[%s1085 + $0x8] sm:$0xff]
    %v1088 = vld [vmem:[%s1085 + $0x10] sm:$0xff]
    %v1089 = vld [vmem:[%s1085 + $0x18] sm:$0xff]
    %1090 = vrot.lane.b32.xlu0 %v350, 56
    %v1091 = vpop.permute.xlu0 %1090
    %1093 = vmatprep.subr.mxu0 0.0
    %1094 = vmatpush1.msra.mxu0 0.0
    %1095 = vmatprep.subr.mxu0 0.0
    %1096 = vmatpush1.msra.mxu0 0.0
    %1097 = vmatprep.subr.mxu0 0.0
    %1098 = vmatpush1.msra.mxu0 0.0
    %1099 = vmatprep.subr.mxu0 0.0
    %1100 = vmatpush1.msra.mxu0 0.0
    %1101 = vmatprep.subr.mxu0 0.0
    %1102 = vmatpush1.msra.mxu0 0.0
    %1103 = vmatprep.subr.mxu0 0.0
    %1104 = vmatpush1.msra.mxu0 0.0
    %1105 = vmatprep.subr.mxu0 0.0
    %1106 = vmatpush1.msra.mxu0 0.0
    %1107 = vmatprep.subr.mxu0 0.0
    %1108 = vmatpush1.msra.mxu0 0.0
    %1109 = vmatprep.subr.mxu0 0.0
    %1110 = vmatpush1.msra.mxu0 0.0
    %1111 = vmatprep.subr.mxu0 0.0
    %1112 = vmatpush1.msra.mxu0 0.0
    %1113 = vmatprep.subr.mxu0 0.0
    %1114 = vmatpush1.msra.mxu0 0.0
    %1115 = vmatprep.subr.mxu0 0.0
    %1116 = vmatpush1.msra.mxu0 0.0
    %1117 = vmatprep.subr.mxu0 0.0
    %1118 = vmatpush1.msra.mxu0 %v1089
    %1119 = vmatprep.subr.mxu0 0.0
    %1120 = vmatpush1.msra.mxu0 %v1088
    %1121 = vmatprep.subr.mxu0 0.0
    %1122 = vmatpush1.msra.mxu0 %v1087
    %1123 = vmatprep.subr.mxu0 0.0
    %1124 = vmatpush1.msra.mxu0 %v1086
    %1125 = vmatprep.subr.mxu0 0.0
    %1126 = vmatpush2.msra.mxu0 0.0
    %1127 = vmatprep.subr.mxu0 0.0
    %1128 = vmatpush2.msra.mxu0 0.0
    %1129 = vmatprep.subr.mxu0 0.0
    %1130 = vmatpush2.msra.mxu0 0.0
    %1131 = vmatprep.subr.mxu0 0.0
    %1132 = vmatpush2.msra.mxu0 0.0
    %1133 = vmatprep.subr.mxu0 0.0
    %1134 = vmatpush2.msra.mxu0 0.0
    %1135 = vmatprep.subr.mxu0 0.0
    %1136 = vmatpush2.msra.mxu0 0.0
    %1137 = vmatprep.subr.mxu0 0.0
    %1138 = vmatpush2.msra.mxu0 0.0
    %1139 = vmatprep.subr.mxu0 0.0
    %1140 = vmatpush2.msra.mxu0 0.0
    %1141 = vmatprep.subr.mxu0 0.0
    %1142 = vmatpush2.msra.mxu0 0.0
    %1143 = vmatprep.subr.mxu0 0.0
    %1144 = vmatpush2.msra.mxu0 0.0
    %1145 = vmatprep.subr.mxu0 0.0
    %1146 = vmatpush2.msra.mxu0 0.0
    %1147 = vmatprep.subr.mxu0 0.0
    %1148 = vmatpush2.msra.mxu0 0.0
    %1149 = vmatprep.subr.mxu0 0.0
    %1150 = vmatpush2.msra.mxu0 0.0
    %1151 = vmatprep.subr.mxu0 0.0
    %1152 = vmatpush2.msra.mxu0 0.0
    %1153 = vmatprep.subr.mxu0 0.0
    %1154 = vmatpush2.msra.mxu0 0.0
    %1155 = vmatprep.subr.mxu0 0.0
    %1156 = vmatpush2.msra.mxu0 0.0
    %1157 = vmatprep.mubr.f32.mxu0 0.0
    %1158 = vmatmul.mubr.f32.gmra.mxu0 %v353
    %v1159 = vpop.f32.mrf.mxu0
    %v1160 = vadd.f32 %v1091, %v1159
    %v1161 = vpop.f32.mrf.mxu0
    %1162 = vmatprep.mubr.f32.mxu0 0.0
    %1163 = vmatmul.mubr.f32.gmra.mxu0 %v356
    %v1164 = vpop.f32.mrf.mxu0
    %v1165 = vadd.f32 %v1091, %v1164
    %v1166 = vpop.f32.mrf.mxu0
    %1167 = vdwg.mxu0
    %v1169 = vsel %vm597, %v994, 0
    %v1172 = vsel %vm597, %v1077, 0
    %1174 = vmatprep.subr.mxu0 0.0
    %1175 = vmatpush1.xpose.msra.mxu0 0.0
    %1176 = vmatprep.subr.mxu0 0.0
    %1177 = vmatpush1.xpose.msra.mxu0 0.0
    %1178 = vmatprep.subr.mxu0 0.0
    %1179 = vmatpush1.xpose.msra.mxu0 0.0
    %1180 = vmatprep.subr.mxu0 0.0
    %1181 = vmatpush1.xpose.msra.mxu0 0.0
    %1182 = vmatprep.subr.mxu0 0.0
    %1183 = vmatpush1.xpose.msra.mxu0 0.0
    %1184 = vmatprep.subr.mxu0 0.0
    %1185 = vmatpush1.xpose.msra.mxu0 0.0
    %1186 = vmatprep.subr.mxu0 0.0
    %1187 = vmatpush1.xpose.msra.mxu0 0.0
    %1188 = vmatprep.subr.mxu0 0.0
    %1189 = vmatpush1.xpose.msra.mxu0 0.0
    %1190 = vmatprep.subr.mxu0 0.0
    %1191 = vmatpush1.xpose.msra.mxu0 0.0
    %1192 = vmatprep.subr.mxu0 0.0
    %1193 = vmatpush1.xpose.msra.mxu0 0.0
    %1194 = vmatprep.subr.mxu0 0.0
    %1195 = vmatpush1.xpose.msra.mxu0 0.0
    %1196 = vmatprep.subr.mxu0 0.0
    %1197 = vmatpush1.xpose.msra.mxu0 0.0
    %1198 = vmatprep.subr.mxu0 0.0
    %1199 = vmatpush1.xpose.msra.mxu0 0.0
    %1200 = vmatprep.subr.mxu0 0.0
    %1201 = vmatpush1.xpose.msra.mxu0 0.0
    %1202 = vmatprep.subr.mxu0 0.0
    %1203 = vmatpush1.xpose.msra.mxu0 0.0
    %1204 = vmatprep.subr.mxu0 0.0
    %1205 = vmatpush1.xpose.msra.mxu0 %v1172
    %1206 = vmatprep.subr.mxu0 0.0
    %1207 = vmatpush2.xpose.msra.mxu0 0.0
    %1208 = vmatprep.subr.mxu0 0.0
    %1209 = vmatpush2.xpose.msra.mxu0 0.0
    %1210 = vmatprep.subr.mxu0 0.0
    %1211 = vmatpush2.xpose.msra.mxu0 0.0
    %1212 = vmatprep.subr.mxu0 0.0
    %1213 = vmatpush2.xpose.msra.mxu0 0.0
    %1214 = vmatprep.subr.mxu0 0.0
    %1215 = vmatpush2.xpose.msra.mxu0 0.0
    %1216 = vmatprep.subr.mxu0 0.0
    %1217 = vmatpush2.xpose.msra.mxu0 0.0
    %1218 = vmatprep.subr.mxu0 0.0
    %1219 = vmatpush2.xpose.msra.mxu0 0.0
    %1220 = vmatprep.subr.mxu0 0.0
    %1221 = vmatpush2.xpose.msra.mxu0 0.0
    %1222 = vmatprep.subr.mxu0 0.0
    %1223 = vmatpush2.xpose.msra.mxu0 0.0
    %1224 = vmatprep.subr.mxu0 0.0
    %1225 = vmatpush2.xpose.msra.mxu0 0.0
    %1226 = vmatprep.subr.mxu0 0.0
    %1227 = vmatpush2.xpose.msra.mxu0 0.0
    %1228 = vmatprep.subr.mxu0 0.0
    %1229 = vmatpush2.xpose.msra.mxu0 0.0
    %1230 = vmatprep.subr.mxu0 0.0
    %1231 = vmatpush2.xpose.msra.mxu0 0.0
    %1232 = vmatprep.subr.mxu0 0.0
    %1233 = vmatpush2.xpose.msra.mxu0 0.0
    %1234 = vmatprep.subr.mxu0 0.0
    %1235 = vmatpush2.xpose.msra.mxu0 0.0
    %1236 = vmatprep.subr.mxu0 0.0
    %1237 = vmatpush2.xpose.msra.mxu0 0.0
    %1238 = vmatprep.mubr.f32.mxu0 0.0
    %1239 = vmatmul.mubr.f32.gmra.mxu0 %v1169
    %v1240 = vpop.f32.mrf.mxu0
    %v1241 = vadd.f32 %v342, %v1240
    %v1242 = vpop.f32.mrf.mxu0
    %1243 = vdwg.mxu0
    %v1245 = vsel %vm597, %v999, 0
    %v1248 = vsel %vm597, %v1082, 0
    %1250 = vmatprep.subr.mxu0 0.0
    %1251 = vmatpush1.xpose.msra.mxu0 0.0
    %1252 = vmatprep.subr.mxu0 0.0
    %1253 = vmatpush1.xpose.msra.mxu0 0.0
    %1254 = vmatprep.subr.mxu0 0.0
    %1255 = vmatpush1.xpose.msra.mxu0 0.0
    %1256 = vmatprep.subr.mxu0 0.0
    %1257 = vmatpush1.xpose.msra.mxu0 0.0
    %1258 = vmatprep.subr.mxu0 0.0
    %1259 = vmatpush1.xpose.msra.mxu0 0.0
    %1260 = vmatprep.subr.mxu0 0.0
    %1261 = vmatpush1.xpose.msra.mxu0 0.0
    %1262 = vmatprep.subr.mxu0 0.0
    %1263 = vmatpush1.xpose.msra.mxu0 0.0
    %1264 = vmatprep.subr.mxu0 0.0
    %1265 = vmatpush1.xpose.msra.mxu0 0.0
    %1266 = vmatprep.subr.mxu0 0.0
    %1267 = vmatpush1.xpose.msra.mxu0 0.0
    %1268 = vmatprep.subr.mxu0 0.0
    %1269 = vmatpush1.xpose.msra.mxu0 0.0
    %1270 = vmatprep.subr.mxu0 0.0
    %1271 = vmatpush1.xpose.msra.mxu0 0.0
    %1272 = vmatprep.subr.mxu0 0.0
    %1273 = vmatpush1.xpose.msra.mxu0 0.0
    %1274 = vmatprep.subr.mxu0 0.0
    %1275 = vmatpush1.xpose.msra.mxu0 0.0
    %1276 = vmatprep.subr.mxu0 0.0
    %1277 = vmatpush1.xpose.msra.mxu0 0.0
    %1278 = vmatprep.subr.mxu0 0.0
    %1279 = vmatpush1.xpose.msra.mxu0 0.0
    %1280 = vmatprep.subr.mxu0 0.0
    %1281 = vmatpush1.xpose.msra.mxu0 %v1248
    %1282 = vmatprep.subr.mxu0 0.0
    %1283 = vmatpush2.xpose.msra.mxu0 0.0
    %1284 = vmatprep.subr.mxu0 0.0
    %1285 = vmatpush2.xpose.msra.mxu0 0.0
    %1286 = vmatprep.subr.mxu0 0.0
    %1287 = vmatpush2.xpose.msra.mxu0 0.0
    %1288 = vmatprep.subr.mxu0 0.0
    %1289 = vmatpush2.xpose.msra.mxu0 0.0
    %1290 = vmatprep.subr.mxu0 0.0
    %1291 = vmatpush2.xpose.msra.mxu0 0.0
    %1292 = vmatprep.subr.mxu0 0.0
    %1293 = vmatpush2.xpose.msra.mxu0 0.0
    %1294 = vmatprep.subr.mxu0 0.0
    %1295 = vmatpush2.xpose.msra.mxu0 0.0
    %1296 = vmatprep.subr.mxu0 0.0
    %1297 = vmatpush2.xpose.msra.mxu0 0.0
    %1298 = vmatprep.subr.mxu0 0.0
    %1299 = vmatpush2.xpose.msra.mxu0 0.0
    %1300 = vmatprep.subr.mxu0 0.0
    %1301 = vmatpush2.xpose.msra.mxu0 0.0
    %1302 = vmatprep.subr.mxu0 0.0
    %1303 = vmatpush2.xpose.msra.mxu0 0.0
    %1304 = vmatprep.subr.mxu0 0.0
    %1305 = vmatpush2.xpose.msra.mxu0 0.0
    %1306 = vmatprep.subr.mxu0 0.0
    %1307 = vmatpush2.xpose.msra.mxu0 0.0
    %1308 = vmatprep.subr.mxu0 0.0
    %1309 = vmatpush2.xpose.msra.mxu0 0.0
    %1310 = vmatprep.subr.mxu0 0.0
    %1311 = vmatpush2.xpose.msra.mxu0 0.0
    %1312 = vmatprep.subr.mxu0 0.0
    %1313 = vmatpush2.xpose.msra.mxu0 0.0
    %1314 = vmatprep.mubr.f32.mxu0 0.0
    %1315 = vmatmul.mubr.f32.gmra.mxu0 %v1245
    %v1316 = vpop.f32.mrf.mxu0
    %v1317 = vadd.f32 %v342, %v1316
    %v1318 = vpop.f32.mrf.mxu0
    %1319 = vdwg.mxu0
    %v1320 = vsel %vm597, %v1241, -inf
    %1321 = vmax.xlane.f32.xlu0 %v1320
    %v1322 = vpop.xlane.xlu0 %1321
    %v1323 = vsel %vm597, %v1317, -inf
    %1324 = vmax.xlane.f32.xlu0 %v1323
    %v1325 = vpop.xlane.xlu0 %1324
    %v1326 = vsub.f32 %v1241, %v1322
    %v1327 = vsub.f32 %v1317, %v1325
    %v1328 = vmul.f32 %v1326, 1.442695
    %v1329 = vpow.pop %v1328
    %v1330 = vmul.f32 %v1327, 1.442695
    %v1331 = vpow.pop %v1330
    %v1332 = vsel %vm597, %v1329, 0.0
    %1333 = vadd.xlane.f32.xlu0 %v1332
    %v1334 = vpop.xlane.xlu0 %1333
    %v1335 = vsel %vm597, %v1331, 0.0
    %1336 = vadd.xlane.f32.xlu0 %v1335
    %v1337 = vpop.xlane.xlu0 %1336
    %v1338 = vrcp.pop %v1334
    %v1339 = vrcp.pop %v1337
    %v1340 = vmul.f32 %v1329, %v1338
    %v1341 = vmul.f32 %v1331, %v1339
    %v1343 = vsel %vm597, %v1340, 0
    %1345 = vmatprep.subr.mxu0 0.0
    %1346 = vmatpush1.msra.mxu0 0.0
    %1347 = vmatprep.subr.mxu0 0.0
    %1348 = vmatpush1.msra.mxu0 0.0
    %1349 = vmatprep.subr.mxu0 0.0
    %1350 = vmatpush1.msra.mxu0 0.0
    %1351 = vmatprep.subr.mxu0 0.0
    %1352 = vmatpush1.msra.mxu0 0.0
    %1353 = vmatprep.subr.mxu0 0.0
    %1354 = vmatpush1.msra.mxu0 0.0
    %1355 = vmatprep.subr.mxu0 0.0
    %1356 = vmatpush1.msra.mxu0 0.0
    %1357 = vmatprep.subr.mxu0 0.0
    %1358 = vmatpush1.msra.mxu0 0.0
    %1359 = vmatprep.subr.mxu0 0.0
    %1360 = vmatpush1.msra.mxu0 0.0
    %1361 = vmatprep.subr.mxu0 0.0
    %1362 = vmatpush1.msra.mxu0 0.0
    %1363 = vmatprep.subr.mxu0 0.0
    %1364 = vmatpush1.msra.mxu0 0.0
    %1365 = vmatprep.subr.mxu0 0.0
    %1366 = vmatpush1.msra.mxu0 0.0
    %1367 = vmatprep.subr.mxu0 0.0
    %1368 = vmatpush1.msra.mxu0 0.0
    %1369 = vmatprep.subr.mxu0 0.0
    %1370 = vmatpush1.msra.mxu0 0.0
    %1371 = vmatprep.subr.mxu0 0.0
    %1372 = vmatpush1.msra.mxu0 0.0
    %1373 = vmatprep.subr.mxu0 0.0
    %1374 = vmatpush1.msra.mxu0 0.0
    %1375 = vmatprep.subr.mxu0 0.0
    %1376 = vmatpush1.msra.mxu0 %v1160
    %1377 = vmatprep.subr.mxu0 0.0
    %1378 = vmatpush2.msra.mxu0 0.0
    %1379 = vmatprep.subr.mxu0 0.0
    %1380 = vmatpush2.msra.mxu0 0.0
    %1381 = vmatprep.subr.mxu0 0.0
    %1382 = vmatpush2.msra.mxu0 0.0
    %1383 = vmatprep.subr.mxu0 0.0
    %1384 = vmatpush2.msra.mxu0 0.0
    %1385 = vmatprep.subr.mxu0 0.0
    %1386 = vmatpush2.msra.mxu0 0.0
    %1387 = vmatprep.subr.mxu0 0.0
    %1388 = vmatpush2.msra.mxu0 0.0
    %1389 = vmatprep.subr.mxu0 0.0
    %1390 = vmatpush2.msra.mxu0 0.0
    %1391 = vmatprep.subr.mxu0 0.0
    %1392 = vmatpush2.msra.mxu0 0.0
    %1393 = vmatprep.subr.mxu0 0.0
    %1394 = vmatpush2.msra.mxu0 0.0
    %1395 = vmatprep.subr.mxu0 0.0
    %1396 = vmatpush2.msra.mxu0 0.0
    %1397 = vmatprep.subr.mxu0 0.0
    %1398 = vmatpush2.msra.mxu0 0.0
    %1399 = vmatprep.subr.mxu0 0.0
    %1400 = vmatpush2.msra.mxu0 0.0
    %1401 = vmatprep.subr.mxu0 0.0
    %1402 = vmatpush2.msra.mxu0 0.0
    %1403 = vmatprep.subr.mxu0 0.0
    %1404 = vmatpush2.msra.mxu0 0.0
    %1405 = vmatprep.subr.mxu0 0.0
    %1406 = vmatpush2.msra.mxu0 0.0
    %1407 = vmatprep.subr.mxu0 0.0
    %1408 = vmatpush2.msra.mxu0 0.0
    %1409 = vmatprep.mubr.f32.mxu0 0.0
    %1410 = vmatmul.mubr.f32.gmra.mxu0 %v1343
    %v1411 = vpop.f32.mrf.mxu0
    %v1412 = vadd.f32 0.0, %v1411
    %v1413 = vpop.f32.mrf.mxu0
    %1414 = vdwg.mxu0
    %v1416 = vsel %vm597, %v1341, 0
    %1418 = vmatprep.subr.mxu0 0.0
    %1419 = vmatpush1.msra.mxu0 0.0
    %1420 = vmatprep.subr.mxu0 0.0
    %1421 = vmatpush1.msra.mxu0 0.0
    %1422 = vmatprep.subr.mxu0 0.0
    %1423 = vmatpush1.msra.mxu0 0.0
    %1424 = vmatprep.subr.mxu0 0.0
    %1425 = vmatpush1.msra.mxu0 0.0
    %1426 = vmatprep.subr.mxu0 0.0
    %1427 = vmatpush1.msra.mxu0 0.0
    %1428 = vmatprep.subr.mxu0 0.0
    %1429 = vmatpush1.msra.mxu0 0.0
    %1430 = vmatprep.subr.mxu0 0.0
    %1431 = vmatpush1.msra.mxu0 0.0
    %1432 = vmatprep.subr.mxu0 0.0
    %1433 = vmatpush1.msra.mxu0 0.0
    %1434 = vmatprep.subr.mxu0 0.0
    %1435 = vmatpush1.msra.mxu0 0.0
    %1436 = vmatprep.subr.mxu0 0.0
    %1437 = vmatpush1.msra.mxu0 0.0
    %1438 = vmatprep.subr.mxu0 0.0
    %1439 = vmatpush1.msra.mxu0 0.0
    %1440 = vmatprep.subr.mxu0 0.0
    %1441 = vmatpush1.msra.mxu0 0.0
    %1442 = vmatprep.subr.mxu0 0.0
    %1443 = vmatpush1.msra.mxu0 0.0
    %1444 = vmatprep.subr.mxu0 0.0
    %1445 = vmatpush1.msra.mxu0 0.0
    %1446 = vmatprep.subr.mxu0 0.0
    %1447 = vmatpush1.msra.mxu0 0.0
    %1448 = vmatprep.subr.mxu0 0.0
    %1449 = vmatpush1.msra.mxu0 %v1165
    %1450 = vmatprep.subr.mxu0 0.0
    %1451 = vmatpush2.msra.mxu0 0.0
    %1452 = vmatprep.subr.mxu0 0.0
    %1453 = vmatpush2.msra.mxu0 0.0
    %1454 = vmatprep.subr.mxu0 0.0
    %1455 = vmatpush2.msra.mxu0 0.0
    %1456 = vmatprep.subr.mxu0 0.0
    %1457 = vmatpush2.msra.mxu0 0.0
    %1458 = vmatprep.subr.mxu0 0.0
    %1459 = vmatpush2.msra.mxu0 0.0
    %1460 = vmatprep.subr.mxu0 0.0
    %1461 = vmatpush2.msra.mxu0 0.0
    %1462 = vmatprep.subr.mxu0 0.0
    %1463 = vmatpush2.msra.mxu0 0.0
    %1464 = vmatprep.subr.mxu0 0.0
    %1465 = vmatpush2.msra.mxu0 0.0
    %1466 = vmatprep.subr.mxu0 0.0
    %1467 = vmatpush2.msra.mxu0 0.0
    %1468 = vmatprep.subr.mxu0 0.0
    %1469 = vmatpush2.msra.mxu0 0.0
    %1470 = vmatprep.subr.mxu0 0.0
    %1471 = vmatpush2.msra.mxu0 0.0
    %1472 = vmatprep.subr.mxu0 0.0
    %1473 = vmatpush2.msra.mxu0 0.0
    %1474 = vmatprep.subr.mxu0 0.0
    %1475 = vmatpush2.msra.mxu0 0.0
    %1476 = vmatprep.subr.mxu0 0.0
    %1477 = vmatpush2.msra.mxu0 0.0
    %1478 = vmatprep.subr.mxu0 0.0
    %1479 = vmatpush2.msra.mxu0 0.0
    %1480 = vmatprep.subr.mxu0 0.0
    %1481 = vmatpush2.msra.mxu0 0.0
    %1482 = vmatprep.mubr.f32.mxu0 0.0
    %1483 = vmatmul.mubr.f32.gmra.mxu0 %v1416
    %v1484 = vpop.f32.mrf.mxu0
    %v1485 = vadd.f32 0.0, %v1484
    %v1486 = vpop.f32.mrf.mxu0
    %1487 = vdwg.mxu0
    %s1488 = scalar_lea.vmem %s6, 8
    %v1489 = vld [vmem:[%s1488] sm:$0xff]
    %v1491 = vsel %vm597, %v1412, 0
    %v1494 = vsel %vm597, %v1485, 0
    %1496 = vmatprep.subr.mxu0 0.0
    %1497 = vmatpush1.msra.mxu0 0.0
    %1498 = vmatprep.subr.mxu0 0.0
    %1499 = vmatpush1.msra.mxu0 0.0
    %1500 = vmatprep.subr.mxu0 0.0
    %1501 = vmatpush1.msra.mxu0 0.0
    %1502 = vmatprep.subr.mxu0 0.0
    %1503 = vmatpush1.msra.mxu0 0.0
    %1504 = vmatprep.subr.mxu0 0.0
    %1505 = vmatpush1.msra.mxu0 0.0
    %1506 = vmatprep.subr.mxu0 0.0
    %1507 = vmatpush1.msra.mxu0 0.0
    %1508 = vmatprep.subr.mxu0 0.0
    %1509 = vmatpush1.msra.mxu0 0.0
    %1510 = vmatprep.subr.mxu0 0.0
    %1511 = vmatpush1.msra.mxu0 0.0
    %1512 = vmatprep.subr.mxu0 0.0
    %1513 = vmatpush1.msra.mxu0 0.0
    %1514 = vmatprep.subr.mxu0 0.0
    %1515 = vmatpush1.msra.mxu0 0.0
    %1516 = vmatprep.subr.mxu0 0.0
    %1517 = vmatpush1.msra.mxu0 0.0
    %1518 = vmatprep.subr.mxu0 0.0
    %1519 = vmatpush1.msra.mxu0 0.0
    %1520 = vmatprep.subr.mxu0 0.0
    %1521 = vmatpush1.msra.mxu0 0.0
    %1522 = vmatprep.subr.mxu0 0.0
    %1523 = vmatpush1.msra.mxu0 0.0
    %1524 = vmatprep.subr.mxu0 0.0
    %1525 = vmatpush1.msra.mxu0 0.0
    %1526 = vmatprep.subr.mxu0 0.0
    %1527 = vmatpush1.msra.mxu0 %v1489
    %1528 = vmatprep.subr.mxu0 0.0
    %1529 = vmatpush2.msra.mxu0 0.0
    %1530 = vmatprep.subr.mxu0 0.0
    %1531 = vmatpush2.msra.mxu0 0.0
    %1532 = vmatprep.subr.mxu0 0.0
    %1533 = vmatpush2.msra.mxu0 0.0
    %1534 = vmatprep.subr.mxu0 0.0
    %1535 = vmatpush2.msra.mxu0 0.0
    %1536 = vmatprep.subr.mxu0 0.0
    %1537 = vmatpush2.msra.mxu0 0.0
    %1538 = vmatprep.subr.mxu0 0.0
    %1539 = vmatpush2.msra.mxu0 0.0
    %1540 = vmatprep.subr.mxu0 0.0
    %1541 = vmatpush2.msra.mxu0 0.0
    %1542 = vmatprep.subr.mxu0 0.0
    %1543 = vmatpush2.msra.mxu0 0.0
    %1544 = vmatprep.subr.mxu0 0.0
    %1545 = vmatpush2.msra.mxu0 0.0
    %1546 = vmatprep.subr.mxu0 0.0
    %1547 = vmatpush2.msra.mxu0 0.0
    %1548 = vmatprep.subr.mxu0 0.0
    %1549 = vmatpush2.msra.mxu0 0.0
    %1550 = vmatprep.subr.mxu0 0.0
    %1551 = vmatpush2.msra.mxu0 0.0
    %1552 = vmatprep.subr.mxu0 0.0
    %1553 = vmatpush2.msra.mxu0 0.0
    %1554 = vmatprep.subr.mxu0 0.0
    %1555 = vmatpush2.msra.mxu0 0.0
    %1556 = vmatprep.subr.mxu0 0.0
    %1557 = vmatpush2.msra.mxu0 0.0
    %1558 = vmatprep.subr.mxu0 0.0
    %1559 = vmatpush2.msra.mxu0 0.0
    %1560 = vmatprep.mubr.f32.mxu0 0.0
    %1561 = vmatmul.mubr.f32.gmra.mxu0 %v1491
    %v1562 = vpop.f32.mrf.mxu0
    %v1563 = vadd.f32 0.0, %v1562
    %v1564 = vpop.f32.mrf.mxu0
    %1565 = vmatprep.mubr.f32.mxu0 0.0
    %1566 = vmatmul.mubr.f32.gmra.mxu0 %v1494
    %v1567 = vpop.f32.mrf.mxu0
    %v1568 = vadd.f32 0.0, %v1567
    %v1569 = vpop.f32.mrf.mxu0
    %1570 = vdwg.mxu0
    %v1572 = vsel %vm597, %v842, 0
    %v1575 = vsel %vm597, %v915, 0
    %1577 = vmatprep.subr.mxu0 0.0
    %1578 = vmatpush1.msra.mxu0 0.0
    %1579 = vmatprep.subr.mxu0 0.0
    %1580 = vmatpush1.msra.mxu0 0.0
    %1581 = vmatprep.subr.mxu0 0.0
    %1582 = vmatpush1.msra.mxu0 0.0
    %1583 = vmatprep.subr.mxu0 0.0
    %1584 = vmatpush1.msra.mxu0 0.0
    %1585 = vmatprep.subr.mxu0 0.0
    %1586 = vmatpush1.msra.mxu0 0.0
    %1587 = vmatprep.subr.mxu0 0.0
    %1588 = vmatpush1.msra.mxu0 0.0
    %1589 = vmatprep.subr.mxu0 0.0
    %1590 = vmatpush1.msra.mxu0 0.0
    %1591 = vmatprep.subr.mxu0 0.0
    %1592 = vmatpush1.msra.mxu0 0.0
    %1593 = vmatprep.subr.mxu0 0.0
    %1594 = vmatpush1.msra.mxu0 0.0
    %1595 = vmatprep.subr.mxu0 0.0
    %1596 = vmatpush1.msra.mxu0 0.0
    %1597 = vmatprep.subr.mxu0 0.0
    %1598 = vmatpush1.msra.mxu0 0.0
    %1599 = vmatprep.subr.mxu0 0.0
    %1600 = vmatpush1.msra.mxu0 0.0
    %1601 = vmatprep.subr.mxu0 0.0
    %1602 = vmatpush1.msra.mxu0 0.0
    %1603 = vmatprep.subr.mxu0 0.0
    %1604 = vmatpush1.msra.mxu0 0.0
    %1605 = vmatprep.subr.mxu0 0.0
    %1606 = vmatpush1.msra.mxu0 0.0
    %1607 = vmatprep.subr.mxu0 0.0
    %1608 = vmatpush1.msra.mxu0 %v918
    %1609 = vmatprep.subr.mxu0 0.0
    %1610 = vmatpush2.msra.mxu0 0.0
    %1611 = vmatprep.subr.mxu0 0.0
    %1612 = vmatpush2.msra.mxu0 0.0
    %1613 = vmatprep.subr.mxu0 0.0
    %1614 = vmatpush2.msra.mxu0 0.0
    %1615 = vmatprep.subr.mxu0 0.0
    %1616 = vmatpush2.msra.mxu0 0.0
    %1617 = vmatprep.subr.mxu0 0.0
    %1618 = vmatpush2.msra.mxu0 0.0
    %1619 = vmatprep.subr.mxu0 0.0
    %1620 = vmatpush2.msra.mxu0 0.0
    %1621 = vmatprep.subr.mxu0 0.0
    %1622 = vmatpush2.msra.mxu0 0.0
    %1623 = vmatprep.subr.mxu0 0.0
    %1624 = vmatpush2.msra.mxu0 0.0
    %1625 = vmatprep.subr.mxu0 0.0
    %1626 = vmatpush2.msra.mxu0 0.0
    %1627 = vmatprep.subr.mxu0 0.0
    %1628 = vmatpush2.msra.mxu0 0.0
    %1629 = vmatprep.subr.mxu0 0.0
    %1630 = vmatpush2.msra.mxu0 0.0
    %1631 = vmatprep.subr.mxu0 0.0
    %1632 = vmatpush2.msra.mxu0 0.0
    %1633 = vmatprep.subr.mxu0 0.0
    %1634 = vmatpush2.msra.mxu0 0.0
    %1635 = vmatprep.subr.mxu0 0.0
    %1636 = vmatpush2.msra.mxu0 0.0
    %1637 = vmatprep.subr.mxu0 0.0
    %1638 = vmatpush2.msra.mxu0 0.0
    %1639 = vmatprep.subr.mxu0 0.0
    %1640 = vmatpush2.msra.mxu0 0.0
    %1641 = vmatprep.mubr.f32.mxu0 0.0
    %1642 = vmatmul.mubr.f32.gmra.mxu0 %v1572
    %v1643 = vpop.f32.mrf.mxu0
    %v1644 = vadd.f32 %v1563, %v1643
    %v1645 = vpop.f32.mrf.mxu0
    %1646 = vmatprep.mubr.f32.mxu0 0.0
    %1647 = vmatmul.mubr.f32.gmra.mxu0 %v1575
    %v1648 = vpop.f32.mrf.mxu0
    %v1649 = vadd.f32 %v1568, %v1648
    %v1650 = vpop.f32.mrf.mxu0
    %1651 = vdwg.mxu0
    %s1652 = scalar_lea.vmem %s3, 64
    %v1653 = vld [vmem:[%s1652] sm:$0xff]
    %v1654 = vld [vmem:[%s1652 + $0x8] sm:$0xff]
    %v1655 = vld [vmem:[%s1652 + $0x10] sm:$0xff]
    %v1656 = vld [vmem:[%s1652 + $0x18] sm:$0xff]
    %1657 = vrot.lane.b32.xlu0 %v350, 112
    %v1658 = vpop.permute.xlu0 %1657
    %1660 = vmatprep.subr.mxu0 0.0
    %1661 = vmatpush1.msra.mxu0 0.0
    %1662 = vmatprep.subr.mxu0 0.0
    %1663 = vmatpush1.msra.mxu0 0.0
    %1664 = vmatprep.subr.mxu0 0.0
    %1665 = vmatpush1.msra.mxu0 0.0
    %1666 = vmatprep.subr.mxu0 0.0
    %1667 = vmatpush1.msra.mxu0 0.0
    %1668 = vmatprep.subr.mxu0 0.0
    %1669 = vmatpush1.msra.mxu0 0.0
    %1670 = vmatprep.subr.mxu0 0.0
    %1671 = vmatpush1.msra.mxu0 0.0
    %1672 = vmatprep.subr.mxu0 0.0
    %1673 = vmatpush1.msra.mxu0 0.0
    %1674 = vmatprep.subr.mxu0 0.0
    %1675 = vmatpush1.msra.mxu0 0.0
    %1676 = vmatprep.subr.mxu0 0.0
    %1677 = vmatpush1.msra.mxu0 0.0
    %1678 = vmatprep.subr.mxu0 0.0
    %1679 = vmatpush1.msra.mxu0 0.0
    %1680 = vmatprep.subr.mxu0 0.0
    %1681 = vmatpush1.msra.mxu0 0.0
    %1682 = vmatprep.subr.mxu0 0.0
    %1683 = vmatpush1.msra.mxu0 0.0
    %1684 = vmatprep.subr.mxu0 0.0
    %1685 = vmatpush1.msra.mxu0 %v1656
    %1686 = vmatprep.subr.mxu0 0.0
    %1687 = vmatpush1.msra.mxu0 %v1655
    %1688 = vmatprep.subr.mxu0 0.0
    %1689 = vmatpush1.msra.mxu0 %v1654
    %1690 = vmatprep.subr.mxu0 0.0
    %1691 = vmatpush1.msra.mxu0 %v1653
    %1692 = vmatprep.subr.mxu0 0.0
    %1693 = vmatpush2.msra.mxu0 0.0
    %1694 = vmatprep.subr.mxu0 0.0
    %1695 = vmatpush2.msra.mxu0 0.0
    %1696 = vmatprep.subr.mxu0 0.0
    %1697 = vmatpush2.msra.mxu0 0.0
    %1698 = vmatprep.subr.mxu0 0.0
    %1699 = vmatpush2.msra.mxu0 0.0
    %1700 = vmatprep.subr.mxu0 0.0
    %1701 = vmatpush2.msra.mxu0 0.0
    %1702 = vmatprep.subr.mxu0 0.0
    %1703 = vmatpush2.msra.mxu0 0.0
    %1704 = vmatprep.subr.mxu0 0.0
    %1705 = vmatpush2.msra.mxu0 0.0
    %1706 = vmatprep.subr.mxu0 0.0
    %1707 = vmatpush2.msra.mxu0 0.0
    %1708 = vmatprep.subr.mxu0 0.0
    %1709 = vmatpush2.msra.mxu0 0.0
    %1710 = vmatprep.subr.mxu0 0.0
    %1711 = vmatpush2.msra.mxu0 0.0
    %1712 = vmatprep.subr.mxu0 0.0
    %1713 = vmatpush2.msra.mxu0 0.0
    %1714 = vmatprep.subr.mxu0 0.0
    %1715 = vmatpush2.msra.mxu0 0.0
    %1716 = vmatprep.subr.mxu0 0.0
    %1717 = vmatpush2.msra.mxu0 0.0
    %1718 = vmatprep.subr.mxu0 0.0
    %1719 = vmatpush2.msra.mxu0 0.0
    %1720 = vmatprep.subr.mxu0 0.0
    %1721 = vmatpush2.msra.mxu0 0.0
    %1722 = vmatprep.subr.mxu0 0.0
    %1723 = vmatpush2.msra.mxu0 0.0
    %1724 = vmatprep.mubr.f32.mxu0 0.0
    %1725 = vmatmul.mubr.f32.gmra.mxu0 %v353
    %v1726 = vpop.f32.mrf.mxu0
    %v1727 = vadd.f32 %v1658, %v1726
    %v1728 = vpop.f32.mrf.mxu0
    %1729 = vmatprep.mubr.f32.mxu0 0.0
    %1730 = vmatmul.mubr.f32.gmra.mxu0 %v356
    %v1731 = vpop.f32.mrf.mxu0
    %v1732 = vadd.f32 %v1658, %v1731
    %v1733 = vpop.f32.mrf.mxu0
    %1734 = vdwg.mxu0
    %s1735 = scalar_lea.vmem %s4, 64
    %v1736 = vld [vmem:[%s1735] sm:$0xff]
    %v1737 = vld [vmem:[%s1735 + $0x8] sm:$0xff]
    %v1738 = vld [vmem:[%s1735 + $0x10] sm:$0xff]
    %v1739 = vld [vmem:[%s1735 + $0x18] sm:$0xff]
    %1740 = vrot.lane.b32.xlu0 %v350, 80
    %v1741 = vpop.permute.xlu0 %1740
    %1743 = vmatprep.subr.mxu0 0.0
    %1744 = vmatpush1.msra.mxu0 0.0
    %1745 = vmatprep.subr.mxu0 0.0
    %1746 = vmatpush1.msra.mxu0 0.0
    %1747 = vmatprep.subr.mxu0 0.0
    %1748 = vmatpush1.msra.mxu0 0.0
    %1749 = vmatprep.subr.mxu0 0.0
    %1750 = vmatpush1.msra.mxu0 0.0
    %1751 = vmatprep.subr.mxu0 0.0
    %1752 = vmatpush1.msra.mxu0 0.0
    %1753 = vmatprep.subr.mxu0 0.0
    %1754 = vmatpush1.msra.mxu0 0.0
    %1755 = vmatprep.subr.mxu0 0.0
    %1756 = vmatpush1.msra.mxu0 0.0
    %1757 = vmatprep.subr.mxu0 0.0
    %1758 = vmatpush1.msra.mxu0 0.0
    %1759 = vmatprep.subr.mxu0 0.0
    %1760 = vmatpush1.msra.mxu0 0.0
    %1761 = vmatprep.subr.mxu0 0.0
    %1762 = vmatpush1.msra.mxu0 0.0
    %1763 = vmatprep.subr.mxu0 0.0
    %1764 = vmatpush1.msra.mxu0 0.0
    %1765 = vmatprep.subr.mxu0 0.0
    %1766 = vmatpush1.msra.mxu0 0.0
    %1767 = vmatprep.subr.mxu0 0.0
    %1768 = vmatpush1.msra.mxu0 %v1739
    %1769 = vmatprep.subr.mxu0 0.0
    %1770 = vmatpush1.msra.mxu0 %v1738
    %1771 = vmatprep.subr.mxu0 0.0
    %1772 = vmatpush1.msra.mxu0 %v1737
    %1773 = vmatprep.subr.mxu0 0.0
    %1774 = vmatpush1.msra.mxu0 %v1736
    %1775 = vmatprep.subr.mxu0 0.0
    %1776 = vmatpush2.msra.mxu0 0.0
    %1777 = vmatprep.subr.mxu0 0.0
    %1778 = vmatpush2.msra.mxu0 0.0
    %1779 = vmatprep.subr.mxu0 0.0
    %1780 = vmatpush2.msra.mxu0 0.0
    %1781 = vmatprep.subr.mxu0 0.0
    %1782 = vmatpush2.msra.mxu0 0.0
    %1783 = vmatprep.subr.mxu0 0.0
    %1784 = vmatpush2.msra.mxu0 0.0
    %1785 = vmatprep.subr.mxu0 0.0
    %1786 = vmatpush2.msra.mxu0 0.0
    %1787 = vmatprep.subr.mxu0 0.0
    %1788 = vmatpush2.msra.mxu0 0.0
    %1789 = vmatprep.subr.mxu0 0.0
    %1790 = vmatpush2.msra.mxu0 0.0
    %1791 = vmatprep.subr.mxu0 0.0
    %1792 = vmatpush2.msra.mxu0 0.0
    %1793 = vmatprep.subr.mxu0 0.0
    %1794 = vmatpush2.msra.mxu0 0.0
    %1795 = vmatprep.subr.mxu0 0.0
    %1796 = vmatpush2.msra.mxu0 0.0
    %1797 = vmatprep.subr.mxu0 0.0
    %1798 = vmatpush2.msra.mxu0 0.0
    %1799 = vmatprep.subr.mxu0 0.0
    %1800 = vmatpush2.msra.mxu0 0.0
    %1801 = vmatprep.subr.mxu0 0.0
    %1802 = vmatpush2.msra.mxu0 0.0
    %1803 = vmatprep.subr.mxu0 0.0
    %1804 = vmatpush2.msra.mxu0 0.0
    %1805 = vmatprep.subr.mxu0 0.0
    %1806 = vmatpush2.msra.mxu0 0.0
    %1807 = vmatprep.mubr.f32.mxu0 0.0
    %1808 = vmatmul.mubr.f32.gmra.mxu0 %v353
    %v1809 = vpop.f32.mrf.mxu0
    %v1810 = vadd.f32 %v1741, %v1809
    %v1811 = vpop.f32.mrf.mxu0
    %1812 = vmatprep.mubr.f32.mxu0 0.0
    %1813 = vmatmul.mubr.f32.gmra.mxu0 %v356
    %v1814 = vpop.f32.mrf.mxu0
    %v1815 = vadd.f32 %v1741, %v1814
    %v1816 = vpop.f32.mrf.mxu0
    %1817 = vdwg.mxu0
    %s1818 = scalar_lea.vmem %s5, 64
    %v1819 = vld [vmem:[%s1818] sm:$0xff]
    %v1820 = vld [vmem:[%s1818 + $0x8] sm:$0xff]
    %v1821 = vld [vmem:[%s1818 + $0x10] sm:$0xff]
    %v1822 = vld [vmem:[%s1818 + $0x18] sm:$0xff]
    %1823 = vrot.lane.b32.xlu0 %v350, 48
    %v1824 = vpop.permute.xlu0 %1823
    %1826 = vmatprep.subr.mxu0 0.0
    %1827 = vmatpush1.msra.mxu0 0.0
    %1828 = vmatprep.subr.mxu0 0.0
    %1829 = vmatpush1.msra.mxu0 0.0
    %1830 = vmatprep.subr.mxu0 0.0
    %1831 = vmatpush1.msra.mxu0 0.0
    %1832 = vmatprep.subr.mxu0 0.0
    %1833 = vmatpush1.msra.mxu0 0.0
    %1834 = vmatprep.subr.mxu0 0.0
    %1835 = vmatpush1.msra.mxu0 0.0
    %1836 = vmatprep.subr.mxu0 0.0
    %1837 = vmatpush1.msra.mxu0 0.0
    %1838 = vmatprep.subr.mxu0 0.0
    %1839 = vmatpush1.msra.mxu0 0.0
    %1840 = vmatprep.subr.mxu0 0.0
    %1841 = vmatpush1.msra.mxu0 0.0
    %1842 = vmatprep.subr.mxu0 0.0
    %1843 = vmatpush1.msra.mxu0 0.0
    %1844 = vmatprep.subr.mxu0 0.0
    %1845 = vmatpush1.msra.mxu0 0.0
    %1846 = vmatprep.subr.mxu0 0.0
    %1847 = vmatpush1.msra.mxu0 0.0
    %1848 = vmatprep.subr.mxu0 0.0
    %1849 = vmatpush1.msra.mxu0 0.0
    %1850 = vmatprep.subr.mxu0 0.0
    %1851 = vmatpush1.msra.mxu0 %v1822
    %1852 = vmatprep.subr.mxu0 0.0
    %1853 = vmatpush1.msra.mxu0 %v1821
    %1854 = vmatprep.subr.mxu0 0.0
    %1855 = vmatpush1.msra.mxu0 %v1820
    %1856 = vmatprep.subr.mxu0 0.0
    %1857 = vmatpush1.msra.mxu0 %v1819
    %1858 = vmatprep.subr.mxu0 0.0
    %1859 = vmatpush2.msra.mxu0 0.0
    %1860 = vmatprep.subr.mxu0 0.0
    %1861 = vmatpush2.msra.mxu0 0.0
    %1862 = vmatprep.subr.mxu0 0.0
    %1863 = vmatpush2.msra.mxu0 0.0
    %1864 = vmatprep.subr.mxu0 0.0
    %1865 = vmatpush2.msra.mxu0 0.0
    %1866 = vmatprep.subr.mxu0 0.0
    %1867 = vmatpush2.msra.mxu0 0.0
    %1868 = vmatprep.subr.mxu0 0.0
    %1869 = vmatpush2.msra.mxu0 0.0
    %1870 = vmatprep.subr.mxu0 0.0
    %1871 = vmatpush2.msra.mxu0 0.0
    %1872 = vmatprep.subr.mxu0 0.0
    %1873 = vmatpush2.msra.mxu0 0.0
    %1874 = vmatprep.subr.mxu0 0.0
    %1875 = vmatpush2.msra.mxu0 0.0
    %1876 = vmatprep.subr.mxu0 0.0
    %1877 = vmatpush2.msra.mxu0 0.0
    %1878 = vmatprep.subr.mxu0 0.0
    %1879 = vmatpush2.msra.mxu0 0.0
    %1880 = vmatprep.subr.mxu0 0.0
    %1881 = vmatpush2.msra.mxu0 0.0
    %1882 = vmatprep.subr.mxu0 0.0
    %1883 = vmatpush2.msra.mxu0 0.0
    %1884 = vmatprep.subr.mxu0 0.0
    %1885 = vmatpush2.msra.mxu0 0.0
    %1886 = vmatprep.subr.mxu0 0.0
    %1887 = vmatpush2.msra.mxu0 0.0
    %1888 = vmatprep.subr.mxu0 0.0
    %1889 = vmatpush2.msra.mxu0 0.0
    %1890 = vmatprep.mubr.f32.mxu0 0.0
    %1891 = vmatmul.mubr.f32.gmra.mxu0 %v353
    %v1892 = vpop.f32.mrf.mxu0
    %v1893 = vadd.f32 %v1824, %v1892
    %v1894 = vpop.f32.mrf.mxu0
    %1895 = vmatprep.mubr.f32.mxu0 0.0
    %1896 = vmatmul.mubr.f32.gmra.mxu0 %v356
    %v1897 = vpop.f32.mrf.mxu0
    %v1898 = vadd.f32 %v1824, %v1897
    %v1899 = vpop.f32.mrf.mxu0
    %1900 = vdwg.mxu0
    %v1902 = vsel %vm597, %v1727, 0
    %v1905 = vsel %vm597, %v1810, 0
    %1907 = vmatprep.subr.mxu0 0.0
    %1908 = vmatpush1.xpose.msra.mxu0 0.0
    %1909 = vmatprep.subr.mxu0 0.0
    %1910 = vmatpush1.xpose.msra.mxu0 0.0
    %1911 = vmatprep.subr.mxu0 0.0
    %1912 = vmatpush1.xpose.msra.mxu0 0.0
    %1913 = vmatprep.subr.mxu0 0.0
    %1914 = vmatpush1.xpose.msra.mxu0 0.0
    %1915 = vmatprep.subr.mxu0 0.0
    %1916 = vmatpush1.xpose.msra.mxu0 0.0
    %1917 = vmatprep.subr.mxu0 0.0
    %1918 = vmatpush1.xpose.msra.mxu0 0.0
    %1919 = vmatprep.subr.mxu0 0.0
    %1920 = vmatpush1.xpose.msra.mxu0 0.0
    %1921 = vmatprep.subr.mxu0 0.0
    %1922 = vmatpush1.xpose.msra.mxu0 0.0
    %1923 = vmatprep.subr.mxu0 0.0
    %1924 = vmatpush1.xpose.msra.mxu0 0.0
    %1925 = vmatprep.subr.mxu0 0.0
    %1926 = vmatpush1.xpose.msra.mxu0 0.0
    %1927 = vmatprep.subr.mxu0 0.0
    %1928 = vmatpush1.xpose.msra.mxu0 0.0
    %1929 = vmatprep.subr.mxu0 0.0
    %1930 = vmatpush1.xpose.msra.mxu0 0.0
    %1931 = vmatprep.subr.mxu0 0.0
    %1932 = vmatpush1.xpose.msra.mxu0 0.0
    %1933 = vmatprep.subr.mxu0 0.0
    %1934 = vmatpush1.xpose.msra.mxu0 0.0
    %1935 = vmatprep.subr.mxu0 0.0
    %1936 = vmatpush1.xpose.msra.mxu0 0.0
    %1937 = vmatprep.subr.mxu0 0.0
    %1938 = vmatpush1.xpose.msra.mxu0 %v1905
    %1939 = vmatprep.subr.mxu0 0.0
    %1940 = vmatpush2.xpose.msra.mxu0 0.0
    %1941 = vmatprep.subr.mxu0 0.0
    %1942 = vmatpush2.xpose.msra.mxu0 0.0
    %1943 = vmatprep.subr.mxu0 0.0
    %1944 = vmatpush2.xpose.msra.mxu0 0.0
    %1945 = vmatprep.subr.mxu0 0.0
    %1946 = vmatpush2.xpose.msra.mxu0 0.0
    %1947 = vmatprep.subr.mxu0 0.0
    %1948 = vmatpush2.xpose.msra.mxu0 0.0
    %1949 = vmatprep.subr.mxu0 0.0
    %1950 = vmatpush2.xpose.msra.mxu0 0.0
    %1951 = vmatprep.subr.mxu0 0.0
    %1952 = vmatpush2.xpose.msra.mxu0 0.0
    %1953 = vmatprep.subr.mxu0 0.0
    %1954 = vmatpush2.xpose.msra.mxu0 0.0
    %1955 = vmatprep.subr.mxu0 0.0
    %1956 = vmatpush2.xpose.msra.mxu0 0.0
    %1957 = vmatprep.subr.mxu0 0.0
    %1958 = vmatpush2.xpose.msra.mxu0 0.0
    %1959 = vmatprep.subr.mxu0 0.0
    %1960 = vmatpush2.xpose.msra.mxu0 0.0
    %1961 = vmatprep.subr.mxu0 0.0
    %1962 = vmatpush2.xpose.msra.mxu0 0.0
    %1963 = vmatprep.subr.mxu0 0.0
    %1964 = vmatpush2.xpose.msra.mxu0 0.0
    %1965 = vmatprep.subr.mxu0 0.0
    %1966 = vmatpush2.xpose.msra.mxu0 0.0
    %1967 = vmatprep.subr.mxu0 0.0
    %1968 = vmatpush2.xpose.msra.mxu0 0.0
    %1969 = vmatprep.subr.mxu0 0.0
    %1970 = vmatpush2.xpose.msra.mxu0 0.0
    %1971 = vmatprep.mubr.f32.mxu0 0.0
    %1972 = vmatmul.mubr.f32.gmra.mxu0 %v1902
    %v1973 = vpop.f32.mrf.mxu0
    %v1974 = vadd.f32 %v342, %v1973
    %v1975 = vpop.f32.mrf.mxu0
    %1976 = vdwg.mxu0
    %v1978 = vsel %vm597, %v1732, 0
    %v1981 = vsel %vm597, %v1815, 0
    %1983 = vmatprep.subr.mxu0 0.0
    %1984 = vmatpush1.xpose.msra.mxu0 0.0
    %1985 = vmatprep.subr.mxu0 0.0
    %1986 = vmatpush1.xpose.msra.mxu0 0.0
    %1987 = vmatprep.subr.mxu0 0.0
    %1988 = vmatpush1.xpose.msra.mxu0 0.0
    %1989 = vmatprep.subr.mxu0 0.0
    %1990 = vmatpush1.xpose.msra.mxu0 0.0
    %1991 = vmatprep.subr.mxu0 0.0
    %1992 = vmatpush1.xpose.msra.mxu0 0.0
    %1993 = vmatprep.subr.mxu0 0.0
    %1994 = vmatpush1.xpose.msra.mxu0 0.0
    %1995 = vmatprep.subr.mxu0 0.0
    %1996 = vmatpush1.xpose.msra.mxu0 0.0
    %1997 = vmatprep.subr.mxu0 0.0
    %1998 = vmatpush1.xpose.msra.mxu0 0.0
    %1999 = vmatprep.subr.mxu0 0.0
    %2000 = vmatpush1.xpose.msra.mxu0 0.0
    %2001 = vmatprep.subr.mxu0 0.0
    %2002 = vmatpush1.xpose.msra.mxu0 0.0
    %2003 = vmatprep.subr.mxu0 0.0
    %2004 = vmatpush1.xpose.msra.mxu0 0.0
    %2005 = vmatprep.subr.mxu0 0.0
    %2006 = vmatpush1.xpose.msra.mxu0 0.0
    %2007 = vmatprep.subr.mxu0 0.0
    %2008 = vmatpush1.xpose.msra.mxu0 0.0
    %2009 = vmatprep.subr.mxu0 0.0
    %2010 = vmatpush1.xpose.msra.mxu0 0.0
    %2011 = vmatprep.subr.mxu0 0.0
    %2012 = vmatpush1.xpose.msra.mxu0 0.0
    %2013 = vmatprep.subr.mxu0 0.0
    %2014 = vmatpush1.xpose.msra.mxu0 %v1981
    %2015 = vmatprep.subr.mxu0 0.0
    %2016 = vmatpush2.xpose.msra.mxu0 0.0
    %2017 = vmatprep.subr.mxu0 0.0
    %2018 = vmatpush2.xpose.msra.mxu0 0.0
    %2019 = vmatprep.subr.mxu0 0.0
    %2020 = vmatpush2.xpose.msra.mxu0 0.0
    %2021 = vmatprep.subr.mxu0 0.0
    %2022 = vmatpush2.xpose.msra.mxu0 0.0
    %2023 = vmatprep.subr.mxu0 0.0
    %2024 = vmatpush2.xpose.msra.mxu0 0.0
    %2025 = vmatprep.subr.mxu0 0.0
    %2026 = vmatpush2.xpose.msra.mxu0 0.0
    %2027 = vmatprep.subr.mxu0 0.0
    %2028 = vmatpush2.xpose.msra.mxu0 0.0
    %2029 = vmatprep.subr.mxu0 0.0
    %2030 = vmatpush2.xpose.msra.mxu0 0.0
    %2031 = vmatprep.subr.mxu0 0.0
    %2032 = vmatpush2.xpose.msra.mxu0 0.0
    %2033 = vmatprep.subr.mxu0 0.0
    %2034 = vmatpush2.xpose.msra.mxu0 0.0
    %2035 = vmatprep.subr.mxu0 0.0
    %2036 = vmatpush2.xpose.msra.mxu0 0.0
    %2037 = vmatprep.subr.mxu0 0.0
    %2038 = vmatpush2.xpose.msra.mxu0 0.0
    %2039 = vmatprep.subr.mxu0 0.0
    %2040 = vmatpush2.xpose.msra.mxu0 0.0
    %2041 = vmatprep.subr.mxu0 0.0
    %2042 = vmatpush2.xpose.msra.mxu0 0.0
    %2043 = vmatprep.subr.mxu0 0.0
    %2044 = vmatpush2.xpose.msra.mxu0 0.0
    %2045 = vmatprep.subr.mxu0 0.0
    %2046 = vmatpush2.xpose.msra.mxu0 0.0
    %2047 = vmatprep.mubr.f32.mxu0 0.0
    %2048 = vmatmul.mubr.f32.gmra.mxu0 %v1978
    %v2049 = vpop.f32.mrf.mxu0
    %v2050 = vadd.f32 %v342, %v2049
    %v2051 = vpop.f32.mrf.mxu0
    %2052 = vdwg.mxu0
    %v2053 = vsel %vm597, %v1974, -inf
    %2054 = vmax.xlane.f32.xlu0 %v2053
    %v2055 = vpop.xlane.xlu0 %2054
    %v2056 = vsel %vm597, %v2050, -inf
    %2057 = vmax.xlane.f32.xlu0 %v2056
    %v2058 = vpop.xlane.xlu0 %2057
    %v2059 = vsub.f32 %v1974, %v2055
    %v2060 = vsub.f32 %v2050, %v2058
    %v2061 = vmul.f32 %v2059, 1.442695
    %v2062 = vpow.pop %v2061
    %v2063 = vmul.f32 %v2060, 1.442695
    %v2064 = vpow.pop %v2063
    %v2065 = vsel %vm597, %v2062, 0.0
    %2066 = vadd.xlane.f32.xlu0 %v2065
    %v2067 = vpop.xlane.xlu0 %2066
    %v2068 = vsel %vm597, %v2064, 0.0
    %2069 = vadd.xlane.f32.xlu0 %v2068
    %v2070 = vpop.xlane.xlu0 %2069
    %v2071 = vrcp.pop %v2067
    %v2072 = vrcp.pop %v2070
    %v2073 = vmul.f32 %v2062, %v2071
    %v2074 = vmul.f32 %v2064, %v2072
    %v2076 = vsel %vm597, %v2073, 0
    %2078 = vmatprep.subr.mxu0 0.0
    %2079 = vmatpush1.msra.mxu0 0.0
    %2080 = vmatprep.subr.mxu0 0.0
    %2081 = vmatpush1.msra.mxu0 0.0
    %2082 = vmatprep.subr.mxu0 0.0
    %2083 = vmatpush1.msra.mxu0 0.0
    %2084 = vmatprep.subr.mxu0 0.0
    %2085 = vmatpush1.msra.mxu0 0.0
    %2086 = vmatprep.subr.mxu0 0.0
    %2087 = vmatpush1.msra.mxu0 0.0
    %2088 = vmatprep.subr.mxu0 0.0
    %2089 = vmatpush1.msra.mxu0 0.0
    %2090 = vmatprep.subr.mxu0 0.0
    %2091 = vmatpush1.msra.mxu0 0.0
    %2092 = vmatprep.subr.mxu0 0.0
    %2093 = vmatpush1.msra.mxu0 0.0
    %2094 = vmatprep.subr.mxu0 0.0
    %2095 = vmatpush1.msra.mxu0 0.0
    %2096 = vmatprep.subr.mxu0 0.0
    %2097 = vmatpush1.msra.mxu0 0.0
    %2098 = vmatprep.subr.mxu0 0.0
    %2099 = vmatpush1.msra.mxu0 0.0
    %2100 = vmatprep.subr.mxu0 0.0
    %2101 = vmatpush1.msra.mxu0 0.0
    %2102 = vmatprep.subr.mxu0 0.0
    %2103 = vmatpush1.msra.mxu0 0.0
    %2104 = vmatprep.subr.mxu0 0.0
    %2105 = vmatpush1.msra.mxu0 0.0
    %2106 = vmatprep.subr.mxu0 0.0
    %2107 = vmatpush1.msra.mxu0 0.0
    %2108 = vmatprep.subr.mxu0 0.0
    %2109 = vmatpush1.msra.mxu0 %v1893
    %2110 = vmatprep.subr.mxu0 0.0
    %2111 = vmatpush2.msra.mxu0 0.0
    %2112 = vmatprep.subr.mxu0 0.0
    %2113 = vmatpush2.msra.mxu0 0.0
    %2114 = vmatprep.subr.mxu0 0.0
    %2115 = vmatpush2.msra.mxu0 0.0
    %2116 = vmatprep.subr.mxu0 0.0
    %2117 = vmatpush2.msra.mxu0 0.0
    %2118 = vmatprep.subr.mxu0 0.0
    %2119 = vmatpush2.msra.mxu0 0.0
    %2120 = vmatprep.subr.mxu0 0.0
    %2121 = vmatpush2.msra.mxu0 0.0
    %2122 = vmatprep.subr.mxu0 0.0
    %2123 = vmatpush2.msra.mxu0 0.0
    %2124 = vmatprep.subr.mxu0 0.0
    %2125 = vmatpush2.msra.mxu0 0.0
    %2126 = vmatprep.subr.mxu0 0.0
    %2127 = vmatpush2.msra.mxu0 0.0
    %2128 = vmatprep.subr.mxu0 0.0
    %2129 = vmatpush2.msra.mxu0 0.0
    %2130 = vmatprep.subr.mxu0 0.0
    %2131 = vmatpush2.msra.mxu0 0.0
    %2132 = vmatprep.subr.mxu0 0.0
    %2133 = vmatpush2.msra.mxu0 0.0
    %2134 = vmatprep.subr.mxu0 0.0
    %2135 = vmatpush2.msra.mxu0 0.0
    %2136 = vmatprep.subr.mxu0 0.0
    %2137 = vmatpush2.msra.mxu0 0.0
    %2138 = vmatprep.subr.mxu0 0.0
    %2139 = vmatpush2.msra.mxu0 0.0
    %2140 = vmatprep.subr.mxu0 0.0
    %2141 = vmatpush2.msra.mxu0 0.0
    %2142 = vmatprep.mubr.f32.mxu0 0.0
    %2143 = vmatmul.mubr.f32.gmra.mxu0 %v2076
    %v2144 = vpop.f32.mrf.mxu0
    %v2145 = vadd.f32 0.0, %v2144
    %v2146 = vpop.f32.mrf.mxu0
    %2147 = vdwg.mxu0
    %v2149 = vsel %vm597, %v2074, 0
    %2151 = vmatprep.subr.mxu0 0.0
    %2152 = vmatpush1.msra.mxu0 0.0
    %2153 = vmatprep.subr.mxu0 0.0
    %2154 = vmatpush1.msra.mxu0 0.0
    %2155 = vmatprep.subr.mxu0 0.0
    %2156 = vmatpush1.msra.mxu0 0.0
    %2157 = vmatprep.subr.mxu0 0.0
    %2158 = vmatpush1.msra.mxu0 0.0
    %2159 = vmatprep.subr.mxu0 0.0
    %2160 = vmatpush1.msra.mxu0 0.0
    %2161 = vmatprep.subr.mxu0 0.0
    %2162 = vmatpush1.msra.mxu0 0.0
    %2163 = vmatprep.subr.mxu0 0.0
    %2164 = vmatpush1.msra.mxu0 0.0
    %2165 = vmatprep.subr.mxu0 0.0
    %2166 = vmatpush1.msra.mxu0 0.0
    %2167 = vmatprep.subr.mxu0 0.0
    %2168 = vmatpush1.msra.mxu0 0.0
    %2169 = vmatprep.subr.mxu0 0.0
    %2170 = vmatpush1.msra.mxu0 0.0
    %2171 = vmatprep.subr.mxu0 0.0
    %2172 = vmatpush1.msra.mxu0 0.0
    %2173 = vmatprep.subr.mxu0 0.0
    %2174 = vmatpush1.msra.mxu0 0.0
    %2175 = vmatprep.subr.mxu0 0.0
    %2176 = vmatpush1.msra.mxu0 0.0
    %2177 = vmatprep.subr.mxu0 0.0
    %2178 = vmatpush1.msra.mxu0 0.0
    %2179 = vmatprep.subr.mxu0 0.0
    %2180 = vmatpush1.msra.mxu0 0.0
    %2181 = vmatprep.subr.mxu0 0.0
    %2182 = vmatpush1.msra.mxu0 %v1898
    %2183 = vmatprep.subr.mxu0 0.0
    %2184 = vmatpush2.msra.mxu0 0.0
    %2185 = vmatprep.subr.mxu0 0.0
    %2186 = vmatpush2.msra.mxu0 0.0
    %2187 = vmatprep.subr.mxu0 0.0
    %2188 = vmatpush2.msra.mxu0 0.0
    %2189 = vmatprep.subr.mxu0 0.0
    %2190 = vmatpush2.msra.mxu0 0.0
    %2191 = vmatprep.subr.mxu0 0.0
    %2192 = vmatpush2.msra.mxu0 0.0
    %2193 = vmatprep.subr.mxu0 0.0
    %2194 = vmatpush2.msra.mxu0 0.0
    %2195 = vmatprep.subr.mxu0 0.0
    %2196 = vmatpush2.msra.mxu0 0.0
    %2197 = vmatprep.subr.mxu0 0.0
    %2198 = vmatpush2.msra.mxu0 0.0
    %2199 = vmatprep.subr.mxu0 0.0
    %2200 = vmatpush2.msra.mxu0 0.0
    %2201 = vmatprep.subr.mxu0 0.0
    %2202 = vmatpush2.msra.mxu0 0.0
    %2203 = vmatprep.subr.mxu0 0.0
    %2204 = vmatpush2.msra.mxu0 0.0
    %2205 = vmatprep.subr.mxu0 0.0
    %2206 = vmatpush2.msra.mxu0 0.0
    %2207 = vmatprep.subr.mxu0 0.0
    %2208 = vmatpush2.msra.mxu0 0.0
    %2209 = vmatprep.subr.mxu0 0.0
    %2210 = vmatpush2.msra.mxu0 0.0
    %2211 = vmatprep.subr.mxu0 0.0
    %2212 = vmatpush2.msra.mxu0 0.0
    %2213 = vmatprep.subr.mxu0 0.0
    %2214 = vmatpush2.msra.mxu0 0.0
    %2215 = vmatprep.mubr.f32.mxu0 0.0
    %2216 = vmatmul.mubr.f32.gmra.mxu0 %v2149
    %v2217 = vpop.f32.mrf.mxu0
    %v2218 = vadd.f32 0.0, %v2217
    %v2219 = vpop.f32.mrf.mxu0
    %2220 = vdwg.mxu0
    %s2221 = scalar_lea.vmem %s6, 16
    %v2222 = vld [vmem:[%s2221] sm:$0xff]
    %v2224 = vsel %vm597, %v2145, 0
    %v2227 = vsel %vm597, %v2218, 0
    %2229 = vmatprep.subr.mxu0 0.0
    %2230 = vmatpush1.msra.mxu0 0.0
    %2231 = vmatprep.subr.mxu0 0.0
    %2232 = vmatpush1.msra.mxu0 0.0
    %2233 = vmatprep.subr.mxu0 0.0
    %2234 = vmatpush1.msra.mxu0 0.0
    %2235 = vmatprep.subr.mxu0 0.0
    %2236 = vmatpush1.msra.mxu0 0.0
    %2237 = vmatprep.subr.mxu0 0.0
    %2238 = vmatpush1.msra.mxu0 0.0
    %2239 = vmatprep.subr.mxu0 0.0
    %2240 = vmatpush1.msra.mxu0 0.0
    %2241 = vmatprep.subr.mxu0 0.0
    %2242 = vmatpush1.msra.mxu0 0.0
    %2243 = vmatprep.subr.mxu0 0.0
    %2244 = vmatpush1.msra.mxu0 0.0
    %2245 = vmatprep.subr.mxu0 0.0
    %2246 = vmatpush1.msra.mxu0 0.0
    %2247 = vmatprep.subr.mxu0 0.0
    %2248 = vmatpush1.msra.mxu0 0.0
    %2249 = vmatprep.subr.mxu0 0.0
    %2250 = vmatpush1.msra.mxu0 0.0
    %2251 = vmatprep.subr.mxu0 0.0
    %2252 = vmatpush1.msra.mxu0 0.0
    %2253 = vmatprep.subr.mxu0 0.0
    %2254 = vmatpush1.msra.mxu0 0.0
    %2255 = vmatprep.subr.mxu0 0.0
    %2256 = vmatpush1.msra.mxu0 0.0
    %2257 = vmatprep.subr.mxu0 0.0
    %2258 = vmatpush1.msra.mxu0 0.0
    %2259 = vmatprep.subr.mxu0 0.0
    %2260 = vmatpush1.msra.mxu0 %v2222
    %2261 = vmatprep.subr.mxu0 0.0
    %2262 = vmatpush2.msra.mxu0 0.0
    %2263 = vmatprep.subr.mxu0 0.0
    %2264 = vmatpush2.msra.mxu0 0.0
    %2265 = vmatprep.subr.mxu0 0.0
    %2266 = vmatpush2.msra.mxu0 0.0
    %2267 = vmatprep.subr.mxu0 0.0
    %2268 = vmatpush2.msra.mxu0 0.0
    %2269 = vmatprep.subr.mxu0 0.0
    %2270 = vmatpush2.msra.mxu0 0.0
    %2271 = vmatprep.subr.mxu0 0.0
    %2272 = vmatpush2.msra.mxu0 0.0
    %2273 = vmatprep.subr.mxu0 0.0
    %2274 = vmatpush2.msra.mxu0 0.0
    %2275 = vmatprep.subr.mxu0 0.0
    %2276 = vmatpush2.msra.mxu0 0.0
    %2277 = vmatprep.subr.mxu0 0.0
    %2278 = vmatpush2.msra.mxu0 0.0
    %2279 = vmatprep.subr.mxu0 0.0
    %2280 = vmatpush2.msra.mxu0 0.0
    %2281 = vmatprep.subr.mxu0 0.0
    %2282 = vmatpush2.msra.mxu0 0.0
    %2283 = vmatprep.subr.mxu0 0.0
    %2284 = vmatpush2.msra.mxu0 0.0
    %2285 = vmatprep.subr.mxu0 0.0
    %2286 = vmatpush2.msra.mxu0 0.0
    %2287 = vmatprep.subr.mxu0 0.0
    %2288 = vmatpush2.msra.mxu0 0.0
    %2289 = vmatprep.subr.mxu0 0.0
    %2290 = vmatpush2.msra.mxu0 0.0
    %2291 = vmatprep.subr.mxu0 0.0
    %2292 = vmatpush2.msra.mxu0 0.0
    %2293 = vmatprep.mubr.f32.mxu0 0.0
    %2294 = vmatmul.mubr.f32.gmra.mxu0 %v2224
    %v2295 = vpop.f32.mrf.mxu0
    %v2296 = vadd.f32 0.0, %v2295
    %v2297 = vpop.f32.mrf.mxu0
    %2298 = vmatprep.mubr.f32.mxu0 0.0
    %2299 = vmatmul.mubr.f32.gmra.mxu0 %v2227
    %v2300 = vpop.f32.mrf.mxu0
    %v2301 = vadd.f32 0.0, %v2300
    %v2302 = vpop.f32.mrf.mxu0
    %2303 = vdwg.mxu0
    %v2304 = vadd.f32 %v1644, %v2296
    %v2305 = vadd.f32 %v1649, %v2301
    %s2306 = scalar_lea.vmem %s3, 96
    %v2307 = vld [vmem:[%s2306] sm:$0xff]
    %v2308 = vld [vmem:[%s2306 + $0x8] sm:$0xff]
    %v2309 = vld [vmem:[%s2306 + $0x10] sm:$0xff]
    %v2310 = vld [vmem:[%s2306 + $0x18] sm:$0xff]
    %2311 = vrot.lane.b32.xlu0 %v350, 104
    %v2312 = vpop.permute.xlu0 %2311
    %2314 = vmatprep.subr.mxu0 0.0
    %2315 = vmatpush1.msra.mxu0 0.0
    %2316 = vmatprep.subr.mxu0 0.0
    %2317 = vmatpush1.msra.mxu0 0.0
    %2318 = vmatprep.subr.mxu0 0.0
    %2319 = vmatpush1.msra.mxu0 0.0
    %2320 = vmatprep.subr.mxu0 0.0
    %2321 = vmatpush1.msra.mxu0 0.0
    %2322 = vmatprep.subr.mxu0 0.0
    %2323 = vmatpush1.msra.mxu0 0.0
    %2324 = vmatprep.subr.mxu0 0.0
    %2325 = vmatpush1.msra.mxu0 0.0
    %2326 = vmatprep.subr.mxu0 0.0
    %2327 = vmatpush1.msra.mxu0 0.0
    %2328 = vmatprep.subr.mxu0 0.0
    %2329 = vmatpush1.msra.mxu0 0.0
    %2330 = vmatprep.subr.mxu0 0.0
    %2331 = vmatpush1.msra.mxu0 0.0
    %2332 = vmatprep.subr.mxu0 0.0
    %2333 = vmatpush1.msra.mxu0 0.0
    %2334 = vmatprep.subr.mxu0 0.0
    %2335 = vmatpush1.msra.mxu0 0.0
    %2336 = vmatprep.subr.mxu0 0.0
    %2337 = vmatpush1.msra.mxu0 0.0
    %2338 = vmatprep.subr.mxu0 0.0
    %2339 = vmatpush1.msra.mxu0 %v2310
    %2340 = vmatprep.subr.mxu0 0.0
    %2341 = vmatpush1.msra.mxu0 %v2309
    %2342 = vmatprep.subr.mxu0 0.0
    %2343 = vmatpush1.msra.mxu0 %v2308
    %2344 = vmatprep.subr.mxu0 0.0
    %2345 = vmatpush1.msra.mxu0 %v2307
    %2346 = vmatprep.subr.mxu0 0.0
    %2347 = vmatpush2.msra.mxu0 0.0
    %2348 = vmatprep.subr.mxu0 0.0
    %2349 = vmatpush2.msra.mxu0 0.0
    %2350 = vmatprep.subr.mxu0 0.0
    %2351 = vmatpush2.msra.mxu0 0.0
    %2352 = vmatprep.subr.mxu0 0.0
    %2353 = vmatpush2.msra.mxu0 0.0
    %2354 = vmatprep.subr.mxu0 0.0
    %2355 = vmatpush2.msra.mxu0 0.0
    %2356 = vmatprep.subr.mxu0 0.0
    %2357 = vmatpush2.msra.mxu0 0.0
    %2358 = vmatprep.subr.mxu0 0.0
    %2359 = vmatpush2.msra.mxu0 0.0
    %2360 = vmatprep.subr.mxu0 0.0
    %2361 = vmatpush2.msra.mxu0 0.0
    %2362 = vmatprep.subr.mxu0 0.0
    %2363 = vmatpush2.msra.mxu0 0.0
    %2364 = vmatprep.subr.mxu0 0.0
    %2365 = vmatpush2.msra.mxu0 0.0
    %2366 = vmatprep.subr.mxu0 0.0
    %2367 = vmatpush2.msra.mxu0 0.0
    %2368 = vmatprep.subr.mxu0 0.0
    %2369 = vmatpush2.msra.mxu0 0.0
    %2370 = vmatprep.subr.mxu0 0.0
    %2371 = vmatpush2.msra.mxu0 0.0
    %2372 = vmatprep.subr.mxu0 0.0
    %2373 = vmatpush2.msra.mxu0 0.0
    %2374 = vmatprep.subr.mxu0 0.0
    %2375 = vmatpush2.msra.mxu0 0.0
    %2376 = vmatprep.subr.mxu0 0.0
    %2377 = vmatpush2.msra.mxu0 0.0
    %2378 = vmatprep.mubr.f32.mxu0 0.0
    %2379 = vmatmul.mubr.f32.gmra.mxu0 %v353
    %v2380 = vpop.f32.mrf.mxu0
    %v2381 = vadd.f32 %v2312, %v2380
    %v2382 = vpop.f32.mrf.mxu0
    %2383 = vmatprep.mubr.f32.mxu0 0.0
    %2384 = vmatmul.mubr.f32.gmra.mxu0 %v356
    %v2385 = vpop.f32.mrf.mxu0
    %v2386 = vadd.f32 %v2312, %v2385
    %v2387 = vpop.f32.mrf.mxu0
    %2388 = vdwg.mxu0
    %s2389 = scalar_lea.vmem %s4, 96
    %v2390 = vld [vmem:[%s2389] sm:$0xff]
    %v2391 = vld [vmem:[%s2389 + $0x8] sm:$0xff]
    %v2392 = vld [vmem:[%s2389 + $0x10] sm:$0xff]
    %v2393 = vld [vmem:[%s2389 + $0x18] sm:$0xff]
    %2394 = vrot.lane.b32.xlu0 %v350, 72
    %v2395 = vpop.permute.xlu0 %2394
    %2397 = vmatprep.subr.mxu0 0.0
    %2398 = vmatpush1.msra.mxu0 0.0
    %2399 = vmatprep.subr.mxu0 0.0
    %2400 = vmatpush1.msra.mxu0 0.0
    %2401 = vmatprep.subr.mxu0 0.0
    %2402 = vmatpush1.msra.mxu0 0.0
    %2403 = vmatprep.subr.mxu0 0.0
    %2404 = vmatpush1.msra.mxu0 0.0
    %2405 = vmatprep.subr.mxu0 0.0
    %2406 = vmatpush1.msra.mxu0 0.0
    %2407 = vmatprep.subr.mxu0 0.0
    %2408 = vmatpush1.msra.mxu0 0.0
    %2409 = vmatprep.subr.mxu0 0.0
    %2410 = vmatpush1.msra.mxu0 0.0
    %2411 = vmatprep.subr.mxu0 0.0
    %2412 = vmatpush1.msra.mxu0 0.0
    %2413 = vmatprep.subr.mxu0 0.0
    %2414 = vmatpush1.msra.mxu0 0.0
    %2415 = vmatprep.subr.mxu0 0.0
    %2416 = vmatpush1.msra.mxu0 0.0
    %2417 = vmatprep.subr.mxu0 0.0
    %2418 = vmatpush1.msra.mxu0 0.0
    %2419 = vmatprep.subr.mxu0 0.0
    %2420 = vmatpush1.msra.mxu0 0.0
    %2421 = vmatprep.subr.mxu0 0.0
    %2422 = vmatpush1.msra.mxu0 %v2393
    %2423 = vmatprep.subr.mxu0 0.0
    %2424 = vmatpush1.msra.mxu0 %v2392
    %2425 = vmatprep.subr.mxu0 0.0
    %2426 = vmatpush1.msra.mxu0 %v2391
    %2427 = vmatprep.subr.mxu0 0.0
    %2428 = vmatpush1.msra.mxu0 %v2390
    %2429 = vmatprep.subr.mxu0 0.0
    %2430 = vmatpush2.msra.mxu0 0.0
    %2431 = vmatprep.subr.mxu0 0.0
    %2432 = vmatpush2.msra.mxu0 0.0
    %2433 = vmatprep.subr.mxu0 0.0
    %2434 = vmatpush2.msra.mxu0 0.0
    %2435 = vmatprep.subr.mxu0 0.0
    %2436 = vmatpush2.msra.mxu0 0.0
    %2437 = vmatprep.subr.mxu0 0.0
    %2438 = vmatpush2.msra.mxu0 0.0
    %2439 = vmatprep.subr.mxu0 0.0
    %2440 = vmatpush2.msra.mxu0 0.0
    %2441 = vmatprep.subr.mxu0 0.0
    %2442 = vmatpush2.msra.mxu0 0.0
    %2443 = vmatprep.subr.mxu0 0.0
    %2444 = vmatpush2.msra.mxu0 0.0
    %2445 = vmatprep.subr.mxu0 0.0
    %2446 = vmatpush2.msra.mxu0 0.0
    %2447 = vmatprep.subr.mxu0 0.0
    %2448 = vmatpush2.msra.mxu0 0.0
    %2449 = vmatprep.subr.mxu0 0.0
    %2450 = vmatpush2.msra.mxu0 0.0
    %2451 = vmatprep.subr.mxu0 0.0
    %2452 = vmatpush2.msra.mxu0 0.0
    %2453 = vmatprep.subr.mxu0 0.0
    %2454 = vmatpush2.msra.mxu0 0.0
    %2455 = vmatprep.subr.mxu0 0.0
    %2456 = vmatpush2.msra.mxu0 0.0
    %2457 = vmatprep.subr.mxu0 0.0
    %2458 = vmatpush2.msra.mxu0 0.0
    %2459 = vmatprep.subr.mxu0 0.0
    %2460 = vmatpush2.msra.mxu0 0.0
    %2461 = vmatprep.mubr.f32.mxu0 0.0
    %2462 = vmatmul.mubr.f32.gmra.mxu0 %v353
    %v2463 = vpop.f32.mrf.mxu0
    %v2464 = vadd.f32 %v2395, %v2463
    %v2465 = vpop.f32.mrf.mxu0
    %2466 = vmatprep.mubr.f32.mxu0 0.0
    %2467 = vmatmul.mubr.f32.gmra.mxu0 %v356
    %v2468 = vpop.f32.mrf.mxu0
    %v2469 = vadd.f32 %v2395, %v2468
    %v2470 = vpop.f32.mrf.mxu0
    %2471 = vdwg.mxu0
    %s2472 = scalar_lea.vmem %s5, 96
    %v2473 = vld [vmem:[%s2472] sm:$0xff]
    %v2474 = vld [vmem:[%s2472 + $0x8] sm:$0xff]
    %v2475 = vld [vmem:[%s2472 + $0x10] sm:$0xff]
    %v2476 = vld [vmem:[%s2472 + $0x18] sm:$0xff]
    %2477 = vrot.lane.b32.xlu0 %v350, 40
    %v2478 = vpop.permute.xlu0 %2477
    %2480 = vmatprep.subr.mxu0 0.0
    %2481 = vmatpush1.msra.mxu0 0.0
    %2482 = vmatprep.subr.mxu0 0.0
    %2483 = vmatpush1.msra.mxu0 0.0
    %2484 = vmatprep.subr.mxu0 0.0
    %2485 = vmatpush1.msra.mxu0 0.0
    %2486 = vmatprep.subr.mxu0 0.0
    %2487 = vmatpush1.msra.mxu0 0.0
    %2488 = vmatprep.subr.mxu0 0.0
    %2489 = vmatpush1.msra.mxu0 0.0
    %2490 = vmatprep.subr.mxu0 0.0
    %2491 = vmatpush1.msra.mxu0 0.0
    %2492 = vmatprep.subr.mxu0 0.0
    %2493 = vmatpush1.msra.mxu0 0.0
    %2494 = vmatprep.subr.mxu0 0.0
    %2495 = vmatpush1.msra.mxu0 0.0
    %2496 = vmatprep.subr.mxu0 0.0
    %2497 = vmatpush1.msra.mxu0 0.0
    %2498 = vmatprep.subr.mxu0 0.0
    %2499 = vmatpush1.msra.mxu0 0.0
    %2500 = vmatprep.subr.mxu0 0.0
    %2501 = vmatpush1.msra.mxu0 0.0
    %2502 = vmatprep.subr.mxu0 0.0
    %2503 = vmatpush1.msra.mxu0 0.0
    %2504 = vmatprep.subr.mxu0 0.0
    %2505 = vmatpush1.msra.mxu0 %v2476
    %2506 = vmatprep.subr.mxu0 0.0
    %2507 = vmatpush1.msra.mxu0 %v2475
    %2508 = vmatprep.subr.mxu0 0.0
    %2509 = vmatpush1.msra.mxu0 %v2474
    %2510 = vmatprep.subr.mxu0 0.0
    %2511 = vmatpush1.msra.mxu0 %v2473
    %2512 = vmatprep.subr.mxu0 0.0
    %2513 = vmatpush2.msra.mxu0 0.0
    %2514 = vmatprep.subr.mxu0 0.0
    %2515 = vmatpush2.msra.mxu0 0.0
    %2516 = vmatprep.subr.mxu0 0.0
    %2517 = vmatpush2.msra.mxu0 0.0
    %2518 = vmatprep.subr.mxu0 0.0
    %2519 = vmatpush2.msra.mxu0 0.0
    %2520 = vmatprep.subr.mxu0 0.0
    %2521 = vmatpush2.msra.mxu0 0.0
    %2522 = vmatprep.subr.mxu0 0.0
    %2523 = vmatpush2.msra.mxu0 0.0
    %2524 = vmatprep.subr.mxu0 0.0
    %2525 = vmatpush2.msra.mxu0 0.0
    %2526 = vmatprep.subr.mxu0 0.0
    %2527 = vmatpush2.msra.mxu0 0.0
    %2528 = vmatprep.subr.mxu0 0.0
    %2529 = vmatpush2.msra.mxu0 0.0
    %2530 = vmatprep.subr.mxu0 0.0
    %2531 = vmatpush2.msra.mxu0 0.0
    %2532 = vmatprep.subr.mxu0 0.0
    %2533 = vmatpush2.msra.mxu0 0.0
    %2534 = vmatprep.subr.mxu0 0.0
    %2535 = vmatpush2.msra.mxu0 0.0
    %2536 = vmatprep.subr.mxu0 0.0
    %2537 = vmatpush2.msra.mxu0 0.0
    %2538 = vmatprep.subr.mxu0 0.0
    %2539 = vmatpush2.msra.mxu0 0.0
    %2540 = vmatprep.subr.mxu0 0.0
    %2541 = vmatpush2.msra.mxu0 0.0
    %2542 = vmatprep.subr.mxu0 0.0
    %2543 = vmatpush2.msra.mxu0 0.0
    %2544 = vmatprep.mubr.f32.mxu0 0.0
    %2545 = vmatmul.mubr.f32.gmra.mxu0 %v353
    %v2546 = vpop.f32.mrf.mxu0
    %v2547 = vadd.f32 %v2478, %v2546
    %v2548 = vpop.f32.mrf.mxu0
    %2549 = vmatprep.mubr.f32.mxu0 0.0
    %2550 = vmatmul.mubr.f32.gmra.mxu0 %v356
    %v2551 = vpop.f32.mrf.mxu0
    %v2552 = vadd.f32 %v2478, %v2551
    %v2553 = vpop.f32.mrf.mxu0
    %2554 = vdwg.mxu0
    %v2556 = vsel %vm597, %v2381, 0
    %v2559 = vsel %vm597, %v2464, 0
    %2561 = vmatprep.subr.mxu0 0.0
    %2562 = vmatpush1.xpose.msra.mxu0 0.0
    %2563 = vmatprep.subr.mxu0 0.0
    %2564 = vmatpush1.xpose.msra.mxu0 0.0
    %2565 = vmatprep.subr.mxu0 0.0
    %2566 = vmatpush1.xpose.msra.mxu0 0.0
    %2567 = vmatprep.subr.mxu0 0.0
    %2568 = vmatpush1.xpose.msra.mxu0 0.0
    %2569 = vmatprep.subr.mxu0 0.0
    %2570 = vmatpush1.xpose.msra.mxu0 0.0
    %2571 = vmatprep.subr.mxu0 0.0
    %2572 = vmatpush1.xpose.msra.mxu0 0.0
    %2573 = vmatprep.subr.mxu0 0.0
    %2574 = vmatpush1.xpose.msra.mxu0 0.0
    %2575 = vmatprep.subr.mxu0 0.0
    %2576 = vmatpush1.xpose.msra.mxu0 0.0
    %2577 = vmatprep.subr.mxu0 0.0
    %2578 = vmatpush1.xpose.msra.mxu0 0.0
    %2579 = vmatprep.subr.mxu0 0.0
    %2580 = vmatpush1.xpose.msra.mxu0 0.0
    %2581 = vmatprep.subr.mxu0 0.0
    %2582 = vmatpush1.xpose.msra.mxu0 0.0
    %2583 = vmatprep.subr.mxu0 0.0
    %2584 = vmatpush1.xpose.msra.mxu0 0.0
    %2585 = vmatprep.subr.mxu0 0.0
    %2586 = vmatpush1.xpose.msra.mxu0 0.0
    %2587 = vmatprep.subr.mxu0 0.0
    %2588 = vmatpush1.xpose.msra.mxu0 0.0
    %2589 = vmatprep.subr.mxu0 0.0
    %2590 = vmatpush1.xpose.msra.mxu0 0.0
    %2591 = vmatprep.subr.mxu0 0.0
    %2592 = vmatpush1.xpose.msra.mxu0 %v2559
    %2593 = vmatprep.subr.mxu0 0.0
    %2594 = vmatpush2.xpose.msra.mxu0 0.0
    %2595 = vmatprep.subr.mxu0 0.0
    %2596 = vmatpush2.xpose.msra.mxu0 0.0
    %2597 = vmatprep.subr.mxu0 0.0
    %2598 = vmatpush2.xpose.msra.mxu0 0.0
    %2599 = vmatprep.subr.mxu0 0.0
    %2600 = vmatpush2.xpose.msra.mxu0 0.0
    %2601 = vmatprep.subr.mxu0 0.0
    %2602 = vmatpush2.xpose.msra.mxu0 0.0
    %2603 = vmatprep.subr.mxu0 0.0
    %2604 = vmatpush2.xpose.msra.mxu0 0.0
    %2605 = vmatprep.subr.mxu0 0.0
    %2606 = vmatpush2.xpose.msra.mxu0 0.0
    %2607 = vmatprep.subr.mxu0 0.0
    %2608 = vmatpush2.xpose.msra.mxu0 0.0
    %2609 = vmatprep.subr.mxu0 0.0
    %2610 = vmatpush2.xpose.msra.mxu0 0.0
    %2611 = vmatprep.subr.mxu0 0.0
    %2612 = vmatpush2.xpose.msra.mxu0 0.0
    %2613 = vmatprep.subr.mxu0 0.0
    %2614 = vmatpush2.xpose.msra.mxu0 0.0
    %2615 = vmatprep.subr.mxu0 0.0
    %2616 = vmatpush2.xpose.msra.mxu0 0.0
    %2617 = vmatprep.subr.mxu0 0.0
    %2618 = vmatpush2.xpose.msra.mxu0 0.0
    %2619 = vmatprep.subr.mxu0 0.0
    %2620 = vmatpush2.xpose.msra.mxu0 0.0
    %2621 = vmatprep.subr.mxu0 0.0
    %2622 = vmatpush2.xpose.msra.mxu0 0.0
    %2623 = vmatprep.subr.mxu0 0.0
    %2624 = vmatpush2.xpose.msra.mxu0 0.0
    %2625 = vmatprep.mubr.f32.mxu0 0.0
    %2626 = vmatmul.mubr.f32.gmra.mxu0 %v2556
    %v2627 = vpop.f32.mrf.mxu0
    %v2628 = vadd.f32 %v342, %v2627
    %v2629 = vpop.f32.mrf.mxu0
    %2630 = vdwg.mxu0
    %v2632 = vsel %vm597, %v2386, 0
    %v2635 = vsel %vm597, %v2469, 0
    %2637 = vmatprep.subr.mxu0 0.0
    %2638 = vmatpush1.xpose.msra.mxu0 0.0
    %2639 = vmatprep.subr.mxu0 0.0
    %2640 = vmatpush1.xpose.msra.mxu0 0.0
    %2641 = vmatprep.subr.mxu0 0.0
    %2642 = vmatpush1.xpose.msra.mxu0 0.0
    %2643 = vmatprep.subr.mxu0 0.0
    %2644 = vmatpush1.xpose.msra.mxu0 0.0
    %2645 = vmatprep.subr.mxu0 0.0
    %2646 = vmatpush1.xpose.msra.mxu0 0.0
    %2647 = vmatprep.subr.mxu0 0.0
    %2648 = vmatpush1.xpose.msra.mxu0 0.0
    %2649 = vmatprep.subr.mxu0 0.0
    %2650 = vmatpush1.xpose.msra.mxu0 0.0
    %2651 = vmatprep.subr.mxu0 0.0
    %2652 = vmatpush1.xpose.msra.mxu0 0.0
    %2653 = vmatprep.subr.mxu0 0.0
    %2654 = vmatpush1.xpose.msra.mxu0 0.0
    %2655 = vmatprep.subr.mxu0 0.0
    %2656 = vmatpush1.xpose.msra.mxu0 0.0
    %2657 = vmatprep.subr.mxu0 0.0
    %2658 = vmatpush1.xpose.msra.mxu0 0.0
    %2659 = vmatprep.subr.mxu0 0.0
    %2660 = vmatpush1.xpose.msra.mxu0 0.0
    %2661 = vmatprep.subr.mxu0 0.0
    %2662 = vmatpush1.xpose.msra.mxu0 0.0
    %2663 = vmatprep.subr.mxu0 0.0
    %2664 = vmatpush1.xpose.msra.mxu0 0.0
    %2665 = vmatprep.subr.mxu0 0.0
    %2666 = vmatpush1.xpose.msra.mxu0 0.0
    %2667 = vmatprep.subr.mxu0 0.0
    %2668 = vmatpush1.xpose.msra.mxu0 %v2635
    %2669 = vmatprep.subr.mxu0 0.0
    %2670 = vmatpush2.xpose.msra.mxu0 0.0
    %2671 = vmatprep.subr.mxu0 0.0
    %2672 = vmatpush2.xpose.msra.mxu0 0.0
    %2673 = vmatprep.subr.mxu0 0.0
    %2674 = vmatpush2.xpose.msra.mxu0 0.0
    %2675 = vmatprep.subr.mxu0 0.0
    %2676 = vmatpush2.xpose.msra.mxu0 0.0
    %2677 = vmatprep.subr.mxu0 0.0
    %2678 = vmatpush2.xpose.msra.mxu0 0.0
    %2679 = vmatprep.subr.mxu0 0.0
    %2680 = vmatpush2.xpose.msra.mxu0 0.0
    %2681 = vmatprep.subr.mxu0 0.0
    %2682 = vmatpush2.xpose.msra.mxu0 0.0
    %2683 = vmatprep.subr.mxu0 0.0
    %2684 = vmatpush2.xpose.msra.mxu0 0.0
    %2685 = vmatprep.subr.mxu0 0.0
    %2686 = vmatpush2.xpose.msra.mxu0 0.0
    %2687 = vmatprep.subr.mxu0 0.0
    %2688 = vmatpush2.xpose.msra.mxu0 0.0
    %2689 = vmatprep.subr.mxu0 0.0
    %2690 = vmatpush2.xpose.msra.mxu0 0.0
    %2691 = vmatprep.subr.mxu0 0.0
    %2692 = vmatpush2.xpose.msra.mxu0 0.0
    %2693 = vmatprep.subr.mxu0 0.0
    %2694 = vmatpush2.xpose.msra.mxu0 0.0
    %2695 = vmatprep.subr.mxu0 0.0
    %2696 = vmatpush2.xpose.msra.mxu0 0.0
    %2697 = vmatprep.subr.mxu0 0.0
    %2698 = vmatpush2.xpose.msra.mxu0 0.0
    %2699 = vmatprep.subr.mxu0 0.0
    %2700 = vmatpush2.xpose.msra.mxu0 0.0
    %2701 = vmatprep.mubr.f32.mxu0 0.0
    %2702 = vmatmul.mubr.f32.gmra.mxu0 %v2632
    %v2703 = vpop.f32.mrf.mxu0
    %v2704 = vadd.f32 %v342, %v2703
    %v2705 = vpop.f32.mrf.mxu0
    %2706 = vdwg.mxu0
    %v2707 = vsel %vm597, %v2628, -inf
    %2708 = vmax.xlane.f32.xlu0 %v2707
    %v2709 = vpop.xlane.xlu0 %2708
    %v2710 = vsel %vm597, %v2704, -inf
    %2711 = vmax.xlane.f32.xlu0 %v2710
    %v2712 = vpop.xlane.xlu0 %2711
    %v2713 = vsub.f32 %v2628, %v2709
    %v2714 = vsub.f32 %v2704, %v2712
    %v2715 = vmul.f32 %v2713, 1.442695
    %v2716 = vpow.pop %v2715
    %v2717 = vmul.f32 %v2714, 1.442695
    %v2718 = vpow.pop %v2717
    %v2719 = vsel %vm597, %v2716, 0.0
    %2720 = vadd.xlane.f32.xlu0 %v2719
    %v2721 = vpop.xlane.xlu0 %2720
    %v2722 = vsel %vm597, %v2718, 0.0
    %2723 = vadd.xlane.f32.xlu0 %v2722
    %v2724 = vpop.xlane.xlu0 %2723
    %v2725 = vrcp.pop %v2721
    %v2726 = vrcp.pop %v2724
    %v2727 = vmul.f32 %v2716, %v2725
    %v2728 = vmul.f32 %v2718, %v2726
    %v2730 = vsel %vm597, %v2727, 0
    %2732 = vmatprep.subr.mxu0 0.0
    %2733 = vmatpush1.msra.mxu0 0.0
    %2734 = vmatprep.subr.mxu0 0.0
    %2735 = vmatpush1.msra.mxu0 0.0
    %2736 = vmatprep.subr.mxu0 0.0
    %2737 = vmatpush1.msra.mxu0 0.0
    %2738 = vmatprep.subr.mxu0 0.0
    %2739 = vmatpush1.msra.mxu0 0.0
    %2740 = vmatprep.subr.mxu0 0.0
    %2741 = vmatpush1.msra.mxu0 0.0
    %2742 = vmatprep.subr.mxu0 0.0
    %2743 = vmatpush1.msra.mxu0 0.0
    %2744 = vmatprep.subr.mxu0 0.0
    %2745 = vmatpush1.msra.mxu0 0.0
    %2746 = vmatprep.subr.mxu0 0.0
    %2747 = vmatpush1.msra.mxu0 0.0
    %2748 = vmatprep.subr.mxu0 0.0
    %2749 = vmatpush1.msra.mxu0 0.0
    %2750 = vmatprep.subr.mxu0 0.0
    %2751 = vmatpush1.msra.mxu0 0.0
    %2752 = vmatprep.subr.mxu0 0.0
    %2753 = vmatpush1.msra.mxu0 0.0
    %2754 = vmatprep.subr.mxu0 0.0
    %2755 = vmatpush1.msra.mxu0 0.0
    %2756 = vmatprep.subr.mxu0 0.0
    %2757 = vmatpush1.msra.mxu0 0.0
    %2758 = vmatprep.subr.mxu0 0.0
    %2759 = vmatpush1.msra.mxu0 0.0
    %2760 = vmatprep.subr.mxu0 0.0
    %2761 = vmatpush1.msra.mxu0 0.0
    %2762 = vmatprep.subr.mxu0 0.0
    %2763 = vmatpush1.msra.mxu0 %v2547
    %2764 = vmatprep.subr.mxu0 0.0
    %2765 = vmatpush2.msra.mxu0 0.0
    %2766 = vmatprep.subr.mxu0 0.0
    %2767 = vmatpush2.msra.mxu0 0.0
    %2768 = vmatprep.subr.mxu0 0.0
    %2769 = vmatpush2.msra.mxu0 0.0
    %2770 = vmatprep.subr.mxu0 0.0
    %2771 = vmatpush2.msra.mxu0 0.0
    %2772 = vmatprep.subr.mxu0 0.0
    %2773 = vmatpush2.msra.mxu0 0.0
    %2774 = vmatprep.subr.mxu0 0.0
    %2775 = vmatpush2.msra.mxu0 0.0
    %2776 = vmatprep.subr.mxu0 0.0
    %2777 = vmatpush2.msra.mxu0 0.0
    %2778 = vmatprep.subr.mxu0 0.0
    %2779 = vmatpush2.msra.mxu0 0.0
    %2780 = vmatprep.subr.mxu0 0.0
    %2781 = vmatpush2.msra.mxu0 0.0
    %2782 = vmatprep.subr.mxu0 0.0
    %2783 = vmatpush2.msra.mxu0 0.0
    %2784 = vmatprep.subr.mxu0 0.0
    %2785 = vmatpush2.msra.mxu0 0.0
    %2786 = vmatprep.subr.mxu0 0.0
    %2787 = vmatpush2.msra.mxu0 0.0
    %2788 = vmatprep.subr.mxu0 0.0
    %2789 = vmatpush2.msra.mxu0 0.0
    %2790 = vmatprep.subr.mxu0 0.0
    %2791 = vmatpush2.msra.mxu0 0.0
    %2792 = vmatprep.subr.mxu0 0.0
    %2793 = vmatpush2.msra.mxu0 0.0
    %2794 = vmatprep.subr.mxu0 0.0
    %2795 = vmatpush2.msra.mxu0 0.0
    %2796 = vmatprep.mubr.f32.mxu0 0.0
    %2797 = vmatmul.mubr.f32.gmra.mxu0 %v2730
    %v2798 = vpop.f32.mrf.mxu0
    %v2799 = vadd.f32 0.0, %v2798
    %v2800 = vpop.f32.mrf.mxu0
    %2801 = vdwg.mxu0
    %v2803 = vsel %vm597, %v2728, 0
    %2805 = vmatprep.subr.mxu0 0.0
    %2806 = vmatpush1.msra.mxu0 0.0
    %2807 = vmatprep.subr.mxu0 0.0
    %2808 = vmatpush1.msra.mxu0 0.0
    %2809 = vmatprep.subr.mxu0 0.0
    %2810 = vmatpush1.msra.mxu0 0.0
    %2811 = vmatprep.subr.mxu0 0.0
    %2812 = vmatpush1.msra.mxu0 0.0
    %2813 = vmatprep.subr.mxu0 0.0
    %2814 = vmatpush1.msra.mxu0 0.0
    %2815 = vmatprep.subr.mxu0 0.0
    %2816 = vmatpush1.msra.mxu0 0.0
    %2817 = vmatprep.subr.mxu0 0.0
    %2818 = vmatpush1.msra.mxu0 0.0
    %2819 = vmatprep.subr.mxu0 0.0
    %2820 = vmatpush1.msra.mxu0 0.0
    %2821 = vmatprep.subr.mxu0 0.0
    %2822 = vmatpush1.msra.mxu0 0.0
    %2823 = vmatprep.subr.mxu0 0.0
    %2824 = vmatpush1.msra.mxu0 0.0
    %2825 = vmatprep.subr.mxu0 0.0
    %2826 = vmatpush1.msra.mxu0 0.0
    %2827 = vmatprep.subr.mxu0 0.0
    %2828 = vmatpush1.msra.mxu0 0.0
    %2829 = vmatprep.subr.mxu0 0.0
    %2830 = vmatpush1.msra.mxu0 0.0
    %2831 = vmatprep.subr.mxu0 0.0
    %2832 = vmatpush1.msra.mxu0 0.0
    %2833 = vmatprep.subr.mxu0 0.0
    %2834 = vmatpush1.msra.mxu0 0.0
    %2835 = vmatprep.subr.mxu0 0.0
    %2836 = vmatpush1.msra.mxu0 %v2552
    %2837 = vmatprep.subr.mxu0 0.0
    %2838 = vmatpush2.msra.mxu0 0.0
    %2839 = vmatprep.subr.mxu0 0.0
    %2840 = vmatpush2.msra.mxu0 0.0
    %2841 = vmatprep.subr.mxu0 0.0
    %2842 = vmatpush2.msra.mxu0 0.0
    %2843 = vmatprep.subr.mxu0 0.0
    %2844 = vmatpush2.msra.mxu0 0.0
    %2845 = vmatprep.subr.mxu0 0.0
    %2846 = vmatpush2.msra.mxu0 0.0
    %2847 = vmatprep.subr.mxu0 0.0
    %2848 = vmatpush2.msra.mxu0 0.0
    %2849 = vmatprep.subr.mxu0 0.0
    %2850 = vmatpush2.msra.mxu0 0.0
    %2851 = vmatprep.subr.mxu0 0.0
    %2852 = vmatpush2.msra.mxu0 0.0
    %2853 = vmatprep.subr.mxu0 0.0
    %2854 = vmatpush2.msra.mxu0 0.0
    %2855 = vmatprep.subr.mxu0 0.0
    %2856 = vmatpush2.msra.mxu0 0.0
    %2857 = vmatprep.subr.mxu0 0.0
    %2858 = vmatpush2.msra.mxu0 0.0
    %2859 = vmatprep.subr.mxu0 0.0
    %2860 = vmatpush2.msra.mxu0 0.0
    %2861 = vmatprep.subr.mxu0 0.0
    %2862 = vmatpush2.msra.mxu0 0.0
    %2863 = vmatprep.subr.mxu0 0.0
    %2864 = vmatpush2.msra.mxu0 0.0
    %2865 = vmatprep.subr.mxu0 0.0
    %2866 = vmatpush2.msra.mxu0 0.0
    %2867 = vmatprep.subr.mxu0 0.0
    %2868 = vmatpush2.msra.mxu0 0.0
    %2869 = vmatprep.mubr.f32.mxu0 0.0
    %2870 = vmatmul.mubr.f32.gmra.mxu0 %v2803
    %v2871 = vpop.f32.mrf.mxu0
    %v2872 = vadd.f32 0.0, %v2871
    %v2873 = vpop.f32.mrf.mxu0
    %2874 = vdwg.mxu0
    %s2875 = scalar_lea.vmem %s6, 24
    %v2876 = vld [vmem:[%s2875] sm:$0xff]
    %v2878 = vsel %vm597, %v2799, 0
    %v2881 = vsel %vm597, %v2872, 0
    %2883 = vmatprep.subr.mxu0 0.0
    %2884 = vmatpush1.msra.mxu0 0.0
    %2885 = vmatprep.subr.mxu0 0.0
    %2886 = vmatpush1.msra.mxu0 0.0
    %2887 = vmatprep.subr.mxu0 0.0
    %2888 = vmatpush1.msra.mxu0 0.0
    %2889 = vmatprep.subr.mxu0 0.0
    %2890 = vmatpush1.msra.mxu0 0.0
    %2891 = vmatprep.subr.mxu0 0.0
    %2892 = vmatpush1.msra.mxu0 0.0
    %2893 = vmatprep.subr.mxu0 0.0
    %2894 = vmatpush1.msra.mxu0 0.0
    %2895 = vmatprep.subr.mxu0 0.0
    %2896 = vmatpush1.msra.mxu0 0.0
    %2897 = vmatprep.subr.mxu0 0.0
    %2898 = vmatpush1.msra.mxu0 0.0
    %2899 = vmatprep.subr.mxu0 0.0
    %2900 = vmatpush1.msra.mxu0 0.0
    %2901 = vmatprep.subr.mxu0 0.0
    %2902 = vmatpush1.msra.mxu0 0.0
    %2903 = vmatprep.subr.mxu0 0.0
    %2904 = vmatpush1.msra.mxu0 0.0
    %2905 = vmatprep.subr.mxu0 0.0
    %2906 = vmatpush1.msra.mxu0 0.0
    %2907 = vmatprep.subr.mxu0 0.0
    %2908 = vmatpush1.msra.mxu0 0.0
    %2909 = vmatprep.subr.mxu0 0.0
    %2910 = vmatpush1.msra.mxu0 0.0
    %2911 = vmatprep.subr.mxu0 0.0
    %2912 = vmatpush1.msra.mxu0 0.0
    %2913 = vmatprep.subr.mxu0 0.0
    %2914 = vmatpush1.msra.mxu0 %v2876
    %2915 = vmatprep.subr.mxu0 0.0
    %2916 = vmatpush2.msra.mxu0 0.0
    %2917 = vmatprep.subr.mxu0 0.0
    %2918 = vmatpush2.msra.mxu0 0.0
    %2919 = vmatprep.subr.mxu0 0.0
    %2920 = vmatpush2.msra.mxu0 0.0
    %2921 = vmatprep.subr.mxu0 0.0
    %2922 = vmatpush2.msra.mxu0 0.0
    %2923 = vmatprep.subr.mxu0 0.0
    %2924 = vmatpush2.msra.mxu0 0.0
    %2925 = vmatprep.subr.mxu0 0.0
    %2926 = vmatpush2.msra.mxu0 0.0
    %2927 = vmatprep.subr.mxu0 0.0
    %2928 = vmatpush2.msra.mxu0 0.0
    %2929 = vmatprep.subr.mxu0 0.0
    %2930 = vmatpush2.msra.mxu0 0.0
    %2931 = vmatprep.subr.mxu0 0.0
    %2932 = vmatpush2.msra.mxu0 0.0
    %2933 = vmatprep.subr.mxu0 0.0
    %2934 = vmatpush2.msra.mxu0 0.0
    %2935 = vmatprep.subr.mxu0 0.0
    %2936 = vmatpush2.msra.mxu0 0.0
    %2937 = vmatprep.subr.mxu0 0.0
    %2938 = vmatpush2.msra.mxu0 0.0
    %2939 = vmatprep.subr.mxu0 0.0
    %2940 = vmatpush2.msra.mxu0 0.0
    %2941 = vmatprep.subr.mxu0 0.0
    %2942 = vmatpush2.msra.mxu0 0.0
    %2943 = vmatprep.subr.mxu0 0.0
    %2944 = vmatpush2.msra.mxu0 0.0
    %2945 = vmatprep.subr.mxu0 0.0
    %2946 = vmatpush2.msra.mxu0 0.0
    %2947 = vmatprep.mubr.f32.mxu0 0.0
    %2948 = vmatmul.mubr.f32.gmra.mxu0 %v2878
    %v2949 = vpop.f32.mrf.mxu0
    %v2950 = vadd.f32 0.0, %v2949
    %v2951 = vpop.f32.mrf.mxu0
    %2952 = vmatprep.mubr.f32.mxu0 0.0
    %2953 = vmatmul.mubr.f32.gmra.mxu0 %v2881
    %v2954 = vpop.f32.mrf.mxu0
    %v2955 = vadd.f32 0.0, %v2954
    %v2956 = vpop.f32.mrf.mxu0
    %2957 = vdwg.mxu0
    %v2958 = vadd.f32 %v2304, %v2950
    %v2959 = vadd.f32 %v2305, %v2955
    %2960 = vrot.lane.b32.xlu0 %v350, 32
    %v2961 = vpop.permute.xlu0 %2960
    %v2963 = vadd.f32 %v2958, %v2961
    %v2964 = vadd.f32 %v2959, %v2961
    %v2965 = vadd.f32 %v336, %v2963
    %v2966 = vadd.f32 %v337, %v2964
    %v2967 = vsel %vm95, %v2965, 0.0
    %2968 = vadd.xlane.f32.xlu0 %v2967
    %v2969 = vpop.xlane.xlu0 %2968
    %v2970 = vsel %vm95, %v2966, 0.0
    %2971 = vadd.xlane.f32.xlu0 %v2970
    %v2972 = vpop.xlane.xlu0 %2971
    %v2973 = vrcp.pop 32.0
    %v2974 = vmul.f32 %v2969, %v2973
    %v2975 = vmul.f32 %v2972, %v2973
    %v2976 = vsub.f32 %v2965, %v2974
    %v2977 = vsub.f32 %v2966, %v2975
    %v2978 = vmul.f32 %v2976, %v2976
    %v2979 = vmul.f32 %v2977, %v2977
    %v2980 = vsel %vm95, %v2978, 0.0
    %2981 = vadd.xlane.f32.xlu0 %v2980
    %v2982 = vpop.xlane.xlu0 %2981
    %v2983 = vsel %vm95, %v2979, 0.0
    %2984 = vadd.xlane.f32.xlu0 %v2983
    %v2985 = vpop.xlane.xlu0 %2984
    %v2986 = vmul.f32 %v2982, %v2973
    %v2987 = vmul.f32 %v2985, %v2973
    %v2988 = vadd.f32 %v2986, 1e-05
    %v2989 = vadd.f32 %v2987, 1e-05
    %v2990 = vrsqrt.pop %v2988
    %v2991 = vrsqrt.pop %v2989
    %v2992 = vmul.f32 %v2976, %v2990
    %v2993 = vmul.f32 %v2977, %v2991
    %v2994 = vrot.slane %v55, 2
    %v2995 = vlaneseq
    %v2996 = vshrl.u32 %v2995, 7
    %v2997 = vsub.s32 0, %v2996
    %v2998 = vrot.slane %v2994, %v2997
    %v3000 = vmul.f32 %v2992, %v2998
    %v3001 = vmul.f32 %v2993, %v2998
    %3002 = vrot.lane.b32.xlu0 %v55, 96
    %v3003 = vpop.permute.xlu0 %3002
    %v3004 = vrot.slane %v3003, 2
    %v3005 = vlaneseq
    %v3006 = vshrl.u32 %v3005, 7
    %v3007 = vsub.s32 0, %v3006
    %v3008 = vrot.slane %v3004, %v3007
    %v3010 = vadd.f32 %v3000, %v3008
    %v3011 = vadd.f32 %v3001, %v3008
    %v3012 = vlaneseq
    %v3013 = vshrl.u32 %v3012, 7
    %v3014 = vsub.s32 0, %v3013
    %v3015 = vrot.slane %v183, %v3014
    %v3016 = vlaneseq
    %v3017 = vshrl.u32 %v3016, 7
    %v3018 = vsub.s32 0, %v3017
    %v3019 = vrot.slane %v190, %v3018
    %v3022 = vadd.f32 %v3010, %v3015
    %v3023 = vadd.f32 %v3011, %v3019
    %v3024 = vsel %vm95, %v3022, 0.0
    %3025 = vadd.xlane.f32.xlu0 %v3024
    %v3026 = vpop.xlane.xlu0 %3025
    %v3027 = vsel %vm95, %v3023, 0.0
    %3028 = vadd.xlane.f32.xlu0 %v3027
    %v3029 = vpop.xlane.xlu0 %3028
    %v3030 = vmul.f32 %v3026, %v2973
    %v3031 = vmul.f32 %v3029, %v2973
    %v3032 = vsub.f32 %v3022, %v3030
    %v3033 = vsub.f32 %v3023, %v3031
    %v3034 = vmul.f32 %v3032, %v3032
    %v3035 = vmul.f32 %v3033, %v3033
    %v3036 = vsel %vm95, %v3034, 0.0
    %3037 = vadd.xlane.f32.xlu0 %v3036
    %v3038 = vpop.xlane.xlu0 %3037
    %v3039 = vsel %vm95, %v3035, 0.0
    %3040 = vadd.xlane.f32.xlu0 %v3039
    %v3041 = vpop.xlane.xlu0 %3040
    %v3042 = vmul.f32 %v3038, %v2973
    %v3043 = vmul.f32 %v3041, %v2973
    %v3044 = vadd.f32 %v3042, 1e-05
    %v3045 = vadd.f32 %v3043, 1e-05
    %v3046 = vrsqrt.pop %v3044
    %v3047 = vrsqrt.pop %v3045
    %v3048 = vmul.f32 %v3032, %v3046
    %v3049 = vmul.f32 %v3033, %v3047
    %3050 = vrot.lane.b32.xlu0 %v55, 64
    %v3051 = vpop.permute.xlu0 %3050
    %v3052 = vrot.slane %v3051, 2
    %v3053 = vlaneseq
    %v3054 = vshrl.u32 %v3053, 7
    %v3055 = vsub.s32 0, %v3054
    %v3056 = vrot.slane %v3052, %v3055
    %v3058 = vmul.f32 %v3048, %v3056
    %v3059 = vmul.f32 %v3049, %v3056
    %3060 = vrot.lane.b32.xlu0 %v55, 32
    %v3061 = vpop.permute.xlu0 %3060
    %v3062 = vrot.slane %v3061, 2
    %v3063 = vlaneseq
    %v3064 = vshrl.u32 %v3063, 7
    %v3065 = vsub.s32 0, %v3064
    %v3066 = vrot.slane %v3062, %v3065
    %v3068 = vadd.f32 %v3058, %v3066
    %v3069 = vadd.f32 %v3059, %v3066
    %v3070 = vld [vmem:[%s7] sm:$0xff]
    %v3071 = vld [vmem:[%s7 + $0x8] sm:$0xff]
    %v3072 = vld [vmem:[%s7 + $0x10] sm:$0xff]
    %v3073 = vld [vmem:[%s7 + $0x18] sm:$0xff]
    %v3074 = vrot.slane %v3003, 1
    %v3075 = vlaneseq
    %v3076 = vshrl.u32 %v3075, 7
    %v3077 = vsub.s32 0, %v3076
    %v3078 = vrot.slane %v3074, %v3077
    %v3081 = vsel %vm95, %v3068, 0
    %v3084 = vsel %vm95, %v3069, 0
    %3086 = vmatprep.subr.mxu0 0.0
    %3087 = vmatpush1.msra.mxu0 0.0
    %3088 = vmatprep.subr.mxu0 0.0
    %3089 = vmatpush1.msra.mxu0 0.0
    %3090 = vmatprep.subr.mxu0 0.0
    %3091 = vmatpush1.msra.mxu0 0.0
    %3092 = vmatprep.subr.mxu0 0.0
    %3093 = vmatpush1.msra.mxu0 0.0
    %3094 = vmatprep.subr.mxu0 0.0
    %3095 = vmatpush1.msra.mxu0 0.0
    %3096 = vmatprep.subr.mxu0 0.0
    %3097 = vmatpush1.msra.mxu0 0.0
    %3098 = vmatprep.subr.mxu0 0.0
    %3099 = vmatpush1.msra.mxu0 0.0
    %3100 = vmatprep.subr.mxu0 0.0
    %3101 = vmatpush1.msra.mxu0 0.0
    %3102 = vmatprep.subr.mxu0 0.0
    %3103 = vmatpush1.msra.mxu0 0.0
    %3104 = vmatprep.subr.mxu0 0.0
    %3105 = vmatpush1.msra.mxu0 0.0
    %3106 = vmatprep.subr.mxu0 0.0
    %3107 = vmatpush1.msra.mxu0 0.0
    %3108 = vmatprep.subr.mxu0 0.0
    %3109 = vmatpush1.msra.mxu0 0.0
    %3110 = vmatprep.subr.mxu0 0.0
    %3111 = vmatpush1.msra.mxu0 %v3073
    %3112 = vmatprep.subr.mxu0 0.0
    %3113 = vmatpush1.msra.mxu0 %v3072
    %3114 = vmatprep.subr.mxu0 0.0
    %3115 = vmatpush1.msra.mxu0 %v3071
    %3116 = vmatprep.subr.mxu0 0.0
    %3117 = vmatpush1.msra.mxu0 %v3070
    %3118 = vmatprep.subr.mxu0 0.0
    %3119 = vmatpush2.msra.mxu0 0.0
    %3120 = vmatprep.subr.mxu0 0.0
    %3121 = vmatpush2.msra.mxu0 0.0
    %3122 = vmatprep.subr.mxu0 0.0
    %3123 = vmatpush2.msra.mxu0 0.0
    %3124 = vmatprep.subr.mxu0 0.0
    %3125 = vmatpush2.msra.mxu0 0.0
    %3126 = vmatprep.subr.mxu0 0.0
    %3127 = vmatpush2.msra.mxu0 0.0
    %3128 = vmatprep.subr.mxu0 0.0
    %3129 = vmatpush2.msra.mxu0 0.0
    %3130 = vmatprep.subr.mxu0 0.0
    %3131 = vmatpush2.msra.mxu0 0.0
    %3132 = vmatprep.subr.mxu0 0.0
    %3133 = vmatpush2.msra.mxu0 0.0
    %3134 = vmatprep.subr.mxu0 0.0
    %3135 = vmatpush2.msra.mxu0 0.0
    %3136 = vmatprep.subr.mxu0 0.0
    %3137 = vmatpush2.msra.mxu0 0.0
    %3138 = vmatprep.subr.mxu0 0.0
    %3139 = vmatpush2.msra.mxu0 0.0
    %3140 = vmatprep.subr.mxu0 0.0
    %3141 = vmatpush2.msra.mxu0 0.0
    %3142 = vmatprep.subr.mxu0 0.0
    %3143 = vmatpush2.msra.mxu0 0.0
    %3144 = vmatprep.subr.mxu0 0.0
    %3145 = vmatpush2.msra.mxu0 0.0
    %3146 = vmatprep.subr.mxu0 0.0
    %3147 = vmatpush2.msra.mxu0 0.0
    %3148 = vmatprep.subr.mxu0 0.0
    %3149 = vmatpush2.msra.mxu0 0.0
    %3150 = vmatprep.mubr.f32.mxu0 0.0
    %3151 = vmatmul.mubr.f32.gmra.mxu0 %v3081
    %v3152 = vpop.f32.mrf.mxu0
    %v3153 = vadd.f32 %v3078, %v3152
    %v3154 = vpop.f32.mrf.mxu0
    %3155 = vmatprep.mubr.f32.mxu0 0.0
    %3156 = vmatmul.mubr.f32.gmra.mxu0 %v3084
    %v3157 = vpop.f32.mrf.mxu0
    %v3158 = vadd.f32 %v3078, %v3157
    %v3159 = vpop.f32.mrf.mxu0
    %3160 = vdwg.mxu0
    %v3161 = vmax.f32 %v3153, 0.0
    %v3162 = vmax.f32 %v3158, 0.0
    %v3163 = vld [vmem:[%s8] sm:$0xff]
    %v3164 = vld [vmem:[%s8 + $0x8] sm:$0xff]
    %v3165 = vld [vmem:[%s8 + $0x10] sm:$0xff]
    %v3166 = vld [vmem:[%s8 + $0x18] sm:$0xff]
    %v3167 = vld [vmem:[%s8 + $0x20] sm:$0xff]
    %v3168 = vld [vmem:[%s8 + $0x28] sm:$0xff]
    %v3169 = vld [vmem:[%s8 + $0x30] sm:$0xff]
    %v3170 = vld [vmem:[%s8 + $0x38] sm:$0xff]
    %v3171 = vrot.slane %v3061, 1
    %v3172 = vlaneseq
    %v3173 = vshrl.u32 %v3172, 7
    %v3174 = vsub.s32 0, %v3173
    %v3175 = vrot.slane %v3171, %v3174
    %vm3177 = vcmask 523264
    %v3179 = vsel %vm3177, %v3161, 0
    %v3182 = vsel %vm3177, %v3162, 0
    %3184 = vmatprep.subr.mxu0 0.0
    %3185 = vmatpush1.msra.mxu0 0.0
    %3186 = vmatprep.subr.mxu0 0.0
    %3187 = vmatpush1.msra.mxu0 0.0
    %3188 = vmatprep.subr.mxu0 0.0
    %3189 = vmatpush1.msra.mxu0 0.0
    %3190 = vmatprep.subr.mxu0 0.0
    %3191 = vmatpush1.msra.mxu0 0.0
    %3192 = vmatprep.subr.mxu0 0.0
    %3193 = vmatpush1.msra.mxu0 0.0
    %3194 = vmatprep.subr.mxu0 0.0
    %3195 = vmatpush1.msra.mxu0 0.0
    %3196 = vmatprep.subr.mxu0 0.0
    %3197 = vmatpush1.msra.mxu0 0.0
    %3198 = vmatprep.subr.mxu0 0.0
    %3199 = vmatpush1.msra.mxu0 0.0
    %3200 = vmatprep.subr.mxu0 0.0
    %3201 = vmatpush1.msra.mxu0 %v3170
    %3202 = vmatprep.subr.mxu0 0.0
    %3203 = vmatpush1.msra.mxu0 %v3169
    %3204 = vmatprep.subr.mxu0 0.0
    %3205 = vmatpush1.msra.mxu0 %v3168
    %3206 = vmatprep.subr.mxu0 0.0
    %3207 = vmatpush1.msra.mxu0 %v3167
    %3208 = vmatprep.subr.mxu0 0.0
    %3209 = vmatpush1.msra.mxu0 %v3166
    %3210 = vmatprep.subr.mxu0 0.0
    %3211 = vmatpush1.msra.mxu0 %v3165
    %3212 = vmatprep.subr.mxu0 0.0
    %3213 = vmatpush1.msra.mxu0 %v3164
    %3214 = vmatprep.subr.mxu0 0.0
    %3215 = vmatpush1.msra.mxu0 %v3163
    %3216 = vmatprep.subr.mxu0 0.0
    %3217 = vmatpush2.msra.mxu0 0.0
    %3218 = vmatprep.subr.mxu0 0.0
    %3219 = vmatpush2.msra.mxu0 0.0
    %3220 = vmatprep.subr.mxu0 0.0
    %3221 = vmatpush2.msra.mxu0 0.0
    %3222 = vmatprep.subr.mxu0 0.0
    %3223 = vmatpush2.msra.mxu0 0.0
    %3224 = vmatprep.subr.mxu0 0.0
    %3225 = vmatpush2.msra.mxu0 0.0
    %3226 = vmatprep.subr.mxu0 0.0
    %3227 = vmatpush2.msra.mxu0 0.0
    %3228 = vmatprep.subr.mxu0 0.0
    %3229 = vmatpush2.msra.mxu0 0.0
    %3230 = vmatprep.subr.mxu0 0.0
    %3231 = vmatpush2.msra.mxu0 0.0
    %3232 = vmatprep.subr.mxu0 0.0
    %3233 = vmatpush2.msra.mxu0 0.0
    %3234 = vmatprep.subr.mxu0 0.0
    %3235 = vmatpush2.msra.mxu0 0.0
    %3236 = vmatprep.subr.mxu0 0.0
    %3237 = vmatpush2.msra.mxu0 0.0
    %3238 = vmatprep.subr.mxu0 0.0
    %3239 = vmatpush2.msra.mxu0 0.0
    %3240 = vmatprep.subr.mxu0 0.0
    %3241 = vmatpush2.msra.mxu0 0.0
    %3242 = vmatprep.subr.mxu0 0.0
    %3243 = vmatpush2.msra.mxu0 0.0
    %3244 = vmatprep.subr.mxu0 0.0
    %3245 = vmatpush2.msra.mxu0 0.0
    %3246 = vmatprep.subr.mxu0 0.0
    %3247 = vmatpush2.msra.mxu0 0.0
    %3248 = vmatprep.mubr.f32.mxu0 0.0
    %3249 = vmatmul.mubr.f32.gmra.mxu0 %v3179
    %v3250 = vpop.f32.mrf.mxu0
    %v3251 = vadd.f32 %v3175, %v3250
    %v3252 = vpop.f32.mrf.mxu0
    %3253 = vmatprep.mubr.f32.mxu0 0.0
    %3254 = vmatmul.mubr.f32.gmra.mxu0 %v3182
    %v3255 = vpop.f32.mrf.mxu0
    %v3256 = vadd.f32 %v3175, %v3255
    %v3257 = vpop.f32.mrf.mxu0
    %3258 = vdwg.mxu0
    %v3259 = vadd.f32 %v3068, %v3251
    %v3260 = vadd.f32 %v3069, %v3256
    %v3261 = vsel %vm95, %v3259, 0.0
    %3262 = vadd.xlane.f32.xlu0 %v3261
    %v3263 = vpop.xlane.xlu0 %3262
    %v3264 = vsel %vm95, %v3260, 0.0
    %3265 = vadd.xlane.f32.xlu0 %v3264
    %v3266 = vpop.xlane.xlu0 %3265
    %v3267 = vmul.f32 %v3263, %v2973
    %v3268 = vmul.f32 %v3266, %v2973
    %v3269 = vsub.f32 %v3259, %v3267
    %v3270 = vsub.f32 %v3260, %v3268
    %v3271 = vmul.f32 %v3269, %v3269
    %v3272 = vmul.f32 %v3270, %v3270
    %v3273 = vsel %vm95, %v3271, 0.0
    %3274 = vadd.xlane.f32.xlu0 %v3273
    %v3275 = vpop.xlane.xlu0 %3274
    %v3276 = vsel %vm95, %v3272, 0.0
    %3277 = vadd.xlane.f32.xlu0 %v3276
    %v3278 = vpop.xlane.xlu0 %3277
    %v3279 = vmul.f32 %v3275, %v2973
    %v3280 = vmul.f32 %v3278, %v2973
    %v3281 = vadd.f32 %v3279, 1e-05
    %v3282 = vadd.f32 %v3280, 1e-05
    %v3283 = vrsqrt.pop %v3281
    %v3284 = vrsqrt.pop %v3282
    %v3285 = vmul.f32 %v3269, %v3283
    %v3286 = vmul.f32 %v3270, %v3284
    %v3287 = vrot.slane %v55, 3
    %v3288 = vlaneseq
    %v3289 = vshrl.u32 %v3288, 7
    %v3290 = vsub.s32 0, %v3289
    %v3291 = vrot.slane %v3287, %v3290
    %v3293 = vmul.f32 %v3285, %v3291
    %v3294 = vmul.f32 %v3286, %v3291
    %v3295 = vrot.slane %v3003, 3
    %v3296 = vlaneseq
    %v3297 = vshrl.u32 %v3296, 7
    %v3298 = vsub.s32 0, %v3297
    %v3299 = vrot.slane %v3295, %v3298
    %v3301 = vadd.f32 %v3293, %v3299
    %v3302 = vadd.f32 %v3294, %v3299
    %vm3303 = vcmp.eq.s32.totalorder %v314, %v340
    %v3304 = vsel %vm3303, 1, 0
    %v3305 = vcvt.s32.f32 %v3304
    %v3306 = vmul.f32 %v3301, %v3305
    %v3307 = vmul.f32 %v3302, %v3305
    %v3308 = vsel %vm95, %v3306, 0.0
    %v3309 = vrot.slane %v3308, 4
    %v3310 = vadd.f32 %v3308, %v3309
    %v3311 = vrot.slane %v3310, 2
    %v3312 = vadd.f32 %v3310, %v3311
    %v3313 = vrot.slane %v3312, 1
    %v3314 = vadd.f32 %v3312, %v3313
    %v3315 = vsel %vm95, %v3307, 0.0
    %v3316 = vrot.slane %v3315, 4
    %v3317 = vadd.f32 %v3315, %v3316
    %v3318 = vrot.slane %v3317, 2
    %v3319 = vadd.f32 %v3317, %v3318
    %v3320 = vrot.slane %v3319, 1
    %v3321 = vadd.f32 %v3319, %v3320
    %s3322 = scalar_lea.vmem %s3, 128
    %v3323 = vld [vmem:[%s3322] sm:$0xff]
    %v3324 = vld [vmem:[%s3322 + $0x8] sm:$0xff]
    %v3325 = vld [vmem:[%s3322 + $0x10] sm:$0xff]
    %v3326 = vld [vmem:[%s3322 + $0x18] sm:$0xff]
    %vm3329 = vcmask 1041409
    %v3330 = vsel %vm3329, %v3321, %v3314
    %v3331 = vcombine.low %v192, %v192
    %v3333 = vunpack.c.l.s4 1966171168
    %v3334 = vunpack.c.0.s8 %v3333
    %v3335 = vlaneseq
    %v3336 = vshrl.u32 %v3335, 7
    %v3337 = vsub.s32 %v3334, %v3336
    %v3338 = vrot.slane %v3331, %v3337
    %v3340 = vunpack.c.l.s4 1966171168
    %v3341 = vunpack.c.0.s8 %v3340
    %v3342 = vlaneseq
    %v3343 = vshrl.u32 %v3342, 7
    %v3344 = vsub.s32 %v3341, %v3343
    %v3345 = vrot.slane %v3338, %v3344
    %v3347 = vsel %vm95, %v3330, 0
    %3349 = vmatprep.subr.mxu0 0.0
    %3350 = vmatpush1.msra.mxu0 0.0
    %3351 = vmatprep.subr.mxu0 0.0
    %3352 = vmatpush1.msra.mxu0 0.0
    %3353 = vmatprep.subr.mxu0 0.0
    %3354 = vmatpush1.msra.mxu0 0.0
    %3355 = vmatprep.subr.mxu0 0.0
    %3356 = vmatpush1.msra.mxu0 0.0
    %3357 = vmatprep.subr.mxu0 0.0
    %3358 = vmatpush1.msra.mxu0 0.0
    %3359 = vmatprep.subr.mxu0 0.0
    %3360 = vmatpush1.msra.mxu0 0.0
    %3361 = vmatprep.subr.mxu0 0.0
    %3362 = vmatpush1.msra.mxu0 0.0
    %3363 = vmatprep.subr.mxu0 0.0
    %3364 = vmatpush1.msra.mxu0 0.0
    %3365 = vmatprep.subr.mxu0 0.0
    %3366 = vmatpush1.msra.mxu0 0.0
    %3367 = vmatprep.subr.mxu0 0.0
    %3368 = vmatpush1.msra.mxu0 0.0
    %3369 = vmatprep.subr.mxu0 0.0
    %3370 = vmatpush1.msra.mxu0 0.0
    %3371 = vmatprep.subr.mxu0 0.0
    %3372 = vmatpush1.msra.mxu0 0.0
    %3373 = vmatprep.subr.mxu0 0.0
    %3374 = vmatpush1.msra.mxu0 %v3326
    %3375 = vmatprep.subr.mxu0 0.0
    %3376 = vmatpush1.msra.mxu0 %v3325
    %3377 = vmatprep.subr.mxu0 0.0
    %3378 = vmatpush1.msra.mxu0 %v3324
    %3379 = vmatprep.subr.mxu0 0.0
    %3380 = vmatpush1.msra.mxu0 %v3323
    %3381 = vmatprep.subr.mxu0 0.0
    %3382 = vmatpush2.msra.mxu0 0.0
    %3383 = vmatprep.subr.mxu0 0.0
    %3384 = vmatpush2.msra.mxu0 0.0
    %3385 = vmatprep.subr.mxu0 0.0
    %3386 = vmatpush2.msra.mxu0 0.0
    %3387 = vmatprep.subr.mxu0 0.0
    %3388 = vmatpush2.msra.mxu0 0.0
    %3389 = vmatprep.subr.mxu0 0.0
    %3390 = vmatpush2.msra.mxu0 0.0
    %3391 = vmatprep.subr.mxu0 0.0
    %3392 = vmatpush2.msra.mxu0 0.0
    %3393 = vmatprep.subr.mxu0 0.0
    %3394 = vmatpush2.msra.mxu0 0.0
    %3395 = vmatprep.subr.mxu0 0.0
    %3396 = vmatpush2.msra.mxu0 0.0
    %3397 = vmatprep.subr.mxu0 0.0
    %3398 = vmatpush2.msra.mxu0 0.0
    %3399 = vmatprep.subr.mxu0 0.0
    %3400 = vmatpush2.msra.mxu0 0.0
    %3401 = vmatprep.subr.mxu0 0.0
    %3402 = vmatpush2.msra.mxu0 0.0
    %3403 = vmatprep.subr.mxu0 0.0
    %3404 = vmatpush2.msra.mxu0 0.0
    %3405 = vmatprep.subr.mxu0 0.0
    %3406 = vmatpush2.msra.mxu0 0.0
    %3407 = vmatprep.subr.mxu0 0.0
    %3408 = vmatpush2.msra.mxu0 0.0
    %3409 = vmatprep.subr.mxu0 0.0
    %3410 = vmatpush2.msra.mxu0 0.0
    %3411 = vmatprep.subr.mxu0 0.0
    %3412 = vmatpush2.msra.mxu0 0.0
    %3413 = vmatprep.mubr.f32.mxu0 0.0
    %3414 = vmatmul.mubr.f32.gmra.mxu0 %v3347
    %v3415 = vpop.f32.mrf.mxu0
    %v3416 = vadd.f32 %v3345, %v3415
    %v3417 = vpop.f32.mrf.mxu0
    %3418 = vdwg.mxu0
    %v3421 = vunpack.c.l.s4 1966171168
    %v3422 = vunpack.c.0.s8 %v3421
    %v3423 = vlaneseq
    %v3424 = vshrl.u32 %v3423, 7
    %v3425 = vsub.s32 %v3422, %v3424
    %v3426 = vrot.slane %v3416, %v3425
    %v3427 = vcombine.high %v3426, %v3426
    %v3429 = vunpack.c.l.s4 1966171168
    %v3430 = vunpack.c.0.s8 %v3429
    %v3431 = vlaneseq
    %v3432 = vshrl.u32 %v3431, 7
    %v3433 = vsub.s32 %v3430, %v3432
    %v3434 = vrot.slane %v3426, %v3433
    %v3436 = vunpack.c.l.s4 1966171168
    %v3437 = vunpack.c.0.s8 %v3436
    %v3438 = vlaneseq
    %v3439 = vshrl.u32 %v3438, 7
    %v3440 = vsub.s32 %v3437, %v3439
    %v3441 = vrot.slane %v3427, %v3440
    %s3442 = scalar_lea.vmem %s4, 128
    %v3443 = vld [vmem:[%s3442] sm:$0xff]
    %v3444 = vld [vmem:[%s3442 + $0x8] sm:$0xff]
    %v3445 = vld [vmem:[%s3442 + $0x10] sm:$0xff]
    %v3446 = vld [vmem:[%s3442 + $0x18] sm:$0xff]
    %v3447 = vlaneseq
    %v3448 = vshrl.u32 %v3447, 7
    %v3449 = vsub.s32 0, %v3448
    %v3450 = vrot.slane %v192, %v3449
    %3451 = vrot.lane.b32.xlu0 %v3450, 96
    %v3452 = vpop.permute.xlu0 %3451
    %v3455 = vsel %vm95, %v3301, 0
    %v3458 = vsel %vm95, %v3302, 0
    %3460 = vmatprep.subr.mxu0 0.0
    %3461 = vmatpush1.msra.mxu0 0.0
    %3462 = vmatprep.subr.mxu0 0.0
    %3463 = vmatpush1.msra.mxu0 0.0
    %3464 = vmatprep.subr.mxu0 0.0
    %3465 = vmatpush1.msra.mxu0 0.0
    %3466 = vmatprep.subr.mxu0 0.0
    %3467 = vmatpush1.msra.mxu0 0.0
    %3468 = vmatprep.subr.mxu0 0.0
    %3469 = vmatpush1.msra.mxu0 0.0
    %3470 = vmatprep.subr.mxu0 0.0
    %3471 = vmatpush1.msra.mxu0 0.0
    %3472 = vmatprep.subr.mxu0 0.0
    %3473 = vmatpush1.msra.mxu0 0.0
    %3474 = vmatprep.subr.mxu0 0.0
    %3475 = vmatpush1.msra.mxu0 0.0
    %3476 = vmatprep.subr.mxu0 0.0
    %3477 = vmatpush1.msra.mxu0 0.0
    %3478 = vmatprep.subr.mxu0 0.0
    %3479 = vmatpush1.msra.mxu0 0.0
    %3480 = vmatprep.subr.mxu0 0.0
    %3481 = vmatpush1.msra.mxu0 0.0
    %3482 = vmatprep.subr.mxu0 0.0
    %3483 = vmatpush1.msra.mxu0 0.0
    %3484 = vmatprep.subr.mxu0 0.0
    %3485 = vmatpush1.msra.mxu0 %v3446
    %3486 = vmatprep.subr.mxu0 0.0
    %3487 = vmatpush1.msra.mxu0 %v3445
    %3488 = vmatprep.subr.mxu0 0.0
    %3489 = vmatpush1.msra.mxu0 %v3444
    %3490 = vmatprep.subr.mxu0 0.0
    %3491 = vmatpush1.msra.mxu0 %v3443
    %3492 = vmatprep.subr.mxu0 0.0
    %3493 = vmatpush2.msra.mxu0 0.0
    %3494 = vmatprep.subr.mxu0 0.0
    %3495 = vmatpush2.msra.mxu0 0.0
    %3496 = vmatprep.subr.mxu0 0.0
    %3497 = vmatpush2.msra.mxu0 0.0
    %3498 = vmatprep.subr.mxu0 0.0
    %3499 = vmatpush2.msra.mxu0 0.0
    %3500 = vmatprep.subr.mxu0 0.0
    %3501 = vmatpush2.msra.mxu0 0.0
    %3502 = vmatprep.subr.mxu0 0.0
    %3503 = vmatpush2.msra.mxu0 0.0
    %3504 = vmatprep.subr.mxu0 0.0
    %3505 = vmatpush2.msra.mxu0 0.0
    %3506 = vmatprep.subr.mxu0 0.0
    %3507 = vmatpush2.msra.mxu0 0.0
    %3508 = vmatprep.subr.mxu0 0.0
    %3509 = vmatpush2.msra.mxu0 0.0
    %3510 = vmatprep.subr.mxu0 0.0
    %3511 = vmatpush2.msra.mxu0 0.0
    %3512 = vmatprep.subr.mxu0 0.0
    %3513 = vmatpush2.msra.mxu0 0.0
    %3514 = vmatprep.subr.mxu0 0.0
    %3515 = vmatpush2.msra.mxu0 0.0
    %3516 = vmatprep.subr.mxu0 0.0
    %3517 = vmatpush2.msra.mxu0 0.0
    %3518 = vmatprep.subr.mxu0 0.0
    %3519 = vmatpush2.msra.mxu0 0.0
    %3520 = vmatprep.subr.mxu0 0.0
    %3521 = vmatpush2.msra.mxu0 0.0
    %3522 = vmatprep.subr.mxu0 0.0
    %3523 = vmatpush2.msra.mxu0 0.0
    %3524 = vmatprep.mubr.f32.mxu0 0.0
    %3525 = vmatmul.mubr.f32.gmra.mxu0 %v3455
    %v3526 = vpop.f32.mrf.mxu0
    %v3527 = vadd.f32 %v3452, %v3526
    %v3528 = vpop.f32.mrf.mxu0
    %3529 = vmatprep.mubr.f32.mxu0 0.0
    %3530 = vmatmul.mubr.f32.gmra.mxu0 %v3458
    %v3531 = vpop.f32.mrf.mxu0
    %v3532 = vadd.f32 %v3452, %v3531
    %v3533 = vpop.f32.mrf.mxu0
    %3534 = vdwg.mxu0
    %s3535 = scalar_lea.vmem %s5, 128
    %v3536 = vld [vmem:[%s3535] sm:$0xff]
    %v3537 = vld [vmem:[%s3535 + $0x8] sm:$0xff]
    %v3538 = vld [vmem:[%s3535 + $0x10] sm:$0xff]
    %v3539 = vld [vmem:[%s3535 + $0x18] sm:$0xff]
    %3540 = vrot.lane.b32.xlu0 %v3450, 64
    %v3541 = vpop.permute.xlu0 %3540
    %3543 = vmatprep.subr.mxu0 0.0
    %3544 = vmatpush1.msra.mxu0 0.0
    %3545 = vmatprep.subr.mxu0 0.0
    %3546 = vmatpush1.msra.mxu0 0.0
    %3547 = vmatprep.subr.mxu0 0.0
    %3548 = vmatpush1.msra.mxu0 0.0
    %3549 = vmatprep.subr.mxu0 0.0
    %3550 = vmatpush1.msra.mxu0 0.0
    %3551 = vmatprep.subr.mxu0 0.0
    %3552 = vmatpush1.msra.mxu0 0.0
    %3553 = vmatprep.subr.mxu0 0.0
    %3554 = vmatpush1.msra.mxu0 0.0
    %3555 = vmatprep.subr.mxu0 0.0
    %3556 = vmatpush1.msra.mxu0 0.0
    %3557 = vmatprep.subr.mxu0 0.0
    %3558 = vmatpush1.msra.mxu0 0.0
    %3559 = vmatprep.subr.mxu0 0.0
    %3560 = vmatpush1.msra.mxu0 0.0
    %3561 = vmatprep.subr.mxu0 0.0
    %3562 = vmatpush1.msra.mxu0 0.0
    %3563 = vmatprep.subr.mxu0 0.0
    %3564 = vmatpush1.msra.mxu0 0.0
    %3565 = vmatprep.subr.mxu0 0.0
    %3566 = vmatpush1.msra.mxu0 0.0
    %3567 = vmatprep.subr.mxu0 0.0
    %3568 = vmatpush1.msra.mxu0 %v3539
    %3569 = vmatprep.subr.mxu0 0.0
    %3570 = vmatpush1.msra.mxu0 %v3538
    %3571 = vmatprep.subr.mxu0 0.0
    %3572 = vmatpush1.msra.mxu0 %v3537
    %3573 = vmatprep.subr.mxu0 0.0
    %3574 = vmatpush1.msra.mxu0 %v3536
    %3575 = vmatprep.subr.mxu0 0.0
    %3576 = vmatpush2.msra.mxu0 0.0
    %3577 = vmatprep.subr.mxu0 0.0
    %3578 = vmatpush2.msra.mxu0 0.0
    %3579 = vmatprep.subr.mxu0 0.0
    %3580 = vmatpush2.msra.mxu0 0.0
    %3581 = vmatprep.subr.mxu0 0.0
    %3582 = vmatpush2.msra.mxu0 0.0
    %3583 = vmatprep.subr.mxu0 0.0
    %3584 = vmatpush2.msra.mxu0 0.0
    %3585 = vmatprep.subr.mxu0 0.0
    %3586 = vmatpush2.msra.mxu0 0.0
    %3587 = vmatprep.subr.mxu0 0.0
    %3588 = vmatpush2.msra.mxu0 0.0
    %3589 = vmatprep.subr.mxu0 0.0
    %3590 = vmatpush2.msra.mxu0 0.0
    %3591 = vmatprep.subr.mxu0 0.0
    %3592 = vmatpush2.msra.mxu0 0.0
    %3593 = vmatprep.subr.mxu0 0.0
    %3594 = vmatpush2.msra.mxu0 0.0
    %3595 = vmatprep.subr.mxu0 0.0
    %3596 = vmatpush2.msra.mxu0 0.0
    %3597 = vmatprep.subr.mxu0 0.0
    %3598 = vmatpush2.msra.mxu0 0.0
    %3599 = vmatprep.subr.mxu0 0.0
    %3600 = vmatpush2.msra.mxu0 0.0
    %3601 = vmatprep.subr.mxu0 0.0
    %3602 = vmatpush2.msra.mxu0 0.0
    %3603 = vmatprep.subr.mxu0 0.0
    %3604 = vmatpush2.msra.mxu0 0.0
    %3605 = vmatprep.subr.mxu0 0.0
    %3606 = vmatpush2.msra.mxu0 0.0
    %3607 = vmatprep.mubr.f32.mxu0 0.0
    %3608 = vmatmul.mubr.f32.gmra.mxu0 %v3455
    %v3609 = vpop.f32.mrf.mxu0
    %v3610 = vadd.f32 %v3541, %v3609
    %v3611 = vpop.f32.mrf.mxu0
    %3612 = vmatprep.mubr.f32.mxu0 0.0
    %3613 = vmatmul.mubr.f32.gmra.mxu0 %v3458
    %v3614 = vpop.f32.mrf.mxu0
    %v3615 = vadd.f32 %v3541, %v3614
    %v3616 = vpop.f32.mrf.mxu0
    %3617 = vdwg.mxu0
    %v3618 = vsel %vm597, %v3434, 0
    %v3621 = vsel %vm597, %v3527, 0
    %3623 = vmatprep.subr.mxu0 0.0
    %3624 = vmatpush1.xpose.msra.mxu0 0.0
    %3625 = vmatprep.subr.mxu0 0.0
    %3626 = vmatpush1.xpose.msra.mxu0 0.0
    %3627 = vmatprep.subr.mxu0 0.0
    %3628 = vmatpush1.xpose.msra.mxu0 0.0
    %3629 = vmatprep.subr.mxu0 0.0
    %3630 = vmatpush1.xpose.msra.mxu0 0.0
    %3631 = vmatprep.subr.mxu0 0.0
    %3632 = vmatpush1.xpose.msra.mxu0 0.0
    %3633 = vmatprep.subr.mxu0 0.0
    %3634 = vmatpush1.xpose.msra.mxu0 0.0
    %3635 = vmatprep.subr.mxu0 0.0
    %3636 = vmatpush1.xpose.msra.mxu0 0.0
    %3637 = vmatprep.subr.mxu0 0.0
    %3638 = vmatpush1.xpose.msra.mxu0 0.0
    %3639 = vmatprep.subr.mxu0 0.0
    %3640 = vmatpush1.xpose.msra.mxu0 0.0
    %3641 = vmatprep.subr.mxu0 0.0
    %3642 = vmatpush1.xpose.msra.mxu0 0.0
    %3643 = vmatprep.subr.mxu0 0.0
    %3644 = vmatpush1.xpose.msra.mxu0 0.0
    %3645 = vmatprep.subr.mxu0 0.0
    %3646 = vmatpush1.xpose.msra.mxu0 0.0
    %3647 = vmatprep.subr.mxu0 0.0
    %3648 = vmatpush1.xpose.msra.mxu0 0.0
    %3649 = vmatprep.subr.mxu0 0.0
    %3650 = vmatpush1.xpose.msra.mxu0 0.0
    %3651 = vmatprep.subr.mxu0 0.0
    %3652 = vmatpush1.xpose.msra.mxu0 0.0
    %3653 = vmatprep.subr.mxu0 0.0
    %3654 = vmatpush1.xpose.msra.mxu0 %v3621
    %3655 = vmatprep.subr.mxu0 0.0
    %3656 = vmatpush2.xpose.msra.mxu0 0.0
    %3657 = vmatprep.subr.mxu0 0.0
    %3658 = vmatpush2.xpose.msra.mxu0 0.0
    %3659 = vmatprep.subr.mxu0 0.0
    %3660 = vmatpush2.xpose.msra.mxu0 0.0
    %3661 = vmatprep.subr.mxu0 0.0
    %3662 = vmatpush2.xpose.msra.mxu0 0.0
    %3663 = vmatprep.subr.mxu0 0.0
    %3664 = vmatpush2.xpose.msra.mxu0 0.0
    %3665 = vmatprep.subr.mxu0 0.0
    %3666 = vmatpush2.xpose.msra.mxu0 0.0
    %3667 = vmatprep.subr.mxu0 0.0
    %3668 = vmatpush2.xpose.msra.mxu0 0.0
    %3669 = vmatprep.subr.mxu0 0.0
    %3670 = vmatpush2.xpose.msra.mxu0 0.0
    %3671 = vmatprep.subr.mxu0 0.0
    %3672 = vmatpush2.xpose.msra.mxu0 0.0
    %3673 = vmatprep.subr.mxu0 0.0
    %3674 = vmatpush2.xpose.msra.mxu0 0.0
    %3675 = vmatprep.subr.mxu0 0.0
    %3676 = vmatpush2.xpose.msra.mxu0 0.0
    %3677 = vmatprep.subr.mxu0 0.0
    %3678 = vmatpush2.xpose.msra.mxu0 0.0
    %3679 = vmatprep.subr.mxu0 0.0
    %3680 = vmatpush2.xpose.msra.mxu0 0.0
    %3681 = vmatprep.subr.mxu0 0.0
    %3682 = vmatpush2.xpose.msra.mxu0 0.0
    %3683 = vmatprep.subr.mxu0 0.0
    %3684 = vmatpush2.xpose.msra.mxu0 0.0
    %3685 = vmatprep.subr.mxu0 0.0
    %3686 = vmatpush2.xpose.msra.mxu0 0.0
    %3687 = vmatprep.mubr.f32.mxu0 0.0
    %3688 = vmatmul.mubr.f32.gmra.mxu0 %v3618
    %v3689 = vpop.f32.mrf.mxu0
    %v3690 = vadd.f32 %v342, %v3689
    %v3691 = vpop.f32.mrf.mxu0
    %3692 = vdwg.mxu0
    %v3693 = vsel %vm597, %v3441, 0
    %v3696 = vsel %vm597, %v3532, 0
    %3698 = vmatprep.subr.mxu0 0.0
    %3699 = vmatpush1.xpose.msra.mxu0 0.0
    %3700 = vmatprep.subr.mxu0 0.0
    %3701 = vmatpush1.xpose.msra.mxu0 0.0
    %3702 = vmatprep.subr.mxu0 0.0
    %3703 = vmatpush1.xpose.msra.mxu0 0.0
    %3704 = vmatprep.subr.mxu0 0.0
    %3705 = vmatpush1.xpose.msra.mxu0 0.0
    %3706 = vmatprep.subr.mxu0 0.0
    %3707 = vmatpush1.xpose.msra.mxu0 0.0
    %3708 = vmatprep.subr.mxu0 0.0
    %3709 = vmatpush1.xpose.msra.mxu0 0.0
    %3710 = vmatprep.subr.mxu0 0.0
    %3711 = vmatpush1.xpose.msra.mxu0 0.0
    %3712 = vmatprep.subr.mxu0 0.0
    %3713 = vmatpush1.xpose.msra.mxu0 0.0
    %3714 = vmatprep.subr.mxu0 0.0
    %3715 = vmatpush1.xpose.msra.mxu0 0.0
    %3716 = vmatprep.subr.mxu0 0.0
    %3717 = vmatpush1.xpose.msra.mxu0 0.0
    %3718 = vmatprep.subr.mxu0 0.0
    %3719 = vmatpush1.xpose.msra.mxu0 0.0
    %3720 = vmatprep.subr.mxu0 0.0
    %3721 = vmatpush1.xpose.msra.mxu0 0.0
    %3722 = vmatprep.subr.mxu0 0.0
    %3723 = vmatpush1.xpose.msra.mxu0 0.0
    %3724 = vmatprep.subr.mxu0 0.0
    %3725 = vmatpush1.xpose.msra.mxu0 0.0
    %3726 = vmatprep.subr.mxu0 0.0
    %3727 = vmatpush1.xpose.msra.mxu0 0.0
    %3728 = vmatprep.subr.mxu0 0.0
    %3729 = vmatpush1.xpose.msra.mxu0 %v3696
    %3730 = vmatprep.subr.mxu0 0.0
    %3731 = vmatpush2.xpose.msra.mxu0 0.0
    %3732 = vmatprep.subr.mxu0 0.0
    %3733 = vmatpush2.xpose.msra.mxu0 0.0
    %3734 = vmatprep.subr.mxu0 0.0
    %3735 = vmatpush2.xpose.msra.mxu0 0.0
    %3736 = vmatprep.subr.mxu0 0.0
    %3737 = vmatpush2.xpose.msra.mxu0 0.0
    %3738 = vmatprep.subr.mxu0 0.0
    %3739 = vmatpush2.xpose.msra.mxu0 0.0
    %3740 = vmatprep.subr.mxu0 0.0
    %3741 = vmatpush2.xpose.msra.mxu0 0.0
    %3742 = vmatprep.subr.mxu0 0.0
    %3743 = vmatpush2.xpose.msra.mxu0 0.0
    %3744 = vmatprep.subr.mxu0 0.0
    %3745 = vmatpush2.xpose.msra.mxu0 0.0
    %3746 = vmatprep.subr.mxu0 0.0
    %3747 = vmatpush2.xpose.msra.mxu0 0.0
    %3748 = vmatprep.subr.mxu0 0.0
    %3749 = vmatpush2.xpose.msra.mxu0 0.0
    %3750 = vmatprep.subr.mxu0 0.0
    %3751 = vmatpush2.xpose.msra.mxu0 0.0
    %3752 = vmatprep.subr.mxu0 0.0
    %3753 = vmatpush2.xpose.msra.mxu0 0.0
    %3754 = vmatprep.subr.mxu0 0.0
    %3755 = vmatpush2.xpose.msra.mxu0 0.0
    %3756 = vmatprep.subr.mxu0 0.0
    %3757 = vmatpush2.xpose.msra.mxu0 0.0
    %3758 = vmatprep.subr.mxu0 0.0
    %3759 = vmatpush2.xpose.msra.mxu0 0.0
    %3760 = vmatprep.subr.mxu0 0.0
    %3761 = vmatpush2.xpose.msra.mxu0 0.0
    %3762 = vmatprep.mubr.f32.mxu0 0.0
    %3763 = vmatmul.mubr.f32.gmra.mxu0 %v3693
    %v3764 = vpop.f32.mrf.mxu0
    %v3765 = vadd.f32 %v342, %v3764
    %v3766 = vpop.f32.mrf.mxu0
    %3767 = vdwg.mxu0
    %vm3768 = vcmask 57344
    %v3769 = vsel %vm3768, %v3690, -inf
    %3770 = vmax.xlane.f32.xlu0 %v3769
    %v3771 = vpop.xlane.xlu0 %3770
    %v3772 = vsel %vm3768, %v3765, -inf
    %3773 = vmax.xlane.f32.xlu0 %v3772
    %v3774 = vpop.xlane.xlu0 %3773
    %v3775 = vsub.f32 %v3690, %v3771
    %v3776 = vsub.f32 %v3765, %v3774
    %v3777 = vmul.f32 %v3775, 1.442695
    %v3778 = vpow.pop %v3777
    %v3779 = vmul.f32 %v3776, 1.442695
    %v3780 = vpow.pop %v3779
    %v3781 = vsel %vm3768, %v3778, 0.0
    %3782 = vadd.xlane.f32.xlu0 %v3781
    %v3783 = vpop.xlane.xlu0 %3782
    %v3784 = vsel %vm3768, %v3780, 0.0
    %3785 = vadd.xlane.f32.xlu0 %v3784
    %v3786 = vpop.xlane.xlu0 %3785
    %v3787 = vrcp.pop %v3783
    %v3788 = vrcp.pop %v3786
    %v3789 = vmul.f32 %v3778, %v3787
    %v3790 = vmul.f32 %v3780, %v3788
    %v3792 = vsel %vm597, %v3789, 0
    %3794 = vmatprep.subr.mxu0 0.0
    %3795 = vmatpush1.msra.mxu0 0.0
    %3796 = vmatprep.subr.mxu0 0.0
    %3797 = vmatpush1.msra.mxu0 0.0
    %3798 = vmatprep.subr.mxu0 0.0
    %3799 = vmatpush1.msra.mxu0 0.0
    %3800 = vmatprep.subr.mxu0 0.0
    %3801 = vmatpush1.msra.mxu0 0.0
    %3802 = vmatprep.subr.mxu0 0.0
    %3803 = vmatpush1.msra.mxu0 0.0
    %3804 = vmatprep.subr.mxu0 0.0
    %3805 = vmatpush1.msra.mxu0 0.0
    %3806 = vmatprep.subr.mxu0 0.0
    %3807 = vmatpush1.msra.mxu0 0.0
    %3808 = vmatprep.subr.mxu0 0.0
    %3809 = vmatpush1.msra.mxu0 0.0
    %3810 = vmatprep.subr.mxu0 0.0
    %3811 = vmatpush1.msra.mxu0 0.0
    %3812 = vmatprep.subr.mxu0 0.0
    %3813 = vmatpush1.msra.mxu0 0.0
    %3814 = vmatprep.subr.mxu0 0.0
    %3815 = vmatpush1.msra.mxu0 0.0
    %3816 = vmatprep.subr.mxu0 0.0
    %3817 = vmatpush1.msra.mxu0 0.0
    %3818 = vmatprep.subr.mxu0 0.0
    %3819 = vmatpush1.msra.mxu0 0.0
    %3820 = vmatprep.subr.mxu0 0.0
    %3821 = vmatpush1.msra.mxu0 0.0
    %3822 = vmatprep.subr.mxu0 0.0
    %3823 = vmatpush1.msra.mxu0 0.0
    %3824 = vmatprep.subr.mxu0 0.0
    %3825 = vmatpush1.msra.mxu0 %v3610
    %3826 = vmatprep.subr.mxu0 0.0
    %3827 = vmatpush2.msra.mxu0 0.0
    %3828 = vmatprep.subr.mxu0 0.0
    %3829 = vmatpush2.msra.mxu0 0.0
    %3830 = vmatprep.subr.mxu0 0.0
    %3831 = vmatpush2.msra.mxu0 0.0
    %3832 = vmatprep.subr.mxu0 0.0
    %3833 = vmatpush2.msra.mxu0 0.0
    %3834 = vmatprep.subr.mxu0 0.0
    %3835 = vmatpush2.msra.mxu0 0.0
    %3836 = vmatprep.subr.mxu0 0.0
    %3837 = vmatpush2.msra.mxu0 0.0
    %3838 = vmatprep.subr.mxu0 0.0
    %3839 = vmatpush2.msra.mxu0 0.0
    %3840 = vmatprep.subr.mxu0 0.0
    %3841 = vmatpush2.msra.mxu0 0.0
    %3842 = vmatprep.subr.mxu0 0.0
    %3843 = vmatpush2.msra.mxu0 0.0
    %3844 = vmatprep.subr.mxu0 0.0
    %3845 = vmatpush2.msra.mxu0 0.0
    %3846 = vmatprep.subr.mxu0 0.0
    %3847 = vmatpush2.msra.mxu0 0.0
    %3848 = vmatprep.subr.mxu0 0.0
    %3849 = vmatpush2.msra.mxu0 0.0
    %3850 = vmatprep.subr.mxu0 0.0
    %3851 = vmatpush2.msra.mxu0 0.0
    %3852 = vmatprep.subr.mxu0 0.0
    %3853 = vmatpush2.msra.mxu0 0.0
    %3854 = vmatprep.subr.mxu0 0.0
    %3855 = vmatpush2.msra.mxu0 0.0
    %3856 = vmatprep.subr.mxu0 0.0
    %3857 = vmatpush2.msra.mxu0 0.0
    %3858 = vmatprep.mubr.f32.mxu0 0.0
    %3859 = vmatmul.mubr.f32.gmra.mxu0 %v3792
    %v3860 = vpop.f32.mrf.mxu0
    %v3861 = vadd.f32 0.0, %v3860
    %v3862 = vpop.f32.mrf.mxu0
    %3863 = vdwg.mxu0
    %v3865 = vsel %vm597, %v3790, 0
    %3867 = vmatprep.subr.mxu0 0.0
    %3868 = vmatpush1.msra.mxu0 0.0
    %3869 = vmatprep.subr.mxu0 0.0
    %3870 = vmatpush1.msra.mxu0 0.0
    %3871 = vmatprep.subr.mxu0 0.0
    %3872 = vmatpush1.msra.mxu0 0.0
    %3873 = vmatprep.subr.mxu0 0.0
    %3874 = vmatpush1.msra.mxu0 0.0
    %3875 = vmatprep.subr.mxu0 0.0
    %3876 = vmatpush1.msra.mxu0 0.0
    %3877 = vmatprep.subr.mxu0 0.0
    %3878 = vmatpush1.msra.mxu0 0.0
    %3879 = vmatprep.subr.mxu0 0.0
    %3880 = vmatpush1.msra.mxu0 0.0
    %3881 = vmatprep.subr.mxu0 0.0
    %3882 = vmatpush1.msra.mxu0 0.0
    %3883 = vmatprep.subr.mxu0 0.0
    %3884 = vmatpush1.msra.mxu0 0.0
    %3885 = vmatprep.subr.mxu0 0.0
    %3886 = vmatpush1.msra.mxu0 0.0
    %3887 = vmatprep.subr.mxu0 0.0
    %3888 = vmatpush1.msra.mxu0 0.0
    %3889 = vmatprep.subr.mxu0 0.0
    %3890 = vmatpush1.msra.mxu0 0.0
    %3891 = vmatprep.subr.mxu0 0.0
    %3892 = vmatpush1.msra.mxu0 0.0
    %3893 = vmatprep.subr.mxu0 0.0
    %3894 = vmatpush1.msra.mxu0 0.0
    %3895 = vmatprep.subr.mxu0 0.0
    %3896 = vmatpush1.msra.mxu0 0.0
    %3897 = vmatprep.subr.mxu0 0.0
    %3898 = vmatpush1.msra.mxu0 %v3615
    %3899 = vmatprep.subr.mxu0 0.0
    %3900 = vmatpush2.msra.mxu0 0.0
    %3901 = vmatprep.subr.mxu0 0.0
    %3902 = vmatpush2.msra.mxu0 0.0
    %3903 = vmatprep.subr.mxu0 0.0
    %3904 = vmatpush2.msra.mxu0 0.0
    %3905 = vmatprep.subr.mxu0 0.0
    %3906 = vmatpush2.msra.mxu0 0.0
    %3907 = vmatprep.subr.mxu0 0.0
    %3908 = vmatpush2.msra.mxu0 0.0
    %3909 = vmatprep.subr.mxu0 0.0
    %3910 = vmatpush2.msra.mxu0 0.0
    %3911 = vmatprep.subr.mxu0 0.0
    %3912 = vmatpush2.msra.mxu0 0.0
    %3913 = vmatprep.subr.mxu0 0.0
    %3914 = vmatpush2.msra.mxu0 0.0
    %3915 = vmatprep.subr.mxu0 0.0
    %3916 = vmatpush2.msra.mxu0 0.0
    %3917 = vmatprep.subr.mxu0 0.0
    %3918 = vmatpush2.msra.mxu0 0.0
    %3919 = vmatprep.subr.mxu0 0.0
    %3920 = vmatpush2.msra.mxu0 0.0
    %3921 = vmatprep.subr.mxu0 0.0
    %3922 = vmatpush2.msra.mxu0 0.0
    %3923 = vmatprep.subr.mxu0 0.0
    %3924 = vmatpush2.msra.mxu0 0.0
    %3925 = vmatprep.subr.mxu0 0.0
    %3926 = vmatpush2.msra.mxu0 0.0
    %3927 = vmatprep.subr.mxu0 0.0
    %3928 = vmatpush2.msra.mxu0 0.0
    %3929 = vmatprep.subr.mxu0 0.0
    %3930 = vmatpush2.msra.mxu0 0.0
    %3931 = vmatprep.mubr.f32.mxu0 0.0
    %3932 = vmatmul.mubr.f32.gmra.mxu0 %v3865
    %v3933 = vpop.f32.mrf.mxu0
    %v3934 = vadd.f32 0.0, %v3933
    %v3935 = vpop.f32.mrf.mxu0
    %3936 = vdwg.mxu0
    %s3937 = scalar_lea.vmem %s6, 32
    %v3938 = vld [vmem:[%s3937] sm:$0xff]
    %s3939 = scalar_lea.vmem %s3, 160
    %v3940 = vld [vmem:[%s3939] sm:$0xff]
    %v3941 = vld [vmem:[%s3939 + $0x8] sm:$0xff]
    %v3942 = vld [vmem:[%s3939 + $0x10] sm:$0xff]
    %v3943 = vld [vmem:[%s3939 + $0x18] sm:$0xff]
    %3944 = vrot.lane.b32.xlu0 %v3345, 120
    %v3945 = vpop.permute.xlu0 %3944
    %3947 = vmatprep.subr.mxu0 0.0
    %3948 = vmatpush1.msra.mxu0 0.0
    %3949 = vmatprep.subr.mxu0 0.0
    %3950 = vmatpush1.msra.mxu0 0.0
    %3951 = vmatprep.subr.mxu0 0.0
    %3952 = vmatpush1.msra.mxu0 0.0
    %3953 = vmatprep.subr.mxu0 0.0
    %3954 = vmatpush1.msra.mxu0 0.0
    %3955 = vmatprep.subr.mxu0 0.0
    %3956 = vmatpush1.msra.mxu0 0.0
    %3957 = vmatprep.subr.mxu0 0.0
    %3958 = vmatpush1.msra.mxu0 0.0
    %3959 = vmatprep.subr.mxu0 0.0
    %3960 = vmatpush1.msra.mxu0 0.0
    %3961 = vmatprep.subr.mxu0 0.0
    %3962 = vmatpush1.msra.mxu0 0.0
    %3963 = vmatprep.subr.mxu0 0.0
    %3964 = vmatpush1.msra.mxu0 0.0
    %3965 = vmatprep.subr.mxu0 0.0
    %3966 = vmatpush1.msra.mxu0 0.0
    %3967 = vmatprep.subr.mxu0 0.0
    %3968 = vmatpush1.msra.mxu0 0.0
    %3969 = vmatprep.subr.mxu0 0.0
    %3970 = vmatpush1.msra.mxu0 0.0
    %3971 = vmatprep.subr.mxu0 0.0
    %3972 = vmatpush1.msra.mxu0 %v3943
    %3973 = vmatprep.subr.mxu0 0.0
    %3974 = vmatpush1.msra.mxu0 %v3942
    %3975 = vmatprep.subr.mxu0 0.0
    %3976 = vmatpush1.msra.mxu0 %v3941
    %3977 = vmatprep.subr.mxu0 0.0
    %3978 = vmatpush1.msra.mxu0 %v3940
    %3979 = vmatprep.subr.mxu0 0.0
    %3980 = vmatpush2.msra.mxu0 0.0
    %3981 = vmatprep.subr.mxu0 0.0
    %3982 = vmatpush2.msra.mxu0 0.0
    %3983 = vmatprep.subr.mxu0 0.0
    %3984 = vmatpush2.msra.mxu0 0.0
    %3985 = vmatprep.subr.mxu0 0.0
    %3986 = vmatpush2.msra.mxu0 0.0
    %3987 = vmatprep.subr.mxu0 0.0
    %3988 = vmatpush2.msra.mxu0 0.0
    %3989 = vmatprep.subr.mxu0 0.0
    %3990 = vmatpush2.msra.mxu0 0.0
    %3991 = vmatprep.subr.mxu0 0.0
    %3992 = vmatpush2.msra.mxu0 0.0
    %3993 = vmatprep.subr.mxu0 0.0
    %3994 = vmatpush2.msra.mxu0 0.0
    %3995 = vmatprep.subr.mxu0 0.0
    %3996 = vmatpush2.msra.mxu0 0.0
    %3997 = vmatprep.subr.mxu0 0.0
    %3998 = vmatpush2.msra.mxu0 0.0
    %3999 = vmatprep.subr.mxu0 0.0
    %4000 = vmatpush2.msra.mxu0 0.0
    %4001 = vmatprep.subr.mxu0 0.0
    %4002 = vmatpush2.msra.mxu0 0.0
    %4003 = vmatprep.subr.mxu0 0.0
    %4004 = vmatpush2.msra.mxu0 0.0
    %4005 = vmatprep.subr.mxu0 0.0
    %4006 = vmatpush2.msra.mxu0 0.0
    %4007 = vmatprep.subr.mxu0 0.0
    %4008 = vmatpush2.msra.mxu0 0.0
    %4009 = vmatprep.subr.mxu0 0.0
    %4010 = vmatpush2.msra.mxu0 0.0
    %4011 = vmatprep.mubr.f32.mxu0 0.0
    %4012 = vmatmul.mubr.f32.gmra.mxu0 %v3347
    %v4013 = vpop.f32.mrf.mxu0
    %v4014 = vadd.f32 %v3945, %v4013
    %v4015 = vpop.f32.mrf.mxu0
    %4016 = vdwg.mxu0
    %v4019 = vunpack.c.l.s4 1966171168
    %v4020 = vunpack.c.0.s8 %v4019
    %v4021 = vlaneseq
    %v4022 = vshrl.u32 %v4021, 7
    %v4023 = vsub.s32 %v4020, %v4022
    %v4024 = vrot.slane %v4014, %v4023
    %v4025 = vcombine.high %v4024, %v4024
    %v4027 = vunpack.c.l.s4 1966171168
    %v4028 = vunpack.c.0.s8 %v4027
    %v4029 = vlaneseq
    %v4030 = vshrl.u32 %v4029, 7
    %v4031 = vsub.s32 %v4028, %v4030
    %v4032 = vrot.slane %v4024, %v4031
    %v4034 = vunpack.c.l.s4 1966171168
    %v4035 = vunpack.c.0.s8 %v4034
    %v4036 = vlaneseq
    %v4037 = vshrl.u32 %v4036, 7
    %v4038 = vsub.s32 %v4035, %v4037
    %v4039 = vrot.slane %v4025, %v4038
    %s4040 = scalar_lea.vmem %s4, 160
    %v4041 = vld [vmem:[%s4040] sm:$0xff]
    %v4042 = vld [vmem:[%s4040 + $0x8] sm:$0xff]
    %v4043 = vld [vmem:[%s4040 + $0x10] sm:$0xff]
    %v4044 = vld [vmem:[%s4040 + $0x18] sm:$0xff]
    %4045 = vrot.lane.b32.xlu0 %v3450, 88
    %v4046 = vpop.permute.xlu0 %4045
    %4048 = vmatprep.subr.mxu0 0.0
    %4049 = vmatpush1.msra.mxu0 0.0
    %4050 = vmatprep.subr.mxu0 0.0
    %4051 = vmatpush1.msra.mxu0 0.0
    %4052 = vmatprep.subr.mxu0 0.0
    %4053 = vmatpush1.msra.mxu0 0.0
    %4054 = vmatprep.subr.mxu0 0.0
    %4055 = vmatpush1.msra.mxu0 0.0
    %4056 = vmatprep.subr.mxu0 0.0
    %4057 = vmatpush1.msra.mxu0 0.0
    %4058 = vmatprep.subr.mxu0 0.0
    %4059 = vmatpush1.msra.mxu0 0.0
    %4060 = vmatprep.subr.mxu0 0.0
    %4061 = vmatpush1.msra.mxu0 0.0
    %4062 = vmatprep.subr.mxu0 0.0
    %4063 = vmatpush1.msra.mxu0 0.0
    %4064 = vmatprep.subr.mxu0 0.0
    %4065 = vmatpush1.msra.mxu0 0.0
    %4066 = vmatprep.subr.mxu0 0.0
    %4067 = vmatpush1.msra.mxu0 0.0
    %4068 = vmatprep.subr.mxu0 0.0
    %4069 = vmatpush1.msra.mxu0 0.0
    %4070 = vmatprep.subr.mxu0 0.0
    %4071 = vmatpush1.msra.mxu0 0.0
    %4072 = vmatprep.subr.mxu0 0.0
    %4073 = vmatpush1.msra.mxu0 %v4044
    %4074 = vmatprep.subr.mxu0 0.0
    %4075 = vmatpush1.msra.mxu0 %v4043
    %4076 = vmatprep.subr.mxu0 0.0
    %4077 = vmatpush1.msra.mxu0 %v4042
    %4078 = vmatprep.subr.mxu0 0.0
    %4079 = vmatpush1.msra.mxu0 %v4041
    %4080 = vmatprep.subr.mxu0 0.0
    %4081 = vmatpush2.msra.mxu0 0.0
    %4082 = vmatprep.subr.mxu0 0.0
    %4083 = vmatpush2.msra.mxu0 0.0
    %4084 = vmatprep.subr.mxu0 0.0
    %4085 = vmatpush2.msra.mxu0 0.0
    %4086 = vmatprep.subr.mxu0 0.0
    %4087 = vmatpush2.msra.mxu0 0.0
    %4088 = vmatprep.subr.mxu0 0.0
    %4089 = vmatpush2.msra.mxu0 0.0
    %4090 = vmatprep.subr.mxu0 0.0
    %4091 = vmatpush2.msra.mxu0 0.0
    %4092 = vmatprep.subr.mxu0 0.0
    %4093 = vmatpush2.msra.mxu0 0.0
    %4094 = vmatprep.subr.mxu0 0.0
    %4095 = vmatpush2.msra.mxu0 0.0
    %4096 = vmatprep.subr.mxu0 0.0
    %4097 = vmatpush2.msra.mxu0 0.0
    %4098 = vmatprep.subr.mxu0 0.0
    %4099 = vmatpush2.msra.mxu0 0.0
    %4100 = vmatprep.subr.mxu0 0.0
    %4101 = vmatpush2.msra.mxu0 0.0
    %4102 = vmatprep.subr.mxu0 0.0
    %4103 = vmatpush2.msra.mxu0 0.0
    %4104 = vmatprep.subr.mxu0 0.0
    %4105 = vmatpush2.msra.mxu0 0.0
    %4106 = vmatprep.subr.mxu0 0.0
    %4107 = vmatpush2.msra.mxu0 0.0
    %4108 = vmatprep.subr.mxu0 0.0
    %4109 = vmatpush2.msra.mxu0 0.0
    %4110 = vmatprep.subr.mxu0 0.0
    %4111 = vmatpush2.msra.mxu0 0.0
    %4112 = vmatprep.mubr.f32.mxu0 0.0
    %4113 = vmatmul.mubr.f32.gmra.mxu0 %v3455
    %v4114 = vpop.f32.mrf.mxu0
    %v4115 = vadd.f32 %v4046, %v4114
    %v4116 = vpop.f32.mrf.mxu0
    %4117 = vmatprep.mubr.f32.mxu0 0.0
    %4118 = vmatmul.mubr.f32.gmra.mxu0 %v3458
    %v4119 = vpop.f32.mrf.mxu0
    %v4120 = vadd.f32 %v4046, %v4119
    %v4121 = vpop.f32.mrf.mxu0
    %4122 = vdwg.mxu0
    %s4123 = scalar_lea.vmem %s5, 160
    %v4124 = vld [vmem:[%s4123] sm:$0xff]
    %v4125 = vld [vmem:[%s4123 + $0x8] sm:$0xff]
    %v4126 = vld [vmem:[%s4123 + $0x10] sm:$0xff]
    %v4127 = vld [vmem:[%s4123 + $0x18] sm:$0xff]
    %4128 = vrot.lane.b32.xlu0 %v3450, 56
    %v4129 = vpop.permute.xlu0 %4128
    %4131 = vmatprep.subr.mxu0 0.0
    %4132 = vmatpush1.msra.mxu0 0.0
    %4133 = vmatprep.subr.mxu0 0.0
    %4134 = vmatpush1.msra.mxu0 0.0
    %4135 = vmatprep.subr.mxu0 0.0
    %4136 = vmatpush1.msra.mxu0 0.0
    %4137 = vmatprep.subr.mxu0 0.0
    %4138 = vmatpush1.msra.mxu0 0.0
    %4139 = vmatprep.subr.mxu0 0.0
    %4140 = vmatpush1.msra.mxu0 0.0
    %4141 = vmatprep.subr.mxu0 0.0
    %4142 = vmatpush1.msra.mxu0 0.0
    %4143 = vmatprep.subr.mxu0 0.0
    %4144 = vmatpush1.msra.mxu0 0.0
    %4145 = vmatprep.subr.mxu0 0.0
    %4146 = vmatpush1.msra.mxu0 0.0
    %4147 = vmatprep.subr.mxu0 0.0
    %4148 = vmatpush1.msra.mxu0 0.0
    %4149 = vmatprep.subr.mxu0 0.0
    %4150 = vmatpush1.msra.mxu0 0.0
    %4151 = vmatprep.subr.mxu0 0.0
    %4152 = vmatpush1.msra.mxu0 0.0
    %4153 = vmatprep.subr.mxu0 0.0
    %4154 = vmatpush1.msra.mxu0 0.0
    %4155 = vmatprep.subr.mxu0 0.0
    %4156 = vmatpush1.msra.mxu0 %v4127
    %4157 = vmatprep.subr.mxu0 0.0
    %4158 = vmatpush1.msra.mxu0 %v4126
    %4159 = vmatprep.subr.mxu0 0.0
    %4160 = vmatpush1.msra.mxu0 %v4125
    %4161 = vmatprep.subr.mxu0 0.0
    %4162 = vmatpush1.msra.mxu0 %v4124
    %4163 = vmatprep.subr.mxu0 0.0
    %4164 = vmatpush2.msra.mxu0 0.0
    %4165 = vmatprep.subr.mxu0 0.0
    %4166 = vmatpush2.msra.mxu0 0.0
    %4167 = vmatprep.subr.mxu0 0.0
    %4168 = vmatpush2.msra.mxu0 0.0
    %4169 = vmatprep.subr.mxu0 0.0
    %4170 = vmatpush2.msra.mxu0 0.0
    %4171 = vmatprep.subr.mxu0 0.0
    %4172 = vmatpush2.msra.mxu0 0.0
    %4173 = vmatprep.subr.mxu0 0.0
    %4174 = vmatpush2.msra.mxu0 0.0
    %4175 = vmatprep.subr.mxu0 0.0
    %4176 = vmatpush2.msra.mxu0 0.0
    %4177 = vmatprep.subr.mxu0 0.0
    %4178 = vmatpush2.msra.mxu0 0.0
    %4179 = vmatprep.subr.mxu0 0.0
    %4180 = vmatpush2.msra.mxu0 0.0
    %4181 = vmatprep.subr.mxu0 0.0
    %4182 = vmatpush2.msra.mxu0 0.0
    %4183 = vmatprep.subr.mxu0 0.0
    %4184 = vmatpush2.msra.mxu0 0.0
    %4185 = vmatprep.subr.mxu0 0.0
    %4186 = vmatpush2.msra.mxu0 0.0
    %4187 = vmatprep.subr.mxu0 0.0
    %4188 = vmatpush2.msra.mxu0 0.0
    %4189 = vmatprep.subr.mxu0 0.0
    %4190 = vmatpush2.msra.mxu0 0.0
    %4191 = vmatprep.subr.mxu0 0.0
    %4192 = vmatpush2.msra.mxu0 0.0
    %4193 = vmatprep.subr.mxu0 0.0
    %4194 = vmatpush2.msra.mxu0 0.0
    %4195 = vmatprep.mubr.f32.mxu0 0.0
    %4196 = vmatmul.mubr.f32.gmra.mxu0 %v3455
    %v4197 = vpop.f32.mrf.mxu0
    %v4198 = vadd.f32 %v4129, %v4197
    %v4199 = vpop.f32.mrf.mxu0
    %4200 = vmatprep.mubr.f32.mxu0 0.0
    %4201 = vmatmul.mubr.f32.gmra.mxu0 %v3458
    %v4202 = vpop.f32.mrf.mxu0
    %v4203 = vadd.f32 %v4129, %v4202
    %v4204 = vpop.f32.mrf.mxu0
    %4205 = vdwg.mxu0
    %v4206 = vsel %vm597, %v4032, 0
    %v4209 = vsel %vm597, %v4115, 0
    %4211 = vmatprep.subr.mxu0 0.0
    %4212 = vmatpush1.xpose.msra.mxu0 0.0
    %4213 = vmatprep.subr.mxu0 0.0
    %4214 = vmatpush1.xpose.msra.mxu0 0.0
    %4215 = vmatprep.subr.mxu0 0.0
    %4216 = vmatpush1.xpose.msra.mxu0 0.0
    %4217 = vmatprep.subr.mxu0 0.0
    %4218 = vmatpush1.xpose.msra.mxu0 0.0
    %4219 = vmatprep.subr.mxu0 0.0
    %4220 = vmatpush1.xpose.msra.mxu0 0.0
    %4221 = vmatprep.subr.mxu0 0.0
    %4222 = vmatpush1.xpose.msra.mxu0 0.0
    %4223 = vmatprep.subr.mxu0 0.0
    %4224 = vmatpush1.xpose.msra.mxu0 0.0
    %4225 = vmatprep.subr.mxu0 0.0
    %4226 = vmatpush1.xpose.msra.mxu0 0.0
    %4227 = vmatprep.subr.mxu0 0.0
    %4228 = vmatpush1.xpose.msra.mxu0 0.0
    %4229 = vmatprep.subr.mxu0 0.0
    %4230 = vmatpush1.xpose.msra.mxu0 0.0
    %4231 = vmatprep.subr.mxu0 0.0
    %4232 = vmatpush1.xpose.msra.mxu0 0.0
    %4233 = vmatprep.subr.mxu0 0.0
    %4234 = vmatpush1.xpose.msra.mxu0 0.0
    %4235 = vmatprep.subr.mxu0 0.0
    %4236 = vmatpush1.xpose.msra.mxu0 0.0
    %4237 = vmatprep.subr.mxu0 0.0
    %4238 = vmatpush1.xpose.msra.mxu0 0.0
    %4239 = vmatprep.subr.mxu0 0.0
    %4240 = vmatpush1.xpose.msra.mxu0 0.0
    %4241 = vmatprep.subr.mxu0 0.0
    %4242 = vmatpush1.xpose.msra.mxu0 %v4209
    %4243 = vmatprep.subr.mxu0 0.0
    %4244 = vmatpush2.xpose.msra.mxu0 0.0
    %4245 = vmatprep.subr.mxu0 0.0
    %4246 = vmatpush2.xpose.msra.mxu0 0.0
    %4247 = vmatprep.subr.mxu0 0.0
    %4248 = vmatpush2.xpose.msra.mxu0 0.0
    %4249 = vmatprep.subr.mxu0 0.0
    %4250 = vmatpush2.xpose.msra.mxu0 0.0
    %4251 = vmatprep.subr.mxu0 0.0
    %4252 = vmatpush2.xpose.msra.mxu0 0.0
    %4253 = vmatprep.subr.mxu0 0.0
    %4254 = vmatpush2.xpose.msra.mxu0 0.0
    %4255 = vmatprep.subr.mxu0 0.0
    %4256 = vmatpush2.xpose.msra.mxu0 0.0
    %4257 = vmatprep.subr.mxu0 0.0
    %4258 = vmatpush2.xpose.msra.mxu0 0.0
    %4259 = vmatprep.subr.mxu0 0.0
    %4260 = vmatpush2.xpose.msra.mxu0 0.0
    %4261 = vmatprep.subr.mxu0 0.0
    %4262 = vmatpush2.xpose.msra.mxu0 0.0
    %4263 = vmatprep.subr.mxu0 0.0
    %4264 = vmatpush2.xpose.msra.mxu0 0.0
    %4265 = vmatprep.subr.mxu0 0.0
    %4266 = vmatpush2.xpose.msra.mxu0 0.0
    %4267 = vmatprep.subr.mxu0 0.0
    %4268 = vmatpush2.xpose.msra.mxu0 0.0
    %4269 = vmatprep.subr.mxu0 0.0
    %4270 = vmatpush2.xpose.msra.mxu0 0.0
    %4271 = vmatprep.subr.mxu0 0.0
    %4272 = vmatpush2.xpose.msra.mxu0 0.0
    %4273 = vmatprep.subr.mxu0 0.0
    %4274 = vmatpush2.xpose.msra.mxu0 0.0
    %4275 = vmatprep.mubr.f32.mxu0 0.0
    %4276 = vmatmul.mubr.f32.gmra.mxu0 %v4206
    %v4277 = vpop.f32.mrf.mxu0
    %v4278 = vadd.f32 %v342, %v4277
    %v4279 = vpop.f32.mrf.mxu0
    %4280 = vdwg.mxu0
    %v4281 = vsel %vm597, %v4039, 0
    %v4284 = vsel %vm597, %v4120, 0
    %4286 = vmatprep.subr.mxu0 0.0
    %4287 = vmatpush1.xpose.msra.mxu0 0.0
    %4288 = vmatprep.subr.mxu0 0.0
    %4289 = vmatpush1.xpose.msra.mxu0 0.0
    %4290 = vmatprep.subr.mxu0 0.0
    %4291 = vmatpush1.xpose.msra.mxu0 0.0
    %4292 = vmatprep.subr.mxu0 0.0
    %4293 = vmatpush1.xpose.msra.mxu0 0.0
    %4294 = vmatprep.subr.mxu0 0.0
    %4295 = vmatpush1.xpose.msra.mxu0 0.0
    %4296 = vmatprep.subr.mxu0 0.0
    %4297 = vmatpush1.xpose.msra.mxu0 0.0
    %4298 = vmatprep.subr.mxu0 0.0
    %4299 = vmatpush1.xpose.msra.mxu0 0.0
    %4300 = vmatprep.subr.mxu0 0.0
    %4301 = vmatpush1.xpose.msra.mxu0 0.0
    %4302 = vmatprep.subr.mxu0 0.0
    %4303 = vmatpush1.xpose.msra.mxu0 0.0
    %4304 = vmatprep.subr.mxu0 0.0
    %4305 = vmatpush1.xpose.msra.mxu0 0.0
    %4306 = vmatprep.subr.mxu0 0.0
    %4307 = vmatpush1.xpose.msra.mxu0 0.0
    %4308 = vmatprep.subr.mxu0 0.0
    %4309 = vmatpush1.xpose.msra.mxu0 0.0
    %4310 = vmatprep.subr.mxu0 0.0
    %4311 = vmatpush1.xpose.msra.mxu0 0.0
    %4312 = vmatprep.subr.mxu0 0.0
    %4313 = vmatpush1.xpose.msra.mxu0 0.0
    %4314 = vmatprep.subr.mxu0 0.0
    %4315 = vmatpush1.xpose.msra.mxu0 0.0
    %4316 = vmatprep.subr.mxu0 0.0
    %4317 = vmatpush1.xpose.msra.mxu0 %v4284
    %4318 = vmatprep.subr.mxu0 0.0
    %4319 = vmatpush2.xpose.msra.mxu0 0.0
    %4320 = vmatprep.subr.mxu0 0.0
    %4321 = vmatpush2.xpose.msra.mxu0 0.0
    %4322 = vmatprep.subr.mxu0 0.0
    %4323 = vmatpush2.xpose.msra.mxu0 0.0
    %4324 = vmatprep.subr.mxu0 0.0
    %4325 = vmatpush2.xpose.msra.mxu0 0.0
    %4326 = vmatprep.subr.mxu0 0.0
    %4327 = vmatpush2.xpose.msra.mxu0 0.0
    %4328 = vmatprep.subr.mxu0 0.0
    %4329 = vmatpush2.xpose.msra.mxu0 0.0
    %4330 = vmatprep.subr.mxu0 0.0
    %4331 = vmatpush2.xpose.msra.mxu0 0.0
    %4332 = vmatprep.subr.mxu0 0.0
    %4333 = vmatpush2.xpose.msra.mxu0 0.0
    %4334 = vmatprep.subr.mxu0 0.0
    %4335 = vmatpush2.xpose.msra.mxu0 0.0
    %4336 = vmatprep.subr.mxu0 0.0
    %4337 = vmatpush2.xpose.msra.mxu0 0.0
    %4338 = vmatprep.subr.mxu0 0.0
    %4339 = vmatpush2.xpose.msra.mxu0 0.0
    %4340 = vmatprep.subr.mxu0 0.0
    %4341 = vmatpush2.xpose.msra.mxu0 0.0
    %4342 = vmatprep.subr.mxu0 0.0
    %4343 = vmatpush2.xpose.msra.mxu0 0.0
    %4344 = vmatprep.subr.mxu0 0.0
    %4345 = vmatpush2.xpose.msra.mxu0 0.0
    %4346 = vmatprep.subr.mxu0 0.0
    %4347 = vmatpush2.xpose.msra.mxu0 0.0
    %4348 = vmatprep.subr.mxu0 0.0
    %4349 = vmatpush2.xpose.msra.mxu0 0.0
    %4350 = vmatprep.mubr.f32.mxu0 0.0
    %4351 = vmatmul.mubr.f32.gmra.mxu0 %v4281
    %v4352 = vpop.f32.mrf.mxu0
    %v4353 = vadd.f32 %v342, %v4352
    %v4354 = vpop.f32.mrf.mxu0
    %4355 = vdwg.mxu0
    %v4356 = vsel %vm3768, %v4278, -inf
    %4357 = vmax.xlane.f32.xlu0 %v4356
    %v4358 = vpop.xlane.xlu0 %4357
    %v4359 = vsel %vm3768, %v4353, -inf
    %4360 = vmax.xlane.f32.xlu0 %v4359
    %v4361 = vpop.xlane.xlu0 %4360
    %v4362 = vsub.f32 %v4278, %v4358
    %v4363 = vsub.f32 %v4353, %v4361
    %v4364 = vmul.f32 %v4362, 1.442695
    %v4365 = vpow.pop %v4364
    %v4366 = vmul.f32 %v4363, 1.442695
    %v4367 = vpow.pop %v4366
    %v4368 = vsel %vm3768, %v4365, 0.0
    %4369 = vadd.xlane.f32.xlu0 %v4368
    %v4370 = vpop.xlane.xlu0 %4369
    %v4371 = vsel %vm3768, %v4367, 0.0
    %4372 = vadd.xlane.f32.xlu0 %v4371
    %v4373 = vpop.xlane.xlu0 %4372
    %v4374 = vrcp.pop %v4370
    %v4375 = vrcp.pop %v4373
    %v4376 = vmul.f32 %v4365, %v4374
    %v4377 = vmul.f32 %v4367, %v4375
    %v4379 = vsel %vm597, %v4376, 0
    %4381 = vmatprep.subr.mxu0 0.0
    %4382 = vmatpush1.msra.mxu0 0.0
    %4383 = vmatprep.subr.mxu0 0.0
    %4384 = vmatpush1.msra.mxu0 0.0
    %4385 = vmatprep.subr.mxu0 0.0
    %4386 = vmatpush1.msra.mxu0 0.0
    %4387 = vmatprep.subr.mxu0 0.0
    %4388 = vmatpush1.msra.mxu0 0.0
    %4389 = vmatprep.subr.mxu0 0.0
    %4390 = vmatpush1.msra.mxu0 0.0
    %4391 = vmatprep.subr.mxu0 0.0
    %4392 = vmatpush1.msra.mxu0 0.0
    %4393 = vmatprep.subr.mxu0 0.0
    %4394 = vmatpush1.msra.mxu0 0.0
    %4395 = vmatprep.subr.mxu0 0.0
    %4396 = vmatpush1.msra.mxu0 0.0
    %4397 = vmatprep.subr.mxu0 0.0
    %4398 = vmatpush1.msra.mxu0 0.0
    %4399 = vmatprep.subr.mxu0 0.0
    %4400 = vmatpush1.msra.mxu0 0.0
    %4401 = vmatprep.subr.mxu0 0.0
    %4402 = vmatpush1.msra.mxu0 0.0
    %4403 = vmatprep.subr.mxu0 0.0
    %4404 = vmatpush1.msra.mxu0 0.0
    %4405 = vmatprep.subr.mxu0 0.0
    %4406 = vmatpush1.msra.mxu0 0.0
    %4407 = vmatprep.subr.mxu0 0.0
    %4408 = vmatpush1.msra.mxu0 0.0
    %4409 = vmatprep.subr.mxu0 0.0
    %4410 = vmatpush1.msra.mxu0 0.0
    %4411 = vmatprep.subr.mxu0 0.0
    %4412 = vmatpush1.msra.mxu0 %v4198
    %4413 = vmatprep.subr.mxu0 0.0
    %4414 = vmatpush2.msra.mxu0 0.0
    %4415 = vmatprep.subr.mxu0 0.0
    %4416 = vmatpush2.msra.mxu0 0.0
    %4417 = vmatprep.subr.mxu0 0.0
    %4418 = vmatpush2.msra.mxu0 0.0
    %4419 = vmatprep.subr.mxu0 0.0
    %4420 = vmatpush2.msra.mxu0 0.0
    %4421 = vmatprep.subr.mxu0 0.0
    %4422 = vmatpush2.msra.mxu0 0.0
    %4423 = vmatprep.subr.mxu0 0.0
    %4424 = vmatpush2.msra.mxu0 0.0
    %4425 = vmatprep.subr.mxu0 0.0
    %4426 = vmatpush2.msra.mxu0 0.0
    %4427 = vmatprep.subr.mxu0 0.0
    %4428 = vmatpush2.msra.mxu0 0.0
    %4429 = vmatprep.subr.mxu0 0.0
    %4430 = vmatpush2.msra.mxu0 0.0
    %4431 = vmatprep.subr.mxu0 0.0
    %4432 = vmatpush2.msra.mxu0 0.0
    %4433 = vmatprep.subr.mxu0 0.0
    %4434 = vmatpush2.msra.mxu0 0.0
    %4435 = vmatprep.subr.mxu0 0.0
    %4436 = vmatpush2.msra.mxu0 0.0
    %4437 = vmatprep.subr.mxu0 0.0
    %4438 = vmatpush2.msra.mxu0 0.0
    %4439 = vmatprep.subr.mxu0 0.0
    %4440 = vmatpush2.msra.mxu0 0.0
    %4441 = vmatprep.subr.mxu0 0.0
    %4442 = vmatpush2.msra.mxu0 0.0
    %4443 = vmatprep.subr.mxu0 0.0
    %4444 = vmatpush2.msra.mxu0 0.0
    %4445 = vmatprep.mubr.f32.mxu0 0.0
    %4446 = vmatmul.mubr.f32.gmra.mxu0 %v4379
    %v4447 = vpop.f32.mrf.mxu0
    %v4448 = vadd.f32 0.0, %v4447
    %v4449 = vpop.f32.mrf.mxu0
    %4450 = vdwg.mxu0
    %v4452 = vsel %vm597, %v4377, 0
    %4454 = vmatprep.subr.mxu0 0.0
    %4455 = vmatpush1.msra.mxu0 0.0
    %4456 = vmatprep.subr.mxu0 0.0
    %4457 = vmatpush1.msra.mxu0 0.0
    %4458 = vmatprep.subr.mxu0 0.0
    %4459 = vmatpush1.msra.mxu0 0.0
    %4460 = vmatprep.subr.mxu0 0.0
    %4461 = vmatpush1.msra.mxu0 0.0
    %4462 = vmatprep.subr.mxu0 0.0
    %4463 = vmatpush1.msra.mxu0 0.0
    %4464 = vmatprep.subr.mxu0 0.0
    %4465 = vmatpush1.msra.mxu0 0.0
    %4466 = vmatprep.subr.mxu0 0.0
    %4467 = vmatpush1.msra.mxu0 0.0
    %4468 = vmatprep.subr.mxu0 0.0
    %4469 = vmatpush1.msra.mxu0 0.0
    %4470 = vmatprep.subr.mxu0 0.0
    %4471 = vmatpush1.msra.mxu0 0.0
    %4472 = vmatprep.subr.mxu0 0.0
    %4473 = vmatpush1.msra.mxu0 0.0
    %4474 = vmatprep.subr.mxu0 0.0
    %4475 = vmatpush1.msra.mxu0 0.0
    %4476 = vmatprep.subr.mxu0 0.0
    %4477 = vmatpush1.msra.mxu0 0.0
    %4478 = vmatprep.subr.mxu0 0.0
    %4479 = vmatpush1.msra.mxu0 0.0
    %4480 = vmatprep.subr.mxu0 0.0
    %4481 = vmatpush1.msra.mxu0 0.0
    %4482 = vmatprep.subr.mxu0 0.0
    %4483 = vmatpush1.msra.mxu0 0.0
    %4484 = vmatprep.subr.mxu0 0.0
    %4485 = vmatpush1.msra.mxu0 %v4203
    %4486 = vmatprep.subr.mxu0 0.0
    %4487 = vmatpush2.msra.mxu0 0.0
    %4488 = vmatprep.subr.mxu0 0.0
    %4489 = vmatpush2.msra.mxu0 0.0
    %4490 = vmatprep.subr.mxu0 0.0
    %4491 = vmatpush2.msra.mxu0 0.0
    %4492 = vmatprep.subr.mxu0 0.0
    %4493 = vmatpush2.msra.mxu0 0.0
    %4494 = vmatprep.subr.mxu0 0.0
    %4495 = vmatpush2.msra.mxu0 0.0
    %4496 = vmatprep.subr.mxu0 0.0
    %4497 = vmatpush2.msra.mxu0 0.0
    %4498 = vmatprep.subr.mxu0 0.0
    %4499 = vmatpush2.msra.mxu0 0.0
    %4500 = vmatprep.subr.mxu0 0.0
    %4501 = vmatpush2.msra.mxu0 0.0
    %4502 = vmatprep.subr.mxu0 0.0
    %4503 = vmatpush2.msra.mxu0 0.0
    %4504 = vmatprep.subr.mxu0 0.0
    %4505 = vmatpush2.msra.mxu0 0.0
    %4506 = vmatprep.subr.mxu0 0.0
    %4507 = vmatpush2.msra.mxu0 0.0
    %4508 = vmatprep.subr.mxu0 0.0
    %4509 = vmatpush2.msra.mxu0 0.0
    %4510 = vmatprep.subr.mxu0 0.0
    %4511 = vmatpush2.msra.mxu0 0.0
    %4512 = vmatprep.subr.mxu0 0.0
    %4513 = vmatpush2.msra.mxu0 0.0
    %4514 = vmatprep.subr.mxu0 0.0
    %4515 = vmatpush2.msra.mxu0 0.0
    %4516 = vmatprep.subr.mxu0 0.0
    %4517 = vmatpush2.msra.mxu0 0.0
    %4518 = vmatprep.mubr.f32.mxu0 0.0
    %4519 = vmatmul.mubr.f32.gmra.mxu0 %v4452
    %v4520 = vpop.f32.mrf.mxu0
    %v4521 = vadd.f32 0.0, %v4520
    %v4522 = vpop.f32.mrf.mxu0
    %4523 = vdwg.mxu0
    %s4524 = scalar_lea.vmem %s6, 40
    %v4525 = vld [vmem:[%s4524] sm:$0xff]
    %v4528 = vrot.slane %v4521, 7
    %v4529 = vsel %vm3329, %v4528, %v4448
    %v4530 = vsel %vm597, %v4529, 0
    %4532 = vmatprep.subr.mxu0 0.0
    %4533 = vmatpush1.msra.mxu0 0.0
    %4534 = vmatprep.subr.mxu0 0.0
    %4535 = vmatpush1.msra.mxu0 0.0
    %4536 = vmatprep.subr.mxu0 0.0
    %4537 = vmatpush1.msra.mxu0 0.0
    %4538 = vmatprep.subr.mxu0 0.0
    %4539 = vmatpush1.msra.mxu0 0.0
    %4540 = vmatprep.subr.mxu0 0.0
    %4541 = vmatpush1.msra.mxu0 0.0
    %4542 = vmatprep.subr.mxu0 0.0
    %4543 = vmatpush1.msra.mxu0 0.0
    %4544 = vmatprep.subr.mxu0 0.0
    %4545 = vmatpush1.msra.mxu0 0.0
    %4546 = vmatprep.subr.mxu0 0.0
    %4547 = vmatpush1.msra.mxu0 0.0
    %4548 = vmatprep.subr.mxu0 0.0
    %4549 = vmatpush1.msra.mxu0 0.0
    %4550 = vmatprep.subr.mxu0 0.0
    %4551 = vmatpush1.msra.mxu0 0.0
    %4552 = vmatprep.subr.mxu0 0.0
    %4553 = vmatpush1.msra.mxu0 0.0
    %4554 = vmatprep.subr.mxu0 0.0
    %4555 = vmatpush1.msra.mxu0 0.0
    %4556 = vmatprep.subr.mxu0 0.0
    %4557 = vmatpush1.msra.mxu0 0.0
    %4558 = vmatprep.subr.mxu0 0.0
    %4559 = vmatpush1.msra.mxu0 0.0
    %4560 = vmatprep.subr.mxu0 0.0
    %4561 = vmatpush1.msra.mxu0 0.0
    %4562 = vmatprep.subr.mxu0 0.0
    %4563 = vmatpush1.msra.mxu0 %v4525
    %4564 = vmatprep.subr.mxu0 0.0
    %4565 = vmatpush2.msra.mxu0 0.0
    %4566 = vmatprep.subr.mxu0 0.0
    %4567 = vmatpush2.msra.mxu0 0.0
    %4568 = vmatprep.subr.mxu0 0.0
    %4569 = vmatpush2.msra.mxu0 0.0
    %4570 = vmatprep.subr.mxu0 0.0
    %4571 = vmatpush2.msra.mxu0 0.0
    %4572 = vmatprep.subr.mxu0 0.0
    %4573 = vmatpush2.msra.mxu0 0.0
    %4574 = vmatprep.subr.mxu0 0.0
    %4575 = vmatpush2.msra.mxu0 0.0
    %4576 = vmatprep.subr.mxu0 0.0
    %4577 = vmatpush2.msra.mxu0 0.0
    %4578 = vmatprep.subr.mxu0 0.0
    %4579 = vmatpush2.msra.mxu0 0.0
    %4580 = vmatprep.subr.mxu0 0.0
    %4581 = vmatpush2.msra.mxu0 0.0
    %4582 = vmatprep.subr.mxu0 0.0
    %4583 = vmatpush2.msra.mxu0 0.0
    %4584 = vmatprep.subr.mxu0 0.0
    %4585 = vmatpush2.msra.mxu0 0.0
    %4586 = vmatprep.subr.mxu0 0.0
    %4587 = vmatpush2.msra.mxu0 0.0
    %4588 = vmatprep.subr.mxu0 0.0
    %4589 = vmatpush2.msra.mxu0 0.0
    %4590 = vmatprep.subr.mxu0 0.0
    %4591 = vmatpush2.msra.mxu0 0.0
    %4592 = vmatprep.subr.mxu0 0.0
    %4593 = vmatpush2.msra.mxu0 0.0
    %4594 = vmatprep.subr.mxu0 0.0
    %4595 = vmatpush2.msra.mxu0 0.0
    %4596 = vmatprep.mubr.f32.mxu0 0.0
    %4597 = vmatmul.mubr.f32.gmra.mxu0 %v4530
    %v4598 = vpop.f32.mrf.mxu0
    %v4599 = vadd.f32 0.0, %v4598
    %v4600 = vpop.f32.mrf.mxu0
    %4601 = vdwg.mxu0
    %v4604 = vrot.slane %v3934, 7
    %v4605 = vsel %vm3329, %v4604, %v3861
    %v4606 = vsel %vm597, %v4605, 0
    %4608 = vmatprep.subr.mxu0 0.0
    %4609 = vmatpush1.msra.mxu0 0.0
    %4610 = vmatprep.subr.mxu0 0.0
    %4611 = vmatpush1.msra.mxu0 0.0
    %4612 = vmatprep.subr.mxu0 0.0
    %4613 = vmatpush1.msra.mxu0 0.0
    %4614 = vmatprep.subr.mxu0 0.0
    %4615 = vmatpush1.msra.mxu0 0.0
    %4616 = vmatprep.subr.mxu0 0.0
    %4617 = vmatpush1.msra.mxu0 0.0
    %4618 = vmatprep.subr.mxu0 0.0
    %4619 = vmatpush1.msra.mxu0 0.0
    %4620 = vmatprep.subr.mxu0 0.0
    %4621 = vmatpush1.msra.mxu0 0.0
    %4622 = vmatprep.subr.mxu0 0.0
    %4623 = vmatpush1.msra.mxu0 0.0
    %4624 = vmatprep.subr.mxu0 0.0
    %4625 = vmatpush1.msra.mxu0 0.0
    %4626 = vmatprep.subr.mxu0 0.0
    %4627 = vmatpush1.msra.mxu0 0.0
    %4628 = vmatprep.subr.mxu0 0.0
    %4629 = vmatpush1.msra.mxu0 0.0
    %4630 = vmatprep.subr.mxu0 0.0
    %4631 = vmatpush1.msra.mxu0 0.0
    %4632 = vmatprep.subr.mxu0 0.0
    %4633 = vmatpush1.msra.mxu0 0.0
    %4634 = vmatprep.subr.mxu0 0.0
    %4635 = vmatpush1.msra.mxu0 0.0
    %4636 = vmatprep.subr.mxu0 0.0
    %4637 = vmatpush1.msra.mxu0 0.0
    %4638 = vmatprep.subr.mxu0 0.0
    %4639 = vmatpush1.msra.mxu0 %v3938
    %4640 = vmatprep.subr.mxu0 0.0
    %4641 = vmatpush2.msra.mxu0 0.0
    %4642 = vmatprep.subr.mxu0 0.0
    %4643 = vmatpush2.msra.mxu0 0.0
    %4644 = vmatprep.subr.mxu0 0.0
    %4645 = vmatpush2.msra.mxu0 0.0
    %4646 = vmatprep.subr.mxu0 0.0
    %4647 = vmatpush2.msra.mxu0 0.0
    %4648 = vmatprep.subr.mxu0 0.0
    %4649 = vmatpush2.msra.mxu0 0.0
    %4650 = vmatprep.subr.mxu0 0.0
    %4651 = vmatpush2.msra.mxu0 0.0
    %4652 = vmatprep.subr.mxu0 0.0
    %4653 = vmatpush2.msra.mxu0 0.0
    %4654 = vmatprep.subr.mxu0 0.0
    %4655 = vmatpush2.msra.mxu0 0.0
    %4656 = vmatprep.subr.mxu0 0.0
    %4657 = vmatpush2.msra.mxu0 0.0
    %4658 = vmatprep.subr.mxu0 0.0
    %4659 = vmatpush2.msra.mxu0 0.0
    %4660 = vmatprep.subr.mxu0 0.0
    %4661 = vmatpush2.msra.mxu0 0.0
    %4662 = vmatprep.subr.mxu0 0.0
    %4663 = vmatpush2.msra.mxu0 0.0
    %4664 = vmatprep.subr.mxu0 0.0
    %4665 = vmatpush2.msra.mxu0 0.0
    %4666 = vmatprep.subr.mxu0 0.0
    %4667 = vmatpush2.msra.mxu0 0.0
    %4668 = vmatprep.subr.mxu0 0.0
    %4669 = vmatpush2.msra.mxu0 0.0
    %4670 = vmatprep.subr.mxu0 0.0
    %4671 = vmatpush2.msra.mxu0 0.0
    %4672 = vmatprep.mubr.f32.mxu0 0.0
    %4673 = vmatmul.mubr.f32.gmra.mxu0 %v4606
    %v4674 = vpop.f32.mrf.mxu0
    %v4675 = vadd.f32 %v4599, %v4674
    %v4676 = vpop.f32.mrf.mxu0
    %4677 = vdwg.mxu0
    %v4680 = vunpack.c.l.s4 1966171168
    %v4681 = vunpack.c.0.s8 %v4680
    %v4682 = vlaneseq
    %v4683 = vshrl.u32 %v4682, 7
    %v4684 = vsub.s32 %v4681, %v4683
    %v4685 = vrot.slane %v4675, %v4684
    %v4686 = vcombine.high %v4685, %v4685
    %v4688 = vunpack.c.l.s4 1966171168
    %v4689 = vunpack.c.0.s8 %v4688
    %v4690 = vlaneseq
    %v4691 = vshrl.u32 %v4690, 7
    %v4692 = vsub.s32 %v4689, %v4691
    %v4693 = vrot.slane %v4685, %v4692
    %v4695 = vunpack.c.l.s4 1966171168
    %v4696 = vunpack.c.0.s8 %v4695
    %v4697 = vlaneseq
    %v4698 = vshrl.u32 %v4697, 7
    %v4699 = vsub.s32 %v4696, %v4698
    %v4700 = vrot.slane %v4686, %v4699
    %s4703 = scalar_lea.vmem %s3, 192
    %v4704 = vld [vmem:[%s4703] sm:$0xff]
    %v4705 = vld [vmem:[%s4703 + $0x8] sm:$0xff]
    %v4706 = vld [vmem:[%s4703 + $0x10] sm:$0xff]
    %v4707 = vld [vmem:[%s4703 + $0x18] sm:$0xff]
    %4708 = vrot.lane.b32.xlu0 %v3345, 112
    %v4709 = vpop.permute.xlu0 %4708
    %4711 = vmatprep.subr.mxu0 0.0
    %4712 = vmatpush1.msra.mxu0 0.0
    %4713 = vmatprep.subr.mxu0 0.0
    %4714 = vmatpush1.msra.mxu0 0.0
    %4715 = vmatprep.subr.mxu0 0.0
    %4716 = vmatpush1.msra.mxu0 0.0
    %4717 = vmatprep.subr.mxu0 0.0
    %4718 = vmatpush1.msra.mxu0 0.0
    %4719 = vmatprep.subr.mxu0 0.0
    %4720 = vmatpush1.msra.mxu0 0.0
    %4721 = vmatprep.subr.mxu0 0.0
    %4722 = vmatpush1.msra.mxu0 0.0
    %4723 = vmatprep.subr.mxu0 0.0
    %4724 = vmatpush1.msra.mxu0 0.0
    %4725 = vmatprep.subr.mxu0 0.0
    %4726 = vmatpush1.msra.mxu0 0.0
    %4727 = vmatprep.subr.mxu0 0.0
    %4728 = vmatpush1.msra.mxu0 0.0
    %4729 = vmatprep.subr.mxu0 0.0
    %4730 = vmatpush1.msra.mxu0 0.0
    %4731 = vmatprep.subr.mxu0 0.0
    %4732 = vmatpush1.msra.mxu0 0.0
    %4733 = vmatprep.subr.mxu0 0.0
    %4734 = vmatpush1.msra.mxu0 0.0
    %4735 = vmatprep.subr.mxu0 0.0
    %4736 = vmatpush1.msra.mxu0 %v4707
    %4737 = vmatprep.subr.mxu0 0.0
    %4738 = vmatpush1.msra.mxu0 %v4706
    %4739 = vmatprep.subr.mxu0 0.0
    %4740 = vmatpush1.msra.mxu0 %v4705
    %4741 = vmatprep.subr.mxu0 0.0
    %4742 = vmatpush1.msra.mxu0 %v4704
    %4743 = vmatprep.subr.mxu0 0.0
    %4744 = vmatpush2.msra.mxu0 0.0
    %4745 = vmatprep.subr.mxu0 0.0
    %4746 = vmatpush2.msra.mxu0 0.0
    %4747 = vmatprep.subr.mxu0 0.0
    %4748 = vmatpush2.msra.mxu0 0.0
    %4749 = vmatprep.subr.mxu0 0.0
    %4750 = vmatpush2.msra.mxu0 0.0
    %4751 = vmatprep.subr.mxu0 0.0
    %4752 = vmatpush2.msra.mxu0 0.0
    %4753 = vmatprep.subr.mxu0 0.0
    %4754 = vmatpush2.msra.mxu0 0.0
    %4755 = vmatprep.subr.mxu0 0.0
    %4756 = vmatpush2.msra.mxu0 0.0
    %4757 = vmatprep.subr.mxu0 0.0
    %4758 = vmatpush2.msra.mxu0 0.0
    %4759 = vmatprep.subr.mxu0 0.0
    %4760 = vmatpush2.msra.mxu0 0.0
    %4761 = vmatprep.subr.mxu0 0.0
    %4762 = vmatpush2.msra.mxu0 0.0
    %4763 = vmatprep.subr.mxu0 0.0
    %4764 = vmatpush2.msra.mxu0 0.0
    %4765 = vmatprep.subr.mxu0 0.0
    %4766 = vmatpush2.msra.mxu0 0.0
    %4767 = vmatprep.subr.mxu0 0.0
    %4768 = vmatpush2.msra.mxu0 0.0
    %4769 = vmatprep.subr.mxu0 0.0
    %4770 = vmatpush2.msra.mxu0 0.0
    %4771 = vmatprep.subr.mxu0 0.0
    %4772 = vmatpush2.msra.mxu0 0.0
    %4773 = vmatprep.subr.mxu0 0.0
    %4774 = vmatpush2.msra.mxu0 0.0
    %4775 = vmatprep.mubr.f32.mxu0 0.0
    %4776 = vmatmul.mubr.f32.gmra.mxu0 %v3347
    %v4777 = vpop.f32.mrf.mxu0
    %v4778 = vadd.f32 %v4709, %v4777
    %v4779 = vpop.f32.mrf.mxu0
    %4780 = vdwg.mxu0
    %v4783 = vunpack.c.l.s4 1966171168
    %v4784 = vunpack.c.0.s8 %v4783
    %v4785 = vlaneseq
    %v4786 = vshrl.u32 %v4785, 7
    %v4787 = vsub.s32 %v4784, %v4786
    %v4788 = vrot.slane %v4778, %v4787
    %v4789 = vcombine.high %v4788, %v4788
    %v4791 = vunpack.c.l.s4 1966171168
    %v4792 = vunpack.c.0.s8 %v4791
    %v4793 = vlaneseq
    %v4794 = vshrl.u32 %v4793, 7
    %v4795 = vsub.s32 %v4792, %v4794
    %v4796 = vrot.slane %v4788, %v4795
    %v4798 = vunpack.c.l.s4 1966171168
    %v4799 = vunpack.c.0.s8 %v4798
    %v4800 = vlaneseq
    %v4801 = vshrl.u32 %v4800, 7
    %v4802 = vsub.s32 %v4799, %v4801
    %v4803 = vrot.slane %v4789, %v4802
    %s4804 = scalar_lea.vmem %s4, 192
    %v4805 = vld [vmem:[%s4804] sm:$0xff]
    %v4806 = vld [vmem:[%s4804 + $0x8] sm:$0xff]
    %v4807 = vld [vmem:[%s4804 + $0x10] sm:$0xff]
    %v4808 = vld [vmem:[%s4804 + $0x18] sm:$0xff]
    %4809 = vrot.lane.b32.xlu0 %v3450, 80
    %v4810 = vpop.permute.xlu0 %4809
    %4812 = vmatprep.subr.mxu0 0.0
    %4813 = vmatpush1.msra.mxu0 0.0
    %4814 = vmatprep.subr.mxu0 0.0
    %4815 = vmatpush1.msra.mxu0 0.0
    %4816 = vmatprep.subr.mxu0 0.0
    %4817 = vmatpush1.msra.mxu0 0.0
    %4818 = vmatprep.subr.mxu0 0.0
    %4819 = vmatpush1.msra.mxu0 0.0
    %4820 = vmatprep.subr.mxu0 0.0
    %4821 = vmatpush1.msra.mxu0 0.0
    %4822 = vmatprep.subr.mxu0 0.0
    %4823 = vmatpush1.msra.mxu0 0.0
    %4824 = vmatprep.subr.mxu0 0.0
    %4825 = vmatpush1.msra.mxu0 0.0
    %4826 = vmatprep.subr.mxu0 0.0
    %4827 = vmatpush1.msra.mxu0 0.0
    %4828 = vmatprep.subr.mxu0 0.0
    %4829 = vmatpush1.msra.mxu0 0.0
    %4830 = vmatprep.subr.mxu0 0.0
    %4831 = vmatpush1.msra.mxu0 0.0
    %4832 = vmatprep.subr.mxu0 0.0
    %4833 = vmatpush1.msra.mxu0 0.0
    %4834 = vmatprep.subr.mxu0 0.0
    %4835 = vmatpush1.msra.mxu0 0.0
    %4836 = vmatprep.subr.mxu0 0.0
    %4837 = vmatpush1.msra.mxu0 %v4808
    %4838 = vmatprep.subr.mxu0 0.0
    %4839 = vmatpush1.msra.mxu0 %v4807
    %4840 = vmatprep.subr.mxu0 0.0
    %4841 = vmatpush1.msra.mxu0 %v4806
    %4842 = vmatprep.subr.mxu0 0.0
    %4843 = vmatpush1.msra.mxu0 %v4805
    %4844 = vmatprep.subr.mxu0 0.0
    %4845 = vmatpush2.msra.mxu0 0.0
    %4846 = vmatprep.subr.mxu0 0.0
    %4847 = vmatpush2.msra.mxu0 0.0
    %4848 = vmatprep.subr.mxu0 0.0
    %4849 = vmatpush2.msra.mxu0 0.0
    %4850 = vmatprep.subr.mxu0 0.0
    %4851 = vmatpush2.msra.mxu0 0.0
    %4852 = vmatprep.subr.mxu0 0.0
    %4853 = vmatpush2.msra.mxu0 0.0
    %4854 = vmatprep.subr.mxu0 0.0
    %4855 = vmatpush2.msra.mxu0 0.0
    %4856 = vmatprep.subr.mxu0 0.0
    %4857 = vmatpush2.msra.mxu0 0.0
    %4858 = vmatprep.subr.mxu0 0.0
    %4859 = vmatpush2.msra.mxu0 0.0
    %4860 = vmatprep.subr.mxu0 0.0
    %4861 = vmatpush2.msra.mxu0 0.0
    %4862 = vmatprep.subr.mxu0 0.0
    %4863 = vmatpush2.msra.mxu0 0.0
    %4864 = vmatprep.subr.mxu0 0.0
    %4865 = vmatpush2.msra.mxu0 0.0
    %4866 = vmatprep.subr.mxu0 0.0
    %4867 = vmatpush2.msra.mxu0 0.0
    %4868 = vmatprep.subr.mxu0 0.0
    %4869 = vmatpush2.msra.mxu0 0.0
    %4870 = vmatprep.subr.mxu0 0.0
    %4871 = vmatpush2.msra.mxu0 0.0
    %4872 = vmatprep.subr.mxu0 0.0
    %4873 = vmatpush2.msra.mxu0 0.0
    %4874 = vmatprep.subr.mxu0 0.0
    %4875 = vmatpush2.msra.mxu0 0.0
    %4876 = vmatprep.mubr.f32.mxu0 0.0
    %4877 = vmatmul.mubr.f32.gmra.mxu0 %v3455
    %v4878 = vpop.f32.mrf.mxu0
    %v4879 = vadd.f32 %v4810, %v4878
    %v4880 = vpop.f32.mrf.mxu0
    %4881 = vmatprep.mubr.f32.mxu0 0.0
    %4882 = vmatmul.mubr.f32.gmra.mxu0 %v3458
    %v4883 = vpop.f32.mrf.mxu0
    %v4884 = vadd.f32 %v4810, %v4883
    %v4885 = vpop.f32.mrf.mxu0
    %4886 = vdwg.mxu0
    %s4887 = scalar_lea.vmem %s5, 192
    %v4888 = vld [vmem:[%s4887] sm:$0xff]
    %v4889 = vld [vmem:[%s4887 + $0x8] sm:$0xff]
    %v4890 = vld [vmem:[%s4887 + $0x10] sm:$0xff]
    %v4891 = vld [vmem:[%s4887 + $0x18] sm:$0xff]
    %4892 = vrot.lane.b32.xlu0 %v3450, 48
    %v4893 = vpop.permute.xlu0 %4892
    %4895 = vmatprep.subr.mxu0 0.0
    %4896 = vmatpush1.msra.mxu0 0.0
    %4897 = vmatprep.subr.mxu0 0.0
    %4898 = vmatpush1.msra.mxu0 0.0
    %4899 = vmatprep.subr.mxu0 0.0
    %4900 = vmatpush1.msra.mxu0 0.0
    %4901 = vmatprep.subr.mxu0 0.0
    %4902 = vmatpush1.msra.mxu0 0.0
    %4903 = vmatprep.subr.mxu0 0.0
    %4904 = vmatpush1.msra.mxu0 0.0
    %4905 = vmatprep.subr.mxu0 0.0
    %4906 = vmatpush1.msra.mxu0 0.0
    %4907 = vmatprep.subr.mxu0 0.0
    %4908 = vmatpush1.msra.mxu0 0.0
    %4909 = vmatprep.subr.mxu0 0.0
    %4910 = vmatpush1.msra.mxu0 0.0
    %4911 = vmatprep.subr.mxu0 0.0
    %4912 = vmatpush1.msra.mxu0 0.0
    %4913 = vmatprep.subr.mxu0 0.0
    %4914 = vmatpush1.msra.mxu0 0.0
    %4915 = vmatprep.subr.mxu0 0.0
    %4916 = vmatpush1.msra.mxu0 0.0
    %4917 = vmatprep.subr.mxu0 0.0
    %4918 = vmatpush1.msra.mxu0 0.0
    %4919 = vmatprep.subr.mxu0 0.0
    %4920 = vmatpush1.msra.mxu0 %v4891
    %4921 = vmatprep.subr.mxu0 0.0
    %4922 = vmatpush1.msra.mxu0 %v4890
    %4923 = vmatprep.subr.mxu0 0.0
    %4924 = vmatpush1.msra.mxu0 %v4889
    %4925 = vmatprep.subr.mxu0 0.0
    %4926 = vmatpush1.msra.mxu0 %v4888
    %4927 = vmatprep.subr.mxu0 0.0
    %4928 = vmatpush2.msra.mxu0 0.0
    %4929 = vmatprep.subr.mxu0 0.0
    %4930 = vmatpush2.msra.mxu0 0.0
    %4931 = vmatprep.subr.mxu0 0.0
    %4932 = vmatpush2.msra.mxu0 0.0
    %4933 = vmatprep.subr.mxu0 0.0
    %4934 = vmatpush2.msra.mxu0 0.0
    %4935 = vmatprep.subr.mxu0 0.0
    %4936 = vmatpush2.msra.mxu0 0.0
    %4937 = vmatprep.subr.mxu0 0.0
    %4938 = vmatpush2.msra.mxu0 0.0
    %4939 = vmatprep.subr.mxu0 0.0
    %4940 = vmatpush2.msra.mxu0 0.0
    %4941 = vmatprep.subr.mxu0 0.0
    %4942 = vmatpush2.msra.mxu0 0.0
    %4943 = vmatprep.subr.mxu0 0.0
    %4944 = vmatpush2.msra.mxu0 0.0
    %4945 = vmatprep.subr.mxu0 0.0
    %4946 = vmatpush2.msra.mxu0 0.0
    %4947 = vmatprep.subr.mxu0 0.0
    %4948 = vmatpush2.msra.mxu0 0.0
    %4949 = vmatprep.subr.mxu0 0.0
    %4950 = vmatpush2.msra.mxu0 0.0
    %4951 = vmatprep.subr.mxu0 0.0
    %4952 = vmatpush2.msra.mxu0 0.0
    %4953 = vmatprep.subr.mxu0 0.0
    %4954 = vmatpush2.msra.mxu0 0.0
    %4955 = vmatprep.subr.mxu0 0.0
    %4956 = vmatpush2.msra.mxu0 0.0
    %4957 = vmatprep.subr.mxu0 0.0
    %4958 = vmatpush2.msra.mxu0 0.0
    %4959 = vmatprep.mubr.f32.mxu0 0.0
    %4960 = vmatmul.mubr.f32.gmra.mxu0 %v3455
    %v4961 = vpop.f32.mrf.mxu0
    %v4962 = vadd.f32 %v4893, %v4961
    %v4963 = vpop.f32.mrf.mxu0
    %4964 = vmatprep.mubr.f32.mxu0 0.0
    %4965 = vmatmul.mubr.f32.gmra.mxu0 %v3458
    %v4966 = vpop.f32.mrf.mxu0
    %v4967 = vadd.f32 %v4893, %v4966
    %v4968 = vpop.f32.mrf.mxu0
    %4969 = vdwg.mxu0
    %v4970 = vsel %vm597, %v4796, 0
    %v4973 = vsel %vm597, %v4879, 0
    %4975 = vmatprep.subr.mxu0 0.0
    %4976 = vmatpush1.xpose.msra.mxu0 0.0
    %4977 = vmatprep.subr.mxu0 0.0
    %4978 = vmatpush1.xpose.msra.mxu0 0.0
    %4979 = vmatprep.subr.mxu0 0.0
    %4980 = vmatpush1.xpose.msra.mxu0 0.0
    %4981 = vmatprep.subr.mxu0 0.0
    %4982 = vmatpush1.xpose.msra.mxu0 0.0
    %4983 = vmatprep.subr.mxu0 0.0
    %4984 = vmatpush1.xpose.msra.mxu0 0.0
    %4985 = vmatprep.subr.mxu0 0.0
    %4986 = vmatpush1.xpose.msra.mxu0 0.0
    %4987 = vmatprep.subr.mxu0 0.0
    %4988 = vmatpush1.xpose.msra.mxu0 0.0
    %4989 = vmatprep.subr.mxu0 0.0
    %4990 = vmatpush1.xpose.msra.mxu0 0.0
    %4991 = vmatprep.subr.mxu0 0.0
    %4992 = vmatpush1.xpose.msra.mxu0 0.0
    %4993 = vmatprep.subr.mxu0 0.0
    %4994 = vmatpush1.xpose.msra.mxu0 0.0
    %4995 = vmatprep.subr.mxu0 0.0
    %4996 = vmatpush1.xpose.msra.mxu0 0.0
    %4997 = vmatprep.subr.mxu0 0.0
    %4998 = vmatpush1.xpose.msra.mxu0 0.0
    %4999 = vmatprep.subr.mxu0 0.0
    %5000 = vmatpush1.xpose.msra.mxu0 0.0
    %5001 = vmatprep.subr.mxu0 0.0
    %5002 = vmatpush1.xpose.msra.mxu0 0.0
    %5003 = vmatprep.subr.mxu0 0.0
    %5004 = vmatpush1.xpose.msra.mxu0 0.0
    %5005 = vmatprep.subr.mxu0 0.0
    %5006 = vmatpush1.xpose.msra.mxu0 %v4973
    %5007 = vmatprep.subr.mxu0 0.0
    %5008 = vmatpush2.xpose.msra.mxu0 0.0
    %5009 = vmatprep.subr.mxu0 0.0
    %5010 = vmatpush2.xpose.msra.mxu0 0.0
    %5011 = vmatprep.subr.mxu0 0.0
    %5012 = vmatpush2.xpose.msra.mxu0 0.0
    %5013 = vmatprep.subr.mxu0 0.0
    %5014 = vmatpush2.xpose.msra.mxu0 0.0
    %5015 = vmatprep.subr.mxu0 0.0
    %5016 = vmatpush2.xpose.msra.mxu0 0.0
    %5017 = vmatprep.subr.mxu0 0.0
    %5018 = vmatpush2.xpose.msra.mxu0 0.0
    %5019 = vmatprep.subr.mxu0 0.0
    %5020 = vmatpush2.xpose.msra.mxu0 0.0
    %5021 = vmatprep.subr.mxu0 0.0
    %5022 = vmatpush2.xpose.msra.mxu0 0.0
    %5023 = vmatprep.subr.mxu0 0.0
    %5024 = vmatpush2.xpose.msra.mxu0 0.0
    %5025 = vmatprep.subr.mxu0 0.0
    %5026 = vmatpush2.xpose.msra.mxu0 0.0
    %5027 = vmatprep.subr.mxu0 0.0
    %5028 = vmatpush2.xpose.msra.mxu0 0.0
    %5029 = vmatprep.subr.mxu0 0.0
    %5030 = vmatpush2.xpose.msra.mxu0 0.0
    %5031 = vmatprep.subr.mxu0 0.0
    %5032 = vmatpush2.xpose.msra.mxu0 0.0
    %5033 = vmatprep.subr.mxu0 0.0
    %5034 = vmatpush2.xpose.msra.mxu0 0.0
    %5035 = vmatprep.subr.mxu0 0.0
    %5036 = vmatpush2.xpose.msra.mxu0 0.0
    %5037 = vmatprep.subr.mxu0 0.0
    %5038 = vmatpush2.xpose.msra.mxu0 0.0
    %5039 = vmatprep.mubr.f32.mxu0 0.0
    %5040 = vmatmul.mubr.f32.gmra.mxu0 %v4970
    %v5041 = vpop.f32.mrf.mxu0
    %v5042 = vadd.f32 %v342, %v5041
    %v5043 = vpop.f32.mrf.mxu0
    %5044 = vdwg.mxu0
    %v5045 = vsel %vm597, %v4803, 0
    %v5048 = vsel %vm597, %v4884, 0
    %5050 = vmatprep.subr.mxu0 0.0
    %5051 = vmatpush1.xpose.msra.mxu0 0.0
    %5052 = vmatprep.subr.mxu0 0.0
    %5053 = vmatpush1.xpose.msra.mxu0 0.0
    %5054 = vmatprep.subr.mxu0 0.0
    %5055 = vmatpush1.xpose.msra.mxu0 0.0
    %5056 = vmatprep.subr.mxu0 0.0
    %5057 = vmatpush1.xpose.msra.mxu0 0.0
    %5058 = vmatprep.subr.mxu0 0.0
    %5059 = vmatpush1.xpose.msra.mxu0 0.0
    %5060 = vmatprep.subr.mxu0 0.0
    %5061 = vmatpush1.xpose.msra.mxu0 0.0
    %5062 = vmatprep.subr.mxu0 0.0
    %5063 = vmatpush1.xpose.msra.mxu0 0.0
    %5064 = vmatprep.subr.mxu0 0.0
    %5065 = vmatpush1.xpose.msra.mxu0 0.0
    %5066 = vmatprep.subr.mxu0 0.0
    %5067 = vmatpush1.xpose.msra.mxu0 0.0
    %5068 = vmatprep.subr.mxu0 0.0
    %5069 = vmatpush1.xpose.msra.mxu0 0.0
    %5070 = vmatprep.subr.mxu0 0.0
    %5071 = vmatpush1.xpose.msra.mxu0 0.0
    %5072 = vmatprep.subr.mxu0 0.0
    %5073 = vmatpush1.xpose.msra.mxu0 0.0
    %5074 = vmatprep.subr.mxu0 0.0
    %5075 = vmatpush1.xpose.msra.mxu0 0.0
    %5076 = vmatprep.subr.mxu0 0.0
    %5077 = vmatpush1.xpose.msra.mxu0 0.0
    %5078 = vmatprep.subr.mxu0 0.0
    %5079 = vmatpush1.xpose.msra.mxu0 0.0
    %5080 = vmatprep.subr.mxu0 0.0
    %5081 = vmatpush1.xpose.msra.mxu0 %v5048
    %5082 = vmatprep.subr.mxu0 0.0
    %5083 = vmatpush2.xpose.msra.mxu0 0.0
    %5084 = vmatprep.subr.mxu0 0.0
    %5085 = vmatpush2.xpose.msra.mxu0 0.0
    %5086 = vmatprep.subr.mxu0 0.0
    %5087 = vmatpush2.xpose.msra.mxu0 0.0
    %5088 = vmatprep.subr.mxu0 0.0
    %5089 = vmatpush2.xpose.msra.mxu0 0.0
    %5090 = vmatprep.subr.mxu0 0.0
    %5091 = vmatpush2.xpose.msra.mxu0 0.0
    %5092 = vmatprep.subr.mxu0 0.0
    %5093 = vmatpush2.xpose.msra.mxu0 0.0
    %5094 = vmatprep.subr.mxu0 0.0
    %5095 = vmatpush2.xpose.msra.mxu0 0.0
    %5096 = vmatprep.subr.mxu0 0.0
    %5097 = vmatpush2.xpose.msra.mxu0 0.0
    %5098 = vmatprep.subr.mxu0 0.0
    %5099 = vmatpush2.xpose.msra.mxu0 0.0
    %5100 = vmatprep.subr.mxu0 0.0
    %5101 = vmatpush2.xpose.msra.mxu0 0.0
    %5102 = vmatprep.subr.mxu0 0.0
    %5103 = vmatpush2.xpose.msra.mxu0 0.0
    %5104 = vmatprep.subr.mxu0 0.0
    %5105 = vmatpush2.xpose.msra.mxu0 0.0
    %5106 = vmatprep.subr.mxu0 0.0
    %5107 = vmatpush2.xpose.msra.mxu0 0.0
    %5108 = vmatprep.subr.mxu0 0.0
    %5109 = vmatpush2.xpose.msra.mxu0 0.0
    %5110 = vmatprep.subr.mxu0 0.0
    %5111 = vmatpush2.xpose.msra.mxu0 0.0
    %5112 = vmatprep.subr.mxu0 0.0
    %5113 = vmatpush2.xpose.msra.mxu0 0.0
    %5114 = vmatprep.mubr.f32.mxu0 0.0
    %5115 = vmatmul.mubr.f32.gmra.mxu0 %v5045
    %v5116 = vpop.f32.mrf.mxu0
    %v5117 = vadd.f32 %v342, %v5116
    %v5118 = vpop.f32.mrf.mxu0
    %5119 = vdwg.mxu0
    %v5120 = vsel %vm3768, %v5042, -inf
    %5121 = vmax.xlane.f32.xlu0 %v5120
    %v5122 = vpop.xlane.xlu0 %5121
    %v5123 = vsel %vm3768, %v5117, -inf
    %5124 = vmax.xlane.f32.xlu0 %v5123
    %v5125 = vpop.xlane.xlu0 %5124
    %v5126 = vsub.f32 %v5042, %v5122
    %v5127 = vsub.f32 %v5117, %v5125
    %v5128 = vmul.f32 %v5126, 1.442695
    %v5129 = vpow.pop %v5128
    %v5130 = vmul.f32 %v5127, 1.442695
    %v5131 = vpow.pop %v5130
    %v5132 = vsel %vm3768, %v5129, 0.0
    %5133 = vadd.xlane.f32.xlu0 %v5132
    %v5134 = vpop.xlane.xlu0 %5133
    %v5135 = vsel %vm3768, %v5131, 0.0
    %5136 = vadd.xlane.f32.xlu0 %v5135
    %v5137 = vpop.xlane.xlu0 %5136
    %v5138 = vrcp.pop %v5134
    %v5139 = vrcp.pop %v5137
    %v5140 = vmul.f32 %v5129, %v5138
    %v5141 = vmul.f32 %v5131, %v5139
    %v5143 = vsel %vm597, %v5140, 0
    %5145 = vmatprep.subr.mxu0 0.0
    %5146 = vmatpush1.msra.mxu0 0.0
    %5147 = vmatprep.subr.mxu0 0.0
    %5148 = vmatpush1.msra.mxu0 0.0
    %5149 = vmatprep.subr.mxu0 0.0
    %5150 = vmatpush1.msra.mxu0 0.0
    %5151 = vmatprep.subr.mxu0 0.0
    %5152 = vmatpush1.msra.mxu0 0.0
    %5153 = vmatprep.subr.mxu0 0.0
    %5154 = vmatpush1.msra.mxu0 0.0
    %5155 = vmatprep.subr.mxu0 0.0
    %5156 = vmatpush1.msra.mxu0 0.0
    %5157 = vmatprep.subr.mxu0 0.0
    %5158 = vmatpush1.msra.mxu0 0.0
    %5159 = vmatprep.subr.mxu0 0.0
    %5160 = vmatpush1.msra.mxu0 0.0
    %5161 = vmatprep.subr.mxu0 0.0
    %5162 = vmatpush1.msra.mxu0 0.0
    %5163 = vmatprep.subr.mxu0 0.0
    %5164 = vmatpush1.msra.mxu0 0.0
    %5165 = vmatprep.subr.mxu0 0.0
    %5166 = vmatpush1.msra.mxu0 0.0
    %5167 = vmatprep.subr.mxu0 0.0
    %5168 = vmatpush1.msra.mxu0 0.0
    %5169 = vmatprep.subr.mxu0 0.0
    %5170 = vmatpush1.msra.mxu0 0.0
    %5171 = vmatprep.subr.mxu0 0.0
    %5172 = vmatpush1.msra.mxu0 0.0
    %5173 = vmatprep.subr.mxu0 0.0
    %5174 = vmatpush1.msra.mxu0 0.0
    %5175 = vmatprep.subr.mxu0 0.0
    %5176 = vmatpush1.msra.mxu0 %v4962
    %5177 = vmatprep.subr.mxu0 0.0
    %5178 = vmatpush2.msra.mxu0 0.0
    %5179 = vmatprep.subr.mxu0 0.0
    %5180 = vmatpush2.msra.mxu0 0.0
    %5181 = vmatprep.subr.mxu0 0.0
    %5182 = vmatpush2.msra.mxu0 0.0
    %5183 = vmatprep.subr.mxu0 0.0
    %5184 = vmatpush2.msra.mxu0 0.0
    %5185 = vmatprep.subr.mxu0 0.0
    %5186 = vmatpush2.msra.mxu0 0.0
    %5187 = vmatprep.subr.mxu0 0.0
    %5188 = vmatpush2.msra.mxu0 0.0
    %5189 = vmatprep.subr.mxu0 0.0
    %5190 = vmatpush2.msra.mxu0 0.0
    %5191 = vmatprep.subr.mxu0 0.0
    %5192 = vmatpush2.msra.mxu0 0.0
    %5193 = vmatprep.subr.mxu0 0.0
    %5194 = vmatpush2.msra.mxu0 0.0
    %5195 = vmatprep.subr.mxu0 0.0
    %5196 = vmatpush2.msra.mxu0 0.0
    %5197 = vmatprep.subr.mxu0 0.0
    %5198 = vmatpush2.msra.mxu0 0.0
    %5199 = vmatprep.subr.mxu0 0.0
    %5200 = vmatpush2.msra.mxu0 0.0
    %5201 = vmatprep.subr.mxu0 0.0
    %5202 = vmatpush2.msra.mxu0 0.0
    %5203 = vmatprep.subr.mxu0 0.0
    %5204 = vmatpush2.msra.mxu0 0.0
    %5205 = vmatprep.subr.mxu0 0.0
    %5206 = vmatpush2.msra.mxu0 0.0
    %5207 = vmatprep.subr.mxu0 0.0
    %5208 = vmatpush2.msra.mxu0 0.0
    %5209 = vmatprep.mubr.f32.mxu0 0.0
    %5210 = vmatmul.mubr.f32.gmra.mxu0 %v5143
    %v5211 = vpop.f32.mrf.mxu0
    %v5212 = vadd.f32 0.0, %v5211
    %v5213 = vpop.f32.mrf.mxu0
    %5214 = vdwg.mxu0
    %v5216 = vsel %vm597, %v5141, 0
    %5218 = vmatprep.subr.mxu0 0.0
    %5219 = vmatpush1.msra.mxu0 0.0
    %5220 = vmatprep.subr.mxu0 0.0
    %5221 = vmatpush1.msra.mxu0 0.0
    %5222 = vmatprep.subr.mxu0 0.0
    %5223 = vmatpush1.msra.mxu0 0.0
    %5224 = vmatprep.subr.mxu0 0.0
    %5225 = vmatpush1.msra.mxu0 0.0
    %5226 = vmatprep.subr.mxu0 0.0
    %5227 = vmatpush1.msra.mxu0 0.0
    %5228 = vmatprep.subr.mxu0 0.0
    %5229 = vmatpush1.msra.mxu0 0.0
    %5230 = vmatprep.subr.mxu0 0.0
    %5231 = vmatpush1.msra.mxu0 0.0
    %5232 = vmatprep.subr.mxu0 0.0
    %5233 = vmatpush1.msra.mxu0 0.0
    %5234 = vmatprep.subr.mxu0 0.0
    %5235 = vmatpush1.msra.mxu0 0.0
    %5236 = vmatprep.subr.mxu0 0.0
    %5237 = vmatpush1.msra.mxu0 0.0
    %5238 = vmatprep.subr.mxu0 0.0
    %5239 = vmatpush1.msra.mxu0 0.0
    %5240 = vmatprep.subr.mxu0 0.0
    %5241 = vmatpush1.msra.mxu0 0.0
    %5242 = vmatprep.subr.mxu0 0.0
    %5243 = vmatpush1.msra.mxu0 0.0
    %5244 = vmatprep.subr.mxu0 0.0
    %5245 = vmatpush1.msra.mxu0 0.0
    %5246 = vmatprep.subr.mxu0 0.0
    %5247 = vmatpush1.msra.mxu0 0.0
    %5248 = vmatprep.subr.mxu0 0.0
    %5249 = vmatpush1.msra.mxu0 %v4967
    %5250 = vmatprep.subr.mxu0 0.0
    %5251 = vmatpush2.msra.mxu0 0.0
    %5252 = vmatprep.subr.mxu0 0.0
    %5253 = vmatpush2.msra.mxu0 0.0
    %5254 = vmatprep.subr.mxu0 0.0
    %5255 = vmatpush2.msra.mxu0 0.0
    %5256 = vmatprep.subr.mxu0 0.0
    %5257 = vmatpush2.msra.mxu0 0.0
    %5258 = vmatprep.subr.mxu0 0.0
    %5259 = vmatpush2.msra.mxu0 0.0
    %5260 = vmatprep.subr.mxu0 0.0
    %5261 = vmatpush2.msra.mxu0 0.0
    %5262 = vmatprep.subr.mxu0 0.0
    %5263 = vmatpush2.msra.mxu0 0.0
    %5264 = vmatprep.subr.mxu0 0.0
    %5265 = vmatpush2.msra.mxu0 0.0
    %5266 = vmatprep.subr.mxu0 0.0
    %5267 = vmatpush2.msra.mxu0 0.0
    %5268 = vmatprep.subr.mxu0 0.0
    %5269 = vmatpush2.msra.mxu0 0.0
    %5270 = vmatprep.subr.mxu0 0.0
    %5271 = vmatpush2.msra.mxu0 0.0
    %5272 = vmatprep.subr.mxu0 0.0
    %5273 = vmatpush2.msra.mxu0 0.0
    %5274 = vmatprep.subr.mxu0 0.0
    %5275 = vmatpush2.msra.mxu0 0.0
    %5276 = vmatprep.subr.mxu0 0.0
    %5277 = vmatpush2.msra.mxu0 0.0
    %5278 = vmatprep.subr.mxu0 0.0
    %5279 = vmatpush2.msra.mxu0 0.0
    %5280 = vmatprep.subr.mxu0 0.0
    %5281 = vmatpush2.msra.mxu0 0.0
    %5282 = vmatprep.mubr.f32.mxu0 0.0
    %5283 = vmatmul.mubr.f32.gmra.mxu0 %v5216
    %v5284 = vpop.f32.mrf.mxu0
    %v5285 = vadd.f32 0.0, %v5284
    %v5286 = vpop.f32.mrf.mxu0
    %5287 = vdwg.mxu0
    %s5288 = scalar_lea.vmem %s6, 48
    %v5289 = vld [vmem:[%s5288] sm:$0xff]
    %v5292 = vrot.slane %v5285, 7
    %v5293 = vsel %vm3329, %v5292, %v5212
    %v5294 = vsel %vm597, %v5293, 0
    %5296 = vmatprep.subr.mxu0 0.0
    %5297 = vmatpush1.msra.mxu0 0.0
    %5298 = vmatprep.subr.mxu0 0.0
    %5299 = vmatpush1.msra.mxu0 0.0
    %5300 = vmatprep.subr.mxu0 0.0
    %5301 = vmatpush1.msra.mxu0 0.0
    %5302 = vmatprep.subr.mxu0 0.0
    %5303 = vmatpush1.msra.mxu0 0.0
    %5304 = vmatprep.subr.mxu0 0.0
    %5305 = vmatpush1.msra.mxu0 0.0
    %5306 = vmatprep.subr.mxu0 0.0
    %5307 = vmatpush1.msra.mxu0 0.0
    %5308 = vmatprep.subr.mxu0 0.0
    %5309 = vmatpush1.msra.mxu0 0.0
    %5310 = vmatprep.subr.mxu0 0.0
    %5311 = vmatpush1.msra.mxu0 0.0
    %5312 = vmatprep.subr.mxu0 0.0
    %5313 = vmatpush1.msra.mxu0 0.0
    %5314 = vmatprep.subr.mxu0 0.0
    %5315 = vmatpush1.msra.mxu0 0.0
    %5316 = vmatprep.subr.mxu0 0.0
    %5317 = vmatpush1.msra.mxu0 0.0
    %5318 = vmatprep.subr.mxu0 0.0
    %5319 = vmatpush1.msra.mxu0 0.0
    %5320 = vmatprep.subr.mxu0 0.0
    %5321 = vmatpush1.msra.mxu0 0.0
    %5322 = vmatprep.subr.mxu0 0.0
    %5323 = vmatpush1.msra.mxu0 0.0
    %5324 = vmatprep.subr.mxu0 0.0
    %5325 = vmatpush1.msra.mxu0 0.0
    %5326 = vmatprep.subr.mxu0 0.0
    %5327 = vmatpush1.msra.mxu0 %v5289
    %5328 = vmatprep.subr.mxu0 0.0
    %5329 = vmatpush2.msra.mxu0 0.0
    %5330 = vmatprep.subr.mxu0 0.0
    %5331 = vmatpush2.msra.mxu0 0.0
    %5332 = vmatprep.subr.mxu0 0.0
    %5333 = vmatpush2.msra.mxu0 0.0
    %5334 = vmatprep.subr.mxu0 0.0
    %5335 = vmatpush2.msra.mxu0 0.0
    %5336 = vmatprep.subr.mxu0 0.0
    %5337 = vmatpush2.msra.mxu0 0.0
    %5338 = vmatprep.subr.mxu0 0.0
    %5339 = vmatpush2.msra.mxu0 0.0
    %5340 = vmatprep.subr.mxu0 0.0
    %5341 = vmatpush2.msra.mxu0 0.0
    %5342 = vmatprep.subr.mxu0 0.0
    %5343 = vmatpush2.msra.mxu0 0.0
    %5344 = vmatprep.subr.mxu0 0.0
    %5345 = vmatpush2.msra.mxu0 0.0
    %5346 = vmatprep.subr.mxu0 0.0
    %5347 = vmatpush2.msra.mxu0 0.0
    %5348 = vmatprep.subr.mxu0 0.0
    %5349 = vmatpush2.msra.mxu0 0.0
    %5350 = vmatprep.subr.mxu0 0.0
    %5351 = vmatpush2.msra.mxu0 0.0
    %5352 = vmatprep.subr.mxu0 0.0
    %5353 = vmatpush2.msra.mxu0 0.0
    %5354 = vmatprep.subr.mxu0 0.0
    %5355 = vmatpush2.msra.mxu0 0.0
    %5356 = vmatprep.subr.mxu0 0.0
    %5357 = vmatpush2.msra.mxu0 0.0
    %5358 = vmatprep.subr.mxu0 0.0
    %5359 = vmatpush2.msra.mxu0 0.0
    %5360 = vmatprep.mubr.f32.mxu0 0.0
    %5361 = vmatmul.mubr.f32.gmra.mxu0 %v5294
    %v5362 = vpop.f32.mrf.mxu0
    %v5363 = vadd.f32 0.0, %v5362
    %v5364 = vpop.f32.mrf.mxu0
    %5365 = vdwg.mxu0
    %v5368 = vunpack.c.l.s4 1966171168
    %v5369 = vunpack.c.0.s8 %v5368
    %v5370 = vlaneseq
    %v5371 = vshrl.u32 %v5370, 7
    %v5372 = vsub.s32 %v5369, %v5371
    %v5373 = vrot.slane %v5363, %v5372
    %v5374 = vcombine.high %v5373, %v5373
    %v5376 = vunpack.c.l.s4 1966171168
    %v5377 = vunpack.c.0.s8 %v5376
    %v5378 = vlaneseq
    %v5379 = vshrl.u32 %v5378, 7
    %v5380 = vsub.s32 %v5377, %v5379
    %v5381 = vrot.slane %v5373, %v5380
    %v5383 = vunpack.c.l.s4 1966171168
    %v5384 = vunpack.c.0.s8 %v5383
    %v5385 = vlaneseq
    %v5386 = vshrl.u32 %v5385, 7
    %v5387 = vsub.s32 %v5384, %v5386
    %v5388 = vrot.slane %v5374, %v5387
    %v5391 = vadd.f32 %v4693, %v5381
    %v5392 = vadd.f32 %v4700, %v5388
    %s5393 = scalar_lea.vmem %s3, 224
    %v5394 = vld [vmem:[%s5393] sm:$0xff]
    %v5395 = vld [vmem:[%s5393 + $0x8] sm:$0xff]
    %v5396 = vld [vmem:[%s5393 + $0x10] sm:$0xff]
    %v5397 = vld [vmem:[%s5393 + $0x18] sm:$0xff]
    %5398 = vrot.lane.b32.xlu0 %v3345, 104
    %v5399 = vpop.permute.xlu0 %5398
    %5401 = vmatprep.subr.mxu0 0.0
    %5402 = vmatpush1.msra.mxu0 0.0
    %5403 = vmatprep.subr.mxu0 0.0
    %5404 = vmatpush1.msra.mxu0 0.0
    %5405 = vmatprep.subr.mxu0 0.0
    %5406 = vmatpush1.msra.mxu0 0.0
    %5407 = vmatprep.subr.mxu0 0.0
    %5408 = vmatpush1.msra.mxu0 0.0
    %5409 = vmatprep.subr.mxu0 0.0
    %5410 = vmatpush1.msra.mxu0 0.0
    %5411 = vmatprep.subr.mxu0 0.0
    %5412 = vmatpush1.msra.mxu0 0.0
    %5413 = vmatprep.subr.mxu0 0.0
    %5414 = vmatpush1.msra.mxu0 0.0
    %5415 = vmatprep.subr.mxu0 0.0
    %5416 = vmatpush1.msra.mxu0 0.0
    %5417 = vmatprep.subr.mxu0 0.0
    %5418 = vmatpush1.msra.mxu0 0.0
    %5419 = vmatprep.subr.mxu0 0.0
    %5420 = vmatpush1.msra.mxu0 0.0
    %5421 = vmatprep.subr.mxu0 0.0
    %5422 = vmatpush1.msra.mxu0 0.0
    %5423 = vmatprep.subr.mxu0 0.0
    %5424 = vmatpush1.msra.mxu0 0.0
    %5425 = vmatprep.subr.mxu0 0.0
    %5426 = vmatpush1.msra.mxu0 %v5397
    %5427 = vmatprep.subr.mxu0 0.0
    %5428 = vmatpush1.msra.mxu0 %v5396
    %5429 = vmatprep.subr.mxu0 0.0
    %5430 = vmatpush1.msra.mxu0 %v5395
    %5431 = vmatprep.subr.mxu0 0.0
    %5432 = vmatpush1.msra.mxu0 %v5394
    %5433 = vmatprep.subr.mxu0 0.0
    %5434 = vmatpush2.msra.mxu0 0.0
    %5435 = vmatprep.subr.mxu0 0.0
    %5436 = vmatpush2.msra.mxu0 0.0
    %5437 = vmatprep.subr.mxu0 0.0
    %5438 = vmatpush2.msra.mxu0 0.0
    %5439 = vmatprep.subr.mxu0 0.0
    %5440 = vmatpush2.msra.mxu0 0.0
    %5441 = vmatprep.subr.mxu0 0.0
    %5442 = vmatpush2.msra.mxu0 0.0
    %5443 = vmatprep.subr.mxu0 0.0
    %5444 = vmatpush2.msra.mxu0 0.0
    %5445 = vmatprep.subr.mxu0 0.0
    %5446 = vmatpush2.msra.mxu0 0.0
    %5447 = vmatprep.subr.mxu0 0.0
    %5448 = vmatpush2.msra.mxu0 0.0
    %5449 = vmatprep.subr.mxu0 0.0
    %5450 = vmatpush2.msra.mxu0 0.0
    %5451 = vmatprep.subr.mxu0 0.0
    %5452 = vmatpush2.msra.mxu0 0.0
    %5453 = vmatprep.subr.mxu0 0.0
    %5454 = vmatpush2.msra.mxu0 0.0
    %5455 = vmatprep.subr.mxu0 0.0
    %5456 = vmatpush2.msra.mxu0 0.0
    %5457 = vmatprep.subr.mxu0 0.0
    %5458 = vmatpush2.msra.mxu0 0.0
    %5459 = vmatprep.subr.mxu0 0.0
    %5460 = vmatpush2.msra.mxu0 0.0
    %5461 = vmatprep.subr.mxu0 0.0
    %5462 = vmatpush2.msra.mxu0 0.0
    %5463 = vmatprep.subr.mxu0 0.0
    %5464 = vmatpush2.msra.mxu0 0.0
    %5465 = vmatprep.mubr.f32.mxu0 0.0
    %5466 = vmatmul.mubr.f32.gmra.mxu0 %v3347
    %v5467 = vpop.f32.mrf.mxu0
    %v5468 = vadd.f32 %v5399, %v5467
    %v5469 = vpop.f32.mrf.mxu0
    %5470 = vdwg.mxu0
    %v5473 = vunpack.c.l.s4 1966171168
    %v5474 = vunpack.c.0.s8 %v5473
    %v5475 = vlaneseq
    %v5476 = vshrl.u32 %v5475, 7
    %v5477 = vsub.s32 %v5474, %v5476
    %v5478 = vrot.slane %v5468, %v5477
    %v5479 = vcombine.high %v5478, %v5478
    %v5481 = vunpack.c.l.s4 1966171168
    %v5482 = vunpack.c.0.s8 %v5481
    %v5483 = vlaneseq
    %v5484 = vshrl.u32 %v5483, 7
    %v5485 = vsub.s32 %v5482, %v5484
    %v5486 = vrot.slane %v5478, %v5485
    %v5488 = vunpack.c.l.s4 1966171168
    %v5489 = vunpack.c.0.s8 %v5488
    %v5490 = vlaneseq
    %v5491 = vshrl.u32 %v5490, 7
    %v5492 = vsub.s32 %v5489, %v5491
    %v5493 = vrot.slane %v5479, %v5492
    %s5494 = scalar_lea.vmem %s4, 224
    %v5495 = vld [vmem:[%s5494] sm:$0xff]
    %v5496 = vld [vmem:[%s5494 + $0x8] sm:$0xff]
    %v5497 = vld [vmem:[%s5494 + $0x10] sm:$0xff]
    %v5498 = vld [vmem:[%s5494 + $0x18] sm:$0xff]
    %5499 = vrot.lane.b32.xlu0 %v3450, 72
    %v5500 = vpop.permute.xlu0 %5499
    %5502 = vmatprep.subr.mxu0 0.0
    %5503 = vmatpush1.msra.mxu0 0.0
    %5504 = vmatprep.subr.mxu0 0.0
    %5505 = vmatpush1.msra.mxu0 0.0
    %5506 = vmatprep.subr.mxu0 0.0
    %5507 = vmatpush1.msra.mxu0 0.0
    %5508 = vmatprep.subr.mxu0 0.0
    %5509 = vmatpush1.msra.mxu0 0.0
    %5510 = vmatprep.subr.mxu0 0.0
    %5511 = vmatpush1.msra.mxu0 0.0
    %5512 = vmatprep.subr.mxu0 0.0
    %5513 = vmatpush1.msra.mxu0 0.0
    %5514 = vmatprep.subr.mxu0 0.0
    %5515 = vmatpush1.msra.mxu0 0.0
    %5516 = vmatprep.subr.mxu0 0.0
    %5517 = vmatpush1.msra.mxu0 0.0
    %5518 = vmatprep.subr.mxu0 0.0
    %5519 = vmatpush1.msra.mxu0 0.0
    %5520 = vmatprep.subr.mxu0 0.0
    %5521 = vmatpush1.msra.mxu0 0.0
    %5522 = vmatprep.subr.mxu0 0.0
    %5523 = vmatpush1.msra.mxu0 0.0
    %5524 = vmatprep.subr.mxu0 0.0
    %5525 = vmatpush1.msra.mxu0 0.0
    %5526 = vmatprep.subr.mxu0 0.0
    %5527 = vmatpush1.msra.mxu0 %v5498
    %5528 = vmatprep.subr.mxu0 0.0
    %5529 = vmatpush1.msra.mxu0 %v5497
    %5530 = vmatprep.subr.mxu0 0.0
    %5531 = vmatpush1.msra.mxu0 %v5496
    %5532 = vmatprep.subr.mxu0 0.0
    %5533 = vmatpush1.msra.mxu0 %v5495
    %5534 = vmatprep.subr.mxu0 0.0
    %5535 = vmatpush2.msra.mxu0 0.0
    %5536 = vmatprep.subr.mxu0 0.0
    %5537 = vmatpush2.msra.mxu0 0.0
    %5538 = vmatprep.subr.mxu0 0.0
    %5539 = vmatpush2.msra.mxu0 0.0
    %5540 = vmatprep.subr.mxu0 0.0
    %5541 = vmatpush2.msra.mxu0 0.0
    %5542 = vmatprep.subr.mxu0 0.0
    %5543 = vmatpush2.msra.mxu0 0.0
    %5544 = vmatprep.subr.mxu0 0.0
    %5545 = vmatpush2.msra.mxu0 0.0
    %5546 = vmatprep.subr.mxu0 0.0
    %5547 = vmatpush2.msra.mxu0 0.0
    %5548 = vmatprep.subr.mxu0 0.0
    %5549 = vmatpush2.msra.mxu0 0.0
    %5550 = vmatprep.subr.mxu0 0.0
    %5551 = vmatpush2.msra.mxu0 0.0
    %5552 = vmatprep.subr.mxu0 0.0
    %5553 = vmatpush2.msra.mxu0 0.0
    %5554 = vmatprep.subr.mxu0 0.0
    %5555 = vmatpush2.msra.mxu0 0.0
    %5556 = vmatprep.subr.mxu0 0.0
    %5557 = vmatpush2.msra.mxu0 0.0
    %5558 = vmatprep.subr.mxu0 0.0
    %5559 = vmatpush2.msra.mxu0 0.0
    %5560 = vmatprep.subr.mxu0 0.0
    %5561 = vmatpush2.msra.mxu0 0.0
    %5562 = vmatprep.subr.mxu0 0.0
    %5563 = vmatpush2.msra.mxu0 0.0
    %5564 = vmatprep.subr.mxu0 0.0
    %5565 = vmatpush2.msra.mxu0 0.0
    %5566 = vmatprep.mubr.f32.mxu0 0.0
    %5567 = vmatmul.mubr.f32.gmra.mxu0 %v3455
    %v5568 = vpop.f32.mrf.mxu0
    %v5569 = vadd.f32 %v5500, %v5568
    %v5570 = vpop.f32.mrf.mxu0
    %5571 = vmatprep.mubr.f32.mxu0 0.0
    %5572 = vmatmul.mubr.f32.gmra.mxu0 %v3458
    %v5573 = vpop.f32.mrf.mxu0
    %v5574 = vadd.f32 %v5500, %v5573
    %v5575 = vpop.f32.mrf.mxu0
    %5576 = vdwg.mxu0
    %s5577 = scalar_lea.vmem %s5, 224
    %v5578 = vld [vmem:[%s5577] sm:$0xff]
    %v5579 = vld [vmem:[%s5577 + $0x8] sm:$0xff]
    %v5580 = vld [vmem:[%s5577 + $0x10] sm:$0xff]
    %v5581 = vld [vmem:[%s5577 + $0x18] sm:$0xff]
    %5582 = vrot.lane.b32.xlu0 %v3450, 40
    %v5583 = vpop.permute.xlu0 %5582
    %5585 = vmatprep.subr.mxu0 0.0
    %5586 = vmatpush1.msra.mxu0 0.0
    %5587 = vmatprep.subr.mxu0 0.0
    %5588 = vmatpush1.msra.mxu0 0.0
    %5589 = vmatprep.subr.mxu0 0.0
    %5590 = vmatpush1.msra.mxu0 0.0
    %5591 = vmatprep.subr.mxu0 0.0
    %5592 = vmatpush1.msra.mxu0 0.0
    %5593 = vmatprep.subr.mxu0 0.0
    %5594 = vmatpush1.msra.mxu0 0.0
    %5595 = vmatprep.subr.mxu0 0.0
    %5596 = vmatpush1.msra.mxu0 0.0
    %5597 = vmatprep.subr.mxu0 0.0
    %5598 = vmatpush1.msra.mxu0 0.0
    %5599 = vmatprep.subr.mxu0 0.0
    %5600 = vmatpush1.msra.mxu0 0.0
    %5601 = vmatprep.subr.mxu0 0.0
    %5602 = vmatpush1.msra.mxu0 0.0
    %5603 = vmatprep.subr.mxu0 0.0
    %5604 = vmatpush1.msra.mxu0 0.0
    %5605 = vmatprep.subr.mxu0 0.0
    %5606 = vmatpush1.msra.mxu0 0.0
    %5607 = vmatprep.subr.mxu0 0.0
    %5608 = vmatpush1.msra.mxu0 0.0
    %5609 = vmatprep.subr.mxu0 0.0
    %5610 = vmatpush1.msra.mxu0 %v5581
    %5611 = vmatprep.subr.mxu0 0.0
    %5612 = vmatpush1.msra.mxu0 %v5580
    %5613 = vmatprep.subr.mxu0 0.0
    %5614 = vmatpush1.msra.mxu0 %v5579
    %5615 = vmatprep.subr.mxu0 0.0
    %5616 = vmatpush1.msra.mxu0 %v5578
    %5617 = vmatprep.subr.mxu0 0.0
    %5618 = vmatpush2.msra.mxu0 0.0
    %5619 = vmatprep.subr.mxu0 0.0
    %5620 = vmatpush2.msra.mxu0 0.0
    %5621 = vmatprep.subr.mxu0 0.0
    %5622 = vmatpush2.msra.mxu0 0.0
    %5623 = vmatprep.subr.mxu0 0.0
    %5624 = vmatpush2.msra.mxu0 0.0
    %5625 = vmatprep.subr.mxu0 0.0
    %5626 = vmatpush2.msra.mxu0 0.0
    %5627 = vmatprep.subr.mxu0 0.0
    %5628 = vmatpush2.msra.mxu0 0.0
    %5629 = vmatprep.subr.mxu0 0.0
    %5630 = vmatpush2.msra.mxu0 0.0
    %5631 = vmatprep.subr.mxu0 0.0
    %5632 = vmatpush2.msra.mxu0 0.0
    %5633 = vmatprep.subr.mxu0 0.0
    %5634 = vmatpush2.msra.mxu0 0.0
    %5635 = vmatprep.subr.mxu0 0.0
    %5636 = vmatpush2.msra.mxu0 0.0
    %5637 = vmatprep.subr.mxu0 0.0
    %5638 = vmatpush2.msra.mxu0 0.0
    %5639 = vmatprep.subr.mxu0 0.0
    %5640 = vmatpush2.msra.mxu0 0.0
    %5641 = vmatprep.subr.mxu0 0.0
    %5642 = vmatpush2.msra.mxu0 0.0
    %5643 = vmatprep.subr.mxu0 0.0
    %5644 = vmatpush2.msra.mxu0 0.0
    %5645 = vmatprep.subr.mxu0 0.0
    %5646 = vmatpush2.msra.mxu0 0.0
    %5647 = vmatprep.subr.mxu0 0.0
    %5648 = vmatpush2.msra.mxu0 0.0
    %5649 = vmatprep.mubr.f32.mxu0 0.0
    %5650 = vmatmul.mubr.f32.gmra.mxu0 %v3455
    %v5651 = vpop.f32.mrf.mxu0
    %v5652 = vadd.f32 %v5583, %v5651
    %v5653 = vpop.f32.mrf.mxu0
    %5654 = vmatprep.mubr.f32.mxu0 0.0
    %5655 = vmatmul.mubr.f32.gmra.mxu0 %v3458
    %v5656 = vpop.f32.mrf.mxu0
    %v5657 = vadd.f32 %v5583, %v5656
    %v5658 = vpop.f32.mrf.mxu0
    %5659 = vdwg.mxu0
    %v5660 = vsel %vm597, %v5486, 0
    %v5663 = vsel %vm597, %v5569, 0
    %5665 = vmatprep.subr.mxu0 0.0
    %5666 = vmatpush1.xpose.msra.mxu0 0.0
    %5667 = vmatprep.subr.mxu0 0.0
    %5668 = vmatpush1.xpose.msra.mxu0 0.0
    %5669 = vmatprep.subr.mxu0 0.0
    %5670 = vmatpush1.xpose.msra.mxu0 0.0
    %5671 = vmatprep.subr.mxu0 0.0
    %5672 = vmatpush1.xpose.msra.mxu0 0.0
    %5673 = vmatprep.subr.mxu0 0.0
    %5674 = vmatpush1.xpose.msra.mxu0 0.0
    %5675 = vmatprep.subr.mxu0 0.0
    %5676 = vmatpush1.xpose.msra.mxu0 0.0
    %5677 = vmatprep.subr.mxu0 0.0
    %5678 = vmatpush1.xpose.msra.mxu0 0.0
    %5679 = vmatprep.subr.mxu0 0.0
    %5680 = vmatpush1.xpose.msra.mxu0 0.0
    %5681 = vmatprep.subr.mxu0 0.0
    %5682 = vmatpush1.xpose.msra.mxu0 0.0
    %5683 = vmatprep.subr.mxu0 0.0
    %5684 = vmatpush1.xpose.msra.mxu0 0.0
    %5685 = vmatprep.subr.mxu0 0.0
    %5686 = vmatpush1.xpose.msra.mxu0 0.0
    %5687 = vmatprep.subr.mxu0 0.0
    %5688 = vmatpush1.xpose.msra.mxu0 0.0
    %5689 = vmatprep.subr.mxu0 0.0
    %5690 = vmatpush1.xpose.msra.mxu0 0.0
    %5691 = vmatprep.subr.mxu0 0.0
    %5692 = vmatpush1.xpose.msra.mxu0 0.0
    %5693 = vmatprep.subr.mxu0 0.0
    %5694 = vmatpush1.xpose.msra.mxu0 0.0
    %5695 = vmatprep.subr.mxu0 0.0
    %5696 = vmatpush1.xpose.msra.mxu0 %v5663
    %5697 = vmatprep.subr.mxu0 0.0
    %5698 = vmatpush2.xpose.msra.mxu0 0.0
    %5699 = vmatprep.subr.mxu0 0.0
    %5700 = vmatpush2.xpose.msra.mxu0 0.0
    %5701 = vmatprep.subr.mxu0 0.0
    %5702 = vmatpush2.xpose.msra.mxu0 0.0
    %5703 = vmatprep.subr.mxu0 0.0
    %5704 = vmatpush2.xpose.msra.mxu0 0.0
    %5705 = vmatprep.subr.mxu0 0.0
    %5706 = vmatpush2.xpose.msra.mxu0 0.0
    %5707 = vmatprep.subr.mxu0 0.0
    %5708 = vmatpush2.xpose.msra.mxu0 0.0
    %5709 = vmatprep.subr.mxu0 0.0
    %5710 = vmatpush2.xpose.msra.mxu0 0.0
    %5711 = vmatprep.subr.mxu0 0.0
    %5712 = vmatpush2.xpose.msra.mxu0 0.0
    %5713 = vmatprep.subr.mxu0 0.0
    %5714 = vmatpush2.xpose.msra.mxu0 0.0
    %5715 = vmatprep.subr.mxu0 0.0
    %5716 = vmatpush2.xpose.msra.mxu0 0.0
    %5717 = vmatprep.subr.mxu0 0.0
    %5718 = vmatpush2.xpose.msra.mxu0 0.0
    %5719 = vmatprep.subr.mxu0 0.0
    %5720 = vmatpush2.xpose.msra.mxu0 0.0
    %5721 = vmatprep.subr.mxu0 0.0
    %5722 = vmatpush2.xpose.msra.mxu0 0.0
    %5723 = vmatprep.subr.mxu0 0.0
    %5724 = vmatpush2.xpose.msra.mxu0 0.0
    %5725 = vmatprep.subr.mxu0 0.0
    %5726 = vmatpush2.xpose.msra.mxu0 0.0
    %5727 = vmatprep.subr.mxu0 0.0
    %5728 = vmatpush2.xpose.msra.mxu0 0.0
    %5729 = vmatprep.mubr.f32.mxu0 0.0
    %5730 = vmatmul.mubr.f32.gmra.mxu0 %v5660
    %v5731 = vpop.f32.mrf.mxu0
    %v5732 = vadd.f32 %v342, %v5731
    %v5733 = vpop.f32.mrf.mxu0
    %5734 = vdwg.mxu0
    %v5735 = vsel %vm597, %v5493, 0
    %v5738 = vsel %vm597, %v5574, 0
    %5740 = vmatprep.subr.mxu0 0.0
    %5741 = vmatpush1.xpose.msra.mxu0 0.0
    %5742 = vmatprep.subr.mxu0 0.0
    %5743 = vmatpush1.xpose.msra.mxu0 0.0
    %5744 = vmatprep.subr.mxu0 0.0
    %5745 = vmatpush1.xpose.msra.mxu0 0.0
    %5746 = vmatprep.subr.mxu0 0.0
    %5747 = vmatpush1.xpose.msra.mxu0 0.0
    %5748 = vmatprep.subr.mxu0 0.0
    %5749 = vmatpush1.xpose.msra.mxu0 0.0
    %5750 = vmatprep.subr.mxu0 0.0
    %5751 = vmatpush1.xpose.msra.mxu0 0.0
    %5752 = vmatprep.subr.mxu0 0.0
    %5753 = vmatpush1.xpose.msra.mxu0 0.0
    %5754 = vmatprep.subr.mxu0 0.0
    %5755 = vmatpush1.xpose.msra.mxu0 0.0
    %5756 = vmatprep.subr.mxu0 0.0
    %5757 = vmatpush1.xpose.msra.mxu0 0.0
    %5758 = vmatprep.subr.mxu0 0.0
    %5759 = vmatpush1.xpose.msra.mxu0 0.0
    %5760 = vmatprep.subr.mxu0 0.0
    %5761 = vmatpush1.xpose.msra.mxu0 0.0
    %5762 = vmatprep.subr.mxu0 0.0
    %5763 = vmatpush1.xpose.msra.mxu0 0.0
    %5764 = vmatprep.subr.mxu0 0.0
    %5765 = vmatpush1.xpose.msra.mxu0 0.0
    %5766 = vmatprep.subr.mxu0 0.0
    %5767 = vmatpush1.xpose.msra.mxu0 0.0
    %5768 = vmatprep.subr.mxu0 0.0
    %5769 = vmatpush1.xpose.msra.mxu0 0.0
    %5770 = vmatprep.subr.mxu0 0.0
    %5771 = vmatpush1.xpose.msra.mxu0 %v5738
    %5772 = vmatprep.subr.mxu0 0.0
    %5773 = vmatpush2.xpose.msra.mxu0 0.0
    %5774 = vmatprep.subr.mxu0 0.0
    %5775 = vmatpush2.xpose.msra.mxu0 0.0
    %5776 = vmatprep.subr.mxu0 0.0
    %5777 = vmatpush2.xpose.msra.mxu0 0.0
    %5778 = vmatprep.subr.mxu0 0.0
    %5779 = vmatpush2.xpose.msra.mxu0 0.0
    %5780 = vmatprep.subr.mxu0 0.0
    %5781 = vmatpush2.xpose.msra.mxu0 0.0
    %5782 = vmatprep.subr.mxu0 0.0
    %5783 = vmatpush2.xpose.msra.mxu0 0.0
    %5784 = vmatprep.subr.mxu0 0.0
    %5785 = vmatpush2.xpose.msra.mxu0 0.0
    %5786 = vmatprep.subr.mxu0 0.0
    %5787 = vmatpush2.xpose.msra.mxu0 0.0
    %5788 = vmatprep.subr.mxu0 0.0
    %5789 = vmatpush2.xpose.msra.mxu0 0.0
    %5790 = vmatprep.subr.mxu0 0.0
    %5791 = vmatpush2.xpose.msra.mxu0 0.0
    %5792 = vmatprep.subr.mxu0 0.0
    %5793 = vmatpush2.xpose.msra.mxu0 0.0
    %5794 = vmatprep.subr.mxu0 0.0
    %5795 = vmatpush2.xpose.msra.mxu0 0.0
    %5796 = vmatprep.subr.mxu0 0.0
    %5797 = vmatpush2.xpose.msra.mxu0 0.0
    %5798 = vmatprep.subr.mxu0 0.0
    %5799 = vmatpush2.xpose.msra.mxu0 0.0
    %5800 = vmatprep.subr.mxu0 0.0
    %5801 = vmatpush2.xpose.msra.mxu0 0.0
    %5802 = vmatprep.subr.mxu0 0.0
    %5803 = vmatpush2.xpose.msra.mxu0 0.0
    %5804 = vmatprep.mubr.f32.mxu0 0.0
    %5805 = vmatmul.mubr.f32.gmra.mxu0 %v5735
    %v5806 = vpop.f32.mrf.mxu0
    %v5807 = vadd.f32 %v342, %v5806
    %v5808 = vpop.f32.mrf.mxu0
    %5809 = vdwg.mxu0
    %v5810 = vsel %vm3768, %v5732, -inf
    %5811 = vmax.xlane.f32.xlu0 %v5810
    %v5812 = vpop.xlane.xlu0 %5811
    %v5813 = vsel %vm3768, %v5807, -inf
    %5814 = vmax.xlane.f32.xlu0 %v5813
    %v5815 = vpop.xlane.xlu0 %5814
    %v5816 = vsub.f32 %v5732, %v5812
    %v5817 = vsub.f32 %v5807, %v5815
    %v5818 = vmul.f32 %v5816, 1.442695
    %v5819 = vpow.pop %v5818
    %v5820 = vmul.f32 %v5817, 1.442695
    %v5821 = vpow.pop %v5820
    %v5822 = vsel %vm3768, %v5819, 0.0
    %5823 = vadd.xlane.f32.xlu0 %v5822
    %v5824 = vpop.xlane.xlu0 %5823
    %v5825 = vsel %vm3768, %v5821, 0.0
    %5826 = vadd.xlane.f32.xlu0 %v5825
    %v5827 = vpop.xlane.xlu0 %5826
    %v5828 = vrcp.pop %v5824
    %v5829 = vrcp.pop %v5827
    %v5830 = vmul.f32 %v5819, %v5828
    %v5831 = vmul.f32 %v5821, %v5829
    %v5833 = vsel %vm597, %v5830, 0
    %5835 = vmatprep.subr.mxu0 0.0
    %5836 = vmatpush1.msra.mxu0 0.0
    %5837 = vmatprep.subr.mxu0 0.0
    %5838 = vmatpush1.msra.mxu0 0.0
    %5839 = vmatprep.subr.mxu0 0.0
    %5840 = vmatpush1.msra.mxu0 0.0
    %5841 = vmatprep.subr.mxu0 0.0
    %5842 = vmatpush1.msra.mxu0 0.0
    %5843 = vmatprep.subr.mxu0 0.0
    %5844 = vmatpush1.msra.mxu0 0.0
    %5845 = vmatprep.subr.mxu0 0.0
    %5846 = vmatpush1.msra.mxu0 0.0
    %5847 = vmatprep.subr.mxu0 0.0
    %5848 = vmatpush1.msra.mxu0 0.0
    %5849 = vmatprep.subr.mxu0 0.0
    %5850 = vmatpush1.msra.mxu0 0.0
    %5851 = vmatprep.subr.mxu0 0.0
    %5852 = vmatpush1.msra.mxu0 0.0
    %5853 = vmatprep.subr.mxu0 0.0
    %5854 = vmatpush1.msra.mxu0 0.0
    %5855 = vmatprep.subr.mxu0 0.0
    %5856 = vmatpush1.msra.mxu0 0.0
    %5857 = vmatprep.subr.mxu0 0.0
    %5858 = vmatpush1.msra.mxu0 0.0
    %5859 = vmatprep.subr.mxu0 0.0
    %5860 = vmatpush1.msra.mxu0 0.0
    %5861 = vmatprep.subr.mxu0 0.0
    %5862 = vmatpush1.msra.mxu0 0.0
    %5863 = vmatprep.subr.mxu0 0.0
    %5864 = vmatpush1.msra.mxu0 0.0
    %5865 = vmatprep.subr.mxu0 0.0
    %5866 = vmatpush1.msra.mxu0 %v5652
    %5867 = vmatprep.subr.mxu0 0.0
    %5868 = vmatpush2.msra.mxu0 0.0
    %5869 = vmatprep.subr.mxu0 0.0
    %5870 = vmatpush2.msra.mxu0 0.0
    %5871 = vmatprep.subr.mxu0 0.0
    %5872 = vmatpush2.msra.mxu0 0.0
    %5873 = vmatprep.subr.mxu0 0.0
    %5874 = vmatpush2.msra.mxu0 0.0
    %5875 = vmatprep.subr.mxu0 0.0
    %5876 = vmatpush2.msra.mxu0 0.0
    %5877 = vmatprep.subr.mxu0 0.0
    %5878 = vmatpush2.msra.mxu0 0.0
    %5879 = vmatprep.subr.mxu0 0.0
    %5880 = vmatpush2.msra.mxu0 0.0
    %5881 = vmatprep.subr.mxu0 0.0
    %5882 = vmatpush2.msra.mxu0 0.0
    %5883 = vmatprep.subr.mxu0 0.0
    %5884 = vmatpush2.msra.mxu0 0.0
    %5885 = vmatprep.subr.mxu0 0.0
    %5886 = vmatpush2.msra.mxu0 0.0
    %5887 = vmatprep.subr.mxu0 0.0
    %5888 = vmatpush2.msra.mxu0 0.0
    %5889 = vmatprep.subr.mxu0 0.0
    %5890 = vmatpush2.msra.mxu0 0.0
    %5891 = vmatprep.subr.mxu0 0.0
    %5892 = vmatpush2.msra.mxu0 0.0
    %5893 = vmatprep.subr.mxu0 0.0
    %5894 = vmatpush2.msra.mxu0 0.0
    %5895 = vmatprep.subr.mxu0 0.0
    %5896 = vmatpush2.msra.mxu0 0.0
    %5897 = vmatprep.subr.mxu0 0.0
    %5898 = vmatpush2.msra.mxu0 0.0
    %5899 = vmatprep.mubr.f32.mxu0 0.0
    %5900 = vmatmul.mubr.f32.gmra.mxu0 %v5833
    %v5901 = vpop.f32.mrf.mxu0
    %v5902 = vadd.f32 0.0, %v5901
    %v5903 = vpop.f32.mrf.mxu0
    %5904 = vdwg.mxu0
    %v5906 = vsel %vm597, %v5831, 0
    %5908 = vmatprep.subr.mxu0 0.0
    %5909 = vmatpush1.msra.mxu0 0.0
    %5910 = vmatprep.subr.mxu0 0.0
    %5911 = vmatpush1.msra.mxu0 0.0
    %5912 = vmatprep.subr.mxu0 0.0
    %5913 = vmatpush1.msra.mxu0 0.0
    %5914 = vmatprep.subr.mxu0 0.0
    %5915 = vmatpush1.msra.mxu0 0.0
    %5916 = vmatprep.subr.mxu0 0.0
    %5917 = vmatpush1.msra.mxu0 0.0
    %5918 = vmatprep.subr.mxu0 0.0
    %5919 = vmatpush1.msra.mxu0 0.0
    %5920 = vmatprep.subr.mxu0 0.0
    %5921 = vmatpush1.msra.mxu0 0.0
    %5922 = vmatprep.subr.mxu0 0.0
    %5923 = vmatpush1.msra.mxu0 0.0
    %5924 = vmatprep.subr.mxu0 0.0
    %5925 = vmatpush1.msra.mxu0 0.0
    %5926 = vmatprep.subr.mxu0 0.0
    %5927 = vmatpush1.msra.mxu0 0.0
    %5928 = vmatprep.subr.mxu0 0.0
    %5929 = vmatpush1.msra.mxu0 0.0
    %5930 = vmatprep.subr.mxu0 0.0
    %5931 = vmatpush1.msra.mxu0 0.0
    %5932 = vmatprep.subr.mxu0 0.0
    %5933 = vmatpush1.msra.mxu0 0.0
    %5934 = vmatprep.subr.mxu0 0.0
    %5935 = vmatpush1.msra.mxu0 0.0
    %5936 = vmatprep.subr.mxu0 0.0
    %5937 = vmatpush1.msra.mxu0 0.0
    %5938 = vmatprep.subr.mxu0 0.0
    %5939 = vmatpush1.msra.mxu0 %v5657
    %5940 = vmatprep.subr.mxu0 0.0
    %5941 = vmatpush2.msra.mxu0 0.0
    %5942 = vmatprep.subr.mxu0 0.0
    %5943 = vmatpush2.msra.mxu0 0.0
    %5944 = vmatprep.subr.mxu0 0.0
    %5945 = vmatpush2.msra.mxu0 0.0
    %5946 = vmatprep.subr.mxu0 0.0
    %5947 = vmatpush2.msra.mxu0 0.0
    %5948 = vmatprep.subr.mxu0 0.0
    %5949 = vmatpush2.msra.mxu0 0.0
    %5950 = vmatprep.subr.mxu0 0.0
    %5951 = vmatpush2.msra.mxu0 0.0
    %5952 = vmatprep.subr.mxu0 0.0
    %5953 = vmatpush2.msra.mxu0 0.0
    %5954 = vmatprep.subr.mxu0 0.0
    %5955 = vmatpush2.msra.mxu0 0.0
    %5956 = vmatprep.subr.mxu0 0.0
    %5957 = vmatpush2.msra.mxu0 0.0
    %5958 = vmatprep.subr.mxu0 0.0
    %5959 = vmatpush2.msra.mxu0 0.0
    %5960 = vmatprep.subr.mxu0 0.0
    %5961 = vmatpush2.msra.mxu0 0.0
    %5962 = vmatprep.subr.mxu0 0.0
    %5963 = vmatpush2.msra.mxu0 0.0
    %5964 = vmatprep.subr.mxu0 0.0
    %5965 = vmatpush2.msra.mxu0 0.0
    %5966 = vmatprep.subr.mxu0 0.0
    %5967 = vmatpush2.msra.mxu0 0.0
    %5968 = vmatprep.subr.mxu0 0.0
    %5969 = vmatpush2.msra.mxu0 0.0
    %5970 = vmatprep.subr.mxu0 0.0
    %5971 = vmatpush2.msra.mxu0 0.0
    %5972 = vmatprep.mubr.f32.mxu0 0.0
    %5973 = vmatmul.mubr.f32.gmra.mxu0 %v5906
    %v5974 = vpop.f32.mrf.mxu0
    %v5975 = vadd.f32 0.0, %v5974
    %v5976 = vpop.f32.mrf.mxu0
    %5977 = vdwg.mxu0
    %s5978 = scalar_lea.vmem %s6, 56
    %v5979 = vld [vmem:[%s5978] sm:$0xff]
    %v5982 = vrot.slane %v5975, 7
    %v5983 = vsel %vm3329, %v5982, %v5902
    %v5984 = vsel %vm597, %v5983, 0
    %5986 = vmatprep.subr.mxu0 0.0
    %5987 = vmatpush1.msra.mxu0 0.0
    %5988 = vmatprep.subr.mxu0 0.0
    %5989 = vmatpush1.msra.mxu0 0.0
    %5990 = vmatprep.subr.mxu0 0.0
    %5991 = vmatpush1.msra.mxu0 0.0
    %5992 = vmatprep.subr.mxu0 0.0
    %5993 = vmatpush1.msra.mxu0 0.0
    %5994 = vmatprep.subr.mxu0 0.0
    %5995 = vmatpush1.msra.mxu0 0.0
    %5996 = vmatprep.subr.mxu0 0.0
    %5997 = vmatpush1.msra.mxu0 0.0
    %5998 = vmatprep.subr.mxu0 0.0
    %5999 = vmatpush1.msra.mxu0 0.0
    %6000 = vmatprep.subr.mxu0 0.0
    %6001 = vmatpush1.msra.mxu0 0.0
    %6002 = vmatprep.subr.mxu0 0.0
    %6003 = vmatpush1.msra.mxu0 0.0
    %6004 = vmatprep.subr.mxu0 0.0
    %6005 = vmatpush1.msra.mxu0 0.0
    %6006 = vmatprep.subr.mxu0 0.0
    %6007 = vmatpush1.msra.mxu0 0.0
    %6008 = vmatprep.subr.mxu0 0.0
    %6009 = vmatpush1.msra.mxu0 0.0
    %6010 = vmatprep.subr.mxu0 0.0
    %6011 = vmatpush1.msra.mxu0 0.0
    %6012 = vmatprep.subr.mxu0 0.0
    %6013 = vmatpush1.msra.mxu0 0.0
    %6014 = vmatprep.subr.mxu0 0.0
    %6015 = vmatpush1.msra.mxu0 0.0
    %6016 = vmatprep.subr.mxu0 0.0
    %6017 = vmatpush1.msra.mxu0 %v5979
    %6018 = vmatprep.subr.mxu0 0.0
    %6019 = vmatpush2.msra.mxu0 0.0
    %6020 = vmatprep.subr.mxu0 0.0
    %6021 = vmatpush2.msra.mxu0 0.0
    %6022 = vmatprep.subr.mxu0 0.0
    %6023 = vmatpush2.msra.mxu0 0.0
    %6024 = vmatprep.subr.mxu0 0.0
    %6025 = vmatpush2.msra.mxu0 0.0
    %6026 = vmatprep.subr.mxu0 0.0
    %6027 = vmatpush2.msra.mxu0 0.0
    %6028 = vmatprep.subr.mxu0 0.0
    %6029 = vmatpush2.msra.mxu0 0.0
    %6030 = vmatprep.subr.mxu0 0.0
    %6031 = vmatpush2.msra.mxu0 0.0
    %6032 = vmatprep.subr.mxu0 0.0
    %6033 = vmatpush2.msra.mxu0 0.0
    %6034 = vmatprep.subr.mxu0 0.0
    %6035 = vmatpush2.msra.mxu0 0.0
    %6036 = vmatprep.subr.mxu0 0.0
    %6037 = vmatpush2.msra.mxu0 0.0
    %6038 = vmatprep.subr.mxu0 0.0
    %6039 = vmatpush2.msra.mxu0 0.0
    %6040 = vmatprep.subr.mxu0 0.0
    %6041 = vmatpush2.msra.mxu0 0.0
    %6042 = vmatprep.subr.mxu0 0.0
    %6043 = vmatpush2.msra.mxu0 0.0
    %6044 = vmatprep.subr.mxu0 0.0
    %6045 = vmatpush2.msra.mxu0 0.0
    %6046 = vmatprep.subr.mxu0 0.0
    %6047 = vmatpush2.msra.mxu0 0.0
    %6048 = vmatprep.subr.mxu0 0.0
    %6049 = vmatpush2.msra.mxu0 0.0
    %6050 = vmatprep.mubr.f32.mxu0 0.0
    %6051 = vmatmul.mubr.f32.gmra.mxu0 %v5984
    %v6052 = vpop.f32.mrf.mxu0
    %v6053 = vadd.f32 0.0, %v6052
    %v6054 = vpop.f32.mrf.mxu0
    %6055 = vdwg.mxu0
    %v6058 = vunpack.c.l.s4 1966171168
    %v6059 = vunpack.c.0.s8 %v6058
    %v6060 = vlaneseq
    %v6061 = vshrl.u32 %v6060, 7
    %v6062 = vsub.s32 %v6059, %v6061
    %v6063 = vrot.slane %v6053, %v6062
    %v6064 = vcombine.high %v6063, %v6063
    %v6066 = vunpack.c.l.s4 1966171168
    %v6067 = vunpack.c.0.s8 %v6066
    %v6068 = vlaneseq
    %v6069 = vshrl.u32 %v6068, 7
    %v6070 = vsub.s32 %v6067, %v6069
    %v6071 = vrot.slane %v6063, %v6070
    %v6073 = vunpack.c.l.s4 1966171168
    %v6074 = vunpack.c.0.s8 %v6073
    %v6075 = vlaneseq
    %v6076 = vshrl.u32 %v6075, 7
    %v6077 = vsub.s32 %v6074, %v6076
    %v6078 = vrot.slane %v6064, %v6077
    %v6081 = vadd.f32 %v5391, %v6071
    %v6082 = vadd.f32 %v5392, %v6078
    %6083 = vrot.lane.b32.xlu0 %v192, 32
    %v6084 = vpop.permute.xlu0 %6083
    %v6086 = vadd.f32 %v6081, %v6084
    %v6087 = vadd.f32 %v6082, %v6084
    %v6088 = vadd.f32 %v3314, %v6086
    %v6089 = vadd.f32 %v3321, %v6087
    %vm6090 = vcmask 253952
    %v6091 = vsel %vm6090, %v6088, 0.0
    %6092 = vadd.xlane.f32.xlu0 %v6091
    %v6093 = vpop.xlane.xlu0 %6092
    %v6094 = vsel %vm6090, %v6089, 0.0
    %6095 = vadd.xlane.f32.xlu0 %v6094
    %v6096 = vpop.xlane.xlu0 %6095
    %v6097 = vmul.f32 %v6093, %v2973
    %v6098 = vmul.f32 %v6096, %v2973
    %v6099 = vsub.f32 %v6088, %v6097
    %v6100 = vsub.f32 %v6089, %v6098
    %v6101 = vmul.f32 %v6099, %v6099
    %v6102 = vmul.f32 %v6100, %v6100
    %v6103 = vsel %vm6090, %v6101, 0.0
    %6104 = vadd.xlane.f32.xlu0 %v6103
    %v6105 = vpop.xlane.xlu0 %6104
    %v6106 = vsel %vm6090, %v6102, 0.0
    %6107 = vadd.xlane.f32.xlu0 %v6106
    %v6108 = vpop.xlane.xlu0 %6107
    %v6109 = vmul.f32 %v6105, %v2973
    %v6110 = vmul.f32 %v6108, %v2973
    %v6111 = vadd.f32 %v6109, 1e-05
    %v6112 = vadd.f32 %v6110, 1e-05
    %v6113 = vrsqrt.pop %v6111
    %v6114 = vrsqrt.pop %v6112
    %v6115 = vmul.f32 %v6099, %v6113
    %v6116 = vmul.f32 %v6100, %v6114
    %v6117 = vrot.slane %v192, 2
    %v6119 = vmul.f32 %v6115, %v6117
    %v6120 = vmul.f32 %v6116, %v6117
    %6121 = vrot.lane.b32.xlu0 %v192, 96
    %v6122 = vpop.permute.xlu0 %6121
    %v6123 = vrot.slane %v6122, 2
    %v6125 = vadd.f32 %v6119, %v6123
    %v6126 = vadd.f32 %v6120, %v6123
    %v6127 = vadd.f32 %v6125, %v301
    %v6128 = vadd.f32 %v6126, %v308
    %v6129 = vsel %vm6090, %v6127, 0.0
    %6130 = vadd.xlane.f32.xlu0 %v6129
    %v6131 = vpop.xlane.xlu0 %6130
    %v6132 = vsel %vm6090, %v6128, 0.0
    %6133 = vadd.xlane.f32.xlu0 %v6132
    %v6134 = vpop.xlane.xlu0 %6133
    %v6135 = vmul.f32 %v6131, %v2973
    %v6136 = vmul.f32 %v6134, %v2973
    %v6137 = vsub.f32 %v6127, %v6135
    %v6138 = vsub.f32 %v6128, %v6136
    %v6139 = vmul.f32 %v6137, %v6137
    %v6140 = vmul.f32 %v6138, %v6138
    %v6141 = vsel %vm6090, %v6139, 0.0
    %6142 = vadd.xlane.f32.xlu0 %v6141
    %v6143 = vpop.xlane.xlu0 %6142
    %v6144 = vsel %vm6090, %v6140, 0.0
    %6145 = vadd.xlane.f32.xlu0 %v6144
    %v6146 = vpop.xlane.xlu0 %6145
    %v6147 = vmul.f32 %v6143, %v2973
    %v6148 = vmul.f32 %v6146, %v2973
    %v6149 = vadd.f32 %v6147, 1e-05
    %v6150 = vadd.f32 %v6148, 1e-05
    %v6151 = vrsqrt.pop %v6149
    %v6152 = vrsqrt.pop %v6150
    %v6153 = vmul.f32 %v6137, %v6151
    %v6154 = vmul.f32 %v6138, %v6152
    %6155 = vrot.lane.b32.xlu0 %v192, 64
    %v6156 = vpop.permute.xlu0 %6155
    %v6157 = vrot.slane %v6156, 2
    %v6159 = vmul.f32 %v6153, %v6157
    %v6160 = vmul.f32 %v6154, %v6157
    %v6161 = vrot.slane %v6084, 2
    %v6163 = vadd.f32 %v6159, %v6161
    %v6164 = vadd.f32 %v6160, %v6161
    %s6165 = scalar_lea.vmem %s7, 32
    %v6166 = vld [vmem:[%s6165] sm:$0xff]
    %v6167 = vld [vmem:[%s6165 + $0x8] sm:$0xff]
    %v6168 = vld [vmem:[%s6165 + $0x10] sm:$0xff]
    %v6169 = vld [vmem:[%s6165 + $0x18] sm:$0xff]
    %v6170 = vrot.slane %v6122, 1
    %v6173 = vrot.slane %v6164, 7
    %v6174 = vsel %vm3329, %v6173, %v6163
    %v6175 = vcombine.low %v6170, %v6170
    %v6177 = vunpack.c.l.s4 1966171168
    %v6178 = vunpack.c.0.s8 %v6177
    %v6179 = vlaneseq
    %v6180 = vshrl.u32 %v6179, 7
    %v6181 = vsub.s32 %v6178, %v6180
    %v6182 = vrot.slane %v6175, %v6181
    %v6184 = vunpack.c.l.s4 1966171168
    %v6185 = vunpack.c.0.s8 %v6184
    %v6186 = vlaneseq
    %v6187 = vshrl.u32 %v6186, 7
    %v6188 = vsub.s32 %v6185, %v6187
    %v6189 = vrot.slane %v6182, %v6188
    %v6191 = vsel %vm95, %v6174, 0
    %6193 = vmatprep.subr.mxu0 0.0
    %6194 = vmatpush1.msra.mxu0 0.0
    %6195 = vmatprep.subr.mxu0 0.0
    %6196 = vmatpush1.msra.mxu0 0.0
    %6197 = vmatprep.subr.mxu0 0.0
    %6198 = vmatpush1.msra.mxu0 0.0
    %6199 = vmatprep.subr.mxu0 0.0
    %6200 = vmatpush1.msra.mxu0 0.0
    %6201 = vmatprep.subr.mxu0 0.0
    %6202 = vmatpush1.msra.mxu0 0.0
    %6203 = vmatprep.subr.mxu0 0.0
    %6204 = vmatpush1.msra.mxu0 0.0
    %6205 = vmatprep.subr.mxu0 0.0
    %6206 = vmatpush1.msra.mxu0 0.0
    %6207 = vmatprep.subr.mxu0 0.0
    %6208 = vmatpush1.msra.mxu0 0.0
    %6209 = vmatprep.subr.mxu0 0.0
    %6210 = vmatpush1.msra.mxu0 0.0
    %6211 = vmatprep.subr.mxu0 0.0
    %6212 = vmatpush1.msra.mxu0 0.0
    %6213 = vmatprep.subr.mxu0 0.0
    %6214 = vmatpush1.msra.mxu0 0.0
    %6215 = vmatprep.subr.mxu0 0.0
    %6216 = vmatpush1.msra.mxu0 0.0
    %6217 = vmatprep.subr.mxu0 0.0
    %6218 = vmatpush1.msra.mxu0 %v6169
    %6219 = vmatprep.subr.mxu0 0.0
    %6220 = vmatpush1.msra.mxu0 %v6168
    %6221 = vmatprep.subr.mxu0 0.0
    %6222 = vmatpush1.msra.mxu0 %v6167
    %6223 = vmatprep.subr.mxu0 0.0
    %6224 = vmatpush1.msra.mxu0 %v6166
    %6225 = vmatprep.subr.mxu0 0.0
    %6226 = vmatpush2.msra.mxu0 0.0
    %6227 = vmatprep.subr.mxu0 0.0
    %6228 = vmatpush2.msra.mxu0 0.0
    %6229 = vmatprep.subr.mxu0 0.0
    %6230 = vmatpush2.msra.mxu0 0.0
    %6231 = vmatprep.subr.mxu0 0.0
    %6232 = vmatpush2.msra.mxu0 0.0
    %6233 = vmatprep.subr.mxu0 0.0
    %6234 = vmatpush2.msra.mxu0 0.0
    %6235 = vmatprep.subr.mxu0 0.0
    %6236 = vmatpush2.msra.mxu0 0.0
    %6237 = vmatprep.subr.mxu0 0.0
    %6238 = vmatpush2.msra.mxu0 0.0
    %6239 = vmatprep.subr.mxu0 0.0
    %6240 = vmatpush2.msra.mxu0 0.0
    %6241 = vmatprep.subr.mxu0 0.0
    %6242 = vmatpush2.msra.mxu0 0.0
    %6243 = vmatprep.subr.mxu0 0.0
    %6244 = vmatpush2.msra.mxu0 0.0
    %6245 = vmatprep.subr.mxu0 0.0
    %6246 = vmatpush2.msra.mxu0 0.0
    %6247 = vmatprep.subr.mxu0 0.0
    %6248 = vmatpush2.msra.mxu0 0.0
    %6249 = vmatprep.subr.mxu0 0.0
    %6250 = vmatpush2.msra.mxu0 0.0
    %6251 = vmatprep.subr.mxu0 0.0
    %6252 = vmatpush2.msra.mxu0 0.0
    %6253 = vmatprep.subr.mxu0 0.0
    %6254 = vmatpush2.msra.mxu0 0.0
    %6255 = vmatprep.subr.mxu0 0.0
    %6256 = vmatpush2.msra.mxu0 0.0
    %6257 = vmatprep.mubr.f32.mxu0 0.0
    %6258 = vmatmul.mubr.f32.gmra.mxu0 %v6191
    %v6259 = vpop.f32.mrf.mxu0
    %v6260 = vadd.f32 %v6189, %v6259
    %v6261 = vpop.f32.mrf.mxu0
    %6262 = vdwg.mxu0
    %v6265 = vunpack.c.l.s4 1966171168
    %v6266 = vunpack.c.0.s8 %v6265
    %v6267 = vlaneseq
    %v6268 = vshrl.u32 %v6267, 7
    %v6269 = vsub.s32 %v6266, %v6268
    %v6270 = vrot.slane %v6260, %v6269
    %v6271 = vcombine.high %v6270, %v6270
    %v6273 = vunpack.c.l.s4 1966171168
    %v6274 = vunpack.c.0.s8 %v6273
    %v6275 = vlaneseq
    %v6276 = vshrl.u32 %v6275, 7
    %v6277 = vsub.s32 %v6274, %v6276
    %v6278 = vrot.slane %v6270, %v6277
    %v6280 = vunpack.c.l.s4 1966171168
    %v6281 = vunpack.c.0.s8 %v6280
    %v6282 = vlaneseq
    %v6283 = vshrl.u32 %v6282, 7
    %v6284 = vsub.s32 %v6281, %v6283
    %v6285 = vrot.slane %v6271, %v6284
    %v6288 = vmax.f32 %v6278, 0.0
    %v6289 = vmax.f32 %v6285, 0.0
    %s6290 = scalar_lea.vmem %s8, 64
    %v6291 = vld [vmem:[%s6290] sm:$0xff]
    %v6292 = vld [vmem:[%s6290 + $0x8] sm:$0xff]
    %v6293 = vld [vmem:[%s6290 + $0x10] sm:$0xff]
    %v6294 = vld [vmem:[%s6290 + $0x18] sm:$0xff]
    %v6295 = vld [vmem:[%s6290 + $0x20] sm:$0xff]
    %v6296 = vld [vmem:[%s6290 + $0x28] sm:$0xff]
    %v6297 = vld [vmem:[%s6290 + $0x30] sm:$0xff]
    %v6298 = vld [vmem:[%s6290 + $0x38] sm:$0xff]
    %v6299 = vrot.slane %v6084, 1
    %v6302 = vcombine.low %v6288, %v6289
    %v6304 = vunpack.c.l.s4 1966171168
    %v6305 = vunpack.c.0.s8 %v6304
    %v6306 = vlaneseq
    %v6307 = vshrl.u32 %v6306, 7
    %v6308 = vsub.s32 %v6305, %v6307
    %v6309 = vrot.slane %v6302, %v6308
    %v6311 = vunpack.c.l.s4 1966171168
    %v6312 = vunpack.c.0.s8 %v6311
    %v6313 = vlaneseq
    %v6314 = vshrl.u32 %v6313, 7
    %v6315 = vsub.s32 %v6312, %v6314
    %v6316 = vrot.slane %v6309, %v6315
    %v6317 = vcombine.low %v6299, %v6299
    %v6319 = vunpack.c.l.s4 1966171168
    %v6320 = vunpack.c.0.s8 %v6319
    %v6321 = vlaneseq
    %v6322 = vshrl.u32 %v6321, 7
    %v6323 = vsub.s32 %v6320, %v6322
    %v6324 = vrot.slane %v6317, %v6323
    %v6326 = vunpack.c.l.s4 1966171168
    %v6327 = vunpack.c.0.s8 %v6326
    %v6328 = vlaneseq
    %v6329 = vshrl.u32 %v6328, 7
    %v6330 = vsub.s32 %v6327, %v6329
    %v6331 = vrot.slane %v6324, %v6330
    %v6333 = vsel %vm3177, %v6316, 0
    %6335 = vmatprep.subr.mxu0 0.0
    %6336 = vmatpush1.msra.mxu0 0.0
    %6337 = vmatprep.subr.mxu0 0.0
    %6338 = vmatpush1.msra.mxu0 0.0
    %6339 = vmatprep.subr.mxu0 0.0
    %6340 = vmatpush1.msra.mxu0 0.0
    %6341 = vmatprep.subr.mxu0 0.0
    %6342 = vmatpush1.msra.mxu0 0.0
    %6343 = vmatprep.subr.mxu0 0.0
    %6344 = vmatpush1.msra.mxu0 0.0
    %6345 = vmatprep.subr.mxu0 0.0
    %6346 = vmatpush1.msra.mxu0 0.0
    %6347 = vmatprep.subr.mxu0 0.0
    %6348 = vmatpush1.msra.mxu0 0.0
    %6349 = vmatprep.subr.mxu0 0.0
    %6350 = vmatpush1.msra.mxu0 0.0
    %6351 = vmatprep.subr.mxu0 0.0
    %6352 = vmatpush1.msra.mxu0 %v6298
    %6353 = vmatprep.subr.mxu0 0.0
    %6354 = vmatpush1.msra.mxu0 %v6297
    %6355 = vmatprep.subr.mxu0 0.0
    %6356 = vmatpush1.msra.mxu0 %v6296
    %6357 = vmatprep.subr.mxu0 0.0
    %6358 = vmatpush1.msra.mxu0 %v6295
    %6359 = vmatprep.subr.mxu0 0.0
    %6360 = vmatpush1.msra.mxu0 %v6294
    %6361 = vmatprep.subr.mxu0 0.0
    %6362 = vmatpush1.msra.mxu0 %v6293
    %6363 = vmatprep.subr.mxu0 0.0
    %6364 = vmatpush1.msra.mxu0 %v6292
    %6365 = vmatprep.subr.mxu0 0.0
    %6366 = vmatpush1.msra.mxu0 %v6291
    %6367 = vmatprep.subr.mxu0 0.0
    %6368 = vmatpush2.msra.mxu0 0.0
    %6369 = vmatprep.subr.mxu0 0.0
    %6370 = vmatpush2.msra.mxu0 0.0
    %6371 = vmatprep.subr.mxu0 0.0
    %6372 = vmatpush2.msra.mxu0 0.0
    %6373 = vmatprep.subr.mxu0 0.0
    %6374 = vmatpush2.msra.mxu0 0.0
    %6375 = vmatprep.subr.mxu0 0.0
    %6376 = vmatpush2.msra.mxu0 0.0
    %6377 = vmatprep.subr.mxu0 0.0
    %6378 = vmatpush2.msra.mxu0 0.0
    %6379 = vmatprep.subr.mxu0 0.0
    %6380 = vmatpush2.msra.mxu0 0.0
    %6381 = vmatprep.subr.mxu0 0.0
    %6382 = vmatpush2.msra.mxu0 0.0
    %6383 = vmatprep.subr.mxu0 0.0
    %6384 = vmatpush2.msra.mxu0 0.0
    %6385 = vmatprep.subr.mxu0 0.0
    %6386 = vmatpush2.msra.mxu0 0.0
    %6387 = vmatprep.subr.mxu0 0.0
    %6388 = vmatpush2.msra.mxu0 0.0
    %6389 = vmatprep.subr.mxu0 0.0
    %6390 = vmatpush2.msra.mxu0 0.0
    %6391 = vmatprep.subr.mxu0 0.0
    %6392 = vmatpush2.msra.mxu0 0.0
    %6393 = vmatprep.subr.mxu0 0.0
    %6394 = vmatpush2.msra.mxu0 0.0
    %6395 = vmatprep.subr.mxu0 0.0
    %6396 = vmatpush2.msra.mxu0 0.0
    %6397 = vmatprep.subr.mxu0 0.0
    %6398 = vmatpush2.msra.mxu0 0.0
    %6399 = vmatprep.mubr.f32.mxu0 0.0
    %6400 = vmatmul.mubr.f32.gmra.mxu0 %v6333
    %v6401 = vpop.f32.mrf.mxu0
    %v6402 = vadd.f32 %v6331, %v6401
    %v6403 = vpop.f32.mrf.mxu0
    %6404 = vdwg.mxu0
    %v6407 = vunpack.c.l.s4 1966171168
    %v6408 = vunpack.c.0.s8 %v6407
    %v6409 = vlaneseq
    %v6410 = vshrl.u32 %v6409, 7
    %v6411 = vsub.s32 %v6408, %v6410
    %v6412 = vrot.slane %v6402, %v6411
    %v6413 = vcombine.high %v6412, %v6412
    %v6415 = vunpack.c.l.s4 1966171168
    %v6416 = vunpack.c.0.s8 %v6415
    %v6417 = vlaneseq
    %v6418 = vshrl.u32 %v6417, 7
    %v6419 = vsub.s32 %v6416, %v6418
    %v6420 = vrot.slane %v6412, %v6419
    %v6422 = vunpack.c.l.s4 1966171168
    %v6423 = vunpack.c.0.s8 %v6422
    %v6424 = vlaneseq
    %v6425 = vshrl.u32 %v6424, 7
    %v6426 = vsub.s32 %v6423, %v6425
    %v6427 = vrot.slane %v6413, %v6426
    %v6430 = vadd.f32 %v6163, %v6420
    %v6431 = vadd.f32 %v6164, %v6427
    %v6432 = vsel %vm6090, %v6430, 0.0
    %6433 = vadd.xlane.f32.xlu0 %v6432
    %v6434 = vpop.xlane.xlu0 %6433
    %v6435 = vsel %vm6090, %v6431, 0.0
    %6436 = vadd.xlane.f32.xlu0 %v6435
    %v6437 = vpop.xlane.xlu0 %6436
    %v6438 = vmul.f32 %v6434, %v2973
    %v6439 = vmul.f32 %v6437, %v2973
    %v6440 = vsub.f32 %v6430, %v6438
    %v6441 = vsub.f32 %v6431, %v6439
    %v6442 = vmul.f32 %v6440, %v6440
    %v6443 = vmul.f32 %v6441, %v6441
    %v6444 = vsel %vm6090, %v6442, 0.0
    %6445 = vadd.xlane.f32.xlu0 %v6444
    %v6446 = vpop.xlane.xlu0 %6445
    %v6447 = vsel %vm6090, %v6443, 0.0
    %6448 = vadd.xlane.f32.xlu0 %v6447
    %v6449 = vpop.xlane.xlu0 %6448
    %v6450 = vmul.f32 %v6446, %v2973
    %v6451 = vmul.f32 %v6449, %v2973
    %v6452 = vadd.f32 %v6450, 1e-05
    %v6453 = vadd.f32 %v6451, 1e-05
    %v6454 = vrsqrt.pop %v6452
    %v6455 = vrsqrt.pop %v6453
    %v6456 = vmul.f32 %v6440, %v6454
    %v6457 = vmul.f32 %v6441, %v6455
    %v6458 = vrot.slane %v192, 3
    %v6460 = vmul.f32 %v6456, %v6458
    %v6461 = vmul.f32 %v6457, %v6458
    %v6462 = vrot.slane %v6122, 3
    %v6464 = vadd.f32 %v6460, %v6462
    %v6465 = vadd.f32 %v6461, %v6462
    %v6468 = vrot.slane %v6465, 7
    %v6469 = vsel %vm3329, %v6468, %v6464
    %v6471 = vcombine.low %v54, %v54
    %v6473 = vunpack.c.l.s4 1966171168
    %v6474 = vunpack.c.0.s8 %v6473
    %v6475 = vlaneseq
    %v6476 = vshrl.u32 %v6475, 7
    %v6477 = vsub.s32 %v6474, %v6476
    %v6478 = vrot.slane %v6471, %v6477
    %v6480 = vunpack.c.l.s4 1966171168
    %v6481 = vunpack.c.0.s8 %v6480
    %v6482 = vlaneseq
    %v6483 = vshrl.u32 %v6482, 7
    %v6484 = vsub.s32 %v6481, %v6483
    %v6485 = vrot.slane %v6478, %v6484
    %v6487 = vsel %vm95, %v6469, 0
    %6489 = vmatprep.subr.mxu0 0.0
    %6490 = vmatpush1.msra.mxu0 0.0
    %6491 = vmatprep.subr.mxu0 0.0
    %6492 = vmatpush1.msra.mxu0 0.0
    %6493 = vmatprep.subr.mxu0 0.0
    %6494 = vmatpush1.msra.mxu0 0.0
    %6495 = vmatprep.subr.mxu0 0.0
    %6496 = vmatpush1.msra.mxu0 0.0
    %6497 = vmatprep.subr.mxu0 0.0
    %6498 = vmatpush1.msra.mxu0 0.0
    %6499 = vmatprep.subr.mxu0 0.0
    %6500 = vmatpush1.msra.mxu0 0.0
    %6501 = vmatprep.subr.mxu0 0.0
    %6502 = vmatpush1.msra.mxu0 0.0
    %6503 = vmatprep.subr.mxu0 0.0
    %6504 = vmatpush1.msra.mxu0 0.0
    %6505 = vmatprep.subr.mxu0 0.0
    %6506 = vmatpush1.msra.mxu0 0.0
    %6507 = vmatprep.subr.mxu0 0.0
    %6508 = vmatpush1.msra.mxu0 0.0
    %6509 = vmatprep.subr.mxu0 0.0
    %6510 = vmatpush1.msra.mxu0 0.0
    %6511 = vmatprep.subr.mxu0 0.0
    %6512 = vmatpush1.msra.mxu0 0.0
    %6513 = vmatprep.subr.mxu0 0.0
    %6514 = vmatpush1.msra.mxu0 %v53
    %6515 = vmatprep.subr.mxu0 0.0
    %6516 = vmatpush1.msra.mxu0 %v52
    %6517 = vmatprep.subr.mxu0 0.0
    %6518 = vmatpush1.msra.mxu0 %v51
    %6519 = vmatprep.subr.mxu0 0.0
    %6520 = vmatpush1.msra.mxu0 %v50
    %6521 = vmatprep.subr.mxu0 0.0
    %6522 = vmatpush2.msra.mxu0 0.0
    %6523 = vmatprep.subr.mxu0 0.0
    %6524 = vmatpush2.msra.mxu0 0.0
    %6525 = vmatprep.subr.mxu0 0.0
    %6526 = vmatpush2.msra.mxu0 0.0
    %6527 = vmatprep.subr.mxu0 0.0
    %6528 = vmatpush2.msra.mxu0 0.0
    %6529 = vmatprep.subr.mxu0 0.0
    %6530 = vmatpush2.msra.mxu0 0.0
    %6531 = vmatprep.subr.mxu0 0.0
    %6532 = vmatpush2.msra.mxu0 0.0
    %6533 = vmatprep.subr.mxu0 0.0
    %6534 = vmatpush2.msra.mxu0 0.0
    %6535 = vmatprep.subr.mxu0 0.0
    %6536 = vmatpush2.msra.mxu0 0.0
    %6537 = vmatprep.subr.mxu0 0.0
    %6538 = vmatpush2.msra.mxu0 0.0
    %6539 = vmatprep.subr.mxu0 0.0
    %6540 = vmatpush2.msra.mxu0 0.0
    %6541 = vmatprep.subr.mxu0 0.0
    %6542 = vmatpush2.msra.mxu0 0.0
    %6543 = vmatprep.subr.mxu0 0.0
    %6544 = vmatpush2.msra.mxu0 0.0
    %6545 = vmatprep.subr.mxu0 0.0
    %6546 = vmatpush2.msra.mxu0 0.0
    %6547 = vmatprep.subr.mxu0 0.0
    %6548 = vmatpush2.msra.mxu0 0.0
    %6549 = vmatprep.subr.mxu0 0.0
    %6550 = vmatpush2.msra.mxu0 0.0
    %6551 = vmatprep.subr.mxu0 0.0
    %6552 = vmatpush2.msra.mxu0 0.0
    %6553 = vmatprep.mubr.f32.mxu0 0.0
    %6554 = vmatmul.mubr.f32.gmra.mxu0 %v6487
    %v6555 = vpop.f32.mrf.mxu0
    %v6556 = vadd.f32 %v6485, %v6555
    %v6557 = vpop.f32.mrf.mxu0
    %6558 = vdwg.mxu0
    %v6561 = vunpack.c.l.s4 1966171168
    %v6562 = vunpack.c.0.s8 %v6561
    %v6563 = vlaneseq
    %v6564 = vshrl.u32 %v6563, 7
    %v6565 = vsub.s32 %v6562, %v6564
    %v6566 = vrot.slane %v6556, %v6565
    %v6567 = vcombine.high %v6566, %v6566
    %v6569 = vunpack.c.l.s4 1966171168
    %v6570 = vunpack.c.0.s8 %v6569
    %v6571 = vlaneseq
    %v6572 = vshrl.u32 %v6571, 7
    %v6573 = vsub.s32 %v6570, %v6572
    %v6574 = vrot.slane %v6566, %v6573
    %v6576 = vunpack.c.l.s4 1966171168
    %v6577 = vunpack.c.0.s8 %v6576
    %v6578 = vlaneseq
    %v6579 = vshrl.u32 %v6578, 7
    %v6580 = vsub.s32 %v6577, %v6579
    %v6581 = vrot.slane %v6567, %v6580
    %vm6584 = vcmp.eq.s32.totalorder %v3304, 1
    %v6585 = vlaneseq
    %v6586 = vshrl.u32 %v6585, 7
    %v6587 = vsub.s32 0, %v6586
    %v6588 = vrot.slane %v6574, %v6587
    %v6589 = vlaneseq
    %v6590 = vshrl.u32 %v6589, 7
    %v6591 = vsub.s32 0, %v6590
    %v6592 = vrot.slane %v6581, %v6591
    %v6595 = vsel %vm6584, %v6588, %v338
    %v6596 = vsel %vm6584, %v6592, %v339
    %vm6597 = vcmp.lt.s32.totalorder %v312, 16
    %v6598 = vsel %vm6597, %v6574, -1e+30
    %v6599 = vsel %vm6597, %v6581, -1e+30
    %vm6600 = vcmask 1040384
    %v6601 = vsel %vm6600, %v6598, -inf
    %6602 = vmax.xlane.f32.xlu0 %v6601
    %v6603 = vpop.xlane.xlu0 %6602
    %v6604 = vsel %vm6600, %v6599, -inf
    %6605 = vmax.xlane.f32.xlu0 %v6604
    %v6606 = vpop.xlane.xlu0 %6605
    %vm6607 = vcmp.ge.f32.partialorder %v6598, %v6603
    %vm6608 = vcmp.ge.f32.partialorder %v6599, %v6606
    %v6609 = vsel %vm6607, %v312, 128
    %v6610 = vsel %vm6608, %v312, 128
    %v6611 = vsel %vm6600, %v6609, 2147483647
    %v6612 = vand.u32 %v6611, 65535
    %v6613 = vshra.s32 %v6611, 16
    %v6614 = vcvt.s32.f32 %v6612
    %v6615 = vcvt.s32.f32 %v6613
    %6616 = vmin.xlane.f32.xlu0 %v6615
    %v6617 = vpop.xlane.xlu0 %6616
    %vm6618 = vcmp.eq.f32.partialorder %v6615, %v6617
    %v6619 = vsel %vm6618, %v6614, inf
    %6620 = vmin.xlane.f32.xlu0 %v6619
    %v6621 = vpop.xlane.xlu0 %6620
    %v6622 = vcvt.f32.s32 %v6621
    %v6623 = vcvt.f32.s32 %v6617
    %v6624 = vshll.u32 %v6623, 16
    %v6625 = vadd.s32 %v6624, %v6622
    %v6626 = vsel %vm6600, %v6610, 2147483647
    %v6627 = vand.u32 %v6626, 65535
    %v6628 = vshra.s32 %v6626, 16
    %v6629 = vcvt.s32.f32 %v6627
    %v6630 = vcvt.s32.f32 %v6628
    %6631 = vmin.xlane.f32.xlu0 %v6630
    %v6632 = vpop.xlane.xlu0 %6631
    %vm6633 = vcmp.eq.f32.partialorder %v6630, %v6632
    %v6634 = vsel %vm6633, %v6629, inf
    %6635 = vmin.xlane.f32.xlu0 %v6634
    %v6636 = vpop.xlane.xlu0 %6635
    %v6637 = vcvt.f32.s32 %v6636
    %v6638 = vcvt.f32.s32 %v6632
    %v6639 = vshll.u32 %v6638, 16
    %v6640 = vadd.s32 %v6639, %v6637
    %vm6641 = vcmp.eq.s32.totalorder %v312, %v6625
    %vm6642 = vcmp.eq.s32.totalorder %v312, %v6640
    %v6643 = vsel %vm6641, 1, 0
    %v6644 = vsel %vm6642, 1, 0
    %v6645 = vcvt.s32.f32 %v6643
    %v6646 = vcvt.s32.f32 %v6644
    %v6649 = vrot.slane %v6646, 7
    %v6650 = vsel %vm3329, %v6649, %v6645
    %v6653 = vcombine.low %v46, %v47
    %v6655 = vunpack.c.l.s4 1966171168
    %v6656 = vunpack.c.0.s8 %v6655
    %v6657 = vlaneseq
    %v6658 = vshrl.u32 %v6657, 7
    %v6659 = vsub.s32 %v6656, %v6658
    %v6660 = vrot.slane %v6653, %v6659
    %v6662 = vunpack.c.l.s4 1966171168
    %v6663 = vunpack.c.0.s8 %v6662
    %v6664 = vlaneseq
    %v6665 = vshrl.u32 %v6664, 7
    %v6666 = vsub.s32 %v6663, %v6665
    %v6667 = vrot.slane %v6660, %v6666
    %vm6669 = vcmask 130048
    %v6670 = vsel %vm6669, %v6650, 0
    %6672 = vmatprep.subr.mxu0 0.0
    %6673 = vmatpush1.msra.mxu0 0.0
    %6674 = vmatprep.subr.mxu0 0.0
    %6675 = vmatpush1.msra.mxu0 0.0
    %6676 = vmatprep.subr.mxu0 0.0
    %6677 = vmatpush1.msra.mxu0 0.0
    %6678 = vmatprep.subr.mxu0 0.0
    %6679 = vmatpush1.msra.mxu0 0.0
    %6680 = vmatprep.subr.mxu0 0.0
    %6681 = vmatpush1.msra.mxu0 0.0
    %6682 = vmatprep.subr.mxu0 0.0
    %6683 = vmatpush1.msra.mxu0 0.0
    %6684 = vmatprep.subr.mxu0 0.0
    %6685 = vmatpush1.msra.mxu0 0.0
    %6686 = vmatprep.subr.mxu0 0.0
    %6687 = vmatpush1.msra.mxu0 0.0
    %6688 = vmatprep.subr.mxu0 0.0
    %6689 = vmatpush1.msra.mxu0 0.0
    %6690 = vmatprep.subr.mxu0 0.0
    %6691 = vmatpush1.msra.mxu0 0.0
    %6692 = vmatprep.subr.mxu0 0.0
    %6693 = vmatpush1.msra.mxu0 0.0
    %6694 = vmatprep.subr.mxu0 0.0
    %6695 = vmatpush1.msra.mxu0 0.0
    %6696 = vmatprep.subr.mxu0 0.0
    %6697 = vmatpush1.msra.mxu0 0.0
    %6698 = vmatprep.subr.mxu0 0.0
    %6699 = vmatpush1.msra.mxu0 0.0
    %6700 = vmatprep.subr.mxu0 0.0
    %6701 = vmatpush1.msra.mxu0 %v45
    %6702 = vmatprep.subr.mxu0 0.0
    %6703 = vmatpush1.msra.mxu0 %v44
    %6704 = vmatprep.subr.mxu0 0.0
    %6705 = vmatpush2.msra.mxu0 0.0
    %6706 = vmatprep.subr.mxu0 0.0
    %6707 = vmatpush2.msra.mxu0 0.0
    %6708 = vmatprep.subr.mxu0 0.0
    %6709 = vmatpush2.msra.mxu0 0.0
    %6710 = vmatprep.subr.mxu0 0.0
    %6711 = vmatpush2.msra.mxu0 0.0
    %6712 = vmatprep.subr.mxu0 0.0
    %6713 = vmatpush2.msra.mxu0 0.0
    %6714 = vmatprep.subr.mxu0 0.0
    %6715 = vmatpush2.msra.mxu0 0.0
    %6716 = vmatprep.subr.mxu0 0.0
    %6717 = vmatpush2.msra.mxu0 0.0
    %6718 = vmatprep.subr.mxu0 0.0
    %6719 = vmatpush2.msra.mxu0 0.0
    %6720 = vmatprep.subr.mxu0 0.0
    %6721 = vmatpush2.msra.mxu0 0.0
    %6722 = vmatprep.subr.mxu0 0.0
    %6723 = vmatpush2.msra.mxu0 0.0
    %6724 = vmatprep.subr.mxu0 0.0
    %6725 = vmatpush2.msra.mxu0 0.0
    %6726 = vmatprep.subr.mxu0 0.0
    %6727 = vmatpush2.msra.mxu0 0.0
    %6728 = vmatprep.subr.mxu0 0.0
    %6729 = vmatpush2.msra.mxu0 0.0
    %6730 = vmatprep.subr.mxu0 0.0
    %6731 = vmatpush2.msra.mxu0 0.0
    %6732 = vmatprep.subr.mxu0 0.0
    %6733 = vmatpush2.msra.mxu0 0.0
    %6734 = vmatprep.subr.mxu0 0.0
    %6735 = vmatpush2.msra.mxu0 0.0
    %6736 = vmatprep.mubr.f32.mxu0 0.0
    %6737 = vmatmul.mubr.f32.gmra.mxu0 %v6670
    %v6738 = vpop.f32.mrf.mxu0
    %v6739 = vadd.f32 %v6667, %v6738
    %v6740 = vpop.f32.mrf.mxu0
    %6741 = vdwg.mxu0
    %v6744 = vunpack.c.l.s4 1966171168
    %v6745 = vunpack.c.0.s8 %v6744
    %v6746 = vlaneseq
    %v6747 = vshrl.u32 %v6746, 7
    %v6748 = vsub.s32 %v6745, %v6747
    %v6749 = vrot.slane %v6739, %v6748
    %v6750 = vcombine.high %v6749, %v6749
    %v6752 = vunpack.c.l.s4 1966171168
    %v6753 = vunpack.c.0.s8 %v6752
    %v6754 = vlaneseq
    %v6755 = vshrl.u32 %v6754, 7
    %v6756 = vsub.s32 %v6753, %v6755
    %v6757 = vrot.slane %v6749, %v6756
    %v6759 = vunpack.c.l.s4 1966171168
    %v6760 = vunpack.c.0.s8 %v6759
    %v6761 = vlaneseq
    %v6762 = vshrl.u32 %v6761, 7
    %v6763 = vsub.s32 %v6760, %v6762
    %v6764 = vrot.slane %v6750, %v6763
    %s6765 = sadd.s32 %s331, 1
    %v6766 = vstv %s6765
    %vm6767 = vcmp.eq.s32.totalorder %v314, %v6766
    %v6768 = vsel %vm6767, 1, 0
    %vm6769 = vcmp.eq.s32.totalorder %v6768, 1
    %v6770 = vlaneseq
    %v6771 = vshrl.u32 %v6770, 7
    %v6772 = vsub.s32 0, %v6771
    %v6773 = vrot.slane %v6757, %v6772
    %v6774 = vlaneseq
    %v6775 = vshrl.u32 %v6774, 7
    %v6776 = vsub.s32 0, %v6775
    %v6777 = vrot.slane %v6764, %v6776
    %v6780 = vsel %vm6769, %v6773, %v336
    %v6781 = vsel %vm6769, %v6777, %v337
  $region58: #{_greedy_decode.1} parent=0 // loop_footer
    %s335 = sadd.s32 1, %s331
  $region59: #{_greedy_decode.1} parent=0 // loop_footer_branch
    %330 = sbr.rel target = $region55
  $region60: #{_greedy_decode.1} parent=0 // loop_exit
    _
  %6782 = vst [vmem:[%s13] sm:$0xff] %v338
  %6783 = vst [vmem:[%s13 + $0x8] sm:$0xff] %v339
  // Predicated region
  $region61: #{_greedy_decode.1} parent=0 // pred_check
    _
  $region62: #{_greedy_decode.1} parent=0 // pred_check_branch
    %6785 = sbr.rel (0) target = $region64
  $region63: #{_greedy_decode.1} parent=0 // pred_region
    _
  $region64: #{_greedy_decode.1} parent=0 // pred_fallthru
    _
  // Predicated region
  $region65: #{_greedy_decode.1} parent=0 // pred_check
    _
  $region66: #{_greedy_decode.1} parent=0 // pred_check_branch
    %6787 = sbr.rel (0) target = $region68
  $region67: #{_greedy_decode.1} parent=0 // pred_region
    _
  $region68: #{_greedy_decode.1} parent=0 // pred_fallthru
    _

</llo_original>
